<compile_context>
chip_gen: v6e
topology: v6e:2x2x1
jax: 0.10.0
libtpu: 0.0.40
codegen_flags: <defaults>
</compile_context>

<pallas_src>
import jax
import jax.numpy as jnp
from jax import lax
from jax.experimental import pallas as pl
from jax.experimental.pallas import tpu as pltpu


D_IN, D_H1, D_H2, D_OUT = 128 * 4 * 4, 4096, 1024, 10
NUM_CORES = 2  # v7x TensorCores per chip


# ------------------------ generation-aware configuration ------------------------

def _tpu_generation():
    try:
        d = jax.devices()[0]
        if d.platform != "tpu":
            return "unknown"
        kind = d.device_kind.lower()
    except Exception:
        return "unknown"
    if "v7" in kind or "7x" in kind:
        return "v7x"
    if "v6" in kind:
        return "v6e"
    if "v5" in kind:
        return "v5e" if ("lite" in kind or "v5e" in kind) else "v5p"
    if "v4" in kind:
        return "v4"
    return "old"


def _kernel_config():
    gen = _tpu_generation()
    if gen == "v7x":
        # 2 TCs, ~3.2 TB/s each, 64 MiB VMEM/TC: split weight stream across cores,
        # big tile (2 steps total), raise the 32 MiB default scoped-VMEM limit.
        return dict(tile_n=2048, vmem_limit=40 << 20, dual_core=True)
    if gen in ("v6e", "v5p", "v4"):
        # 128 MiB physical VMEM: bigger tile halves per-grid-step fixed cost.
        return dict(tile_n=2048, vmem_limit=40 << 20, dual_core=False)
    if gen == "v5e":
        # 16 MiB default scoped VMEM: keep the 1024 tile, state the budget explicitly.
        return dict(tile_n=1024, vmem_limit=24 << 20, dual_core=False)
    # Unknown / older chips: conservative layout known to compile cleanly.
    return dict(tile_n=1024, vmem_limit=None, dual_core=False)


def _cost_estimate(B):
    matmul_flops = 2 * B * (D_IN * D_H1 + D_H1 * D_H2 + D_H2 * D_OUT)
    weight_bytes = 2 * (D_IN * D_H1 + D_H1 * D_H2 + D_H2 * D_OUT)  # bf16
    act_bytes = 4 * B * (D_IN + D_OUT)
    return pl.CostEstimate(flops=matmul_flops,
                           transcendentals=B * (D_OUT + 1),
                           bytes_accessed=weight_bytes + act_bytes)


def _compiler_params(dimension_semantics, vmem_limit):
    kwargs = dict(dimension_semantics=dimension_semantics)
    if vmem_limit is not None:
        kwargs["vmem_limit_bytes"] = vmem_limit
    return pltpu.CompilerParams(**kwargs)


# ------------------------------ Pallas kernels ------------------------------

def _mlp_fused_kernel(x_ref, w1_ref, s1_ref, t1_ref,
                      w2_ref, s2_ref, t2_ref,
                      w3_ref, b3_ref, o_ref, acc2_ref):
    """Whole MLP in one call; grid iterates over tiles of the 4096 hidden dim."""
    n = pl.program_id(0)

    @pl.when(n == 0)
    def _():
        acc2_ref[...] = jnp.zeros_like(acc2_ref)

    # Linear1 tile (bf16 MXU, f32 accum) + folded eval-mode BatchNorm1d + ReLU.
    h1 = jnp.dot(x_ref[...], w1_ref[...], preferred_element_type=jnp.float32)
    h1 = jnp.maximum(h1 * s1_ref[...] + t1_ref[...], 0.0)
    # TODO(synk): nn.Dropout() is identity in eval mode; train-mode stochastic
    # dropout and train-mode (batch-statistic) BatchNorm1d are not reproduced.

    # Linear2 partial sum over hidden tiles (h1 never touches HBM).
    acc2_ref[...] += jnp.dot(h1.astype(w2_ref.dtype), w2_ref[...],
                             preferred_element_type=jnp.float32)

    @pl.when(n == pl.num_programs(0) - 1)
    def _():
        h2 = jnp.maximum(acc2_ref[...] * s2_ref[...] + t2_ref[...], 0.0)
        logits = jnp.dot(h2.astype(w3_ref.dtype), w3_ref[...],
                         preferred_element_type=jnp.float32) + b3_ref[...]
        m = jnp.max(logits, axis=-1, keepdims=True)
        z = logits - m
        lse = jnp.log(jnp.sum(jnp.exp(z), axis=-1, keepdims=True))
        o_ref[...] = (z - lse).astype(o_ref.dtype)


def _mlp_partial_kernel(x_ref, w1_ref, s1_ref, t1_ref, w2_ref,
                        part_ref, acc2_ref):
    """Dual-TC variant: each core produces its own partial pre-BN2 accumulator."""
    n = pl.program_id(1)

    @pl.when(n == 0)
    def _():
        acc2_ref[...] = jnp.zeros_like(acc2_ref)

    h1 = jnp.dot(x_ref[...], w1_ref[...], preferred_element_type=jnp.float32)
    h1 = jnp.maximum(h1 * s1_ref[...] + t1_ref[...], 0.0)
    acc2_ref[...] += jnp.dot(h1.astype(w2_ref.dtype), w2_ref[...],
                             preferred_element_type=jnp.float32)

    @pl.when(n == pl.num_programs(1) - 1)
    def _():
        part_ref[...] = acc2_ref[...]


def _tail_kernel(parts_ref, s2_ref, t2_ref, w3_ref, b3_ref, o_ref):
    """Tiny epilogue: sum core partials, BN2+ReLU, 1024x10 matmul, log-softmax."""
    acc = jnp.sum(parts_ref[...], axis=0)
    h2 = jnp.maximum(acc * s2_ref[...] + t2_ref[...], 0.0)
    logits = jnp.dot(h2.astype(w3_ref.dtype), w3_ref[...],
                     preferred_element_type=jnp.float32) + b3_ref[...]
    m = jnp.max(logits, axis=-1, keepdims=True)
    z = logits - m
    lse = jnp.log(jnp.sum(jnp.exp(z), axis=-1, keepdims=True))
    o_ref[...] = (z - lse).astype(o_ref.dtype)


# --------------------------------- wrappers ---------------------------------

def _forward_fused(params, x, *, tile_n, vmem_limit):
    B = x.shape[0]
    x2d = x.reshape(B, D_IN).astype(jnp.bfloat16)  # tiny; weights stay bf16 at rest
    n_tiles = D_H1 // tile_n
    return pl.pallas_call(
        _mlp_fused_kernel,
        out_shape=jax.ShapeDtypeStruct((B, D_OUT), jnp.float32),
        grid_spec=pltpu.PrefetchScalarGridSpec(
            num_scalar_prefetch=0,
            grid=(n_tiles,),
            in_specs=[
                pl.BlockSpec((B, D_IN), lambda n: (0, 0)),         # x (resident)
                pl.BlockSpec((D_IN, tile_n), lambda n: (0, n)),    # W1 column tile
                pl.BlockSpec((1, tile_n), lambda n: (0, n)),       # BN1 scale tile
                pl.BlockSpec((1, tile_n), lambda n: (0, n)),       # BN1 shift tile
                pl.BlockSpec((tile_n, D_H2), lambda n: (n, 0)),    # W2 row tile
                pl.BlockSpec((1, D_H2), lambda n: (0, 0)),         # BN2 scale
                pl.BlockSpec((1, D_H2), lambda n: (0, 0)),         # BN2 shift
                pl.BlockSpec((D_H2, D_OUT), lambda n: (0, 0)),     # W3
                pl.BlockSpec((1, D_OUT), lambda n: (0, 0)),        # b3
            ],
            out_specs=pl.BlockSpec((B, D_OUT), lambda n: (0, 0)),
            scratch_shapes=[pltpu.VMEM((B, D_H2), jnp.float32)],   # layer-2 accumulator
        ),
        compiler_params=_compiler_params(("arbitrary",), vmem_limit),
        cost_estimate=_cost_estimate(B),
    )(x2d, params["w1"], params["s1"], params["t1"],
      params["w2"], params["s2"], params["t2"], params["w3"], params["b3"])


def _forward_dual_core(params, x, *, tile_n, vmem_limit):
    """v7x: split the weight stream across the 2 TensorCores (leading 'parallel'
    axis), each core emits its own partial accumulator; a tiny second pallas_call
    finishes BN2/ReLU/Linear3/log-softmax.  Correct (just not faster) on 1-TC chips."""
    B = x.shape[0]
    x2d = x.reshape(B, D_IN).astype(jnp.bfloat16)
    n_tiles = D_H1 // tile_n
    tiles_per_core = n_tiles // NUM_CORES

    parts = pl.pallas_call(
        _mlp_partial_kernel,
        out_shape=jax.ShapeDtypeStruct((NUM_CORES, B, D_H2), jnp.float32),
        grid_spec=pltpu.PrefetchScalarGridSpec(
            num_scalar_prefetch=0,
            grid=(NUM_CORES, tiles_per_core),
            in_specs=[
                pl.BlockSpec((B, D_IN), lambda c, n: (0, 0)),
                pl.BlockSpec((D_IN, tile_n),
                             lambda c, n: (0, c * tiles_per_core + n)),
                pl.BlockSpec((1, tile_n),
                             lambda c, n: (0, c * tiles_per_core + n)),
                pl.BlockSpec((1, tile_n),
                             lambda c, n: (0, c * tiles_per_core + n)),
                pl.BlockSpec((tile_n, D_H2),
                             lambda c, n: (c * tiles_per_core + n, 0)),
            ],
            # Each core owns a distinct output slot -> no write race.
            out_specs=pl.BlockSpec((None, B, D_H2), lambda c, n: (c, 0, 0)),
            scratch_shapes=[pltpu.VMEM((B, D_H2), jnp.float32)],
        ),
        compiler_params=_compiler_params(("parallel", "arbitrary"), vmem_limit),
        cost_estimate=_cost_estimate(B),
    )(x2d, params["w1"], params["s1"], params["t1"], params["w2"])

    vmem = pltpu.MemorySpace.VMEM
    return pl.pallas_call(
        _tail_kernel,
        out_shape=jax.ShapeDtypeStruct((B, D_OUT), jnp.float32),
        in_specs=[pl.BlockSpec(memory_space=vmem)] * 5,
        out_specs=pl.BlockSpec(memory_space=vmem),
    )(parts, params["s2"], params["t2"], params["w3"], params["b3"])


def label_predictor(params, x):
    cfg = _kernel_config()
    if cfg["dual_core"]:
        return _forward_dual_core(params, x, tile_n=cfg["tile_n"],
                                  vmem_limit=cfg["vmem_limit"])
    return _forward_fused(params, x, tile_n=cfg["tile_n"],
                          vmem_limit=cfg["vmem_limit"])


# -------------------- deterministic params (BN eval folded) -----------------
# Weights are stored in bf16 ONCE here (no per-call convert in the wrapper).
# TODO(synk): optional int8 (v5e/v6e) / fp8 (v7x) weight quantization with
# per-column scales folded into s1/s2 would halve weight bytes again.

def init_params(key):
    ks = iter(jax.random.split(key, 16))

    def linear_bn(fan_in, fan_out):
        w = jax.random.normal(next(ks), (fan_in, fan_out), jnp.float32) / jnp.sqrt(fan_in)
        b = 0.05 * jax.random.normal(next(ks), (fan_out,), jnp.float32)
        gamma = 1.0 + 0.1 * jax.random.normal(next(ks), (fan_out,), jnp.float32)
        beta = 0.1 * jax.random.normal(next(ks), (fan_out,), jnp.float32)
        rmean = 0.1 * jax.random.normal(next(ks), (fan_out,), jnp.float32)
        rvar = jax.random.uniform(next(ks), (fan_out,), jnp.float32, 0.5, 1.5)
        inv = gamma * lax.rsqrt(rvar + 1e-5)
        return (w.astype(jnp.bfloat16),
                inv.reshape(1, fan_out),
                ((b - rmean) * inv + beta).reshape(1, fan_out))

    w1, s1, t1 = linear_bn(D_IN, D_H1)
    w2, s2, t2 = linear_bn(D_H1, D_H2)
    w3 = (jax.random.normal(next(ks), (D_H2, D_OUT), jnp.float32)
          / jnp.sqrt(D_H2)).astype(jnp.bfloat16)
    b3 = (0.05 * jax.random.normal(next(ks), (D_OUT,), jnp.float32)).reshape(1, D_OUT)
    return dict(w1=w1, s1=s1, t1=t1, w2=w2, s2=s2, t2=t2, w3=w3, b3=b3)


# -------------------------------- pure-JAX ref ------------------------------

def _reference(params, x):
    B = x.shape[0]
    x = x.reshape(B, D_IN).astype(jnp.float32)
    w1 = params["w1"].astype(jnp.float32)
    w2 = params["w2"].astype(jnp.float32)
    w3 = params["w3"].astype(jnp.float32)
    h1 = jnp.maximum((x @ w1) * params["s1"] + params["t1"], 0.0)
    h2 = jnp.maximum((h1 @ w2) * params["s2"] + params["t2"], 0.0)
    logits = h2 @ w3 + params["b3"]
    return jax.nn.log_softmax(logits, axis=1)


if __name__ == "__main__":
    key = jax.random.PRNGKey(0)
    kp, kx = jax.random.split(key)
    params = init_params(kp)
    x = jax.random.normal(kx, (2, D_IN), jnp.float32)  # features: x.view(-1, 128*4*4)

    ref = jax.block_until_ready(_reference(params, x))

    # Primary (generation-tuned) path.
    out = jax.block_until_ready(label_predictor(params, x))
    assert out.shape == (2, D_OUT), out.shape
    err = float(jnp.max(jnp.abs(out - ref)))
    assert jnp.allclose(out, ref, rtol=2e-2, atol=2e-2), err

    # Also validate both kernel variants with the conservative (always-fits) tiling,
    # so the v7x dual-core path is exercised even on single-TensorCore chips.
    out_f = jax.block_until_ready(_forward_fused(params, x, tile_n=1024, vmem_limit=None))
    out_d = jax.block_until_ready(_forward_dual_core(params, x, tile_n=1024, vmem_limit=None))
    assert jnp.allclose(out_f, ref, rtol=2e-2, atol=2e-2)
    assert jnp.allclose(out_d, ref, rtol=2e-2, atol=2e-2)

    print("KERNEL_OK")
</pallas_src>

<mosaic_0001>
module attributes {stable_mosaic.version = 11 : i64} {
  func.func @_mlp_fused_kernel(%arg0: i32, %arg1: memref<2x2048xbf16, #tpu.memory_space<vmem>>, %arg2: memref<2048x1024xbf16, #tpu.memory_space<vmem>>, %arg3: memref<1x1024xf32, #tpu.memory_space<vmem>>, %arg4: memref<1x1024xf32, #tpu.memory_space<vmem>>, %arg5: memref<1024x1024xbf16, #tpu.memory_space<vmem>>, %arg6: memref<1x1024xf32, #tpu.memory_space<vmem>>, %arg7: memref<1x1024xf32, #tpu.memory_space<vmem>>, %arg8: memref<1024x10xbf16, #tpu.memory_space<vmem>>, %arg9: memref<1x10xf32, #tpu.memory_space<vmem>>, %arg10: memref<2x10xf32, #tpu.memory_space<vmem>>, %arg11: memref<2x1024xf32, #tpu.memory_space<vmem>>) attributes {dimension_semantics = [#tpu.dimension_semantics<arbitrary>], iteration_bounds = array<i64: 4>, scalar_prefetch = 0 : i64, scratch_operands = 1 : i64, tpu.core_type = #tpu.core_type<tc>, window_params = [{pipeline_mode = #tpu.pipeline_mode<synchronous>, transform_indices = @transform_0, window_bounds = array<i64: 2, 2048>}, {transform_indices = @transform_1, window_bounds = array<i64: 2048, 1024>}, {transform_indices = @transform_2, window_bounds = array<i64: 1, 1024>}, {transform_indices = @transform_3, window_bounds = array<i64: 1, 1024>}, {transform_indices = @transform_4, window_bounds = array<i64: 1024, 1024>}, {pipeline_mode = #tpu.pipeline_mode<synchronous>, transform_indices = @transform_5, window_bounds = array<i64: 1, 1024>}, {pipeline_mode = #tpu.pipeline_mode<synchronous>, transform_indices = @transform_6, window_bounds = array<i64: 1, 1024>}, {pipeline_mode = #tpu.pipeline_mode<synchronous>, transform_indices = @transform_7, window_bounds = array<i64: 1024, 10>}, {pipeline_mode = #tpu.pipeline_mode<synchronous>, transform_indices = @transform_8, window_bounds = array<i64: 1, 10>}, {pipeline_mode = #tpu.pipeline_mode<synchronous>, transform_indices = @transform_9, window_bounds = array<i64: 2, 10>}]} {
    %c0_i32 = arith.constant 0 : i32
    %0 = arith.cmpi eq, %arg0, %c0_i32 : i32
    %1 = arith.extui %0 : i1 to i32
    %c0_i32_0 = arith.constant 0 : i32
    %2 = arith.cmpi ne, %1, %c0_i32_0 : i32
    scf.if %2 {
      %cst_17 = arith.constant 0.000000e+00 : f32
      %23 = vector.broadcast %cst_17 : f32 to vector<2x1024xf32>
      %c0_18 = arith.constant 0 : index
      %c0_19 = arith.constant 0 : index
      %24 = vector.load %arg11[%c0_18, %c0_19] : memref<2x1024xf32, #tpu.memory_space<vmem>>, vector<2x1024xf32>
      tpu.vector_store %arg11[%c0_18, %c0_19], %23 {strides = array<i32>} : memref<2x1024xf32, #tpu.memory_space<vmem>>, vector<2x1024xf32>,
    } else {
    }
    %c0 = arith.constant 0 : index
    %c0_1 = arith.constant 0 : index
    %3 = vector.load %arg1[%c0, %c0_1] : memref<2x2048xbf16, #tpu.memory_space<vmem>>, vector<2x2048xbf16>
    %c0_2 = arith.constant 0 : index
    %c0_3 = arith.constant 0 : index
    %4 = vector.load %arg2[%c0_2, %c0_3] : memref<2048x1024xbf16, #tpu.memory_space<vmem>>, vector<2048x1024xbf16>
    %cst = arith.constant dense<0.000000e+00> : vector<2x1024xf32>
    %5 = tpu.matmul %3, %4, %cst {dimension_numbers = #tpu.dot_dimension_numbers<[1], [0], [0], [1], [0, 0, 1, 1], [], []>} : vector<2x2048xbf16>, vector<2048x1024xbf16>, vector<2x1024xf32> -> vector<2x1024xf32>
    %c0_4 = arith.constant 0 : index
    %c0_5 = arith.constant 0 : index
    %6 = vector.load %arg3[%c0_4, %c0_5] : memref<1x1024xf32, #tpu.memory_space<vmem>>, vector<1x1024xf32>
    %7 = vector.broadcast %6 : vector<1x1024xf32> to vector<2x1024xf32>
    %8 = arith.mulf %5, %7 : vector<2x1024xf32>
    %c0_6 = arith.constant 0 : index
    %c0_7 = arith.constant 0 : index
    %9 = vector.load %arg4[%c0_6, %c0_7] : memref<1x1024xf32, #tpu.memory_space<vmem>>, vector<1x1024xf32>
    %10 = vector.broadcast %9 : vector<1x1024xf32> to vector<2x1024xf32>
    %11 = arith.addf %8, %10 : vector<2x1024xf32>
    %cst_8 = arith.constant 0.000000e+00 : f32
    %12 = vector.broadcast %cst_8 : f32 to vector<2x1024xf32>
    %13 = arith.maximumf %11, %12 : vector<2x1024xf32>
    %c0_9 = arith.constant 0 : index
    %c0_10 = arith.constant 0 : index
    %14 = vector.load %arg11[%c0_9, %c0_10] : memref<2x1024xf32, #tpu.memory_space<vmem>>, vector<2x1024xf32>
    %15 = arith.truncf %13 : vector<2x1024xf32> to vector<2x1024xbf16>
    %c0_11 = arith.constant 0 : index
    %c0_12 = arith.constant 0 : index
    %16 = vector.load %arg5[%c0_11, %c0_12] : memref<1024x1024xbf16, #tpu.memory_space<vmem>>, vector<1024x1024xbf16>
    %cst_13 = arith.constant dense<0.000000e+00> : vector<2x1024xf32>
    %17 = tpu.matmul %15, %16, %cst_13 {dimension_numbers = #tpu.dot_dimension_numbers<[1], [0], [0], [1], [0, 0, 1, 1], [], []>} : vector<2x1024xbf16>, vector<1024x1024xbf16>, vector<2x1024xf32> -> vector<2x1024xf32>
    %18 = arith.addf %14, %17 : vector<2x1024xf32>
    %c0_14 = arith.constant 0 : index
    %c0_15 = arith.constant 0 : index
    %19 = vector.load %arg11[%c0_14, %c0_15] : memref<2x1024xf32, #tpu.memory_space<vmem>>, vector<2x1024xf32>
    tpu.vector_store %arg11[%c0_14, %c0_15], %18 {strides = array<i32>} : memref<2x1024xf32, #tpu.memory_space<vmem>>, vector<2x1024xf32>,
    %c3_i32 = arith.constant 3 : i32
    %20 = arith.cmpi eq, %arg0, %c3_i32 : i32
    %21 = arith.extui %20 : i1 to i32
    %c0_i32_16 = arith.constant 0 : i32
    %22 = arith.cmpi ne, %21, %c0_i32_16 : i32
    scf.if %22 {
      %c0_17 = arith.constant 0 : index
      %c0_18 = arith.constant 0 : index
      %23 = vector.load %arg11[%c0_17, %c0_18] : memref<2x1024xf32, #tpu.memory_space<vmem>>, vector<2x1024xf32>
      %c0_19 = arith.constant 0 : index
      %c0_20 = arith.constant 0 : index
      %24 = vector.load %arg6[%c0_19, %c0_20] : memref<1x1024xf32, #tpu.memory_space<vmem>>, vector<1x1024xf32>
      %25 = vector.broadcast %24 : vector<1x1024xf32> to vector<2x1024xf32>
      %26 = arith.mulf %23, %25 : vector<2x1024xf32>
      %c0_21 = arith.constant 0 : index
      %c0_22 = arith.constant 0 : index
      %27 = vector.load %arg7[%c0_21, %c0_22] : memref<1x1024xf32, #tpu.memory_space<vmem>>, vector<1x1024xf32>
      %28 = vector.broadcast %27 : vector<1x1024xf32> to vector<2x1024xf32>
      %29 = arith.addf %26, %28 : vector<2x1024xf32>
      %cst_23 = arith.constant 0.000000e+00 : f32
      %30 = vector.broadcast %cst_23 : f32 to vector<2x1024xf32>
      %31 = arith.maximumf %29, %30 : vector<2x1024xf32>
      %32 = arith.truncf %31 : vector<2x1024xf32> to vector<2x1024xbf16>
      %c0_24 = arith.constant 0 : index
      %c0_25 = arith.constant 0 : index
      %33 = vector.load %arg8[%c0_24, %c0_25] : memref<1024x10xbf16, #tpu.memory_space<vmem>>, vector<1024x10xbf16>
      %cst_26 = arith.constant dense<0.000000e+00> : vector<2x10xf32>
      %34 = tpu.matmul %32, %33, %cst_26 {dimension_numbers = #tpu.dot_dimension_numbers<[1], [0], [0], [1], [0, 0, 1, 1], [], []>} : vector<2x1024xbf16>, vector<1024x10xbf16>, vector<2x10xf32> -> vector<2x10xf32>
      %c0_27 = arith.constant 0 : index
      %c0_28 = arith.constant 0 : index
      %35 = vector.load %arg9[%c0_27, %c0_28] : memref<1x10xf32, #tpu.memory_space<vmem>>, vector<1x10xf32>
      %36 = vector.broadcast %35 : vector<1x10xf32> to vector<2x10xf32>
      %37 = arith.addf %34, %36 : vector<2x10xf32>
      %cst_29 = arith.constant dense<0xFF800000> : vector<2xf32>
      %38 = vector.multi_reduction <maximumf>, %37, %cst_29 [1] : vector<2x10xf32> to vector<2xf32>
      %39 = vector.shape_cast %38 : vector<2xf32> to vector<2x1xf32>
      %40 = vector.broadcast %39 : vector<2x1xf32> to vector<2x10xf32>
      %41 = arith.subf %37, %40 : vector<2x10xf32>
      %42 = math.exp %41 : vector<2x10xf32>
      %cst_30 = arith.constant dense<0.000000e+00> : vector<2xf32>
      %43 = vector.multi_reduction <add>, %42, %cst_30 [1] : vector<2x10xf32> to vector<2xf32>
      %44 = vector.shape_cast %43 : vector<2xf32> to vector<2x1xf32>
      %45 = math.log %44 : vector<2x1xf32>
      %46 = vector.broadcast %45 : vector<2x1xf32> to vector<2x10xf32>
      %47 = arith.subf %41, %46 : vector<2x10xf32>
      %c0_31 = arith.constant 0 : index
      %c0_32 = arith.constant 0 : index
      %48 = vector.load %arg10[%c0_31, %c0_32] : memref<2x10xf32, #tpu.memory_space<vmem>>, vector<2x10xf32>
      tpu.vector_store %arg10[%c0_31, %c0_32], %47 {strides = array<i32>} : memref<2x10xf32, #tpu.memory_space<vmem>>, vector<2x10xf32>,
    } else {
    }
    return
  }
  func.func @transform_0(%arg0: i32) -> (i32, i32) {
    %c0_i32 = arith.constant 0 : i32
    %c0_i32_0 = arith.constant 0 : i32
    %c0_i32_1 = arith.constant 0 : i32
    return %c0_i32, %c0_i32_0 : i32, i32
  }
  func.func @transform_1(%arg0: i32) -> (i32, i32) {
    %c0_i32 = arith.constant 0 : i32
    %c0_i32_0 = arith.constant 0 : i32
    return %c0_i32, %arg0 : i32, i32
  }
  func.func @transform_2(%arg0: i32) -> (i32, i32) {
    %c0_i32 = arith.constant 0 : i32
    %c0_i32_0 = arith.constant 0 : i32
    return %c0_i32, %arg0 : i32, i32
  }
  func.func @transform_3(%arg0: i32) -> (i32, i32) {
    %c0_i32 = arith.constant 0 : i32
    %c0_i32_0 = arith.constant 0 : i32
    return %c0_i32, %arg0 : i32, i32
  }
  func.func @transform_4(%arg0: i32) -> (i32, i32) {
    %c0_i32 = arith.constant 0 : i32
    %c0_i32_0 = arith.constant 0 : i32
    return %arg0, %c0_i32 : i32, i32
  }
  func.func @transform_5(%arg0: i32) -> (i32, i32) {
    %c0_i32 = arith.constant 0 : i32
    %c0_i32_0 = arith.constant 0 : i32
    %c0_i32_1 = arith.constant 0 : i32
    return %c0_i32, %c0_i32_0 : i32, i32
  }
  func.func @transform_6(%arg0: i32) -> (i32, i32) {
    %c0_i32 = arith.constant 0 : i32
    %c0_i32_0 = arith.constant 0 : i32
    %c0_i32_1 = arith.constant 0 : i32
    return %c0_i32, %c0_i32_0 : i32, i32
  }
  func.func @transform_7(%arg0: i32) -> (i32, i32) {
    %c0_i32 = arith.constant 0 : i32
    %c0_i32_0 = arith.constant 0 : i32
    %c0_i32_1 = arith.constant 0 : i32
    return %c0_i32, %c0_i32_0 : i32, i32
  }
  func.func @transform_8(%arg0: i32) -> (i32, i32) {
    %c0_i32 = arith.constant 0 : i32
    %c0_i32_0 = arith.constant 0 : i32
    %c0_i32_1 = arith.constant 0 : i32
    return %c0_i32, %c0_i32_0 : i32, i32
  }
  func.func @transform_9(%arg0: i32) -> (i32, i32) {
    %c0_i32 = arith.constant 0 : i32
    %c0_i32_0 = arith.constant 0 : i32
    %c0_i32_1 = arith.constant 0 : i32
    return %c0_i32, %c0_i32_0 : i32, i32
  }
}

</mosaic_0001>

<llo_original>
// kernel: tpu_custom_call.1
$region0: #{tpu_custom_call.1}
  #allocation0 [shape = 'u32[]', space=smem, size = 0x4, offset = 0x4, fixed_abs, tag = 'smem constant byte address 0x4 - core index']
  #allocation1 [shape = 'u32[144,128]{1,0:T(1,128)}', space=vmem, size = 0x12000, scoped, tag = 'internal scratch']
  #allocation2 [shape = 'f32[2,1024]{1,0:T(2,128)}', space=vmem, size = 0x2000, scoped, tag = 'scratch operand']
  %s0 = inlined_call_operand.hbm [shape: bf16[2,2048], index: 0, kind: input, shape index: {}]
  %s1 = inlined_call_operand.hbm [shape: bf16[2048,4096], index: 1, kind: input, shape index: {}]
  %s2 = inlined_call_operand.hbm [shape: f32[1,4096], index: 2, kind: input, shape index: {}]
  %s3 = inlined_call_operand.hbm [shape: f32[1,4096], index: 3, kind: input, shape index: {}]
  %s4 = inlined_call_operand.hbm [shape: bf16[4096,1024], index: 4, kind: input, shape index: {}]
  %s5 = inlined_call_operand.hbm [shape: f32[1,1024], index: 5, kind: input, shape index: {}]
  %s6 = inlined_call_operand.hbm [shape: f32[1,1024], index: 6, kind: input, shape index: {}]
  %s7 = inlined_call_operand.vmem [shape: bf16[1024,10], index: 7, kind: input, shape index: {}]
  %s8 = inlined_call_operand.hbm [shape: f32[1,10], index: 8, kind: input, shape index: {}]
  %s9 = inlined_call_operand.hbm [shape: f32[2,10], index: 9, kind: output, shape index: {}]
  %s10 = sld [smem:[#allocation0]]
  $region109: #{tpu_custom_call.1} parent=0
    _
  %s12 = ssub.s32 1, %s10
  %s13 = scalar_select 0, %s12, %s10
  $region1: #{tpu_custom_call.1} parent=0
    #allocation3 [shape = 'u8[8192]{0}', space=vmem, size = 0x2000, scoped, tag = 'input window, operand 0, single buffered']
    #allocation4 [shape = 's32[2]{0}', space=sflag, size = 0x8, scoped, tag = 'scoped memory for tpu_custom_call.1']
    #allocation5 [shape = 's32[2]{0}', space=sflag, size = 0x8, scoped, tag = 'scoped memory for tpu_custom_call.1']
    #allocation6 [shape = 'u8[8388608]{0}', space=vmem, size = 0x800000, scoped, tag = 'input window, operand 1']
    #allocation7 [shape = 's32[2]{0}', space=sflag, size = 0x8, scoped, tag = 'scoped memory for tpu_custom_call.1']
    #allocation8 [shape = 'u8[8192]{0}', space=vmem, size = 0x2000, scoped, tag = 'input window, operand 2']
    #allocation9 [shape = 'u8[8192]{0}', space=vmem, size = 0x2000, scoped, tag = 'input window, operand 3']
    #allocation10 [shape = 's32[2]{0}', space=sflag, size = 0x8, scoped, tag = 'scoped memory for tpu_custom_call.1']
    #allocation11 [shape = 'u8[4194304]{0}', space=vmem, size = 0x400000, scoped, tag = 'input window, operand 4']
    #allocation12 [shape = 'u8[4096]{0}', space=vmem, size = 0x1000, scoped, tag = 'input window, operand 5, single buffered']
    #allocation13 [shape = 's32[1]{0}', space=sflag, size = 0x4, scoped, tag = 'scoped memory for tpu_custom_call.1']
    #allocation14 [shape = 'u8[4096]{0}', space=vmem, size = 0x1000, scoped, tag = 'input window, operand 6, single buffered']
    #allocation15 [shape = 'u8[512]{0}', space=vmem, size = 0x400, scoped, tag = 'input window, operand 8, single buffered']
    #allocation16 [shape = 's32[1]{0}', space=sflag, size = 0x4, scoped, tag = 'scoped memory for tpu_custom_call.1']
    #allocation17 [shape = 'u8[1024]{0}', space=vmem, size = 0x400, scoped, tag = 'output window, operand 0, single buffered']
    %14 = vsyncpa [#allocation4], 0
    %15 = vsyncpa [#allocation7], 0
    %s16 = scalar_lea.sflag [#allocation7], 1
    %17 = vsyncpa %s16, 0
    %18 = vsyncpa [#allocation10], 0
    %s19 = scalar_lea.sflag [#allocation10], 1
    %20 = vsyncpa %s19, 0
    %21 = vsyncpa [#allocation13], 0
    %22 = vsyncpa [#allocation16], 0
    %23 = vsyncpa [#allocation5], 0
    loop: start=0, step=1, limit=6
    $region2: #{tpu_custom_call.1} parent=1 // loop_pre_header
      _
    $region3: #{tpu_custom_call.1} parent=1 // loop_header
      %s25 = sphi 0, %s29
      %p26 = scmp.ge.s32.totalorder %s25, 6
      %s33 = sphi 0, %s33
      %s35 = sphi 0, %s33
      %s36 = sphi 0, %s35
      %s50 = sphi 0, %s36
      %s56 = sphi 0, %s58
      %s59 = sphi 0, %s56
      %s60 = sphi 0, %s59
      %s76 = sphi 0, %s60
      %s82 = sphi 0, %s84
      %s85 = sphi 0, %s82
      %s86 = sphi 0, %s85
      %s102 = sphi 0, %s86
      %s108 = sphi 0, %s110
      %s111 = sphi 0, %s108
      %s112 = sphi 0, %s111
      %s128 = sphi 0, %s112
      %s134 = sphi 0, %s136
      %s137 = sphi 0, %s134
      %s138 = sphi 0, %s137
      %s154 = sphi 0, %s138
      %s158 = sphi 0, %s158
      %s160 = sphi 0, %s158
      %s161 = sphi 0, %s160
      %s175 = sphi 0, %s161
      %s179 = sphi 0, %s179
      %s181 = sphi 0, %s179
      %s182 = sphi 0, %s181
      %s196 = sphi 0, %s182
      %s200 = sphi 0, %s200
      %s202 = sphi 0, %s200
      %s203 = sphi 0, %s202
      %s217 = sphi 0, %s203
      %s221 = sphi 0, %s221
      %s223 = sphi 0, %s221
      %s224 = sphi 0, %s223
      %s238 = sphi 0, %s224
      %s242 = sphi 0, %s242
      %s244 = sphi 0, %s242
      %s245 = sphi 0, %s244
      %s259 = sphi 0, %s245
    $region4: #{tpu_custom_call.1} parent=1 // loop_header_branch
      %28 = sbr.rel (%p26) target = $region8
    $region5: #{tpu_custom_call.1} parent=1 // loop_body
      %s30 = ssub.s32 %s25, 1
      %s31 = ssub.s32 %s25, 2
      %s32 = sadd.s32 %s25, 1
      %s34 = sadd.s32 %s33, 1
      %p37 = scmp.eq.s32.totalorder %s25, 3
      %p38 = scmp.ne.s32.totalorder %s33, %s35
      %p39 = scmp.eq.s32.totalorder %s25, 0
      %p40 = por %p38, %p39
      %p41 = scmp.ne.s32.totalorder %s33, %s35
      %p42 = scmp.eq.s32.totalorder %s30, 3
      %p43 = por %p41, %p42
      %p44 = scmp.ne.s32.totalorder %s35, %s36
      %p45 = scmp.eq.s32.totalorder %s30, 0
      %p46 = por %p44, %p45
      %p47 = scmp.ne.s32.totalorder %s35, %s36
      %p48 = scmp.eq.s32.totalorder %s31, 3
      %p49 = por %p47, %p48
      %p51 = scmp.ne.s32.totalorder %s36, %s50
      %p52 = scmp.eq.s32.totalorder %s31, 0
      %p53 = por %p51, %p52
      %s54 = ssub.s32 %s25, %s32
      %p55 = scmp.eq.s32.totalorder %s54, 0
      %s57 = sadd.s32 %s56, 1
      %s58 = scalar_select %p55, %s56, %s57
      %p61 = pneg %p55
      %p62 = scmp.eq.s32.totalorder %s25, 3
      %p63 = por %p61, %p62
      %p64 = scmp.ne.s32.totalorder %s56, %s59
      %p65 = scmp.eq.s32.totalorder %s25, 0
      %p66 = por %p64, %p65
      %p67 = scmp.ne.s32.totalorder %s56, %s59
      %p68 = scmp.eq.s32.totalorder %s30, 3
      %p69 = por %p67, %p68
      %p70 = scmp.ne.s32.totalorder %s59, %s60
      %p71 = scmp.eq.s32.totalorder %s30, 0
      %p72 = por %p70, %p71
      %p73 = scmp.ne.s32.totalorder %s59, %s60
      %p74 = scmp.eq.s32.totalorder %s31, 3
      %p75 = por %p73, %p74
      %p77 = scmp.ne.s32.totalorder %s60, %s76
      %p78 = scmp.eq.s32.totalorder %s31, 0
      %p79 = por %p77, %p78
      %s80 = ssub.s32 %s25, %s32
      %p81 = scmp.eq.s32.totalorder %s80, 0
      %s83 = sadd.s32 %s82, 1
      %s84 = scalar_select %p81, %s82, %s83
      %p87 = pneg %p81
      %p88 = scmp.eq.s32.totalorder %s25, 3
      %p89 = por %p87, %p88
      %p90 = scmp.ne.s32.totalorder %s82, %s85
      %p91 = scmp.eq.s32.totalorder %s25, 0
      %p92 = por %p90, %p91
      %p93 = scmp.ne.s32.totalorder %s82, %s85
      %p94 = scmp.eq.s32.totalorder %s30, 3
      %p95 = por %p93, %p94
      %p96 = scmp.ne.s32.totalorder %s85, %s86
      %p97 = scmp.eq.s32.totalorder %s30, 0
      %p98 = por %p96, %p97
      %p99 = scmp.ne.s32.totalorder %s85, %s86
      %p100 = scmp.eq.s32.totalorder %s31, 3
      %p101 = por %p99, %p100
      %p103 = scmp.ne.s32.totalorder %s86, %s102
      %p104 = scmp.eq.s32.totalorder %s31, 0
      %p105 = por %p103, %p104
      %s106 = ssub.s32 %s25, %s32
      %p107 = scmp.eq.s32.totalorder %s106, 0
      %s109 = sadd.s32 %s108, 1
      %s110 = scalar_select %p107, %s108, %s109
      %p113 = pneg %p107
      %p114 = scmp.eq.s32.totalorder %s25, 3
      %p115 = por %p113, %p114
      %p116 = scmp.ne.s32.totalorder %s108, %s111
      %p117 = scmp.eq.s32.totalorder %s25, 0
      %p118 = por %p116, %p117
      %p119 = scmp.ne.s32.totalorder %s108, %s111
      %p120 = scmp.eq.s32.totalorder %s30, 3
      %p121 = por %p119, %p120
      %p122 = scmp.ne.s32.totalorder %s111, %s112
      %p123 = scmp.eq.s32.totalorder %s30, 0
      %p124 = por %p122, %p123
      %p125 = scmp.ne.s32.totalorder %s111, %s112
      %p126 = scmp.eq.s32.totalorder %s31, 3
      %p127 = por %p125, %p126
      %p129 = scmp.ne.s32.totalorder %s112, %s128
      %p130 = scmp.eq.s32.totalorder %s31, 0
      %p131 = por %p129, %p130
      %s132 = ssub.s32 %s25, %s32
      %p133 = scmp.eq.s32.totalorder %s132, 0
      %s135 = sadd.s32 %s134, 1
      %s136 = scalar_select %p133, %s134, %s135
      %p139 = pneg %p133
      %p140 = scmp.eq.s32.totalorder %s25, 3
      %p141 = por %p139, %p140
      %p142 = scmp.ne.s32.totalorder %s134, %s137
      %p143 = scmp.eq.s32.totalorder %s25, 0
      %p144 = por %p142, %p143
      %p145 = scmp.ne.s32.totalorder %s134, %s137
      %p146 = scmp.eq.s32.totalorder %s30, 3
      %p147 = por %p145, %p146
      %p148 = scmp.ne.s32.totalorder %s137, %s138
      %p149 = scmp.eq.s32.totalorder %s30, 0
      %p150 = por %p148, %p149
      %p151 = scmp.ne.s32.totalorder %s137, %s138
      %p152 = scmp.eq.s32.totalorder %s31, 3
      %p153 = por %p151, %p152
      %p155 = scmp.ne.s32.totalorder %s138, %s154
      %p156 = scmp.eq.s32.totalorder %s31, 0
      %p157 = por %p155, %p156
      %s159 = sadd.s32 %s158, 1
      %p162 = scmp.eq.s32.totalorder %s25, 3
      %p163 = scmp.ne.s32.totalorder %s158, %s160
      %p164 = scmp.eq.s32.totalorder %s25, 0
      %p165 = por %p163, %p164
      %p166 = scmp.ne.s32.totalorder %s158, %s160
      %p167 = scmp.eq.s32.totalorder %s30, 3
      %p168 = por %p166, %p167
      %p169 = scmp.ne.s32.totalorder %s160, %s161
      %p170 = scmp.eq.s32.totalorder %s30, 0
      %p171 = por %p169, %p170
      %p172 = scmp.ne.s32.totalorder %s160, %s161
      %p173 = scmp.eq.s32.totalorder %s31, 3
      %p174 = por %p172, %p173
      %p176 = scmp.ne.s32.totalorder %s161, %s175
      %p177 = scmp.eq.s32.totalorder %s31, 0
      %p178 = por %p176, %p177
      %s180 = sadd.s32 %s179, 1
      %p183 = scmp.eq.s32.totalorder %s25, 3
      %p184 = scmp.ne.s32.totalorder %s179, %s181
      %p185 = scmp.eq.s32.totalorder %s25, 0
      %p186 = por %p184, %p185
      %p187 = scmp.ne.s32.totalorder %s179, %s181
      %p188 = scmp.eq.s32.totalorder %s30, 3
      %p189 = por %p187, %p188
      %p190 = scmp.ne.s32.totalorder %s181, %s182
      %p191 = scmp.eq.s32.totalorder %s30, 0
      %p192 = por %p190, %p191
      %p193 = scmp.ne.s32.totalorder %s181, %s182
      %p194 = scmp.eq.s32.totalorder %s31, 3
      %p195 = por %p193, %p194
      %p197 = scmp.ne.s32.totalorder %s182, %s196
      %p198 = scmp.eq.s32.totalorder %s31, 0
      %p199 = por %p197, %p198
      %s201 = sadd.s32 %s200, 1
      %p204 = scmp.eq.s32.totalorder %s25, 3
      %p205 = scmp.ne.s32.totalorder %s200, %s202
      %p206 = scmp.eq.s32.totalorder %s25, 0
      %p207 = por %p205, %p206
      %p208 = scmp.ne.s32.totalorder %s200, %s202
      %p209 = scmp.eq.s32.totalorder %s30, 3
      %p210 = por %p208, %p209
      %p211 = scmp.ne.s32.totalorder %s202, %s203
      %p212 = scmp.eq.s32.totalorder %s30, 0
      %p213 = por %p211, %p212
      %p214 = scmp.ne.s32.totalorder %s202, %s203
      %p215 = scmp.eq.s32.totalorder %s31, 3
      %p216 = por %p214, %p215
      %p218 = scmp.ne.s32.totalorder %s203, %s217
      %p219 = scmp.eq.s32.totalorder %s31, 0
      %p220 = por %p218, %p219
      %s222 = sadd.s32 %s221, 1
      %p225 = scmp.eq.s32.totalorder %s25, 3
      %p226 = scmp.ne.s32.totalorder %s221, %s223
      %p227 = scmp.eq.s32.totalorder %s25, 0
      %p228 = por %p226, %p227
      %p229 = scmp.ne.s32.totalorder %s221, %s223
      %p230 = scmp.eq.s32.totalorder %s30, 3
      %p231 = por %p229, %p230
      %p232 = scmp.ne.s32.totalorder %s223, %s224
      %p233 = scmp.eq.s32.totalorder %s30, 0
      %p234 = por %p232, %p233
      %p235 = scmp.ne.s32.totalorder %s223, %s224
      %p236 = scmp.eq.s32.totalorder %s31, 3
      %p237 = por %p235, %p236
      %p239 = scmp.ne.s32.totalorder %s224, %s238
      %p240 = scmp.eq.s32.totalorder %s31, 0
      %p241 = por %p239, %p240
      %s243 = sadd.s32 %s242, 1
      %p246 = scmp.eq.s32.totalorder %s25, 3
      %p247 = scmp.ne.s32.totalorder %s242, %s244
      %p248 = scmp.eq.s32.totalorder %s25, 0
      %p249 = por %p247, %p248
      %p250 = scmp.ne.s32.totalorder %s242, %s244
      %p251 = scmp.eq.s32.totalorder %s30, 3
      %p252 = por %p250, %p251
      %p253 = scmp.ne.s32.totalorder %s244, %s245
      %p254 = scmp.eq.s32.totalorder %s30, 0
      %p255 = por %p253, %p254
      %p256 = scmp.ne.s32.totalorder %s244, %s245
      %p257 = scmp.eq.s32.totalorder %s31, 3
      %p258 = por %p256, %p257
      %p260 = scmp.ne.s32.totalorder %s245, %s259
      %p261 = scmp.eq.s32.totalorder %s31, 0
      %p262 = por %p260, %p261
      %p263 = scmp.le.s32.totalorder 1, %s25
      %p264 = scmp.lt.s32.totalorder %s25, 5
      %p265 = pnand %p263, %p264
      %p266 = pneg %p265
      // Predicated region
      $region9: #{tpu_custom_call.1} parent=5 // pred_check
        _
      $region10: #{tpu_custom_call.1} parent=5 // pred_check_branch
        %268 = sbr.rel (%p265) target = $region12
      $region11: #{tpu_custom_call.1} parent=5 // pred_region
        %s269 = ssub.s32 %s25, 1
        // Predicated region
        $region13: #{tpu_custom_call.1} parent=11 // pred_check
          %p270 = pneg %p46
        $region14: #{tpu_custom_call.1} parent=11 // pred_check_branch
          %272 = sbr.rel (%p270) target = $region16
        $region15: #{tpu_custom_call.1} parent=11 // pred_region
          %s274 = ssub.s32 256, 256
          %275 = vsyncadd [#allocation4], %s274
          %s277 = sshll.u32 [#allocation3], 4
          %s278 = int_to_ptr.vmem [resolvable:$true] %s277
          %280 = dma.hbm_to_vmem [thread:$0]  %s0, 256, %s278, [#allocation4]
        $region16: #{tpu_custom_call.1} parent=11 // pred_fallthru
          _
        // Predicated region
        $region17: #{tpu_custom_call.1} parent=11 // pred_check
          %p281 = pneg %p171
        $region18: #{tpu_custom_call.1} parent=11 // pred_check_branch
          %283 = sbr.rel (%p281) target = $region20
        $region19: #{tpu_custom_call.1} parent=11 // pred_region
          %s285 = ssub.s32 128, 128
          %286 = vsyncadd [#allocation13], %s285
          %s288 = sshll.u32 [#allocation12], 4
          %s289 = int_to_ptr.vmem [resolvable:$true] %s288
          %291 = dma.hbm_to_vmem [thread:$0]  %s5, 128, %s289, [#allocation13]
        $region20: #{tpu_custom_call.1} parent=11 // pred_fallthru
          _
        // Predicated region
        $region21: #{tpu_custom_call.1} parent=11 // pred_check
          %p292 = pneg %p192
        $region22: #{tpu_custom_call.1} parent=11 // pred_check_branch
          %294 = sbr.rel (%p292) target = $region24
        $region23: #{tpu_custom_call.1} parent=11 // pred_region
          %s296 = ssub.s32 128, 128
          %297 = vsyncadd [#allocation13], %s296
          %s299 = sshll.u32 [#allocation14], 4
          %s300 = int_to_ptr.vmem [resolvable:$true] %s299
          %302 = dma.hbm_to_vmem [thread:$0]  %s6, 128, %s300, [#allocation13]
        $region24: #{tpu_custom_call.1} parent=11 // pred_fallthru
          _
        // Predicated region
        $region25: #{tpu_custom_call.1} parent=11 // pred_check
          %p303 = pneg %p213
        $region26: #{tpu_custom_call.1} parent=11 // pred_check_branch
          %305 = sbr.rel (%p303) target = $region28
        $region27: #{tpu_custom_call.1} parent=11 // pred_region
          _
        $region28: #{tpu_custom_call.1} parent=11 // pred_fallthru
          _
        // Predicated region
        $region29: #{tpu_custom_call.1} parent=11 // pred_check
          %p306 = pneg %p234
        $region30: #{tpu_custom_call.1} parent=11 // pred_check_branch
          %308 = sbr.rel (%p306) target = $region32
        $region31: #{tpu_custom_call.1} parent=11 // pred_region
          %s310 = ssub.s32 16, 16
          %311 = vsyncadd [#allocation16], %s310
          %s313 = sshll.u32 [#allocation15], 4
          %s314 = int_to_ptr.vmem [resolvable:$true] %s313
          %316 = dma.hbm_to_vmem [thread:$0]  %s8, 16, %s314, [#allocation16]
        $region32: #{tpu_custom_call.1} parent=11 // pred_fallthru
          _
      $region12: #{tpu_custom_call.1} parent=5 // pred_fallthru
        _
      %p317 = scmp.lt.s32.totalorder %s25, 4
      // Predicated region
      $region33: #{tpu_custom_call.1} parent=5 // pred_check
        %p318 = pneg %p317
      $region34: #{tpu_custom_call.1} parent=5 // pred_check_branch
        %320 = sbr.rel (%p318) target = $region36
      $region35: #{tpu_custom_call.1} parent=5 // pred_region
        // Predicated region
        $region37: #{tpu_custom_call.1} parent=35 // pred_check
          %p321 = pneg %p66
        $region38: #{tpu_custom_call.1} parent=35 // pred_check_branch
          %323 = sbr.rel (%p321) target = $region40
        $region39: #{tpu_custom_call.1} parent=35 // pred_region
          %s324 = sand.u32 %s25, 1
          %s325 = scalar_lea.sflag [#allocation7], %s324
          %s326 = sand.u32 %s56, 1
          %s327 = smul.addr %s326, 8192
          %s328 = scalar_lea.vmem [#allocation6], %s327
          %s329 = smul.u32 8, %s25
          %s331 = ssub.s32 131072, 131072
          %332 = vsyncadd %s325, %s331
          %s333 = smul.addr %s329, 64
          %s334 = scalar_lea.hbm %s1, %s333
          %s335 = sshll.u32 %s328, 4
          %s336 = int_to_ptr.vmem [resolvable:$true] %s335
          %341 = dma.hbm_to_vmem [thread:$0]  %s334, 131072, %s336, %s325, 2048, 512, 32
        $region40: #{tpu_custom_call.1} parent=35 // pred_fallthru
          _
        // Predicated region
        $region41: #{tpu_custom_call.1} parent=35 // pred_check
          %p342 = pneg %p92
        $region42: #{tpu_custom_call.1} parent=35 // pred_check_branch
          %344 = sbr.rel (%p342) target = $region44
        $region43: #{tpu_custom_call.1} parent=35 // pred_region
          %s345 = sand.u32 %s25, 1
          %s346 = scalar_lea.sflag [#allocation7], %s345
          %s347 = sand.u32 %s82, 1
          %s348 = smul.addr %s347, 8
          %s349 = scalar_lea.vmem [#allocation8], %s348
          %s350 = smul.u32 8, %s25
          %s352 = ssub.s32 128, 128
          %353 = vsyncadd %s346, %s352
          %s354 = smul.addr %s350, 16
          %s355 = scalar_lea.hbm %s2, %s354
          %s357 = sshll.u32 %s349, 4
          %s358 = int_to_ptr.vmem [resolvable:$true] %s357
          %360 = dma.hbm_to_vmem [thread:$0]  %s355, 128, %s358, %s346
        $region44: #{tpu_custom_call.1} parent=35 // pred_fallthru
          _
        // Predicated region
        $region45: #{tpu_custom_call.1} parent=35 // pred_check
          %p361 = pneg %p118
        $region46: #{tpu_custom_call.1} parent=35 // pred_check_branch
          %363 = sbr.rel (%p361) target = $region48
        $region47: #{tpu_custom_call.1} parent=35 // pred_region
          %s364 = sand.u32 %s25, 1
          %s365 = scalar_lea.sflag [#allocation10], %s364
          %s366 = sand.u32 %s108, 1
          %s367 = smul.addr %s366, 8
          %s368 = scalar_lea.vmem [#allocation9], %s367
          %s369 = smul.u32 8, %s25
          %s371 = ssub.s32 128, 128
          %372 = vsyncadd %s365, %s371
          %s373 = smul.addr %s369, 16
          %s374 = scalar_lea.hbm %s3, %s373
          %s376 = sshll.u32 %s368, 4
          %s377 = int_to_ptr.vmem [resolvable:$true] %s376
          %379 = dma.hbm_to_vmem [thread:$0]  %s374, 128, %s377, %s365
        $region48: #{tpu_custom_call.1} parent=35 // pred_fallthru
          _
        // Predicated region
        $region49: #{tpu_custom_call.1} parent=35 // pred_check
          %p380 = pneg %p144
        $region50: #{tpu_custom_call.1} parent=35 // pred_check_branch
          %382 = sbr.rel (%p380) target = $region52
        $region51: #{tpu_custom_call.1} parent=35 // pred_region
          %s383 = sand.u32 %s25, 1
          %s384 = scalar_lea.sflag [#allocation10], %s383
          %s385 = sand.u32 %s134, 1
          %s386 = smul.addr %s385, 4096
          %s387 = scalar_lea.vmem [#allocation11], %s386
          %s388 = smul.u32 128, %s25
          %s390 = ssub.s32 65536, 65536
          %391 = vsyncadd %s384, %s390
          %s392 = smul.addr %s388, 8
          %s393 = smul.addr %s392, 64
          %s394 = scalar_lea.hbm %s4, %s393
          %s395 = sshll.u32 %s387, 4
          %s396 = int_to_ptr.vmem [resolvable:$true] %s395
          %401 = dma.hbm_to_vmem [thread:$0]  %s394, 65536, %s396, %s384, 512, 512, 32
        $region52: #{tpu_custom_call.1} parent=35 // pred_fallthru
          _
      $region36: #{tpu_custom_call.1} parent=5 // pred_fallthru
        _
      %p402 = scmp.le.s32.totalorder 1, %s25
      %p403 = scmp.lt.s32.totalorder %s25, 5
      %p404 = pnand %p402, %p403
      %p405 = pneg %p404
      // Predicated region
      $region53: #{tpu_custom_call.1} parent=5 // pred_check
        _
      $region54: #{tpu_custom_call.1} parent=5 // pred_check_branch
        %407 = sbr.rel (%p404) target = $region56
      $region55: #{tpu_custom_call.1} parent=5 // pred_region
        %s408 = ssub.s32 %s25, 1
        // Predicated region
        $region57: #{tpu_custom_call.1} parent=55 // pred_check
          %p409 = pneg %p46
        $region58: #{tpu_custom_call.1} parent=55 // pred_check_branch
          %411 = sbr.rel (%p409) target = $region60
        $region59: #{tpu_custom_call.1} parent=55 // pred_region
          %412 = dma.done [#allocation4], 256
        $region60: #{tpu_custom_call.1} parent=55 // pred_fallthru
          _
        %s413 = sand.u32 %s30, 1
        %s414 = scalar_lea.sflag [#allocation7], %s413
        %s415 = sand.u32 %s59, 1
        %s416 = smul.addr %s415, 8192
        %s417 = scalar_lea.vmem [#allocation6], %s416
        // Predicated region
        $region61: #{tpu_custom_call.1} parent=55 // pred_check
          %p418 = pneg %p72
        $region62: #{tpu_custom_call.1} parent=55 // pred_check_branch
          %420 = sbr.rel (%p418) target = $region64
        $region63: #{tpu_custom_call.1} parent=55 // pred_region
          %421 = dma.done %s414, 131072
        $region64: #{tpu_custom_call.1} parent=55 // pred_fallthru
          _
        %s422 = sand.u32 %s30, 1
        %s423 = scalar_lea.sflag [#allocation7], %s422
        %s424 = sand.u32 %s85, 1
        %s425 = smul.addr %s424, 8
        %s426 = scalar_lea.vmem [#allocation8], %s425
        // Predicated region
        $region65: #{tpu_custom_call.1} parent=55 // pred_check
          %p427 = pneg %p98
        $region66: #{tpu_custom_call.1} parent=55 // pred_check_branch
          %429 = sbr.rel (%p427) target = $region68
        $region67: #{tpu_custom_call.1} parent=55 // pred_region
          %430 = dma.done %s423, 128
        $region68: #{tpu_custom_call.1} parent=55 // pred_fallthru
          _
        %s431 = sand.u32 %s30, 1
        %s432 = scalar_lea.sflag [#allocation10], %s431
        %s433 = sand.u32 %s111, 1
        %s434 = smul.addr %s433, 8
        %s435 = scalar_lea.vmem [#allocation9], %s434
        // Predicated region
        $region69: #{tpu_custom_call.1} parent=55 // pred_check
          %p436 = pneg %p124
        $region70: #{tpu_custom_call.1} parent=55 // pred_check_branch
          %438 = sbr.rel (%p436) target = $region72
        $region71: #{tpu_custom_call.1} parent=55 // pred_region
          %439 = dma.done %s432, 128
        $region72: #{tpu_custom_call.1} parent=55 // pred_fallthru
          _
        %s440 = sand.u32 %s30, 1
        %s441 = scalar_lea.sflag [#allocation10], %s440
        %s442 = sand.u32 %s137, 1
        %s443 = smul.addr %s442, 4096
        %s444 = scalar_lea.vmem [#allocation11], %s443
        // Predicated region
        $region73: #{tpu_custom_call.1} parent=55 // pred_check
          %p445 = pneg %p150
        $region74: #{tpu_custom_call.1} parent=55 // pred_check_branch
          %447 = sbr.rel (%p445) target = $region76
        $region75: #{tpu_custom_call.1} parent=55 // pred_region
          %448 = dma.done %s441, 65536
        $region76: #{tpu_custom_call.1} parent=55 // pred_fallthru
          _
        // Predicated region
        $region77: #{tpu_custom_call.1} parent=55 // pred_check
          %p449 = pneg %p171
        $region78: #{tpu_custom_call.1} parent=55 // pred_check_branch
          %451 = sbr.rel (%p449) target = $region80
        $region79: #{tpu_custom_call.1} parent=55 // pred_region
          %452 = dma.done [#allocation13], 128
        $region80: #{tpu_custom_call.1} parent=55 // pred_fallthru
          _
        // Predicated region
        $region81: #{tpu_custom_call.1} parent=55 // pred_check
          %p453 = pneg %p192
        $region82: #{tpu_custom_call.1} parent=55 // pred_check_branch
          %455 = sbr.rel (%p453) target = $region84
        $region83: #{tpu_custom_call.1} parent=55 // pred_region
          %456 = dma.done [#allocation13], 128
        $region84: #{tpu_custom_call.1} parent=55 // pred_fallthru
          _
        // Predicated region
        $region85: #{tpu_custom_call.1} parent=55 // pred_check
          %p457 = pneg %p234
        $region86: #{tpu_custom_call.1} parent=55 // pred_check_branch
          %459 = sbr.rel (%p457) target = $region88
        $region87: #{tpu_custom_call.1} parent=55 // pred_region
          %460 = dma.done [#allocation16], 16
        $region88: #{tpu_custom_call.1} parent=55 // pred_fallthru
          _
        %p461 = pneg %p46
        %p462 = pneg %p43
        %s463 = sand.u32 %s30, 1
        %s464 = scalar_lea.sflag [#allocation7], %s463
        %s465 = sand.u32 %s59, 1
        %s466 = smul.addr %s465, 8192
        %s467 = scalar_lea.vmem [#allocation6], %s466
        %p468 = pneg %p72
        %p469 = pneg %p69
        %s470 = sand.u32 %s30, 1
        %s471 = scalar_lea.sflag [#allocation7], %s470
        %s472 = sand.u32 %s85, 1
        %s473 = smul.addr %s472, 8
        %s474 = scalar_lea.vmem [#allocation8], %s473
        %p475 = pneg %p98
        %p476 = pneg %p95
        %s477 = sand.u32 %s30, 1
        %s478 = scalar_lea.sflag [#allocation10], %s477
        %s479 = sand.u32 %s111, 1
        %s480 = smul.addr %s479, 8
        %s481 = scalar_lea.vmem [#allocation9], %s480
        %p482 = pneg %p124
        %p483 = pneg %p121
        %s484 = sand.u32 %s30, 1
        %s485 = scalar_lea.sflag [#allocation10], %s484
        %s486 = sand.u32 %s137, 1
        %s487 = smul.addr %s486, 4096
        %s488 = scalar_lea.vmem [#allocation11], %s487
        %p489 = pneg %p150
        %p490 = pneg %p147
        %p491 = pneg %p171
        %p492 = pneg %p168
        %p493 = pneg %p192
        %p494 = pneg %p189
        %p495 = pneg %p213
        %p496 = pneg %p210
        %p497 = pneg %p234
        %p498 = pneg %p231
        %p499 = pneg %p255
        %p500 = pneg %p252
        %s501 = smul.u32 8, %s30
        %s502 = smul.u32 8, %s30
        %s503 = smul.u32 8, %s30
        %s504 = smul.u32 128, %s30
        %p506 = scmp.eq.s32.totalorder %s30, 0
        // Predicated region
        $region89: #{tpu_custom_call.1} parent=55 // pred_check
          %p507 = pneg %p506
        $region90: #{tpu_custom_call.1} parent=55 // pred_check_branch
          %509 = sbr.rel (%p507) target = $region92
        $region91: #{tpu_custom_call.1} parent=55 // pred_region
          %510 = vst [vmem:[#allocation2] sm:$0xff] 0.0
          %511 = vst [vmem:[#allocation2 + $0x8] sm:$0xff] 0.0
        $region92: #{tpu_custom_call.1} parent=55 // pred_fallthru
          _
        %v512 = vld [vmem:[#allocation3] sm:$0xff]
        %v513 = vld [vmem:[#allocation3 + $0x8] sm:$0xff]
        %v514 = vld [vmem:[%s417] sm:$0xff]
        %v515 = vld [vmem:[%s417 + $0x8] sm:$0xff]
        %v516 = vld [vmem:[%s417 + $0x10] sm:$0xff]
        %v517 = vld [vmem:[%s417 + $0x18] sm:$0xff]
        %v518 = vld [vmem:[%s417 + $0x20] sm:$0xff]
        %v519 = vld [vmem:[%s417 + $0x28] sm:$0xff]
        %v520 = vld [vmem:[%s417 + $0x30] sm:$0xff]
        %v521 = vld [vmem:[%s417 + $0x38] sm:$0xff]
        %v522 = vld [vmem:[%s417 + $0x40] sm:$0xff]
        %v523 = vld [vmem:[%s417 + $0x48] sm:$0xff]
        %v524 = vld [vmem:[%s417 + $0x50] sm:$0xff]
        %v525 = vld [vmem:[%s417 + $0x58] sm:$0xff]
        %v526 = vld [vmem:[%s417 + $0x60] sm:$0xff]
        %v527 = vld [vmem:[%s417 + $0x68] sm:$0xff]
        %v528 = vld [vmem:[%s417 + $0x70] sm:$0xff]
        %v529 = vld [vmem:[%s417 + $0x78] sm:$0xff]
        %v530 = vld [vmem:[%s417 + $0x80] sm:$0xff]
        %v531 = vld [vmem:[%s417 + $0x88] sm:$0xff]
        %v532 = vld [vmem:[%s417 + $0x90] sm:$0xff]
        %v533 = vld [vmem:[%s417 + $0x98] sm:$0xff]
        %v534 = vld [vmem:[%s417 + $0xa0] sm:$0xff]
        %v535 = vld [vmem:[%s417 + $0xa8] sm:$0xff]
        %v536 = vld [vmem:[%s417 + $0xb0] sm:$0xff]
        %v537 = vld [vmem:[%s417 + $0xb8] sm:$0xff]
        %v538 = vld [vmem:[%s417 + $0xc0] sm:$0xff]
        %v539 = vld [vmem:[%s417 + $0xc8] sm:$0xff]
        %v540 = vld [vmem:[%s417 + $0xd0] sm:$0xff]
        %v541 = vld [vmem:[%s417 + $0xd8] sm:$0xff]
        %v542 = vld [vmem:[%s417 + $0xe0] sm:$0xff]
        %v543 = vld [vmem:[%s417 + $0xe8] sm:$0xff]
        %v544 = vld [vmem:[%s417 + $0xf0] sm:$0xff]
        %v545 = vld [vmem:[%s417 + $0xf8] sm:$0xff]
        %v546 = vld [vmem:[%s417 + $0x100] sm:$0xff]
        %v547 = vld [vmem:[%s417 + $0x108] sm:$0xff]
        %v548 = vld [vmem:[%s417 + $0x110] sm:$0xff]
        %v549 = vld [vmem:[%s417 + $0x118] sm:$0xff]
        %v550 = vld [vmem:[%s417 + $0x120] sm:$0xff]
        %v551 = vld [vmem:[%s417 + $0x128] sm:$0xff]
        %v552 = vld [vmem:[%s417 + $0x130] sm:$0xff]
        %v553 = vld [vmem:[%s417 + $0x138] sm:$0xff]
        %v554 = vld [vmem:[%s417 + $0x140] sm:$0xff]
        %v555 = vld [vmem:[%s417 + $0x148] sm:$0xff]
        %v556 = vld [vmem:[%s417 + $0x150] sm:$0xff]
        %v557 = vld [vmem:[%s417 + $0x158] sm:$0xff]
        %v558 = vld [vmem:[%s417 + $0x160] sm:$0xff]
        %v559 = vld [vmem:[%s417 + $0x168] sm:$0xff]
        %v560 = vld [vmem:[%s417 + $0x170] sm:$0xff]
        %v561 = vld [vmem:[%s417 + $0x178] sm:$0xff]
        %v562 = vld [vmem:[%s417 + $0x180] sm:$0xff]
        %v563 = vld [vmem:[%s417 + $0x188] sm:$0xff]
        %v564 = vld [vmem:[%s417 + $0x190] sm:$0xff]
        %v565 = vld [vmem:[%s417 + $0x198] sm:$0xff]
        %v566 = vld [vmem:[%s417 + $0x1a0] sm:$0xff]
        %v567 = vld [vmem:[%s417 + $0x1a8] sm:$0xff]
        %v568 = vld [vmem:[%s417 + $0x1b0] sm:$0xff]
        %v569 = vld [vmem:[%s417 + $0x1b8] sm:$0xff]
        %v570 = vld [vmem:[%s417 + $0x1c0] sm:$0xff]
        %v571 = vld [vmem:[%s417 + $0x1c8] sm:$0xff]
        %v572 = vld [vmem:[%s417 + $0x1d0] sm:$0xff]
        %v573 = vld [vmem:[%s417 + $0x1d8] sm:$0xff]
        %v574 = vld [vmem:[%s417 + $0x1e0] sm:$0xff]
        %v575 = vld [vmem:[%s417 + $0x1e8] sm:$0xff]
        %v576 = vld [vmem:[%s417 + $0x1f0] sm:$0xff]
        %v577 = vld [vmem:[%s417 + $0x1f8] sm:$0xff]
        %v578 = vld [vmem:[%s417 + $0x200] sm:$0xff]
        %v579 = vld [vmem:[%s417 + $0x208] sm:$0xff]
        %v580 = vld [vmem:[%s417 + $0x210] sm:$0xff]
        %v581 = vld [vmem:[%s417 + $0x218] sm:$0xff]
        %v582 = vld [vmem:[%s417 + $0x220] sm:$0xff]
        %v583 = vld [vmem:[%s417 + $0x228] sm:$0xff]
        %v584 = vld [vmem:[%s417 + $0x230] sm:$0xff]
        %v585 = vld [vmem:[%s417 + $0x238] sm:$0xff]
        %v586 = vld [vmem:[%s417 + $0x240] sm:$0xff]
        %v587 = vld [vmem:[%s417 + $0x248] sm:$0xff]
        %v588 = vld [vmem:[%s417 + $0x250] sm:$0xff]
        %v589 = vld [vmem:[%s417 + $0x258] sm:$0xff]
        %v590 = vld [vmem:[%s417 + $0x260] sm:$0xff]
        %v591 = vld [vmem:[%s417 + $0x268] sm:$0xff]
        %v592 = vld [vmem:[%s417 + $0x270] sm:$0xff]
        %v593 = vld [vmem:[%s417 + $0x278] sm:$0xff]
        %v594 = vld [vmem:[%s417 + $0x280] sm:$0xff]
        %v595 = vld [vmem:[%s417 + $0x288] sm:$0xff]
        %v596 = vld [vmem:[%s417 + $0x290] sm:$0xff]
        %v597 = vld [vmem:[%s417 + $0x298] sm:$0xff]
        %v598 = vld [vmem:[%s417 + $0x2a0] sm:$0xff]
        %v599 = vld [vmem:[%s417 + $0x2a8] sm:$0xff]
        %v600 = vld [vmem:[%s417 + $0x2b0] sm:$0xff]
        %v601 = vld [vmem:[%s417 + $0x2b8] sm:$0xff]
        %v602 = vld [vmem:[%s417 + $0x2c0] sm:$0xff]
        %v603 = vld [vmem:[%s417 + $0x2c8] sm:$0xff]
        %v604 = vld [vmem:[%s417 + $0x2d0] sm:$0xff]
        %v605 = vld [vmem:[%s417 + $0x2d8] sm:$0xff]
        %v606 = vld [vmem:[%s417 + $0x2e0] sm:$0xff]
        %v607 = vld [vmem:[%s417 + $0x2e8] sm:$0xff]
        %v608 = vld [vmem:[%s417 + $0x2f0] sm:$0xff]
        %v609 = vld [vmem:[%s417 + $0x2f8] sm:$0xff]
        %v610 = vld [vmem:[%s417 + $0x300] sm:$0xff]
        %v611 = vld [vmem:[%s417 + $0x308] sm:$0xff]
        %v612 = vld [vmem:[%s417 + $0x310] sm:$0xff]
        %v613 = vld [vmem:[%s417 + $0x318] sm:$0xff]
        %v614 = vld [vmem:[%s417 + $0x320] sm:$0xff]
        %v615 = vld [vmem:[%s417 + $0x328] sm:$0xff]
        %v616 = vld [vmem:[%s417 + $0x330] sm:$0xff]
        %v617 = vld [vmem:[%s417 + $0x338] sm:$0xff]
        %v618 = vld [vmem:[%s417 + $0x340] sm:$0xff]
        %v619 = vld [vmem:[%s417 + $0x348] sm:$0xff]
        %v620 = vld [vmem:[%s417 + $0x350] sm:$0xff]
        %v621 = vld [vmem:[%s417 + $0x358] sm:$0xff]
        %v622 = vld [vmem:[%s417 + $0x360] sm:$0xff]
        %v623 = vld [vmem:[%s417 + $0x368] sm:$0xff]
        %v624 = vld [vmem:[%s417 + $0x370] sm:$0xff]
        %v625 = vld [vmem:[%s417 + $0x378] sm:$0xff]
        %v626 = vld [vmem:[%s417 + $0x380] sm:$0xff]
        %v627 = vld [vmem:[%s417 + $0x388] sm:$0xff]
        %v628 = vld [vmem:[%s417 + $0x390] sm:$0xff]
        %v629 = vld [vmem:[%s417 + $0x398] sm:$0xff]
        %v630 = vld [vmem:[%s417 + $0x3a0] sm:$0xff]
        %v631 = vld [vmem:[%s417 + $0x3a8] sm:$0xff]
        %v632 = vld [vmem:[%s417 + $0x3b0] sm:$0xff]
        %v633 = vld [vmem:[%s417 + $0x3b8] sm:$0xff]
        %v634 = vld [vmem:[%s417 + $0x3c0] sm:$0xff]
        %v635 = vld [vmem:[%s417 + $0x3c8] sm:$0xff]
        %v636 = vld [vmem:[%s417 + $0x3d0] sm:$0xff]
        %v637 = vld [vmem:[%s417 + $0x3d8] sm:$0xff]
        %v638 = vld [vmem:[%s417 + $0x3e0] sm:$0xff]
        %v639 = vld [vmem:[%s417 + $0x3e8] sm:$0xff]
        %v640 = vld [vmem:[%s417 + $0x3f0] sm:$0xff]
        %v641 = vld [vmem:[%s417 + $0x3f8] sm:$0xff]
        %v642 = vld [vmem:[%s417 + $0x400] sm:$0xff]
        %v643 = vld [vmem:[%s417 + $0x408] sm:$0xff]
        %v644 = vld [vmem:[%s417 + $0x410] sm:$0xff]
        %v645 = vld [vmem:[%s417 + $0x418] sm:$0xff]
        %v646 = vld [vmem:[%s417 + $0x420] sm:$0xff]
        %v647 = vld [vmem:[%s417 + $0x428] sm:$0xff]
        %v648 = vld [vmem:[%s417 + $0x430] sm:$0xff]
        %v649 = vld [vmem:[%s417 + $0x438] sm:$0xff]
        %v650 = vld [vmem:[%s417 + $0x440] sm:$0xff]
        %v651 = vld [vmem:[%s417 + $0x448] sm:$0xff]
        %v652 = vld [vmem:[%s417 + $0x450] sm:$0xff]
        %v653 = vld [vmem:[%s417 + $0x458] sm:$0xff]
        %v654 = vld [vmem:[%s417 + $0x460] sm:$0xff]
        %v655 = vld [vmem:[%s417 + $0x468] sm:$0xff]
        %v656 = vld [vmem:[%s417 + $0x470] sm:$0xff]
        %v657 = vld [vmem:[%s417 + $0x478] sm:$0xff]
        %v658 = vld [vmem:[%s417 + $0x480] sm:$0xff]
        %v659 = vld [vmem:[%s417 + $0x488] sm:$0xff]
        %v660 = vld [vmem:[%s417 + $0x490] sm:$0xff]
        %v661 = vld [vmem:[%s417 + $0x498] sm:$0xff]
        %v662 = vld [vmem:[%s417 + $0x4a0] sm:$0xff]
        %v663 = vld [vmem:[%s417 + $0x4a8] sm:$0xff]
        %v664 = vld [vmem:[%s417 + $0x4b0] sm:$0xff]
        %v665 = vld [vmem:[%s417 + $0x4b8] sm:$0xff]
        %v666 = vld [vmem:[%s417 + $0x4c0] sm:$0xff]
        %v667 = vld [vmem:[%s417 + $0x4c8] sm:$0xff]
        %v668 = vld [vmem:[%s417 + $0x4d0] sm:$0xff]
        %v669 = vld [vmem:[%s417 + $0x4d8] sm:$0xff]
        %v670 = vld [vmem:[%s417 + $0x4e0] sm:$0xff]
        %v671 = vld [vmem:[%s417 + $0x4e8] sm:$0xff]
        %v672 = vld [vmem:[%s417 + $0x4f0] sm:$0xff]
        %v673 = vld [vmem:[%s417 + $0x4f8] sm:$0xff]
        %v674 = vld [vmem:[%s417 + $0x500] sm:$0xff]
        %v675 = vld [vmem:[%s417 + $0x508] sm:$0xff]
        %v676 = vld [vmem:[%s417 + $0x510] sm:$0xff]
        %v677 = vld [vmem:[%s417 + $0x518] sm:$0xff]
        %v678 = vld [vmem:[%s417 + $0x520] sm:$0xff]
        %v679 = vld [vmem:[%s417 + $0x528] sm:$0xff]
        %v680 = vld [vmem:[%s417 + $0x530] sm:$0xff]
        %v681 = vld [vmem:[%s417 + $0x538] sm:$0xff]
        %v682 = vld [vmem:[%s417 + $0x540] sm:$0xff]
        %v683 = vld [vmem:[%s417 + $0x548] sm:$0xff]
        %v684 = vld [vmem:[%s417 + $0x550] sm:$0xff]
        %v685 = vld [vmem:[%s417 + $0x558] sm:$0xff]
        %v686 = vld [vmem:[%s417 + $0x560] sm:$0xff]
        %v687 = vld [vmem:[%s417 + $0x568] sm:$0xff]
        %v688 = vld [vmem:[%s417 + $0x570] sm:$0xff]
        %v689 = vld [vmem:[%s417 + $0x578] sm:$0xff]
        %v690 = vld [vmem:[%s417 + $0x580] sm:$0xff]
        %v691 = vld [vmem:[%s417 + $0x588] sm:$0xff]
        %v692 = vld [vmem:[%s417 + $0x590] sm:$0xff]
        %v693 = vld [vmem:[%s417 + $0x598] sm:$0xff]
        %v694 = vld [vmem:[%s417 + $0x5a0] sm:$0xff]
        %v695 = vld [vmem:[%s417 + $0x5a8] sm:$0xff]
        %v696 = vld [vmem:[%s417 + $0x5b0] sm:$0xff]
        %v697 = vld [vmem:[%s417 + $0x5b8] sm:$0xff]
        %v698 = vld [vmem:[%s417 + $0x5c0] sm:$0xff]
        %v699 = vld [vmem:[%s417 + $0x5c8] sm:$0xff]
        %v700 = vld [vmem:[%s417 + $0x5d0] sm:$0xff]
        %v701 = vld [vmem:[%s417 + $0x5d8] sm:$0xff]
        %v702 = vld [vmem:[%s417 + $0x5e0] sm:$0xff]
        %v703 = vld [vmem:[%s417 + $0x5e8] sm:$0xff]
        %v704 = vld [vmem:[%s417 + $0x5f0] sm:$0xff]
        %v705 = vld [vmem:[%s417 + $0x5f8] sm:$0xff]
        %v706 = vld [vmem:[%s417 + $0x600] sm:$0xff]
        %v707 = vld [vmem:[%s417 + $0x608] sm:$0xff]
        %v708 = vld [vmem:[%s417 + $0x610] sm:$0xff]
        %v709 = vld [vmem:[%s417 + $0x618] sm:$0xff]
        %v710 = vld [vmem:[%s417 + $0x620] sm:$0xff]
        %v711 = vld [vmem:[%s417 + $0x628] sm:$0xff]
        %v712 = vld [vmem:[%s417 + $0x630] sm:$0xff]
        %v713 = vld [vmem:[%s417 + $0x638] sm:$0xff]
        %v714 = vld [vmem:[%s417 + $0x640] sm:$0xff]
        %v715 = vld [vmem:[%s417 + $0x648] sm:$0xff]
        %v716 = vld [vmem:[%s417 + $0x650] sm:$0xff]
        %v717 = vld [vmem:[%s417 + $0x658] sm:$0xff]
        %v718 = vld [vmem:[%s417 + $0x660] sm:$0xff]
        %v719 = vld [vmem:[%s417 + $0x668] sm:$0xff]
        %v720 = vld [vmem:[%s417 + $0x670] sm:$0xff]
        %v721 = vld [vmem:[%s417 + $0x678] sm:$0xff]
        %v722 = vld [vmem:[%s417 + $0x680] sm:$0xff]
        %v723 = vld [vmem:[%s417 + $0x688] sm:$0xff]
        %v724 = vld [vmem:[%s417 + $0x690] sm:$0xff]
        %v725 = vld [vmem:[%s417 + $0x698] sm:$0xff]
        %v726 = vld [vmem:[%s417 + $0x6a0] sm:$0xff]
        %v727 = vld [vmem:[%s417 + $0x6a8] sm:$0xff]
        %v728 = vld [vmem:[%s417 + $0x6b0] sm:$0xff]
        %v729 = vld [vmem:[%s417 + $0x6b8] sm:$0xff]
        %v730 = vld [vmem:[%s417 + $0x6c0] sm:$0xff]
        %v731 = vld [vmem:[%s417 + $0x6c8] sm:$0xff]
        %v732 = vld [vmem:[%s417 + $0x6d0] sm:$0xff]
        %v733 = vld [vmem:[%s417 + $0x6d8] sm:$0xff]
        %v734 = vld [vmem:[%s417 + $0x6e0] sm:$0xff]
        %v735 = vld [vmem:[%s417 + $0x6e8] sm:$0xff]
        %v736 = vld [vmem:[%s417 + $0x6f0] sm:$0xff]
        %v737 = vld [vmem:[%s417 + $0x6f8] sm:$0xff]
        %v738 = vld [vmem:[%s417 + $0x700] sm:$0xff]
        %v739 = vld [vmem:[%s417 + $0x708] sm:$0xff]
        %v740 = vld [vmem:[%s417 + $0x710] sm:$0xff]
        %v741 = vld [vmem:[%s417 + $0x718] sm:$0xff]
        %v742 = vld [vmem:[%s417 + $0x720] sm:$0xff]
        %v743 = vld [vmem:[%s417 + $0x728] sm:$0xff]
        %v744 = vld [vmem:[%s417 + $0x730] sm:$0xff]
        %v745 = vld [vmem:[%s417 + $0x738] sm:$0xff]
        %v746 = vld [vmem:[%s417 + $0x740] sm:$0xff]
        %v747 = vld [vmem:[%s417 + $0x748] sm:$0xff]
        %v748 = vld [vmem:[%s417 + $0x750] sm:$0xff]
        %v749 = vld [vmem:[%s417 + $0x758] sm:$0xff]
        %v750 = vld [vmem:[%s417 + $0x760] sm:$0xff]
        %v751 = vld [vmem:[%s417 + $0x768] sm:$0xff]
        %v752 = vld [vmem:[%s417 + $0x770] sm:$0xff]
        %v753 = vld [vmem:[%s417 + $0x778] sm:$0xff]
        %v754 = vld [vmem:[%s417 + $0x780] sm:$0xff]
        %v755 = vld [vmem:[%s417 + $0x788] sm:$0xff]
        %v756 = vld [vmem:[%s417 + $0x790] sm:$0xff]
        %v757 = vld [vmem:[%s417 + $0x798] sm:$0xff]
        %v758 = vld [vmem:[%s417 + $0x7a0] sm:$0xff]
        %v759 = vld [vmem:[%s417 + $0x7a8] sm:$0xff]
        %v760 = vld [vmem:[%s417 + $0x7b0] sm:$0xff]
        %v761 = vld [vmem:[%s417 + $0x7b8] sm:$0xff]
        %v762 = vld [vmem:[%s417 + $0x7c0] sm:$0xff]
        %v763 = vld [vmem:[%s417 + $0x7c8] sm:$0xff]
        %v764 = vld [vmem:[%s417 + $0x7d0] sm:$0xff]
        %v765 = vld [vmem:[%s417 + $0x7d8] sm:$0xff]
        %v766 = vld [vmem:[%s417 + $0x7e0] sm:$0xff]
        %v767 = vld [vmem:[%s417 + $0x7e8] sm:$0xff]
        %v768 = vld [vmem:[%s417 + $0x7f0] sm:$0xff]
        %v769 = vld [vmem:[%s417 + $0x7f8] sm:$0xff]
        %v770 = vld [vmem:[%s417 + $0x800] sm:$0xff]
        %v771 = vld [vmem:[%s417 + $0x808] sm:$0xff]
        %v772 = vld [vmem:[%s417 + $0x810] sm:$0xff]
        %v773 = vld [vmem:[%s417 + $0x818] sm:$0xff]
        %v774 = vld [vmem:[%s417 + $0x820] sm:$0xff]
        %v775 = vld [vmem:[%s417 + $0x828] sm:$0xff]
        %v776 = vld [vmem:[%s417 + $0x830] sm:$0xff]
        %v777 = vld [vmem:[%s417 + $0x838] sm:$0xff]
        %v778 = vld [vmem:[%s417 + $0x840] sm:$0xff]
        %v779 = vld [vmem:[%s417 + $0x848] sm:$0xff]
        %v780 = vld [vmem:[%s417 + $0x850] sm:$0xff]
        %v781 = vld [vmem:[%s417 + $0x858] sm:$0xff]
        %v782 = vld [vmem:[%s417 + $0x860] sm:$0xff]
        %v783 = vld [vmem:[%s417 + $0x868] sm:$0xff]
        %v784 = vld [vmem:[%s417 + $0x870] sm:$0xff]
        %v785 = vld [vmem:[%s417 + $0x878] sm:$0xff]
        %v786 = vld [vmem:[%s417 + $0x880] sm:$0xff]
        %v787 = vld [vmem:[%s417 + $0x888] sm:$0xff]
        %v788 = vld [vmem:[%s417 + $0x890] sm:$0xff]
        %v789 = vld [vmem:[%s417 + $0x898] sm:$0xff]
        %v790 = vld [vmem:[%s417 + $0x8a0] sm:$0xff]
        %v791 = vld [vmem:[%s417 + $0x8a8] sm:$0xff]
        %v792 = vld [vmem:[%s417 + $0x8b0] sm:$0xff]
        %v793 = vld [vmem:[%s417 + $0x8b8] sm:$0xff]
        %v794 = vld [vmem:[%s417 + $0x8c0] sm:$0xff]
        %v795 = vld [vmem:[%s417 + $0x8c8] sm:$0xff]
        %v796 = vld [vmem:[%s417 + $0x8d0] sm:$0xff]
        %v797 = vld [vmem:[%s417 + $0x8d8] sm:$0xff]
        %v798 = vld [vmem:[%s417 + $0x8e0] sm:$0xff]
        %v799 = vld [vmem:[%s417 + $0x8e8] sm:$0xff]
        %v800 = vld [vmem:[%s417 + $0x8f0] sm:$0xff]
        %v801 = vld [vmem:[%s417 + $0x8f8] sm:$0xff]
        %v802 = vld [vmem:[%s417 + $0x900] sm:$0xff]
        %v803 = vld [vmem:[%s417 + $0x908] sm:$0xff]
        %v804 = vld [vmem:[%s417 + $0x910] sm:$0xff]
        %v805 = vld [vmem:[%s417 + $0x918] sm:$0xff]
        %v806 = vld [vmem:[%s417 + $0x920] sm:$0xff]
        %v807 = vld [vmem:[%s417 + $0x928] sm:$0xff]
        %v808 = vld [vmem:[%s417 + $0x930] sm:$0xff]
        %v809 = vld [vmem:[%s417 + $0x938] sm:$0xff]
        %v810 = vld [vmem:[%s417 + $0x940] sm:$0xff]
        %v811 = vld [vmem:[%s417 + $0x948] sm:$0xff]
        %v812 = vld [vmem:[%s417 + $0x950] sm:$0xff]
        %v813 = vld [vmem:[%s417 + $0x958] sm:$0xff]
        %v814 = vld [vmem:[%s417 + $0x960] sm:$0xff]
        %v815 = vld [vmem:[%s417 + $0x968] sm:$0xff]
        %v816 = vld [vmem:[%s417 + $0x970] sm:$0xff]
        %v817 = vld [vmem:[%s417 + $0x978] sm:$0xff]
        %v818 = vld [vmem:[%s417 + $0x980] sm:$0xff]
        %v819 = vld [vmem:[%s417 + $0x988] sm:$0xff]
        %v820 = vld [vmem:[%s417 + $0x990] sm:$0xff]
        %v821 = vld [vmem:[%s417 + $0x998] sm:$0xff]
        %v822 = vld [vmem:[%s417 + $0x9a0] sm:$0xff]
        %v823 = vld [vmem:[%s417 + $0x9a8] sm:$0xff]
        %v824 = vld [vmem:[%s417 + $0x9b0] sm:$0xff]
        %v825 = vld [vmem:[%s417 + $0x9b8] sm:$0xff]
        %v826 = vld [vmem:[%s417 + $0x9c0] sm:$0xff]
        %v827 = vld [vmem:[%s417 + $0x9c8] sm:$0xff]
        %v828 = vld [vmem:[%s417 + $0x9d0] sm:$0xff]
        %v829 = vld [vmem:[%s417 + $0x9d8] sm:$0xff]
        %v830 = vld [vmem:[%s417 + $0x9e0] sm:$0xff]
        %v831 = vld [vmem:[%s417 + $0x9e8] sm:$0xff]
        %v832 = vld [vmem:[%s417 + $0x9f0] sm:$0xff]
        %v833 = vld [vmem:[%s417 + $0x9f8] sm:$0xff]
        %v834 = vld [vmem:[%s417 + $0xa00] sm:$0xff]
        %v835 = vld [vmem:[%s417 + $0xa08] sm:$0xff]
        %v836 = vld [vmem:[%s417 + $0xa10] sm:$0xff]
        %v837 = vld [vmem:[%s417 + $0xa18] sm:$0xff]
        %v838 = vld [vmem:[%s417 + $0xa20] sm:$0xff]
        %v839 = vld [vmem:[%s417 + $0xa28] sm:$0xff]
        %v840 = vld [vmem:[%s417 + $0xa30] sm:$0xff]
        %v841 = vld [vmem:[%s417 + $0xa38] sm:$0xff]
        %v842 = vld [vmem:[%s417 + $0xa40] sm:$0xff]
        %v843 = vld [vmem:[%s417 + $0xa48] sm:$0xff]
        %v844 = vld [vmem:[%s417 + $0xa50] sm:$0xff]
        %v845 = vld [vmem:[%s417 + $0xa58] sm:$0xff]
        %v846 = vld [vmem:[%s417 + $0xa60] sm:$0xff]
        %v847 = vld [vmem:[%s417 + $0xa68] sm:$0xff]
        %v848 = vld [vmem:[%s417 + $0xa70] sm:$0xff]
        %v849 = vld [vmem:[%s417 + $0xa78] sm:$0xff]
        %v850 = vld [vmem:[%s417 + $0xa80] sm:$0xff]
        %v851 = vld [vmem:[%s417 + $0xa88] sm:$0xff]
        %v852 = vld [vmem:[%s417 + $0xa90] sm:$0xff]
        %v853 = vld [vmem:[%s417 + $0xa98] sm:$0xff]
        %v854 = vld [vmem:[%s417 + $0xaa0] sm:$0xff]
        %v855 = vld [vmem:[%s417 + $0xaa8] sm:$0xff]
        %v856 = vld [vmem:[%s417 + $0xab0] sm:$0xff]
        %v857 = vld [vmem:[%s417 + $0xab8] sm:$0xff]
        %v858 = vld [vmem:[%s417 + $0xac0] sm:$0xff]
        %v859 = vld [vmem:[%s417 + $0xac8] sm:$0xff]
        %v860 = vld [vmem:[%s417 + $0xad0] sm:$0xff]
        %v861 = vld [vmem:[%s417 + $0xad8] sm:$0xff]
        %v862 = vld [vmem:[%s417 + $0xae0] sm:$0xff]
        %v863 = vld [vmem:[%s417 + $0xae8] sm:$0xff]
        %v864 = vld [vmem:[%s417 + $0xaf0] sm:$0xff]
        %v865 = vld [vmem:[%s417 + $0xaf8] sm:$0xff]
        %v866 = vld [vmem:[%s417 + $0xb00] sm:$0xff]
        %v867 = vld [vmem:[%s417 + $0xb08] sm:$0xff]
        %v868 = vld [vmem:[%s417 + $0xb10] sm:$0xff]
        %v869 = vld [vmem:[%s417 + $0xb18] sm:$0xff]
        %v870 = vld [vmem:[%s417 + $0xb20] sm:$0xff]
        %v871 = vld [vmem:[%s417 + $0xb28] sm:$0xff]
        %v872 = vld [vmem:[%s417 + $0xb30] sm:$0xff]
        %v873 = vld [vmem:[%s417 + $0xb38] sm:$0xff]
        %v874 = vld [vmem:[%s417 + $0xb40] sm:$0xff]
        %v875 = vld [vmem:[%s417 + $0xb48] sm:$0xff]
        %v876 = vld [vmem:[%s417 + $0xb50] sm:$0xff]
        %v877 = vld [vmem:[%s417 + $0xb58] sm:$0xff]
        %v878 = vld [vmem:[%s417 + $0xb60] sm:$0xff]
        %v879 = vld [vmem:[%s417 + $0xb68] sm:$0xff]
        %v880 = vld [vmem:[%s417 + $0xb70] sm:$0xff]
        %v881 = vld [vmem:[%s417 + $0xb78] sm:$0xff]
        %v882 = vld [vmem:[%s417 + $0xb80] sm:$0xff]
        %v883 = vld [vmem:[%s417 + $0xb88] sm:$0xff]
        %v884 = vld [vmem:[%s417 + $0xb90] sm:$0xff]
        %v885 = vld [vmem:[%s417 + $0xb98] sm:$0xff]
        %v886 = vld [vmem:[%s417 + $0xba0] sm:$0xff]
        %v887 = vld [vmem:[%s417 + $0xba8] sm:$0xff]
        %v888 = vld [vmem:[%s417 + $0xbb0] sm:$0xff]
        %v889 = vld [vmem:[%s417 + $0xbb8] sm:$0xff]
        %v890 = vld [vmem:[%s417 + $0xbc0] sm:$0xff]
        %v891 = vld [vmem:[%s417 + $0xbc8] sm:$0xff]
        %v892 = vld [vmem:[%s417 + $0xbd0] sm:$0xff]
        %v893 = vld [vmem:[%s417 + $0xbd8] sm:$0xff]
        %v894 = vld [vmem:[%s417 + $0xbe0] sm:$0xff]
        %v895 = vld [vmem:[%s417 + $0xbe8] sm:$0xff]
        %v896 = vld [vmem:[%s417 + $0xbf0] sm:$0xff]
        %v897 = vld [vmem:[%s417 + $0xbf8] sm:$0xff]
        %v898 = vld [vmem:[%s417 + $0xc00] sm:$0xff]
        %v899 = vld [vmem:[%s417 + $0xc08] sm:$0xff]
        %v900 = vld [vmem:[%s417 + $0xc10] sm:$0xff]
        %v901 = vld [vmem:[%s417 + $0xc18] sm:$0xff]
        %v902 = vld [vmem:[%s417 + $0xc20] sm:$0xff]
        %v903 = vld [vmem:[%s417 + $0xc28] sm:$0xff]
        %v904 = vld [vmem:[%s417 + $0xc30] sm:$0xff]
        %v905 = vld [vmem:[%s417 + $0xc38] sm:$0xff]
        %v906 = vld [vmem:[%s417 + $0xc40] sm:$0xff]
        %v907 = vld [vmem:[%s417 + $0xc48] sm:$0xff]
        %v908 = vld [vmem:[%s417 + $0xc50] sm:$0xff]
        %v909 = vld [vmem:[%s417 + $0xc58] sm:$0xff]
        %v910 = vld [vmem:[%s417 + $0xc60] sm:$0xff]
        %v911 = vld [vmem:[%s417 + $0xc68] sm:$0xff]
        %v912 = vld [vmem:[%s417 + $0xc70] sm:$0xff]
        %v913 = vld [vmem:[%s417 + $0xc78] sm:$0xff]
        %v914 = vld [vmem:[%s417 + $0xc80] sm:$0xff]
        %v915 = vld [vmem:[%s417 + $0xc88] sm:$0xff]
        %v916 = vld [vmem:[%s417 + $0xc90] sm:$0xff]
        %v917 = vld [vmem:[%s417 + $0xc98] sm:$0xff]
        %v918 = vld [vmem:[%s417 + $0xca0] sm:$0xff]
        %v919 = vld [vmem:[%s417 + $0xca8] sm:$0xff]
        %v920 = vld [vmem:[%s417 + $0xcb0] sm:$0xff]
        %v921 = vld [vmem:[%s417 + $0xcb8] sm:$0xff]
        %v922 = vld [vmem:[%s417 + $0xcc0] sm:$0xff]
        %v923 = vld [vmem:[%s417 + $0xcc8] sm:$0xff]
        %v924 = vld [vmem:[%s417 + $0xcd0] sm:$0xff]
        %v925 = vld [vmem:[%s417 + $0xcd8] sm:$0xff]
        %v926 = vld [vmem:[%s417 + $0xce0] sm:$0xff]
        %v927 = vld [vmem:[%s417 + $0xce8] sm:$0xff]
        %v928 = vld [vmem:[%s417 + $0xcf0] sm:$0xff]
        %v929 = vld [vmem:[%s417 + $0xcf8] sm:$0xff]
        %v930 = vld [vmem:[%s417 + $0xd00] sm:$0xff]
        %v931 = vld [vmem:[%s417 + $0xd08] sm:$0xff]
        %v932 = vld [vmem:[%s417 + $0xd10] sm:$0xff]
        %v933 = vld [vmem:[%s417 + $0xd18] sm:$0xff]
        %v934 = vld [vmem:[%s417 + $0xd20] sm:$0xff]
        %v935 = vld [vmem:[%s417 + $0xd28] sm:$0xff]
        %v936 = vld [vmem:[%s417 + $0xd30] sm:$0xff]
        %v937 = vld [vmem:[%s417 + $0xd38] sm:$0xff]
        %v938 = vld [vmem:[%s417 + $0xd40] sm:$0xff]
        %v939 = vld [vmem:[%s417 + $0xd48] sm:$0xff]
        %v940 = vld [vmem:[%s417 + $0xd50] sm:$0xff]
        %v941 = vld [vmem:[%s417 + $0xd58] sm:$0xff]
        %v942 = vld [vmem:[%s417 + $0xd60] sm:$0xff]
        %v943 = vld [vmem:[%s417 + $0xd68] sm:$0xff]
        %v944 = vld [vmem:[%s417 + $0xd70] sm:$0xff]
        %v945 = vld [vmem:[%s417 + $0xd78] sm:$0xff]
        %v946 = vld [vmem:[%s417 + $0xd80] sm:$0xff]
        %v947 = vld [vmem:[%s417 + $0xd88] sm:$0xff]
        %v948 = vld [vmem:[%s417 + $0xd90] sm:$0xff]
        %v949 = vld [vmem:[%s417 + $0xd98] sm:$0xff]
        %v950 = vld [vmem:[%s417 + $0xda0] sm:$0xff]
        %v951 = vld [vmem:[%s417 + $0xda8] sm:$0xff]
        %v952 = vld [vmem:[%s417 + $0xdb0] sm:$0xff]
        %v953 = vld [vmem:[%s417 + $0xdb8] sm:$0xff]
        %v954 = vld [vmem:[%s417 + $0xdc0] sm:$0xff]
        %v955 = vld [vmem:[%s417 + $0xdc8] sm:$0xff]
        %v956 = vld [vmem:[%s417 + $0xdd0] sm:$0xff]
        %v957 = vld [vmem:[%s417 + $0xdd8] sm:$0xff]
        %v958 = vld [vmem:[%s417 + $0xde0] sm:$0xff]
        %v959 = vld [vmem:[%s417 + $0xde8] sm:$0xff]
        %v960 = vld [vmem:[%s417 + $0xdf0] sm:$0xff]
        %v961 = vld [vmem:[%s417 + $0xdf8] sm:$0xff]
        %v962 = vld [vmem:[%s417 + $0xe00] sm:$0xff]
        %v963 = vld [vmem:[%s417 + $0xe08] sm:$0xff]
        %v964 = vld [vmem:[%s417 + $0xe10] sm:$0xff]
        %v965 = vld [vmem:[%s417 + $0xe18] sm:$0xff]
        %v966 = vld [vmem:[%s417 + $0xe20] sm:$0xff]
        %v967 = vld [vmem:[%s417 + $0xe28] sm:$0xff]
        %v968 = vld [vmem:[%s417 + $0xe30] sm:$0xff]
        %v969 = vld [vmem:[%s417 + $0xe38] sm:$0xff]
        %v970 = vld [vmem:[%s417 + $0xe40] sm:$0xff]
        %v971 = vld [vmem:[%s417 + $0xe48] sm:$0xff]
        %v972 = vld [vmem:[%s417 + $0xe50] sm:$0xff]
        %v973 = vld [vmem:[%s417 + $0xe58] sm:$0xff]
        %v974 = vld [vmem:[%s417 + $0xe60] sm:$0xff]
        %v975 = vld [vmem:[%s417 + $0xe68] sm:$0xff]
        %v976 = vld [vmem:[%s417 + $0xe70] sm:$0xff]
        %v977 = vld [vmem:[%s417 + $0xe78] sm:$0xff]
        %v978 = vld [vmem:[%s417 + $0xe80] sm:$0xff]
        %v979 = vld [vmem:[%s417 + $0xe88] sm:$0xff]
        %v980 = vld [vmem:[%s417 + $0xe90] sm:$0xff]
        %v981 = vld [vmem:[%s417 + $0xe98] sm:$0xff]
        %v982 = vld [vmem:[%s417 + $0xea0] sm:$0xff]
        %v983 = vld [vmem:[%s417 + $0xea8] sm:$0xff]
        %v984 = vld [vmem:[%s417 + $0xeb0] sm:$0xff]
        %v985 = vld [vmem:[%s417 + $0xeb8] sm:$0xff]
        %v986 = vld [vmem:[%s417 + $0xec0] sm:$0xff]
        %v987 = vld [vmem:[%s417 + $0xec8] sm:$0xff]
        %v988 = vld [vmem:[%s417 + $0xed0] sm:$0xff]
        %v989 = vld [vmem:[%s417 + $0xed8] sm:$0xff]
        %v990 = vld [vmem:[%s417 + $0xee0] sm:$0xff]
        %v991 = vld [vmem:[%s417 + $0xee8] sm:$0xff]
        %v992 = vld [vmem:[%s417 + $0xef0] sm:$0xff]
        %v993 = vld [vmem:[%s417 + $0xef8] sm:$0xff]
        %v994 = vld [vmem:[%s417 + $0xf00] sm:$0xff]
        %v995 = vld [vmem:[%s417 + $0xf08] sm:$0xff]
        %v996 = vld [vmem:[%s417 + $0xf10] sm:$0xff]
        %v997 = vld [vmem:[%s417 + $0xf18] sm:$0xff]
        %v998 = vld [vmem:[%s417 + $0xf20] sm:$0xff]
        %v999 = vld [vmem:[%s417 + $0xf28] sm:$0xff]
        %v1000 = vld [vmem:[%s417 + $0xf30] sm:$0xff]
        %v1001 = vld [vmem:[%s417 + $0xf38] sm:$0xff]
        %v1002 = vld [vmem:[%s417 + $0xf40] sm:$0xff]
        %v1003 = vld [vmem:[%s417 + $0xf48] sm:$0xff]
        %v1004 = vld [vmem:[%s417 + $0xf50] sm:$0xff]
        %v1005 = vld [vmem:[%s417 + $0xf58] sm:$0xff]
        %v1006 = vld [vmem:[%s417 + $0xf60] sm:$0xff]
        %v1007 = vld [vmem:[%s417 + $0xf68] sm:$0xff]
        %v1008 = vld [vmem:[%s417 + $0xf70] sm:$0xff]
        %v1009 = vld [vmem:[%s417 + $0xf78] sm:$0xff]
        %v1010 = vld [vmem:[%s417 + $0xf80] sm:$0xff]
        %v1011 = vld [vmem:[%s417 + $0xf88] sm:$0xff]
        %v1012 = vld [vmem:[%s417 + $0xf90] sm:$0xff]
        %v1013 = vld [vmem:[%s417 + $0xf98] sm:$0xff]
        %v1014 = vld [vmem:[%s417 + $0xfa0] sm:$0xff]
        %v1015 = vld [vmem:[%s417 + $0xfa8] sm:$0xff]
        %v1016 = vld [vmem:[%s417 + $0xfb0] sm:$0xff]
        %v1017 = vld [vmem:[%s417 + $0xfb8] sm:$0xff]
        %v1018 = vld [vmem:[%s417 + $0xfc0] sm:$0xff]
        %v1019 = vld [vmem:[%s417 + $0xfc8] sm:$0xff]
        %v1020 = vld [vmem:[%s417 + $0xfd0] sm:$0xff]
        %v1021 = vld [vmem:[%s417 + $0xfd8] sm:$0xff]
        %v1022 = vld [vmem:[%s417 + $0xfe0] sm:$0xff]
        %v1023 = vld [vmem:[%s417 + $0xfe8] sm:$0xff]
        %v1024 = vld [vmem:[%s417 + $0xff0] sm:$0xff]
        %v1025 = vld [vmem:[%s417 + $0xff8] sm:$0xff]
        %v1026 = vld [vmem:[%s417 + $0x1000] sm:$0xff]
        %v1027 = vld [vmem:[%s417 + $0x1008] sm:$0xff]
        %v1028 = vld [vmem:[%s417 + $0x1010] sm:$0xff]
        %v1029 = vld [vmem:[%s417 + $0x1018] sm:$0xff]
        %v1030 = vld [vmem:[%s417 + $0x1020] sm:$0xff]
        %v1031 = vld [vmem:[%s417 + $0x1028] sm:$0xff]
        %v1032 = vld [vmem:[%s417 + $0x1030] sm:$0xff]
        %v1033 = vld [vmem:[%s417 + $0x1038] sm:$0xff]
        %v1034 = vld [vmem:[%s417 + $0x1040] sm:$0xff]
        %v1035 = vld [vmem:[%s417 + $0x1048] sm:$0xff]
        %v1036 = vld [vmem:[%s417 + $0x1050] sm:$0xff]
        %v1037 = vld [vmem:[%s417 + $0x1058] sm:$0xff]
        %v1038 = vld [vmem:[%s417 + $0x1060] sm:$0xff]
        %v1039 = vld [vmem:[%s417 + $0x1068] sm:$0xff]
        %v1040 = vld [vmem:[%s417 + $0x1070] sm:$0xff]
        %v1041 = vld [vmem:[%s417 + $0x1078] sm:$0xff]
        %v1042 = vld [vmem:[%s417 + $0x1080] sm:$0xff]
        %v1043 = vld [vmem:[%s417 + $0x1088] sm:$0xff]
        %v1044 = vld [vmem:[%s417 + $0x1090] sm:$0xff]
        %v1045 = vld [vmem:[%s417 + $0x1098] sm:$0xff]
        %v1046 = vld [vmem:[%s417 + $0x10a0] sm:$0xff]
        %v1047 = vld [vmem:[%s417 + $0x10a8] sm:$0xff]
        %v1048 = vld [vmem:[%s417 + $0x10b0] sm:$0xff]
        %v1049 = vld [vmem:[%s417 + $0x10b8] sm:$0xff]
        %v1050 = vld [vmem:[%s417 + $0x10c0] sm:$0xff]
        %v1051 = vld [vmem:[%s417 + $0x10c8] sm:$0xff]
        %v1052 = vld [vmem:[%s417 + $0x10d0] sm:$0xff]
        %v1053 = vld [vmem:[%s417 + $0x10d8] sm:$0xff]
        %v1054 = vld [vmem:[%s417 + $0x10e0] sm:$0xff]
        %v1055 = vld [vmem:[%s417 + $0x10e8] sm:$0xff]
        %v1056 = vld [vmem:[%s417 + $0x10f0] sm:$0xff]
        %v1057 = vld [vmem:[%s417 + $0x10f8] sm:$0xff]
        %v1058 = vld [vmem:[%s417 + $0x1100] sm:$0xff]
        %v1059 = vld [vmem:[%s417 + $0x1108] sm:$0xff]
        %v1060 = vld [vmem:[%s417 + $0x1110] sm:$0xff]
        %v1061 = vld [vmem:[%s417 + $0x1118] sm:$0xff]
        %v1062 = vld [vmem:[%s417 + $0x1120] sm:$0xff]
        %v1063 = vld [vmem:[%s417 + $0x1128] sm:$0xff]
        %v1064 = vld [vmem:[%s417 + $0x1130] sm:$0xff]
        %v1065 = vld [vmem:[%s417 + $0x1138] sm:$0xff]
        %v1066 = vld [vmem:[%s417 + $0x1140] sm:$0xff]
        %v1067 = vld [vmem:[%s417 + $0x1148] sm:$0xff]
        %v1068 = vld [vmem:[%s417 + $0x1150] sm:$0xff]
        %v1069 = vld [vmem:[%s417 + $0x1158] sm:$0xff]
        %v1070 = vld [vmem:[%s417 + $0x1160] sm:$0xff]
        %v1071 = vld [vmem:[%s417 + $0x1168] sm:$0xff]
        %v1072 = vld [vmem:[%s417 + $0x1170] sm:$0xff]
        %v1073 = vld [vmem:[%s417 + $0x1178] sm:$0xff]
        %v1074 = vld [vmem:[%s417 + $0x1180] sm:$0xff]
        %v1075 = vld [vmem:[%s417 + $0x1188] sm:$0xff]
        %v1076 = vld [vmem:[%s417 + $0x1190] sm:$0xff]
        %v1077 = vld [vmem:[%s417 + $0x1198] sm:$0xff]
        %v1078 = vld [vmem:[%s417 + $0x11a0] sm:$0xff]
        %v1079 = vld [vmem:[%s417 + $0x11a8] sm:$0xff]
        %v1080 = vld [vmem:[%s417 + $0x11b0] sm:$0xff]
        %v1081 = vld [vmem:[%s417 + $0x11b8] sm:$0xff]
        %v1082 = vld [vmem:[%s417 + $0x11c0] sm:$0xff]
        %v1083 = vld [vmem:[%s417 + $0x11c8] sm:$0xff]
        %v1084 = vld [vmem:[%s417 + $0x11d0] sm:$0xff]
        %v1085 = vld [vmem:[%s417 + $0x11d8] sm:$0xff]
        %v1086 = vld [vmem:[%s417 + $0x11e0] sm:$0xff]
        %v1087 = vld [vmem:[%s417 + $0x11e8] sm:$0xff]
        %v1088 = vld [vmem:[%s417 + $0x11f0] sm:$0xff]
        %v1089 = vld [vmem:[%s417 + $0x11f8] sm:$0xff]
        %v1090 = vld [vmem:[%s417 + $0x1200] sm:$0xff]
        %v1091 = vld [vmem:[%s417 + $0x1208] sm:$0xff]
        %v1092 = vld [vmem:[%s417 + $0x1210] sm:$0xff]
        %v1093 = vld [vmem:[%s417 + $0x1218] sm:$0xff]
        %v1094 = vld [vmem:[%s417 + $0x1220] sm:$0xff]
        %v1095 = vld [vmem:[%s417 + $0x1228] sm:$0xff]
        %v1096 = vld [vmem:[%s417 + $0x1230] sm:$0xff]
        %v1097 = vld [vmem:[%s417 + $0x1238] sm:$0xff]
        %v1098 = vld [vmem:[%s417 + $0x1240] sm:$0xff]
        %v1099 = vld [vmem:[%s417 + $0x1248] sm:$0xff]
        %v1100 = vld [vmem:[%s417 + $0x1250] sm:$0xff]
        %v1101 = vld [vmem:[%s417 + $0x1258] sm:$0xff]
        %v1102 = vld [vmem:[%s417 + $0x1260] sm:$0xff]
        %v1103 = vld [vmem:[%s417 + $0x1268] sm:$0xff]
        %v1104 = vld [vmem:[%s417 + $0x1270] sm:$0xff]
        %v1105 = vld [vmem:[%s417 + $0x1278] sm:$0xff]
        %v1106 = vld [vmem:[%s417 + $0x1280] sm:$0xff]
        %v1107 = vld [vmem:[%s417 + $0x1288] sm:$0xff]
        %v1108 = vld [vmem:[%s417 + $0x1290] sm:$0xff]
        %v1109 = vld [vmem:[%s417 + $0x1298] sm:$0xff]
        %v1110 = vld [vmem:[%s417 + $0x12a0] sm:$0xff]
        %v1111 = vld [vmem:[%s417 + $0x12a8] sm:$0xff]
        %v1112 = vld [vmem:[%s417 + $0x12b0] sm:$0xff]
        %v1113 = vld [vmem:[%s417 + $0x12b8] sm:$0xff]
        %v1114 = vld [vmem:[%s417 + $0x12c0] sm:$0xff]
        %v1115 = vld [vmem:[%s417 + $0x12c8] sm:$0xff]
        %v1116 = vld [vmem:[%s417 + $0x12d0] sm:$0xff]
        %v1117 = vld [vmem:[%s417 + $0x12d8] sm:$0xff]
        %v1118 = vld [vmem:[%s417 + $0x12e0] sm:$0xff]
        %v1119 = vld [vmem:[%s417 + $0x12e8] sm:$0xff]
        %v1120 = vld [vmem:[%s417 + $0x12f0] sm:$0xff]
        %v1121 = vld [vmem:[%s417 + $0x12f8] sm:$0xff]
        %v1122 = vld [vmem:[%s417 + $0x1300] sm:$0xff]
        %v1123 = vld [vmem:[%s417 + $0x1308] sm:$0xff]
        %v1124 = vld [vmem:[%s417 + $0x1310] sm:$0xff]
        %v1125 = vld [vmem:[%s417 + $0x1318] sm:$0xff]
        %v1126 = vld [vmem:[%s417 + $0x1320] sm:$0xff]
        %v1127 = vld [vmem:[%s417 + $0x1328] sm:$0xff]
        %v1128 = vld [vmem:[%s417 + $0x1330] sm:$0xff]
        %v1129 = vld [vmem:[%s417 + $0x1338] sm:$0xff]
        %v1130 = vld [vmem:[%s417 + $0x1340] sm:$0xff]
        %v1131 = vld [vmem:[%s417 + $0x1348] sm:$0xff]
        %v1132 = vld [vmem:[%s417 + $0x1350] sm:$0xff]
        %v1133 = vld [vmem:[%s417 + $0x1358] sm:$0xff]
        %v1134 = vld [vmem:[%s417 + $0x1360] sm:$0xff]
        %v1135 = vld [vmem:[%s417 + $0x1368] sm:$0xff]
        %v1136 = vld [vmem:[%s417 + $0x1370] sm:$0xff]
        %v1137 = vld [vmem:[%s417 + $0x1378] sm:$0xff]
        %v1138 = vld [vmem:[%s417 + $0x1380] sm:$0xff]
        %v1139 = vld [vmem:[%s417 + $0x1388] sm:$0xff]
        %v1140 = vld [vmem:[%s417 + $0x1390] sm:$0xff]
        %v1141 = vld [vmem:[%s417 + $0x1398] sm:$0xff]
        %v1142 = vld [vmem:[%s417 + $0x13a0] sm:$0xff]
        %v1143 = vld [vmem:[%s417 + $0x13a8] sm:$0xff]
        %v1144 = vld [vmem:[%s417 + $0x13b0] sm:$0xff]
        %v1145 = vld [vmem:[%s417 + $0x13b8] sm:$0xff]
        %v1146 = vld [vmem:[%s417 + $0x13c0] sm:$0xff]
        %v1147 = vld [vmem:[%s417 + $0x13c8] sm:$0xff]
        %v1148 = vld [vmem:[%s417 + $0x13d0] sm:$0xff]
        %v1149 = vld [vmem:[%s417 + $0x13d8] sm:$0xff]
        %v1150 = vld [vmem:[%s417 + $0x13e0] sm:$0xff]
        %v1151 = vld [vmem:[%s417 + $0x13e8] sm:$0xff]
        %v1152 = vld [vmem:[%s417 + $0x13f0] sm:$0xff]
        %v1153 = vld [vmem:[%s417 + $0x13f8] sm:$0xff]
        %v1154 = vld [vmem:[%s417 + $0x1400] sm:$0xff]
        %v1155 = vld [vmem:[%s417 + $0x1408] sm:$0xff]
        %v1156 = vld [vmem:[%s417 + $0x1410] sm:$0xff]
        %v1157 = vld [vmem:[%s417 + $0x1418] sm:$0xff]
        %v1158 = vld [vmem:[%s417 + $0x1420] sm:$0xff]
        %v1159 = vld [vmem:[%s417 + $0x1428] sm:$0xff]
        %v1160 = vld [vmem:[%s417 + $0x1430] sm:$0xff]
        %v1161 = vld [vmem:[%s417 + $0x1438] sm:$0xff]
        %v1162 = vld [vmem:[%s417 + $0x1440] sm:$0xff]
        %v1163 = vld [vmem:[%s417 + $0x1448] sm:$0xff]
        %v1164 = vld [vmem:[%s417 + $0x1450] sm:$0xff]
        %v1165 = vld [vmem:[%s417 + $0x1458] sm:$0xff]
        %v1166 = vld [vmem:[%s417 + $0x1460] sm:$0xff]
        %v1167 = vld [vmem:[%s417 + $0x1468] sm:$0xff]
        %v1168 = vld [vmem:[%s417 + $0x1470] sm:$0xff]
        %v1169 = vld [vmem:[%s417 + $0x1478] sm:$0xff]
        %v1170 = vld [vmem:[%s417 + $0x1480] sm:$0xff]
        %v1171 = vld [vmem:[%s417 + $0x1488] sm:$0xff]
        %v1172 = vld [vmem:[%s417 + $0x1490] sm:$0xff]
        %v1173 = vld [vmem:[%s417 + $0x1498] sm:$0xff]
        %v1174 = vld [vmem:[%s417 + $0x14a0] sm:$0xff]
        %v1175 = vld [vmem:[%s417 + $0x14a8] sm:$0xff]
        %v1176 = vld [vmem:[%s417 + $0x14b0] sm:$0xff]
        %v1177 = vld [vmem:[%s417 + $0x14b8] sm:$0xff]
        %v1178 = vld [vmem:[%s417 + $0x14c0] sm:$0xff]
        %v1179 = vld [vmem:[%s417 + $0x14c8] sm:$0xff]
        %v1180 = vld [vmem:[%s417 + $0x14d0] sm:$0xff]
        %v1181 = vld [vmem:[%s417 + $0x14d8] sm:$0xff]
        %v1182 = vld [vmem:[%s417 + $0x14e0] sm:$0xff]
        %v1183 = vld [vmem:[%s417 + $0x14e8] sm:$0xff]
        %v1184 = vld [vmem:[%s417 + $0x14f0] sm:$0xff]
        %v1185 = vld [vmem:[%s417 + $0x14f8] sm:$0xff]
        %v1186 = vld [vmem:[%s417 + $0x1500] sm:$0xff]
        %v1187 = vld [vmem:[%s417 + $0x1508] sm:$0xff]
        %v1188 = vld [vmem:[%s417 + $0x1510] sm:$0xff]
        %v1189 = vld [vmem:[%s417 + $0x1518] sm:$0xff]
        %v1190 = vld [vmem:[%s417 + $0x1520] sm:$0xff]
        %v1191 = vld [vmem:[%s417 + $0x1528] sm:$0xff]
        %v1192 = vld [vmem:[%s417 + $0x1530] sm:$0xff]
        %v1193 = vld [vmem:[%s417 + $0x1538] sm:$0xff]
        %v1194 = vld [vmem:[%s417 + $0x1540] sm:$0xff]
        %v1195 = vld [vmem:[%s417 + $0x1548] sm:$0xff]
        %v1196 = vld [vmem:[%s417 + $0x1550] sm:$0xff]
        %v1197 = vld [vmem:[%s417 + $0x1558] sm:$0xff]
        %v1198 = vld [vmem:[%s417 + $0x1560] sm:$0xff]
        %v1199 = vld [vmem:[%s417 + $0x1568] sm:$0xff]
        %v1200 = vld [vmem:[%s417 + $0x1570] sm:$0xff]
        %v1201 = vld [vmem:[%s417 + $0x1578] sm:$0xff]
        %v1202 = vld [vmem:[%s417 + $0x1580] sm:$0xff]
        %v1203 = vld [vmem:[%s417 + $0x1588] sm:$0xff]
        %v1204 = vld [vmem:[%s417 + $0x1590] sm:$0xff]
        %v1205 = vld [vmem:[%s417 + $0x1598] sm:$0xff]
        %v1206 = vld [vmem:[%s417 + $0x15a0] sm:$0xff]
        %v1207 = vld [vmem:[%s417 + $0x15a8] sm:$0xff]
        %v1208 = vld [vmem:[%s417 + $0x15b0] sm:$0xff]
        %v1209 = vld [vmem:[%s417 + $0x15b8] sm:$0xff]
        %v1210 = vld [vmem:[%s417 + $0x15c0] sm:$0xff]
        %v1211 = vld [vmem:[%s417 + $0x15c8] sm:$0xff]
        %v1212 = vld [vmem:[%s417 + $0x15d0] sm:$0xff]
        %v1213 = vld [vmem:[%s417 + $0x15d8] sm:$0xff]
        %v1214 = vld [vmem:[%s417 + $0x15e0] sm:$0xff]
        %v1215 = vld [vmem:[%s417 + $0x15e8] sm:$0xff]
        %v1216 = vld [vmem:[%s417 + $0x15f0] sm:$0xff]
        %v1217 = vld [vmem:[%s417 + $0x15f8] sm:$0xff]
        %v1218 = vld [vmem:[%s417 + $0x1600] sm:$0xff]
        %v1219 = vld [vmem:[%s417 + $0x1608] sm:$0xff]
        %v1220 = vld [vmem:[%s417 + $0x1610] sm:$0xff]
        %v1221 = vld [vmem:[%s417 + $0x1618] sm:$0xff]
        %v1222 = vld [vmem:[%s417 + $0x1620] sm:$0xff]
        %v1223 = vld [vmem:[%s417 + $0x1628] sm:$0xff]
        %v1224 = vld [vmem:[%s417 + $0x1630] sm:$0xff]
        %v1225 = vld [vmem:[%s417 + $0x1638] sm:$0xff]
        %v1226 = vld [vmem:[%s417 + $0x1640] sm:$0xff]
        %v1227 = vld [vmem:[%s417 + $0x1648] sm:$0xff]
        %v1228 = vld [vmem:[%s417 + $0x1650] sm:$0xff]
        %v1229 = vld [vmem:[%s417 + $0x1658] sm:$0xff]
        %v1230 = vld [vmem:[%s417 + $0x1660] sm:$0xff]
        %v1231 = vld [vmem:[%s417 + $0x1668] sm:$0xff]
        %v1232 = vld [vmem:[%s417 + $0x1670] sm:$0xff]
        %v1233 = vld [vmem:[%s417 + $0x1678] sm:$0xff]
        %v1234 = vld [vmem:[%s417 + $0x1680] sm:$0xff]
        %v1235 = vld [vmem:[%s417 + $0x1688] sm:$0xff]
        %v1236 = vld [vmem:[%s417 + $0x1690] sm:$0xff]
        %v1237 = vld [vmem:[%s417 + $0x1698] sm:$0xff]
        %v1238 = vld [vmem:[%s417 + $0x16a0] sm:$0xff]
        %v1239 = vld [vmem:[%s417 + $0x16a8] sm:$0xff]
        %v1240 = vld [vmem:[%s417 + $0x16b0] sm:$0xff]
        %v1241 = vld [vmem:[%s417 + $0x16b8] sm:$0xff]
        %v1242 = vld [vmem:[%s417 + $0x16c0] sm:$0xff]
        %v1243 = vld [vmem:[%s417 + $0x16c8] sm:$0xff]
        %v1244 = vld [vmem:[%s417 + $0x16d0] sm:$0xff]
        %v1245 = vld [vmem:[%s417 + $0x16d8] sm:$0xff]
        %v1246 = vld [vmem:[%s417 + $0x16e0] sm:$0xff]
        %v1247 = vld [vmem:[%s417 + $0x16e8] sm:$0xff]
        %v1248 = vld [vmem:[%s417 + $0x16f0] sm:$0xff]
        %v1249 = vld [vmem:[%s417 + $0x16f8] sm:$0xff]
        %v1250 = vld [vmem:[%s417 + $0x1700] sm:$0xff]
        %v1251 = vld [vmem:[%s417 + $0x1708] sm:$0xff]
        %v1252 = vld [vmem:[%s417 + $0x1710] sm:$0xff]
        %v1253 = vld [vmem:[%s417 + $0x1718] sm:$0xff]
        %v1254 = vld [vmem:[%s417 + $0x1720] sm:$0xff]
        %v1255 = vld [vmem:[%s417 + $0x1728] sm:$0xff]
        %v1256 = vld [vmem:[%s417 + $0x1730] sm:$0xff]
        %v1257 = vld [vmem:[%s417 + $0x1738] sm:$0xff]
        %v1258 = vld [vmem:[%s417 + $0x1740] sm:$0xff]
        %v1259 = vld [vmem:[%s417 + $0x1748] sm:$0xff]
        %v1260 = vld [vmem:[%s417 + $0x1750] sm:$0xff]
        %v1261 = vld [vmem:[%s417 + $0x1758] sm:$0xff]
        %v1262 = vld [vmem:[%s417 + $0x1760] sm:$0xff]
        %v1263 = vld [vmem:[%s417 + $0x1768] sm:$0xff]
        %v1264 = vld [vmem:[%s417 + $0x1770] sm:$0xff]
        %v1265 = vld [vmem:[%s417 + $0x1778] sm:$0xff]
        %v1266 = vld [vmem:[%s417 + $0x1780] sm:$0xff]
        %v1267 = vld [vmem:[%s417 + $0x1788] sm:$0xff]
        %v1268 = vld [vmem:[%s417 + $0x1790] sm:$0xff]
        %v1269 = vld [vmem:[%s417 + $0x1798] sm:$0xff]
        %v1270 = vld [vmem:[%s417 + $0x17a0] sm:$0xff]
        %v1271 = vld [vmem:[%s417 + $0x17a8] sm:$0xff]
        %v1272 = vld [vmem:[%s417 + $0x17b0] sm:$0xff]
        %v1273 = vld [vmem:[%s417 + $0x17b8] sm:$0xff]
        %v1274 = vld [vmem:[%s417 + $0x17c0] sm:$0xff]
        %v1275 = vld [vmem:[%s417 + $0x17c8] sm:$0xff]
        %v1276 = vld [vmem:[%s417 + $0x17d0] sm:$0xff]
        %v1277 = vld [vmem:[%s417 + $0x17d8] sm:$0xff]
        %v1278 = vld [vmem:[%s417 + $0x17e0] sm:$0xff]
        %v1279 = vld [vmem:[%s417 + $0x17e8] sm:$0xff]
        %v1280 = vld [vmem:[%s417 + $0x17f0] sm:$0xff]
        %v1281 = vld [vmem:[%s417 + $0x17f8] sm:$0xff]
        %v1282 = vld [vmem:[%s417 + $0x1800] sm:$0xff]
        %v1283 = vld [vmem:[%s417 + $0x1808] sm:$0xff]
        %v1284 = vld [vmem:[%s417 + $0x1810] sm:$0xff]
        %v1285 = vld [vmem:[%s417 + $0x1818] sm:$0xff]
        %v1286 = vld [vmem:[%s417 + $0x1820] sm:$0xff]
        %v1287 = vld [vmem:[%s417 + $0x1828] sm:$0xff]
        %v1288 = vld [vmem:[%s417 + $0x1830] sm:$0xff]
        %v1289 = vld [vmem:[%s417 + $0x1838] sm:$0xff]
        %v1290 = vld [vmem:[%s417 + $0x1840] sm:$0xff]
        %v1291 = vld [vmem:[%s417 + $0x1848] sm:$0xff]
        %v1292 = vld [vmem:[%s417 + $0x1850] sm:$0xff]
        %v1293 = vld [vmem:[%s417 + $0x1858] sm:$0xff]
        %v1294 = vld [vmem:[%s417 + $0x1860] sm:$0xff]
        %v1295 = vld [vmem:[%s417 + $0x1868] sm:$0xff]
        %v1296 = vld [vmem:[%s417 + $0x1870] sm:$0xff]
        %v1297 = vld [vmem:[%s417 + $0x1878] sm:$0xff]
        %v1298 = vld [vmem:[%s417 + $0x1880] sm:$0xff]
        %v1299 = vld [vmem:[%s417 + $0x1888] sm:$0xff]
        %v1300 = vld [vmem:[%s417 + $0x1890] sm:$0xff]
        %v1301 = vld [vmem:[%s417 + $0x1898] sm:$0xff]
        %v1302 = vld [vmem:[%s417 + $0x18a0] sm:$0xff]
        %v1303 = vld [vmem:[%s417 + $0x18a8] sm:$0xff]
        %v1304 = vld [vmem:[%s417 + $0x18b0] sm:$0xff]
        %v1305 = vld [vmem:[%s417 + $0x18b8] sm:$0xff]
        %v1306 = vld [vmem:[%s417 + $0x18c0] sm:$0xff]
        %v1307 = vld [vmem:[%s417 + $0x18c8] sm:$0xff]
        %v1308 = vld [vmem:[%s417 + $0x18d0] sm:$0xff]
        %v1309 = vld [vmem:[%s417 + $0x18d8] sm:$0xff]
        %v1310 = vld [vmem:[%s417 + $0x18e0] sm:$0xff]
        %v1311 = vld [vmem:[%s417 + $0x18e8] sm:$0xff]
        %v1312 = vld [vmem:[%s417 + $0x18f0] sm:$0xff]
        %v1313 = vld [vmem:[%s417 + $0x18f8] sm:$0xff]
        %v1314 = vld [vmem:[%s417 + $0x1900] sm:$0xff]
        %v1315 = vld [vmem:[%s417 + $0x1908] sm:$0xff]
        %v1316 = vld [vmem:[%s417 + $0x1910] sm:$0xff]
        %v1317 = vld [vmem:[%s417 + $0x1918] sm:$0xff]
        %v1318 = vld [vmem:[%s417 + $0x1920] sm:$0xff]
        %v1319 = vld [vmem:[%s417 + $0x1928] sm:$0xff]
        %v1320 = vld [vmem:[%s417 + $0x1930] sm:$0xff]
        %v1321 = vld [vmem:[%s417 + $0x1938] sm:$0xff]
        %v1322 = vld [vmem:[%s417 + $0x1940] sm:$0xff]
        %v1323 = vld [vmem:[%s417 + $0x1948] sm:$0xff]
        %v1324 = vld [vmem:[%s417 + $0x1950] sm:$0xff]
        %v1325 = vld [vmem:[%s417 + $0x1958] sm:$0xff]
        %v1326 = vld [vmem:[%s417 + $0x1960] sm:$0xff]
        %v1327 = vld [vmem:[%s417 + $0x1968] sm:$0xff]
        %v1328 = vld [vmem:[%s417 + $0x1970] sm:$0xff]
        %v1329 = vld [vmem:[%s417 + $0x1978] sm:$0xff]
        %v1330 = vld [vmem:[%s417 + $0x1980] sm:$0xff]
        %v1331 = vld [vmem:[%s417 + $0x1988] sm:$0xff]
        %v1332 = vld [vmem:[%s417 + $0x1990] sm:$0xff]
        %v1333 = vld [vmem:[%s417 + $0x1998] sm:$0xff]
        %v1334 = vld [vmem:[%s417 + $0x19a0] sm:$0xff]
        %v1335 = vld [vmem:[%s417 + $0x19a8] sm:$0xff]
        %v1336 = vld [vmem:[%s417 + $0x19b0] sm:$0xff]
        %v1337 = vld [vmem:[%s417 + $0x19b8] sm:$0xff]
        %v1338 = vld [vmem:[%s417 + $0x19c0] sm:$0xff]
        %v1339 = vld [vmem:[%s417 + $0x19c8] sm:$0xff]
        %v1340 = vld [vmem:[%s417 + $0x19d0] sm:$0xff]
        %v1341 = vld [vmem:[%s417 + $0x19d8] sm:$0xff]
        %v1342 = vld [vmem:[%s417 + $0x19e0] sm:$0xff]
        %v1343 = vld [vmem:[%s417 + $0x19e8] sm:$0xff]
        %v1344 = vld [vmem:[%s417 + $0x19f0] sm:$0xff]
        %v1345 = vld [vmem:[%s417 + $0x19f8] sm:$0xff]
        %v1346 = vld [vmem:[%s417 + $0x1a00] sm:$0xff]
        %v1347 = vld [vmem:[%s417 + $0x1a08] sm:$0xff]
        %v1348 = vld [vmem:[%s417 + $0x1a10] sm:$0xff]
        %v1349 = vld [vmem:[%s417 + $0x1a18] sm:$0xff]
        %v1350 = vld [vmem:[%s417 + $0x1a20] sm:$0xff]
        %v1351 = vld [vmem:[%s417 + $0x1a28] sm:$0xff]
        %v1352 = vld [vmem:[%s417 + $0x1a30] sm:$0xff]
        %v1353 = vld [vmem:[%s417 + $0x1a38] sm:$0xff]
        %v1354 = vld [vmem:[%s417 + $0x1a40] sm:$0xff]
        %v1355 = vld [vmem:[%s417 + $0x1a48] sm:$0xff]
        %v1356 = vld [vmem:[%s417 + $0x1a50] sm:$0xff]
        %v1357 = vld [vmem:[%s417 + $0x1a58] sm:$0xff]
        %v1358 = vld [vmem:[%s417 + $0x1a60] sm:$0xff]
        %v1359 = vld [vmem:[%s417 + $0x1a68] sm:$0xff]
        %v1360 = vld [vmem:[%s417 + $0x1a70] sm:$0xff]
        %v1361 = vld [vmem:[%s417 + $0x1a78] sm:$0xff]
        %v1362 = vld [vmem:[%s417 + $0x1a80] sm:$0xff]
        %v1363 = vld [vmem:[%s417 + $0x1a88] sm:$0xff]
        %v1364 = vld [vmem:[%s417 + $0x1a90] sm:$0xff]
        %v1365 = vld [vmem:[%s417 + $0x1a98] sm:$0xff]
        %v1366 = vld [vmem:[%s417 + $0x1aa0] sm:$0xff]
        %v1367 = vld [vmem:[%s417 + $0x1aa8] sm:$0xff]
        %v1368 = vld [vmem:[%s417 + $0x1ab0] sm:$0xff]
        %v1369 = vld [vmem:[%s417 + $0x1ab8] sm:$0xff]
        %v1370 = vld [vmem:[%s417 + $0x1ac0] sm:$0xff]
        %v1371 = vld [vmem:[%s417 + $0x1ac8] sm:$0xff]
        %v1372 = vld [vmem:[%s417 + $0x1ad0] sm:$0xff]
        %v1373 = vld [vmem:[%s417 + $0x1ad8] sm:$0xff]
        %v1374 = vld [vmem:[%s417 + $0x1ae0] sm:$0xff]
        %v1375 = vld [vmem:[%s417 + $0x1ae8] sm:$0xff]
        %v1376 = vld [vmem:[%s417 + $0x1af0] sm:$0xff]
        %v1377 = vld [vmem:[%s417 + $0x1af8] sm:$0xff]
        %v1378 = vld [vmem:[%s417 + $0x1b00] sm:$0xff]
        %v1379 = vld [vmem:[%s417 + $0x1b08] sm:$0xff]
        %v1380 = vld [vmem:[%s417 + $0x1b10] sm:$0xff]
        %v1381 = vld [vmem:[%s417 + $0x1b18] sm:$0xff]
        %v1382 = vld [vmem:[%s417 + $0x1b20] sm:$0xff]
        %v1383 = vld [vmem:[%s417 + $0x1b28] sm:$0xff]
        %v1384 = vld [vmem:[%s417 + $0x1b30] sm:$0xff]
        %v1385 = vld [vmem:[%s417 + $0x1b38] sm:$0xff]
        %v1386 = vld [vmem:[%s417 + $0x1b40] sm:$0xff]
        %v1387 = vld [vmem:[%s417 + $0x1b48] sm:$0xff]
        %v1388 = vld [vmem:[%s417 + $0x1b50] sm:$0xff]
        %v1389 = vld [vmem:[%s417 + $0x1b58] sm:$0xff]
        %v1390 = vld [vmem:[%s417 + $0x1b60] sm:$0xff]
        %v1391 = vld [vmem:[%s417 + $0x1b68] sm:$0xff]
        %v1392 = vld [vmem:[%s417 + $0x1b70] sm:$0xff]
        %v1393 = vld [vmem:[%s417 + $0x1b78] sm:$0xff]
        %v1394 = vld [vmem:[%s417 + $0x1b80] sm:$0xff]
        %v1395 = vld [vmem:[%s417 + $0x1b88] sm:$0xff]
        %v1396 = vld [vmem:[%s417 + $0x1b90] sm:$0xff]
        %v1397 = vld [vmem:[%s417 + $0x1b98] sm:$0xff]
        %v1398 = vld [vmem:[%s417 + $0x1ba0] sm:$0xff]
        %v1399 = vld [vmem:[%s417 + $0x1ba8] sm:$0xff]
        %v1400 = vld [vmem:[%s417 + $0x1bb0] sm:$0xff]
        %v1401 = vld [vmem:[%s417 + $0x1bb8] sm:$0xff]
        %v1402 = vld [vmem:[%s417 + $0x1bc0] sm:$0xff]
        %v1403 = vld [vmem:[%s417 + $0x1bc8] sm:$0xff]
        %v1404 = vld [vmem:[%s417 + $0x1bd0] sm:$0xff]
        %v1405 = vld [vmem:[%s417 + $0x1bd8] sm:$0xff]
        %v1406 = vld [vmem:[%s417 + $0x1be0] sm:$0xff]
        %v1407 = vld [vmem:[%s417 + $0x1be8] sm:$0xff]
        %v1408 = vld [vmem:[%s417 + $0x1bf0] sm:$0xff]
        %v1409 = vld [vmem:[%s417 + $0x1bf8] sm:$0xff]
        %v1410 = vld [vmem:[%s417 + $0x1c00] sm:$0xff]
        %v1411 = vld [vmem:[%s417 + $0x1c08] sm:$0xff]
        %v1412 = vld [vmem:[%s417 + $0x1c10] sm:$0xff]
        %v1413 = vld [vmem:[%s417 + $0x1c18] sm:$0xff]
        %v1414 = vld [vmem:[%s417 + $0x1c20] sm:$0xff]
        %v1415 = vld [vmem:[%s417 + $0x1c28] sm:$0xff]
        %v1416 = vld [vmem:[%s417 + $0x1c30] sm:$0xff]
        %v1417 = vld [vmem:[%s417 + $0x1c38] sm:$0xff]
        %v1418 = vld [vmem:[%s417 + $0x1c40] sm:$0xff]
        %v1419 = vld [vmem:[%s417 + $0x1c48] sm:$0xff]
        %v1420 = vld [vmem:[%s417 + $0x1c50] sm:$0xff]
        %v1421 = vld [vmem:[%s417 + $0x1c58] sm:$0xff]
        %v1422 = vld [vmem:[%s417 + $0x1c60] sm:$0xff]
        %v1423 = vld [vmem:[%s417 + $0x1c68] sm:$0xff]
        %v1424 = vld [vmem:[%s417 + $0x1c70] sm:$0xff]
        %v1425 = vld [vmem:[%s417 + $0x1c78] sm:$0xff]
        %v1426 = vld [vmem:[%s417 + $0x1c80] sm:$0xff]
        %v1427 = vld [vmem:[%s417 + $0x1c88] sm:$0xff]
        %v1428 = vld [vmem:[%s417 + $0x1c90] sm:$0xff]
        %v1429 = vld [vmem:[%s417 + $0x1c98] sm:$0xff]
        %v1430 = vld [vmem:[%s417 + $0x1ca0] sm:$0xff]
        %v1431 = vld [vmem:[%s417 + $0x1ca8] sm:$0xff]
        %v1432 = vld [vmem:[%s417 + $0x1cb0] sm:$0xff]
        %v1433 = vld [vmem:[%s417 + $0x1cb8] sm:$0xff]
        %v1434 = vld [vmem:[%s417 + $0x1cc0] sm:$0xff]
        %v1435 = vld [vmem:[%s417 + $0x1cc8] sm:$0xff]
        %v1436 = vld [vmem:[%s417 + $0x1cd0] sm:$0xff]
        %v1437 = vld [vmem:[%s417 + $0x1cd8] sm:$0xff]
        %v1438 = vld [vmem:[%s417 + $0x1ce0] sm:$0xff]
        %v1439 = vld [vmem:[%s417 + $0x1ce8] sm:$0xff]
        %v1440 = vld [vmem:[%s417 + $0x1cf0] sm:$0xff]
        %v1441 = vld [vmem:[%s417 + $0x1cf8] sm:$0xff]
        %v1442 = vld [vmem:[%s417 + $0x1d00] sm:$0xff]
        %v1443 = vld [vmem:[%s417 + $0x1d08] sm:$0xff]
        %v1444 = vld [vmem:[%s417 + $0x1d10] sm:$0xff]
        %v1445 = vld [vmem:[%s417 + $0x1d18] sm:$0xff]
        %v1446 = vld [vmem:[%s417 + $0x1d20] sm:$0xff]
        %v1447 = vld [vmem:[%s417 + $0x1d28] sm:$0xff]
        %v1448 = vld [vmem:[%s417 + $0x1d30] sm:$0xff]
        %v1449 = vld [vmem:[%s417 + $0x1d38] sm:$0xff]
        %v1450 = vld [vmem:[%s417 + $0x1d40] sm:$0xff]
        %v1451 = vld [vmem:[%s417 + $0x1d48] sm:$0xff]
        %v1452 = vld [vmem:[%s417 + $0x1d50] sm:$0xff]
        %v1453 = vld [vmem:[%s417 + $0x1d58] sm:$0xff]
        %v1454 = vld [vmem:[%s417 + $0x1d60] sm:$0xff]
        %v1455 = vld [vmem:[%s417 + $0x1d68] sm:$0xff]
        %v1456 = vld [vmem:[%s417 + $0x1d70] sm:$0xff]
        %v1457 = vld [vmem:[%s417 + $0x1d78] sm:$0xff]
        %v1458 = vld [vmem:[%s417 + $0x1d80] sm:$0xff]
        %v1459 = vld [vmem:[%s417 + $0x1d88] sm:$0xff]
        %v1460 = vld [vmem:[%s417 + $0x1d90] sm:$0xff]
        %v1461 = vld [vmem:[%s417 + $0x1d98] sm:$0xff]
        %v1462 = vld [vmem:[%s417 + $0x1da0] sm:$0xff]
        %v1463 = vld [vmem:[%s417 + $0x1da8] sm:$0xff]
        %v1464 = vld [vmem:[%s417 + $0x1db0] sm:$0xff]
        %v1465 = vld [vmem:[%s417 + $0x1db8] sm:$0xff]
        %v1466 = vld [vmem:[%s417 + $0x1dc0] sm:$0xff]
        %v1467 = vld [vmem:[%s417 + $0x1dc8] sm:$0xff]
        %v1468 = vld [vmem:[%s417 + $0x1dd0] sm:$0xff]
        %v1469 = vld [vmem:[%s417 + $0x1dd8] sm:$0xff]
        %v1470 = vld [vmem:[%s417 + $0x1de0] sm:$0xff]
        %v1471 = vld [vmem:[%s417 + $0x1de8] sm:$0xff]
        %v1472 = vld [vmem:[%s417 + $0x1df0] sm:$0xff]
        %v1473 = vld [vmem:[%s417 + $0x1df8] sm:$0xff]
        %v1474 = vld [vmem:[%s417 + $0x1e00] sm:$0xff]
        %v1475 = vld [vmem:[%s417 + $0x1e08] sm:$0xff]
        %v1476 = vld [vmem:[%s417 + $0x1e10] sm:$0xff]
        %v1477 = vld [vmem:[%s417 + $0x1e18] sm:$0xff]
        %v1478 = vld [vmem:[%s417 + $0x1e20] sm:$0xff]
        %v1479 = vld [vmem:[%s417 + $0x1e28] sm:$0xff]
        %v1480 = vld [vmem:[%s417 + $0x1e30] sm:$0xff]
        %v1481 = vld [vmem:[%s417 + $0x1e38] sm:$0xff]
        %v1482 = vld [vmem:[%s417 + $0x1e40] sm:$0xff]
        %v1483 = vld [vmem:[%s417 + $0x1e48] sm:$0xff]
        %v1484 = vld [vmem:[%s417 + $0x1e50] sm:$0xff]
        %v1485 = vld [vmem:[%s417 + $0x1e58] sm:$0xff]
        %v1486 = vld [vmem:[%s417 + $0x1e60] sm:$0xff]
        %v1487 = vld [vmem:[%s417 + $0x1e68] sm:$0xff]
        %v1488 = vld [vmem:[%s417 + $0x1e70] sm:$0xff]
        %v1489 = vld [vmem:[%s417 + $0x1e78] sm:$0xff]
        %v1490 = vld [vmem:[%s417 + $0x1e80] sm:$0xff]
        %v1491 = vld [vmem:[%s417 + $0x1e88] sm:$0xff]
        %v1492 = vld [vmem:[%s417 + $0x1e90] sm:$0xff]
        %v1493 = vld [vmem:[%s417 + $0x1e98] sm:$0xff]
        %v1494 = vld [vmem:[%s417 + $0x1ea0] sm:$0xff]
        %v1495 = vld [vmem:[%s417 + $0x1ea8] sm:$0xff]
        %v1496 = vld [vmem:[%s417 + $0x1eb0] sm:$0xff]
        %v1497 = vld [vmem:[%s417 + $0x1eb8] sm:$0xff]
        %v1498 = vld [vmem:[%s417 + $0x1ec0] sm:$0xff]
        %v1499 = vld [vmem:[%s417 + $0x1ec8] sm:$0xff]
        %v1500 = vld [vmem:[%s417 + $0x1ed0] sm:$0xff]
        %v1501 = vld [vmem:[%s417 + $0x1ed8] sm:$0xff]
        %v1502 = vld [vmem:[%s417 + $0x1ee0] sm:$0xff]
        %v1503 = vld [vmem:[%s417 + $0x1ee8] sm:$0xff]
        %v1504 = vld [vmem:[%s417 + $0x1ef0] sm:$0xff]
        %v1505 = vld [vmem:[%s417 + $0x1ef8] sm:$0xff]
        %v1506 = vld [vmem:[%s417 + $0x1f00] sm:$0xff]
        %v1507 = vld [vmem:[%s417 + $0x1f08] sm:$0xff]
        %v1508 = vld [vmem:[%s417 + $0x1f10] sm:$0xff]
        %v1509 = vld [vmem:[%s417 + $0x1f18] sm:$0xff]
        %v1510 = vld [vmem:[%s417 + $0x1f20] sm:$0xff]
        %v1511 = vld [vmem:[%s417 + $0x1f28] sm:$0xff]
        %v1512 = vld [vmem:[%s417 + $0x1f30] sm:$0xff]
        %v1513 = vld [vmem:[%s417 + $0x1f38] sm:$0xff]
        %v1514 = vld [vmem:[%s417 + $0x1f40] sm:$0xff]
        %v1515 = vld [vmem:[%s417 + $0x1f48] sm:$0xff]
        %v1516 = vld [vmem:[%s417 + $0x1f50] sm:$0xff]
        %v1517 = vld [vmem:[%s417 + $0x1f58] sm:$0xff]
        %v1518 = vld [vmem:[%s417 + $0x1f60] sm:$0xff]
        %v1519 = vld [vmem:[%s417 + $0x1f68] sm:$0xff]
        %v1520 = vld [vmem:[%s417 + $0x1f70] sm:$0xff]
        %v1521 = vld [vmem:[%s417 + $0x1f78] sm:$0xff]
        %v1522 = vld [vmem:[%s417 + $0x1f80] sm:$0xff]
        %v1523 = vld [vmem:[%s417 + $0x1f88] sm:$0xff]
        %v1524 = vld [vmem:[%s417 + $0x1f90] sm:$0xff]
        %v1525 = vld [vmem:[%s417 + $0x1f98] sm:$0xff]
        %v1526 = vld [vmem:[%s417 + $0x1fa0] sm:$0xff]
        %v1527 = vld [vmem:[%s417 + $0x1fa8] sm:$0xff]
        %v1528 = vld [vmem:[%s417 + $0x1fb0] sm:$0xff]
        %v1529 = vld [vmem:[%s417 + $0x1fb8] sm:$0xff]
        %v1530 = vld [vmem:[%s417 + $0x1fc0] sm:$0xff]
        %v1531 = vld [vmem:[%s417 + $0x1fc8] sm:$0xff]
        %v1532 = vld [vmem:[%s417 + $0x1fd0] sm:$0xff]
        %v1533 = vld [vmem:[%s417 + $0x1fd8] sm:$0xff]
        %v1534 = vld [vmem:[%s417 + $0x1fe0] sm:$0xff]
        %v1535 = vld [vmem:[%s417 + $0x1fe8] sm:$0xff]
        %v1536 = vld [vmem:[%s417 + $0x1ff0] sm:$0xff]
        %v1537 = vld [vmem:[%s417 + $0x1ff8] sm:$0xff]
        %v1540 = vcombine.high %v512, %v512
        %v1542 = vunpack.c.l.s4 1966171168
        %v1543 = vunpack.c.0.s8 %v1542
        %v1544 = vlaneseq
        %v1545 = vshrl.u32 %v1544, 7
        %v1546 = vsub.s32 %v1543, %v1545
        %v1547 = vrot.slane %v512, %v1546
        %v1549 = vunpack.c.l.s4 1966171168
        %v1550 = vunpack.c.0.s8 %v1549
        %v1551 = vlaneseq
        %v1552 = vshrl.u32 %v1551, 7
        %v1553 = vsub.s32 %v1550, %v1552
        %v1554 = vrot.slane %v1540, %v1553
        %v1555 = vcombine.high %v1547, %v1547
        %v1556 = vcombine.high %v1554, %v1554
        %v1558 = vunpack.c.l.s4 1966171168
        %v1559 = vunpack.c.0.s8 %v1558
        %v1560 = vlaneseq
        %v1561 = vshrl.u32 %v1560, 7
        %v1562 = vsub.s32 %v1559, %v1561
        %v1563 = vrot.slane %v1547, %v1562
        %v1565 = vunpack.c.l.s4 1966171168
        %v1566 = vunpack.c.0.s8 %v1565
        %v1567 = vlaneseq
        %v1568 = vshrl.u32 %v1567, 7
        %v1569 = vsub.s32 %v1566, %v1568
        %v1570 = vrot.slane %v1554, %v1569
        %v1572 = vunpack.c.l.s4 1966171168
        %v1573 = vunpack.c.0.s8 %v1572
        %v1574 = vlaneseq
        %v1575 = vshrl.u32 %v1574, 7
        %v1576 = vsub.s32 %v1573, %v1575
        %v1577 = vrot.slane %v1555, %v1576
        %v1579 = vunpack.c.l.s4 1966171168
        %v1580 = vunpack.c.0.s8 %v1579
        %v1581 = vlaneseq
        %v1582 = vshrl.u32 %v1581, 7
        %v1583 = vsub.s32 %v1580, %v1582
        %v1584 = vrot.slane %v1556, %v1583
        %v1585 = vcombine.high %v1563, %v1563
        %v1586 = vcombine.high %v1570, %v1570
        %v1587 = vcombine.high %v1577, %v1577
        %v1588 = vcombine.high %v1584, %v1584
        %v1589 = vcombine.high %v513, %v513
        %v1591 = vunpack.c.l.s4 1966171168
        %v1592 = vunpack.c.0.s8 %v1591
        %v1593 = vlaneseq
        %v1594 = vshrl.u32 %v1593, 7
        %v1595 = vsub.s32 %v1592, %v1594
        %v1596 = vrot.slane %v513, %v1595
        %v1598 = vunpack.c.l.s4 1966171168
        %v1599 = vunpack.c.0.s8 %v1598
        %v1600 = vlaneseq
        %v1601 = vshrl.u32 %v1600, 7
        %v1602 = vsub.s32 %v1599, %v1601
        %v1603 = vrot.slane %v1589, %v1602
        %v1604 = vcombine.high %v1596, %v1596
        %v1605 = vcombine.high %v1603, %v1603
        %v1607 = vunpack.c.l.s4 1966171168
        %v1608 = vunpack.c.0.s8 %v1607
        %v1609 = vlaneseq
        %v1610 = vshrl.u32 %v1609, 7
        %v1611 = vsub.s32 %v1608, %v1610
        %v1612 = vrot.slane %v1596, %v1611
        %v1614 = vunpack.c.l.s4 1966171168
        %v1615 = vunpack.c.0.s8 %v1614
        %v1616 = vlaneseq
        %v1617 = vshrl.u32 %v1616, 7
        %v1618 = vsub.s32 %v1615, %v1617
        %v1619 = vrot.slane %v1603, %v1618
        %v1621 = vunpack.c.l.s4 1966171168
        %v1622 = vunpack.c.0.s8 %v1621
        %v1623 = vlaneseq
        %v1624 = vshrl.u32 %v1623, 7
        %v1625 = vsub.s32 %v1622, %v1624
        %v1626 = vrot.slane %v1604, %v1625
        %v1628 = vunpack.c.l.s4 1966171168
        %v1629 = vunpack.c.0.s8 %v1628
        %v1630 = vlaneseq
        %v1631 = vshrl.u32 %v1630, 7
        %v1632 = vsub.s32 %v1629, %v1631
        %v1633 = vrot.slane %v1605, %v1632
        %v1634 = vcombine.high %v1612, %v1612
        %v1635 = vcombine.high %v1619, %v1619
        %v1636 = vcombine.high %v1626, %v1626
        %v1637 = vcombine.high %v1633, %v1633
        %v2678 = vunpack.c.l.b16 %v514
        %v2679 = vunpack.c.h.b16 %v514
        %v2680 = vunpack.c.l.b16 %v515
        %v2681 = vunpack.c.h.b16 %v515
        %v2682 = vunpack.c.l.b16 %v516
        %v2683 = vunpack.c.h.b16 %v516
        %v2684 = vunpack.c.l.b16 %v517
        %v2685 = vunpack.c.h.b16 %v517
        %v2686 = vunpack.c.l.b16 %v518
        %v2687 = vunpack.c.h.b16 %v518
        %v2688 = vunpack.c.l.b16 %v519
        %v2689 = vunpack.c.h.b16 %v519
        %v2690 = vunpack.c.l.b16 %v520
        %v2691 = vunpack.c.h.b16 %v520
        %v2692 = vunpack.c.l.b16 %v521
        %v2693 = vunpack.c.h.b16 %v521
        %v2694 = vunpack.c.l.b16 %v522
        %v2695 = vunpack.c.h.b16 %v522
        %v2696 = vunpack.c.l.b16 %v523
        %v2697 = vunpack.c.h.b16 %v523
        %v2698 = vunpack.c.l.b16 %v524
        %v2699 = vunpack.c.h.b16 %v524
        %v2700 = vunpack.c.l.b16 %v525
        %v2701 = vunpack.c.h.b16 %v525
        %v2702 = vunpack.c.l.b16 %v526
        %v2703 = vunpack.c.h.b16 %v526
        %v2704 = vunpack.c.l.b16 %v527
        %v2705 = vunpack.c.h.b16 %v527
        %v2706 = vunpack.c.l.b16 %v528
        %v2707 = vunpack.c.h.b16 %v528
        %v2708 = vunpack.c.l.b16 %v529
        %v2709 = vunpack.c.h.b16 %v529
        %v2710 = vunpack.c.l.b16 %v530
        %v2711 = vunpack.c.h.b16 %v530
        %v2712 = vunpack.c.l.b16 %v531
        %v2713 = vunpack.c.h.b16 %v531
        %v2714 = vunpack.c.l.b16 %v532
        %v2715 = vunpack.c.h.b16 %v532
        %v2716 = vunpack.c.l.b16 %v533
        %v2717 = vunpack.c.h.b16 %v533
        %v2718 = vunpack.c.l.b16 %v534
        %v2719 = vunpack.c.h.b16 %v534
        %v2720 = vunpack.c.l.b16 %v535
        %v2721 = vunpack.c.h.b16 %v535
        %v2722 = vunpack.c.l.b16 %v536
        %v2723 = vunpack.c.h.b16 %v536
        %v2724 = vunpack.c.l.b16 %v537
        %v2725 = vunpack.c.h.b16 %v537
        %v2726 = vunpack.c.l.b16 %v538
        %v2727 = vunpack.c.h.b16 %v538
        %v2728 = vunpack.c.l.b16 %v539
        %v2729 = vunpack.c.h.b16 %v539
        %v2730 = vunpack.c.l.b16 %v540
        %v2731 = vunpack.c.h.b16 %v540
        %v2732 = vunpack.c.l.b16 %v541
        %v2733 = vunpack.c.h.b16 %v541
        %v2734 = vunpack.c.l.b16 %v542
        %v2735 = vunpack.c.h.b16 %v542
        %v2736 = vunpack.c.l.b16 %v543
        %v2737 = vunpack.c.h.b16 %v543
        %v2738 = vunpack.c.l.b16 %v544
        %v2739 = vunpack.c.h.b16 %v544
        %v2740 = vunpack.c.l.b16 %v545
        %v2741 = vunpack.c.h.b16 %v545
        %v2742 = vunpack.c.l.b16 %v546
        %v2743 = vunpack.c.h.b16 %v546
        %v2744 = vunpack.c.l.b16 %v547
        %v2745 = vunpack.c.h.b16 %v547
        %v2746 = vunpack.c.l.b16 %v548
        %v2747 = vunpack.c.h.b16 %v548
        %v2748 = vunpack.c.l.b16 %v549
        %v2749 = vunpack.c.h.b16 %v549
        %v2750 = vunpack.c.l.b16 %v550
        %v2751 = vunpack.c.h.b16 %v550
        %v2752 = vunpack.c.l.b16 %v551
        %v2753 = vunpack.c.h.b16 %v551
        %v2754 = vunpack.c.l.b16 %v552
        %v2755 = vunpack.c.h.b16 %v552
        %v2756 = vunpack.c.l.b16 %v553
        %v2757 = vunpack.c.h.b16 %v553
        %v2758 = vunpack.c.l.b16 %v554
        %v2759 = vunpack.c.h.b16 %v554
        %v2760 = vunpack.c.l.b16 %v555
        %v2761 = vunpack.c.h.b16 %v555
        %v2762 = vunpack.c.l.b16 %v556
        %v2763 = vunpack.c.h.b16 %v556
        %v2764 = vunpack.c.l.b16 %v557
        %v2765 = vunpack.c.h.b16 %v557
        %v2766 = vunpack.c.l.b16 %v558
        %v2767 = vunpack.c.h.b16 %v558
        %v2768 = vunpack.c.l.b16 %v559
        %v2769 = vunpack.c.h.b16 %v559
        %v2770 = vunpack.c.l.b16 %v560
        %v2771 = vunpack.c.h.b16 %v560
        %v2772 = vunpack.c.l.b16 %v561
        %v2773 = vunpack.c.h.b16 %v561
        %v2774 = vunpack.c.l.b16 %v562
        %v2775 = vunpack.c.h.b16 %v562
        %v2776 = vunpack.c.l.b16 %v563
        %v2777 = vunpack.c.h.b16 %v563
        %v2778 = vunpack.c.l.b16 %v564
        %v2779 = vunpack.c.h.b16 %v564
        %v2780 = vunpack.c.l.b16 %v565
        %v2781 = vunpack.c.h.b16 %v565
        %v2782 = vunpack.c.l.b16 %v566
        %v2783 = vunpack.c.h.b16 %v566
        %v2784 = vunpack.c.l.b16 %v567
        %v2785 = vunpack.c.h.b16 %v567
        %v2786 = vunpack.c.l.b16 %v568
        %v2787 = vunpack.c.h.b16 %v568
        %v2788 = vunpack.c.l.b16 %v569
        %v2789 = vunpack.c.h.b16 %v569
        %v2790 = vunpack.c.l.b16 %v570
        %v2791 = vunpack.c.h.b16 %v570
        %v2792 = vunpack.c.l.b16 %v571
        %v2793 = vunpack.c.h.b16 %v571
        %v2794 = vunpack.c.l.b16 %v572
        %v2795 = vunpack.c.h.b16 %v572
        %v2796 = vunpack.c.l.b16 %v573
        %v2797 = vunpack.c.h.b16 %v573
        %v2798 = vunpack.c.l.b16 %v574
        %v2799 = vunpack.c.h.b16 %v574
        %v2800 = vunpack.c.l.b16 %v575
        %v2801 = vunpack.c.h.b16 %v575
        %v2802 = vunpack.c.l.b16 %v576
        %v2803 = vunpack.c.h.b16 %v576
        %v2804 = vunpack.c.l.b16 %v577
        %v2805 = vunpack.c.h.b16 %v577
        %v2806 = vunpack.c.l.b16 %v578
        %v2807 = vunpack.c.h.b16 %v578
        %v2808 = vunpack.c.l.b16 %v579
        %v2809 = vunpack.c.h.b16 %v579
        %v2810 = vunpack.c.l.b16 %v580
        %v2811 = vunpack.c.h.b16 %v580
        %v2812 = vunpack.c.l.b16 %v581
        %v2813 = vunpack.c.h.b16 %v581
        %v2814 = vunpack.c.l.b16 %v582
        %v2815 = vunpack.c.h.b16 %v582
        %v2816 = vunpack.c.l.b16 %v583
        %v2817 = vunpack.c.h.b16 %v583
        %v2818 = vunpack.c.l.b16 %v584
        %v2819 = vunpack.c.h.b16 %v584
        %v2820 = vunpack.c.l.b16 %v585
        %v2821 = vunpack.c.h.b16 %v585
        %v2822 = vunpack.c.l.b16 %v586
        %v2823 = vunpack.c.h.b16 %v586
        %v2824 = vunpack.c.l.b16 %v587
        %v2825 = vunpack.c.h.b16 %v587
        %v2826 = vunpack.c.l.b16 %v588
        %v2827 = vunpack.c.h.b16 %v588
        %v2828 = vunpack.c.l.b16 %v589
        %v2829 = vunpack.c.h.b16 %v589
        %v2830 = vunpack.c.l.b16 %v590
        %v2831 = vunpack.c.h.b16 %v590
        %v2832 = vunpack.c.l.b16 %v591
        %v2833 = vunpack.c.h.b16 %v591
        %v2834 = vunpack.c.l.b16 %v592
        %v2835 = vunpack.c.h.b16 %v592
        %v2836 = vunpack.c.l.b16 %v593
        %v2837 = vunpack.c.h.b16 %v593
        %v2838 = vunpack.c.l.b16 %v594
        %v2839 = vunpack.c.h.b16 %v594
        %v2840 = vunpack.c.l.b16 %v595
        %v2841 = vunpack.c.h.b16 %v595
        %v2842 = vunpack.c.l.b16 %v596
        %v2843 = vunpack.c.h.b16 %v596
        %v2844 = vunpack.c.l.b16 %v597
        %v2845 = vunpack.c.h.b16 %v597
        %v2846 = vunpack.c.l.b16 %v598
        %v2847 = vunpack.c.h.b16 %v598
        %v2848 = vunpack.c.l.b16 %v599
        %v2849 = vunpack.c.h.b16 %v599
        %v2850 = vunpack.c.l.b16 %v600
        %v2851 = vunpack.c.h.b16 %v600
        %v2852 = vunpack.c.l.b16 %v601
        %v2853 = vunpack.c.h.b16 %v601
        %v2854 = vunpack.c.l.b16 %v602
        %v2855 = vunpack.c.h.b16 %v602
        %v2856 = vunpack.c.l.b16 %v603
        %v2857 = vunpack.c.h.b16 %v603
        %v2858 = vunpack.c.l.b16 %v604
        %v2859 = vunpack.c.h.b16 %v604
        %v2860 = vunpack.c.l.b16 %v605
        %v2861 = vunpack.c.h.b16 %v605
        %v2862 = vunpack.c.l.b16 %v606
        %v2863 = vunpack.c.h.b16 %v606
        %v2864 = vunpack.c.l.b16 %v607
        %v2865 = vunpack.c.h.b16 %v607
        %v2866 = vunpack.c.l.b16 %v608
        %v2867 = vunpack.c.h.b16 %v608
        %v2868 = vunpack.c.l.b16 %v609
        %v2869 = vunpack.c.h.b16 %v609
        %v2870 = vunpack.c.l.b16 %v610
        %v2871 = vunpack.c.h.b16 %v610
        %v2872 = vunpack.c.l.b16 %v611
        %v2873 = vunpack.c.h.b16 %v611
        %v2874 = vunpack.c.l.b16 %v612
        %v2875 = vunpack.c.h.b16 %v612
        %v2876 = vunpack.c.l.b16 %v613
        %v2877 = vunpack.c.h.b16 %v613
        %v2878 = vunpack.c.l.b16 %v614
        %v2879 = vunpack.c.h.b16 %v614
        %v2880 = vunpack.c.l.b16 %v615
        %v2881 = vunpack.c.h.b16 %v615
        %v2882 = vunpack.c.l.b16 %v616
        %v2883 = vunpack.c.h.b16 %v616
        %v2884 = vunpack.c.l.b16 %v617
        %v2885 = vunpack.c.h.b16 %v617
        %v2886 = vunpack.c.l.b16 %v618
        %v2887 = vunpack.c.h.b16 %v618
        %v2888 = vunpack.c.l.b16 %v619
        %v2889 = vunpack.c.h.b16 %v619
        %v2890 = vunpack.c.l.b16 %v620
        %v2891 = vunpack.c.h.b16 %v620
        %v2892 = vunpack.c.l.b16 %v621
        %v2893 = vunpack.c.h.b16 %v621
        %v2894 = vunpack.c.l.b16 %v622
        %v2895 = vunpack.c.h.b16 %v622
        %v2896 = vunpack.c.l.b16 %v623
        %v2897 = vunpack.c.h.b16 %v623
        %v2898 = vunpack.c.l.b16 %v624
        %v2899 = vunpack.c.h.b16 %v624
        %v2900 = vunpack.c.l.b16 %v625
        %v2901 = vunpack.c.h.b16 %v625
        %v2902 = vunpack.c.l.b16 %v626
        %v2903 = vunpack.c.h.b16 %v626
        %v2904 = vunpack.c.l.b16 %v627
        %v2905 = vunpack.c.h.b16 %v627
        %v2906 = vunpack.c.l.b16 %v628
        %v2907 = vunpack.c.h.b16 %v628
        %v2908 = vunpack.c.l.b16 %v629
        %v2909 = vunpack.c.h.b16 %v629
        %v2910 = vunpack.c.l.b16 %v630
        %v2911 = vunpack.c.h.b16 %v630
        %v2912 = vunpack.c.l.b16 %v631
        %v2913 = vunpack.c.h.b16 %v631
        %v2914 = vunpack.c.l.b16 %v632
        %v2915 = vunpack.c.h.b16 %v632
        %v2916 = vunpack.c.l.b16 %v633
        %v2917 = vunpack.c.h.b16 %v633
        %v2918 = vunpack.c.l.b16 %v634
        %v2919 = vunpack.c.h.b16 %v634
        %v2920 = vunpack.c.l.b16 %v635
        %v2921 = vunpack.c.h.b16 %v635
        %v2922 = vunpack.c.l.b16 %v636
        %v2923 = vunpack.c.h.b16 %v636
        %v2924 = vunpack.c.l.b16 %v637
        %v2925 = vunpack.c.h.b16 %v637
        %v2926 = vunpack.c.l.b16 %v638
        %v2927 = vunpack.c.h.b16 %v638
        %v2928 = vunpack.c.l.b16 %v639
        %v2929 = vunpack.c.h.b16 %v639
        %v2930 = vunpack.c.l.b16 %v640
        %v2931 = vunpack.c.h.b16 %v640
        %v2932 = vunpack.c.l.b16 %v641
        %v2933 = vunpack.c.h.b16 %v641
        %v2934 = vunpack.c.l.b16 %v642
        %v2935 = vunpack.c.h.b16 %v642
        %v2936 = vunpack.c.l.b16 %v643
        %v2937 = vunpack.c.h.b16 %v643
        %v2938 = vunpack.c.l.b16 %v644
        %v2939 = vunpack.c.h.b16 %v644
        %v2940 = vunpack.c.l.b16 %v645
        %v2941 = vunpack.c.h.b16 %v645
        %v2942 = vunpack.c.l.b16 %v646
        %v2943 = vunpack.c.h.b16 %v646
        %v2944 = vunpack.c.l.b16 %v647
        %v2945 = vunpack.c.h.b16 %v647
        %v2946 = vunpack.c.l.b16 %v648
        %v2947 = vunpack.c.h.b16 %v648
        %v2948 = vunpack.c.l.b16 %v649
        %v2949 = vunpack.c.h.b16 %v649
        %v2950 = vunpack.c.l.b16 %v650
        %v2951 = vunpack.c.h.b16 %v650
        %v2952 = vunpack.c.l.b16 %v651
        %v2953 = vunpack.c.h.b16 %v651
        %v2954 = vunpack.c.l.b16 %v652
        %v2955 = vunpack.c.h.b16 %v652
        %v2956 = vunpack.c.l.b16 %v653
        %v2957 = vunpack.c.h.b16 %v653
        %v2958 = vunpack.c.l.b16 %v654
        %v2959 = vunpack.c.h.b16 %v654
        %v2960 = vunpack.c.l.b16 %v655
        %v2961 = vunpack.c.h.b16 %v655
        %v2962 = vunpack.c.l.b16 %v656
        %v2963 = vunpack.c.h.b16 %v656
        %v2964 = vunpack.c.l.b16 %v657
        %v2965 = vunpack.c.h.b16 %v657
        %v2966 = vunpack.c.l.b16 %v658
        %v2967 = vunpack.c.h.b16 %v658
        %v2968 = vunpack.c.l.b16 %v659
        %v2969 = vunpack.c.h.b16 %v659
        %v2970 = vunpack.c.l.b16 %v660
        %v2971 = vunpack.c.h.b16 %v660
        %v2972 = vunpack.c.l.b16 %v661
        %v2973 = vunpack.c.h.b16 %v661
        %v2974 = vunpack.c.l.b16 %v662
        %v2975 = vunpack.c.h.b16 %v662
        %v2976 = vunpack.c.l.b16 %v663
        %v2977 = vunpack.c.h.b16 %v663
        %v2978 = vunpack.c.l.b16 %v664
        %v2979 = vunpack.c.h.b16 %v664
        %v2980 = vunpack.c.l.b16 %v665
        %v2981 = vunpack.c.h.b16 %v665
        %v2982 = vunpack.c.l.b16 %v666
        %v2983 = vunpack.c.h.b16 %v666
        %v2984 = vunpack.c.l.b16 %v667
        %v2985 = vunpack.c.h.b16 %v667
        %v2986 = vunpack.c.l.b16 %v668
        %v2987 = vunpack.c.h.b16 %v668
        %v2988 = vunpack.c.l.b16 %v669
        %v2989 = vunpack.c.h.b16 %v669
        %v2990 = vunpack.c.l.b16 %v670
        %v2991 = vunpack.c.h.b16 %v670
        %v2992 = vunpack.c.l.b16 %v671
        %v2993 = vunpack.c.h.b16 %v671
        %v2994 = vunpack.c.l.b16 %v672
        %v2995 = vunpack.c.h.b16 %v672
        %v2996 = vunpack.c.l.b16 %v673
        %v2997 = vunpack.c.h.b16 %v673
        %v2998 = vunpack.c.l.b16 %v674
        %v2999 = vunpack.c.h.b16 %v674
        %v3000 = vunpack.c.l.b16 %v675
        %v3001 = vunpack.c.h.b16 %v675
        %v3002 = vunpack.c.l.b16 %v676
        %v3003 = vunpack.c.h.b16 %v676
        %v3004 = vunpack.c.l.b16 %v677
        %v3005 = vunpack.c.h.b16 %v677
        %v3006 = vunpack.c.l.b16 %v678
        %v3007 = vunpack.c.h.b16 %v678
        %v3008 = vunpack.c.l.b16 %v679
        %v3009 = vunpack.c.h.b16 %v679
        %v3010 = vunpack.c.l.b16 %v680
        %v3011 = vunpack.c.h.b16 %v680
        %v3012 = vunpack.c.l.b16 %v681
        %v3013 = vunpack.c.h.b16 %v681
        %v3014 = vunpack.c.l.b16 %v682
        %v3015 = vunpack.c.h.b16 %v682
        %v3016 = vunpack.c.l.b16 %v683
        %v3017 = vunpack.c.h.b16 %v683
        %v3018 = vunpack.c.l.b16 %v684
        %v3019 = vunpack.c.h.b16 %v684
        %v3020 = vunpack.c.l.b16 %v685
        %v3021 = vunpack.c.h.b16 %v685
        %v3022 = vunpack.c.l.b16 %v686
        %v3023 = vunpack.c.h.b16 %v686
        %v3024 = vunpack.c.l.b16 %v687
        %v3025 = vunpack.c.h.b16 %v687
        %v3026 = vunpack.c.l.b16 %v688
        %v3027 = vunpack.c.h.b16 %v688
        %v3028 = vunpack.c.l.b16 %v689
        %v3029 = vunpack.c.h.b16 %v689
        %v3030 = vunpack.c.l.b16 %v690
        %v3031 = vunpack.c.h.b16 %v690
        %v3032 = vunpack.c.l.b16 %v691
        %v3033 = vunpack.c.h.b16 %v691
        %v3034 = vunpack.c.l.b16 %v692
        %v3035 = vunpack.c.h.b16 %v692
        %v3036 = vunpack.c.l.b16 %v693
        %v3037 = vunpack.c.h.b16 %v693
        %v3038 = vunpack.c.l.b16 %v694
        %v3039 = vunpack.c.h.b16 %v694
        %v3040 = vunpack.c.l.b16 %v695
        %v3041 = vunpack.c.h.b16 %v695
        %v3042 = vunpack.c.l.b16 %v696
        %v3043 = vunpack.c.h.b16 %v696
        %v3044 = vunpack.c.l.b16 %v697
        %v3045 = vunpack.c.h.b16 %v697
        %v3046 = vunpack.c.l.b16 %v698
        %v3047 = vunpack.c.h.b16 %v698
        %v3048 = vunpack.c.l.b16 %v699
        %v3049 = vunpack.c.h.b16 %v699
        %v3050 = vunpack.c.l.b16 %v700
        %v3051 = vunpack.c.h.b16 %v700
        %v3052 = vunpack.c.l.b16 %v701
        %v3053 = vunpack.c.h.b16 %v701
        %v3054 = vunpack.c.l.b16 %v702
        %v3055 = vunpack.c.h.b16 %v702
        %v3056 = vunpack.c.l.b16 %v703
        %v3057 = vunpack.c.h.b16 %v703
        %v3058 = vunpack.c.l.b16 %v704
        %v3059 = vunpack.c.h.b16 %v704
        %v3060 = vunpack.c.l.b16 %v705
        %v3061 = vunpack.c.h.b16 %v705
        %v3062 = vunpack.c.l.b16 %v706
        %v3063 = vunpack.c.h.b16 %v706
        %v3064 = vunpack.c.l.b16 %v707
        %v3065 = vunpack.c.h.b16 %v707
        %v3066 = vunpack.c.l.b16 %v708
        %v3067 = vunpack.c.h.b16 %v708
        %v3068 = vunpack.c.l.b16 %v709
        %v3069 = vunpack.c.h.b16 %v709
        %v3070 = vunpack.c.l.b16 %v710
        %v3071 = vunpack.c.h.b16 %v710
        %v3072 = vunpack.c.l.b16 %v711
        %v3073 = vunpack.c.h.b16 %v711
        %v3074 = vunpack.c.l.b16 %v712
        %v3075 = vunpack.c.h.b16 %v712
        %v3076 = vunpack.c.l.b16 %v713
        %v3077 = vunpack.c.h.b16 %v713
        %v3078 = vunpack.c.l.b16 %v714
        %v3079 = vunpack.c.h.b16 %v714
        %v3080 = vunpack.c.l.b16 %v715
        %v3081 = vunpack.c.h.b16 %v715
        %v3082 = vunpack.c.l.b16 %v716
        %v3083 = vunpack.c.h.b16 %v716
        %v3084 = vunpack.c.l.b16 %v717
        %v3085 = vunpack.c.h.b16 %v717
        %v3086 = vunpack.c.l.b16 %v718
        %v3087 = vunpack.c.h.b16 %v718
        %v3088 = vunpack.c.l.b16 %v719
        %v3089 = vunpack.c.h.b16 %v719
        %v3090 = vunpack.c.l.b16 %v720
        %v3091 = vunpack.c.h.b16 %v720
        %v3092 = vunpack.c.l.b16 %v721
        %v3093 = vunpack.c.h.b16 %v721
        %v3094 = vunpack.c.l.b16 %v722
        %v3095 = vunpack.c.h.b16 %v722
        %v3096 = vunpack.c.l.b16 %v723
        %v3097 = vunpack.c.h.b16 %v723
        %v3098 = vunpack.c.l.b16 %v724
        %v3099 = vunpack.c.h.b16 %v724
        %v3100 = vunpack.c.l.b16 %v725
        %v3101 = vunpack.c.h.b16 %v725
        %v3102 = vunpack.c.l.b16 %v726
        %v3103 = vunpack.c.h.b16 %v726
        %v3104 = vunpack.c.l.b16 %v727
        %v3105 = vunpack.c.h.b16 %v727
        %v3106 = vunpack.c.l.b16 %v728
        %v3107 = vunpack.c.h.b16 %v728
        %v3108 = vunpack.c.l.b16 %v729
        %v3109 = vunpack.c.h.b16 %v729
        %v3110 = vunpack.c.l.b16 %v730
        %v3111 = vunpack.c.h.b16 %v730
        %v3112 = vunpack.c.l.b16 %v731
        %v3113 = vunpack.c.h.b16 %v731
        %v3114 = vunpack.c.l.b16 %v732
        %v3115 = vunpack.c.h.b16 %v732
        %v3116 = vunpack.c.l.b16 %v733
        %v3117 = vunpack.c.h.b16 %v733
        %v3118 = vunpack.c.l.b16 %v734
        %v3119 = vunpack.c.h.b16 %v734
        %v3120 = vunpack.c.l.b16 %v735
        %v3121 = vunpack.c.h.b16 %v735
        %v3122 = vunpack.c.l.b16 %v736
        %v3123 = vunpack.c.h.b16 %v736
        %v3124 = vunpack.c.l.b16 %v737
        %v3125 = vunpack.c.h.b16 %v737
        %v3126 = vunpack.c.l.b16 %v738
        %v3127 = vunpack.c.h.b16 %v738
        %v3128 = vunpack.c.l.b16 %v739
        %v3129 = vunpack.c.h.b16 %v739
        %v3130 = vunpack.c.l.b16 %v740
        %v3131 = vunpack.c.h.b16 %v740
        %v3132 = vunpack.c.l.b16 %v741
        %v3133 = vunpack.c.h.b16 %v741
        %v3134 = vunpack.c.l.b16 %v742
        %v3135 = vunpack.c.h.b16 %v742
        %v3136 = vunpack.c.l.b16 %v743
        %v3137 = vunpack.c.h.b16 %v743
        %v3138 = vunpack.c.l.b16 %v744
        %v3139 = vunpack.c.h.b16 %v744
        %v3140 = vunpack.c.l.b16 %v745
        %v3141 = vunpack.c.h.b16 %v745
        %v3142 = vunpack.c.l.b16 %v746
        %v3143 = vunpack.c.h.b16 %v746
        %v3144 = vunpack.c.l.b16 %v747
        %v3145 = vunpack.c.h.b16 %v747
        %v3146 = vunpack.c.l.b16 %v748
        %v3147 = vunpack.c.h.b16 %v748
        %v3148 = vunpack.c.l.b16 %v749
        %v3149 = vunpack.c.h.b16 %v749
        %v3150 = vunpack.c.l.b16 %v750
        %v3151 = vunpack.c.h.b16 %v750
        %v3152 = vunpack.c.l.b16 %v751
        %v3153 = vunpack.c.h.b16 %v751
        %v3154 = vunpack.c.l.b16 %v752
        %v3155 = vunpack.c.h.b16 %v752
        %v3156 = vunpack.c.l.b16 %v753
        %v3157 = vunpack.c.h.b16 %v753
        %v3158 = vunpack.c.l.b16 %v754
        %v3159 = vunpack.c.h.b16 %v754
        %v3160 = vunpack.c.l.b16 %v755
        %v3161 = vunpack.c.h.b16 %v755
        %v3162 = vunpack.c.l.b16 %v756
        %v3163 = vunpack.c.h.b16 %v756
        %v3164 = vunpack.c.l.b16 %v757
        %v3165 = vunpack.c.h.b16 %v757
        %v3166 = vunpack.c.l.b16 %v758
        %v3167 = vunpack.c.h.b16 %v758
        %v3168 = vunpack.c.l.b16 %v759
        %v3169 = vunpack.c.h.b16 %v759
        %v3170 = vunpack.c.l.b16 %v760
        %v3171 = vunpack.c.h.b16 %v760
        %v3172 = vunpack.c.l.b16 %v761
        %v3173 = vunpack.c.h.b16 %v761
        %v3174 = vunpack.c.l.b16 %v762
        %v3175 = vunpack.c.h.b16 %v762
        %v3176 = vunpack.c.l.b16 %v763
        %v3177 = vunpack.c.h.b16 %v763
        %v3178 = vunpack.c.l.b16 %v764
        %v3179 = vunpack.c.h.b16 %v764
        %v3180 = vunpack.c.l.b16 %v765
        %v3181 = vunpack.c.h.b16 %v765
        %v3182 = vunpack.c.l.b16 %v766
        %v3183 = vunpack.c.h.b16 %v766
        %v3184 = vunpack.c.l.b16 %v767
        %v3185 = vunpack.c.h.b16 %v767
        %v3186 = vunpack.c.l.b16 %v768
        %v3187 = vunpack.c.h.b16 %v768
        %v3188 = vunpack.c.l.b16 %v769
        %v3189 = vunpack.c.h.b16 %v769
        %v3190 = vunpack.c.l.b16 %v770
        %v3191 = vunpack.c.h.b16 %v770
        %v3192 = vunpack.c.l.b16 %v771
        %v3193 = vunpack.c.h.b16 %v771
        %v3194 = vunpack.c.l.b16 %v772
        %v3195 = vunpack.c.h.b16 %v772
        %v3196 = vunpack.c.l.b16 %v773
        %v3197 = vunpack.c.h.b16 %v773
        %v3198 = vunpack.c.l.b16 %v774
        %v3199 = vunpack.c.h.b16 %v774
        %v3200 = vunpack.c.l.b16 %v775
        %v3201 = vunpack.c.h.b16 %v775
        %v3202 = vunpack.c.l.b16 %v776
        %v3203 = vunpack.c.h.b16 %v776
        %v3204 = vunpack.c.l.b16 %v777
        %v3205 = vunpack.c.h.b16 %v777
        %v3206 = vunpack.c.l.b16 %v778
        %v3207 = vunpack.c.h.b16 %v778
        %v3208 = vunpack.c.l.b16 %v779
        %v3209 = vunpack.c.h.b16 %v779
        %v3210 = vunpack.c.l.b16 %v780
        %v3211 = vunpack.c.h.b16 %v780
        %v3212 = vunpack.c.l.b16 %v781
        %v3213 = vunpack.c.h.b16 %v781
        %v3214 = vunpack.c.l.b16 %v782
        %v3215 = vunpack.c.h.b16 %v782
        %v3216 = vunpack.c.l.b16 %v783
        %v3217 = vunpack.c.h.b16 %v783
        %v3218 = vunpack.c.l.b16 %v784
        %v3219 = vunpack.c.h.b16 %v784
        %v3220 = vunpack.c.l.b16 %v785
        %v3221 = vunpack.c.h.b16 %v785
        %v3222 = vunpack.c.l.b16 %v786
        %v3223 = vunpack.c.h.b16 %v786
        %v3224 = vunpack.c.l.b16 %v787
        %v3225 = vunpack.c.h.b16 %v787
        %v3226 = vunpack.c.l.b16 %v788
        %v3227 = vunpack.c.h.b16 %v788
        %v3228 = vunpack.c.l.b16 %v789
        %v3229 = vunpack.c.h.b16 %v789
        %v3230 = vunpack.c.l.b16 %v790
        %v3231 = vunpack.c.h.b16 %v790
        %v3232 = vunpack.c.l.b16 %v791
        %v3233 = vunpack.c.h.b16 %v791
        %v3234 = vunpack.c.l.b16 %v792
        %v3235 = vunpack.c.h.b16 %v792
        %v3236 = vunpack.c.l.b16 %v793
        %v3237 = vunpack.c.h.b16 %v793
        %v3238 = vunpack.c.l.b16 %v794
        %v3239 = vunpack.c.h.b16 %v794
        %v3240 = vunpack.c.l.b16 %v795
        %v3241 = vunpack.c.h.b16 %v795
        %v3242 = vunpack.c.l.b16 %v796
        %v3243 = vunpack.c.h.b16 %v796
        %v3244 = vunpack.c.l.b16 %v797
        %v3245 = vunpack.c.h.b16 %v797
        %v3246 = vunpack.c.l.b16 %v798
        %v3247 = vunpack.c.h.b16 %v798
        %v3248 = vunpack.c.l.b16 %v799
        %v3249 = vunpack.c.h.b16 %v799
        %v3250 = vunpack.c.l.b16 %v800
        %v3251 = vunpack.c.h.b16 %v800
        %v3252 = vunpack.c.l.b16 %v801
        %v3253 = vunpack.c.h.b16 %v801
        %v3254 = vunpack.c.l.b16 %v802
        %v3255 = vunpack.c.h.b16 %v802
        %v3256 = vunpack.c.l.b16 %v803
        %v3257 = vunpack.c.h.b16 %v803
        %v3258 = vunpack.c.l.b16 %v804
        %v3259 = vunpack.c.h.b16 %v804
        %v3260 = vunpack.c.l.b16 %v805
        %v3261 = vunpack.c.h.b16 %v805
        %v3262 = vunpack.c.l.b16 %v806
        %v3263 = vunpack.c.h.b16 %v806
        %v3264 = vunpack.c.l.b16 %v807
        %v3265 = vunpack.c.h.b16 %v807
        %v3266 = vunpack.c.l.b16 %v808
        %v3267 = vunpack.c.h.b16 %v808
        %v3268 = vunpack.c.l.b16 %v809
        %v3269 = vunpack.c.h.b16 %v809
        %v3270 = vunpack.c.l.b16 %v810
        %v3271 = vunpack.c.h.b16 %v810
        %v3272 = vunpack.c.l.b16 %v811
        %v3273 = vunpack.c.h.b16 %v811
        %v3274 = vunpack.c.l.b16 %v812
        %v3275 = vunpack.c.h.b16 %v812
        %v3276 = vunpack.c.l.b16 %v813
        %v3277 = vunpack.c.h.b16 %v813
        %v3278 = vunpack.c.l.b16 %v814
        %v3279 = vunpack.c.h.b16 %v814
        %v3280 = vunpack.c.l.b16 %v815
        %v3281 = vunpack.c.h.b16 %v815
        %v3282 = vunpack.c.l.b16 %v816
        %v3283 = vunpack.c.h.b16 %v816
        %v3284 = vunpack.c.l.b16 %v817
        %v3285 = vunpack.c.h.b16 %v817
        %v3286 = vunpack.c.l.b16 %v818
        %v3287 = vunpack.c.h.b16 %v818
        %v3288 = vunpack.c.l.b16 %v819
        %v3289 = vunpack.c.h.b16 %v819
        %v3290 = vunpack.c.l.b16 %v820
        %v3291 = vunpack.c.h.b16 %v820
        %v3292 = vunpack.c.l.b16 %v821
        %v3293 = vunpack.c.h.b16 %v821
        %v3294 = vunpack.c.l.b16 %v822
        %v3295 = vunpack.c.h.b16 %v822
        %v3296 = vunpack.c.l.b16 %v823
        %v3297 = vunpack.c.h.b16 %v823
        %v3298 = vunpack.c.l.b16 %v824
        %v3299 = vunpack.c.h.b16 %v824
        %v3300 = vunpack.c.l.b16 %v825
        %v3301 = vunpack.c.h.b16 %v825
        %v3302 = vunpack.c.l.b16 %v826
        %v3303 = vunpack.c.h.b16 %v826
        %v3304 = vunpack.c.l.b16 %v827
        %v3305 = vunpack.c.h.b16 %v827
        %v3306 = vunpack.c.l.b16 %v828
        %v3307 = vunpack.c.h.b16 %v828
        %v3308 = vunpack.c.l.b16 %v829
        %v3309 = vunpack.c.h.b16 %v829
        %v3310 = vunpack.c.l.b16 %v830
        %v3311 = vunpack.c.h.b16 %v830
        %v3312 = vunpack.c.l.b16 %v831
        %v3313 = vunpack.c.h.b16 %v831
        %v3314 = vunpack.c.l.b16 %v832
        %v3315 = vunpack.c.h.b16 %v832
        %v3316 = vunpack.c.l.b16 %v833
        %v3317 = vunpack.c.h.b16 %v833
        %v3318 = vunpack.c.l.b16 %v834
        %v3319 = vunpack.c.h.b16 %v834
        %v3320 = vunpack.c.l.b16 %v835
        %v3321 = vunpack.c.h.b16 %v835
        %v3322 = vunpack.c.l.b16 %v836
        %v3323 = vunpack.c.h.b16 %v836
        %v3324 = vunpack.c.l.b16 %v837
        %v3325 = vunpack.c.h.b16 %v837
        %v3326 = vunpack.c.l.b16 %v838
        %v3327 = vunpack.c.h.b16 %v838
        %v3328 = vunpack.c.l.b16 %v839
        %v3329 = vunpack.c.h.b16 %v839
        %v3330 = vunpack.c.l.b16 %v840
        %v3331 = vunpack.c.h.b16 %v840
        %v3332 = vunpack.c.l.b16 %v841
        %v3333 = vunpack.c.h.b16 %v841
        %v3334 = vunpack.c.l.b16 %v842
        %v3335 = vunpack.c.h.b16 %v842
        %v3336 = vunpack.c.l.b16 %v843
        %v3337 = vunpack.c.h.b16 %v843
        %v3338 = vunpack.c.l.b16 %v844
        %v3339 = vunpack.c.h.b16 %v844
        %v3340 = vunpack.c.l.b16 %v845
        %v3341 = vunpack.c.h.b16 %v845
        %v3342 = vunpack.c.l.b16 %v846
        %v3343 = vunpack.c.h.b16 %v846
        %v3344 = vunpack.c.l.b16 %v847
        %v3345 = vunpack.c.h.b16 %v847
        %v3346 = vunpack.c.l.b16 %v848
        %v3347 = vunpack.c.h.b16 %v848
        %v3348 = vunpack.c.l.b16 %v849
        %v3349 = vunpack.c.h.b16 %v849
        %v3350 = vunpack.c.l.b16 %v850
        %v3351 = vunpack.c.h.b16 %v850
        %v3352 = vunpack.c.l.b16 %v851
        %v3353 = vunpack.c.h.b16 %v851
        %v3354 = vunpack.c.l.b16 %v852
        %v3355 = vunpack.c.h.b16 %v852
        %v3356 = vunpack.c.l.b16 %v853
        %v3357 = vunpack.c.h.b16 %v853
        %v3358 = vunpack.c.l.b16 %v854
        %v3359 = vunpack.c.h.b16 %v854
        %v3360 = vunpack.c.l.b16 %v855
        %v3361 = vunpack.c.h.b16 %v855
        %v3362 = vunpack.c.l.b16 %v856
        %v3363 = vunpack.c.h.b16 %v856
        %v3364 = vunpack.c.l.b16 %v857
        %v3365 = vunpack.c.h.b16 %v857
        %v3366 = vunpack.c.l.b16 %v858
        %v3367 = vunpack.c.h.b16 %v858
        %v3368 = vunpack.c.l.b16 %v859
        %v3369 = vunpack.c.h.b16 %v859
        %v3370 = vunpack.c.l.b16 %v860
        %v3371 = vunpack.c.h.b16 %v860
        %v3372 = vunpack.c.l.b16 %v861
        %v3373 = vunpack.c.h.b16 %v861
        %v3374 = vunpack.c.l.b16 %v862
        %v3375 = vunpack.c.h.b16 %v862
        %v3376 = vunpack.c.l.b16 %v863
        %v3377 = vunpack.c.h.b16 %v863
        %v3378 = vunpack.c.l.b16 %v864
        %v3379 = vunpack.c.h.b16 %v864
        %v3380 = vunpack.c.l.b16 %v865
        %v3381 = vunpack.c.h.b16 %v865
        %v3382 = vunpack.c.l.b16 %v866
        %v3383 = vunpack.c.h.b16 %v866
        %v3384 = vunpack.c.l.b16 %v867
        %v3385 = vunpack.c.h.b16 %v867
        %v3386 = vunpack.c.l.b16 %v868
        %v3387 = vunpack.c.h.b16 %v868
        %v3388 = vunpack.c.l.b16 %v869
        %v3389 = vunpack.c.h.b16 %v869
        %v3390 = vunpack.c.l.b16 %v870
        %v3391 = vunpack.c.h.b16 %v870
        %v3392 = vunpack.c.l.b16 %v871
        %v3393 = vunpack.c.h.b16 %v871
        %v3394 = vunpack.c.l.b16 %v872
        %v3395 = vunpack.c.h.b16 %v872
        %v3396 = vunpack.c.l.b16 %v873
        %v3397 = vunpack.c.h.b16 %v873
        %v3398 = vunpack.c.l.b16 %v874
        %v3399 = vunpack.c.h.b16 %v874
        %v3400 = vunpack.c.l.b16 %v875
        %v3401 = vunpack.c.h.b16 %v875
        %v3402 = vunpack.c.l.b16 %v876
        %v3403 = vunpack.c.h.b16 %v876
        %v3404 = vunpack.c.l.b16 %v877
        %v3405 = vunpack.c.h.b16 %v877
        %v3406 = vunpack.c.l.b16 %v878
        %v3407 = vunpack.c.h.b16 %v878
        %v3408 = vunpack.c.l.b16 %v879
        %v3409 = vunpack.c.h.b16 %v879
        %v3410 = vunpack.c.l.b16 %v880
        %v3411 = vunpack.c.h.b16 %v880
        %v3412 = vunpack.c.l.b16 %v881
        %v3413 = vunpack.c.h.b16 %v881
        %v3414 = vunpack.c.l.b16 %v882
        %v3415 = vunpack.c.h.b16 %v882
        %v3416 = vunpack.c.l.b16 %v883
        %v3417 = vunpack.c.h.b16 %v883
        %v3418 = vunpack.c.l.b16 %v884
        %v3419 = vunpack.c.h.b16 %v884
        %v3420 = vunpack.c.l.b16 %v885
        %v3421 = vunpack.c.h.b16 %v885
        %v3422 = vunpack.c.l.b16 %v886
        %v3423 = vunpack.c.h.b16 %v886
        %v3424 = vunpack.c.l.b16 %v887
        %v3425 = vunpack.c.h.b16 %v887
        %v3426 = vunpack.c.l.b16 %v888
        %v3427 = vunpack.c.h.b16 %v888
        %v3428 = vunpack.c.l.b16 %v889
        %v3429 = vunpack.c.h.b16 %v889
        %v3430 = vunpack.c.l.b16 %v890
        %v3431 = vunpack.c.h.b16 %v890
        %v3432 = vunpack.c.l.b16 %v891
        %v3433 = vunpack.c.h.b16 %v891
        %v3434 = vunpack.c.l.b16 %v892
        %v3435 = vunpack.c.h.b16 %v892
        %v3436 = vunpack.c.l.b16 %v893
        %v3437 = vunpack.c.h.b16 %v893
        %v3438 = vunpack.c.l.b16 %v894
        %v3439 = vunpack.c.h.b16 %v894
        %v3440 = vunpack.c.l.b16 %v895
        %v3441 = vunpack.c.h.b16 %v895
        %v3442 = vunpack.c.l.b16 %v896
        %v3443 = vunpack.c.h.b16 %v896
        %v3444 = vunpack.c.l.b16 %v897
        %v3445 = vunpack.c.h.b16 %v897
        %v3446 = vunpack.c.l.b16 %v898
        %v3447 = vunpack.c.h.b16 %v898
        %v3448 = vunpack.c.l.b16 %v899
        %v3449 = vunpack.c.h.b16 %v899
        %v3450 = vunpack.c.l.b16 %v900
        %v3451 = vunpack.c.h.b16 %v900
        %v3452 = vunpack.c.l.b16 %v901
        %v3453 = vunpack.c.h.b16 %v901
        %v3454 = vunpack.c.l.b16 %v902
        %v3455 = vunpack.c.h.b16 %v902
        %v3456 = vunpack.c.l.b16 %v903
        %v3457 = vunpack.c.h.b16 %v903
        %v3458 = vunpack.c.l.b16 %v904
        %v3459 = vunpack.c.h.b16 %v904
        %v3460 = vunpack.c.l.b16 %v905
        %v3461 = vunpack.c.h.b16 %v905
        %v3462 = vunpack.c.l.b16 %v906
        %v3463 = vunpack.c.h.b16 %v906
        %v3464 = vunpack.c.l.b16 %v907
        %v3465 = vunpack.c.h.b16 %v907
        %v3466 = vunpack.c.l.b16 %v908
        %v3467 = vunpack.c.h.b16 %v908
        %v3468 = vunpack.c.l.b16 %v909
        %v3469 = vunpack.c.h.b16 %v909
        %v3470 = vunpack.c.l.b16 %v910
        %v3471 = vunpack.c.h.b16 %v910
        %v3472 = vunpack.c.l.b16 %v911
        %v3473 = vunpack.c.h.b16 %v911
        %v3474 = vunpack.c.l.b16 %v912
        %v3475 = vunpack.c.h.b16 %v912
        %v3476 = vunpack.c.l.b16 %v913
        %v3477 = vunpack.c.h.b16 %v913
        %v3478 = vunpack.c.l.b16 %v914
        %v3479 = vunpack.c.h.b16 %v914
        %v3480 = vunpack.c.l.b16 %v915
        %v3481 = vunpack.c.h.b16 %v915
        %v3482 = vunpack.c.l.b16 %v916
        %v3483 = vunpack.c.h.b16 %v916
        %v3484 = vunpack.c.l.b16 %v917
        %v3485 = vunpack.c.h.b16 %v917
        %v3486 = vunpack.c.l.b16 %v918
        %v3487 = vunpack.c.h.b16 %v918
        %v3488 = vunpack.c.l.b16 %v919
        %v3489 = vunpack.c.h.b16 %v919
        %v3490 = vunpack.c.l.b16 %v920
        %v3491 = vunpack.c.h.b16 %v920
        %v3492 = vunpack.c.l.b16 %v921
        %v3493 = vunpack.c.h.b16 %v921
        %v3494 = vunpack.c.l.b16 %v922
        %v3495 = vunpack.c.h.b16 %v922
        %v3496 = vunpack.c.l.b16 %v923
        %v3497 = vunpack.c.h.b16 %v923
        %v3498 = vunpack.c.l.b16 %v924
        %v3499 = vunpack.c.h.b16 %v924
        %v3500 = vunpack.c.l.b16 %v925
        %v3501 = vunpack.c.h.b16 %v925
        %v3502 = vunpack.c.l.b16 %v926
        %v3503 = vunpack.c.h.b16 %v926
        %v3504 = vunpack.c.l.b16 %v927
        %v3505 = vunpack.c.h.b16 %v927
        %v3506 = vunpack.c.l.b16 %v928
        %v3507 = vunpack.c.h.b16 %v928
        %v3508 = vunpack.c.l.b16 %v929
        %v3509 = vunpack.c.h.b16 %v929
        %v3510 = vunpack.c.l.b16 %v930
        %v3511 = vunpack.c.h.b16 %v930
        %v3512 = vunpack.c.l.b16 %v931
        %v3513 = vunpack.c.h.b16 %v931
        %v3514 = vunpack.c.l.b16 %v932
        %v3515 = vunpack.c.h.b16 %v932
        %v3516 = vunpack.c.l.b16 %v933
        %v3517 = vunpack.c.h.b16 %v933
        %v3518 = vunpack.c.l.b16 %v934
        %v3519 = vunpack.c.h.b16 %v934
        %v3520 = vunpack.c.l.b16 %v935
        %v3521 = vunpack.c.h.b16 %v935
        %v3522 = vunpack.c.l.b16 %v936
        %v3523 = vunpack.c.h.b16 %v936
        %v3524 = vunpack.c.l.b16 %v937
        %v3525 = vunpack.c.h.b16 %v937
        %v3526 = vunpack.c.l.b16 %v938
        %v3527 = vunpack.c.h.b16 %v938
        %v3528 = vunpack.c.l.b16 %v939
        %v3529 = vunpack.c.h.b16 %v939
        %v3530 = vunpack.c.l.b16 %v940
        %v3531 = vunpack.c.h.b16 %v940
        %v3532 = vunpack.c.l.b16 %v941
        %v3533 = vunpack.c.h.b16 %v941
        %v3534 = vunpack.c.l.b16 %v942
        %v3535 = vunpack.c.h.b16 %v942
        %v3536 = vunpack.c.l.b16 %v943
        %v3537 = vunpack.c.h.b16 %v943
        %v3538 = vunpack.c.l.b16 %v944
        %v3539 = vunpack.c.h.b16 %v944
        %v3540 = vunpack.c.l.b16 %v945
        %v3541 = vunpack.c.h.b16 %v945
        %v3542 = vunpack.c.l.b16 %v946
        %v3543 = vunpack.c.h.b16 %v946
        %v3544 = vunpack.c.l.b16 %v947
        %v3545 = vunpack.c.h.b16 %v947
        %v3546 = vunpack.c.l.b16 %v948
        %v3547 = vunpack.c.h.b16 %v948
        %v3548 = vunpack.c.l.b16 %v949
        %v3549 = vunpack.c.h.b16 %v949
        %v3550 = vunpack.c.l.b16 %v950
        %v3551 = vunpack.c.h.b16 %v950
        %v3552 = vunpack.c.l.b16 %v951
        %v3553 = vunpack.c.h.b16 %v951
        %v3554 = vunpack.c.l.b16 %v952
        %v3555 = vunpack.c.h.b16 %v952
        %v3556 = vunpack.c.l.b16 %v953
        %v3557 = vunpack.c.h.b16 %v953
        %v3558 = vunpack.c.l.b16 %v954
        %v3559 = vunpack.c.h.b16 %v954
        %v3560 = vunpack.c.l.b16 %v955
        %v3561 = vunpack.c.h.b16 %v955
        %v3562 = vunpack.c.l.b16 %v956
        %v3563 = vunpack.c.h.b16 %v956
        %v3564 = vunpack.c.l.b16 %v957
        %v3565 = vunpack.c.h.b16 %v957
        %v3566 = vunpack.c.l.b16 %v958
        %v3567 = vunpack.c.h.b16 %v958
        %v3568 = vunpack.c.l.b16 %v959
        %v3569 = vunpack.c.h.b16 %v959
        %v3570 = vunpack.c.l.b16 %v960
        %v3571 = vunpack.c.h.b16 %v960
        %v3572 = vunpack.c.l.b16 %v961
        %v3573 = vunpack.c.h.b16 %v961
        %v3574 = vunpack.c.l.b16 %v962
        %v3575 = vunpack.c.h.b16 %v962
        %v3576 = vunpack.c.l.b16 %v963
        %v3577 = vunpack.c.h.b16 %v963
        %v3578 = vunpack.c.l.b16 %v964
        %v3579 = vunpack.c.h.b16 %v964
        %v3580 = vunpack.c.l.b16 %v965
        %v3581 = vunpack.c.h.b16 %v965
        %v3582 = vunpack.c.l.b16 %v966
        %v3583 = vunpack.c.h.b16 %v966
        %v3584 = vunpack.c.l.b16 %v967
        %v3585 = vunpack.c.h.b16 %v967
        %v3586 = vunpack.c.l.b16 %v968
        %v3587 = vunpack.c.h.b16 %v968
        %v3588 = vunpack.c.l.b16 %v969
        %v3589 = vunpack.c.h.b16 %v969
        %v3590 = vunpack.c.l.b16 %v970
        %v3591 = vunpack.c.h.b16 %v970
        %v3592 = vunpack.c.l.b16 %v971
        %v3593 = vunpack.c.h.b16 %v971
        %v3594 = vunpack.c.l.b16 %v972
        %v3595 = vunpack.c.h.b16 %v972
        %v3596 = vunpack.c.l.b16 %v973
        %v3597 = vunpack.c.h.b16 %v973
        %v3598 = vunpack.c.l.b16 %v974
        %v3599 = vunpack.c.h.b16 %v974
        %v3600 = vunpack.c.l.b16 %v975
        %v3601 = vunpack.c.h.b16 %v975
        %v3602 = vunpack.c.l.b16 %v976
        %v3603 = vunpack.c.h.b16 %v976
        %v3604 = vunpack.c.l.b16 %v977
        %v3605 = vunpack.c.h.b16 %v977
        %v3606 = vunpack.c.l.b16 %v978
        %v3607 = vunpack.c.h.b16 %v978
        %v3608 = vunpack.c.l.b16 %v979
        %v3609 = vunpack.c.h.b16 %v979
        %v3610 = vunpack.c.l.b16 %v980
        %v3611 = vunpack.c.h.b16 %v980
        %v3612 = vunpack.c.l.b16 %v981
        %v3613 = vunpack.c.h.b16 %v981
        %v3614 = vunpack.c.l.b16 %v982
        %v3615 = vunpack.c.h.b16 %v982
        %v3616 = vunpack.c.l.b16 %v983
        %v3617 = vunpack.c.h.b16 %v983
        %v3618 = vunpack.c.l.b16 %v984
        %v3619 = vunpack.c.h.b16 %v984
        %v3620 = vunpack.c.l.b16 %v985
        %v3621 = vunpack.c.h.b16 %v985
        %v3622 = vunpack.c.l.b16 %v986
        %v3623 = vunpack.c.h.b16 %v986
        %v3624 = vunpack.c.l.b16 %v987
        %v3625 = vunpack.c.h.b16 %v987
        %v3626 = vunpack.c.l.b16 %v988
        %v3627 = vunpack.c.h.b16 %v988
        %v3628 = vunpack.c.l.b16 %v989
        %v3629 = vunpack.c.h.b16 %v989
        %v3630 = vunpack.c.l.b16 %v990
        %v3631 = vunpack.c.h.b16 %v990
        %v3632 = vunpack.c.l.b16 %v991
        %v3633 = vunpack.c.h.b16 %v991
        %v3634 = vunpack.c.l.b16 %v992
        %v3635 = vunpack.c.h.b16 %v992
        %v3636 = vunpack.c.l.b16 %v993
        %v3637 = vunpack.c.h.b16 %v993
        %v3638 = vunpack.c.l.b16 %v994
        %v3639 = vunpack.c.h.b16 %v994
        %v3640 = vunpack.c.l.b16 %v995
        %v3641 = vunpack.c.h.b16 %v995
        %v3642 = vunpack.c.l.b16 %v996
        %v3643 = vunpack.c.h.b16 %v996
        %v3644 = vunpack.c.l.b16 %v997
        %v3645 = vunpack.c.h.b16 %v997
        %v3646 = vunpack.c.l.b16 %v998
        %v3647 = vunpack.c.h.b16 %v998
        %v3648 = vunpack.c.l.b16 %v999
        %v3649 = vunpack.c.h.b16 %v999
        %v3650 = vunpack.c.l.b16 %v1000
        %v3651 = vunpack.c.h.b16 %v1000
        %v3652 = vunpack.c.l.b16 %v1001
        %v3653 = vunpack.c.h.b16 %v1001
        %v3654 = vunpack.c.l.b16 %v1002
        %v3655 = vunpack.c.h.b16 %v1002
        %v3656 = vunpack.c.l.b16 %v1003
        %v3657 = vunpack.c.h.b16 %v1003
        %v3658 = vunpack.c.l.b16 %v1004
        %v3659 = vunpack.c.h.b16 %v1004
        %v3660 = vunpack.c.l.b16 %v1005
        %v3661 = vunpack.c.h.b16 %v1005
        %v3662 = vunpack.c.l.b16 %v1006
        %v3663 = vunpack.c.h.b16 %v1006
        %v3664 = vunpack.c.l.b16 %v1007
        %v3665 = vunpack.c.h.b16 %v1007
        %v3666 = vunpack.c.l.b16 %v1008
        %v3667 = vunpack.c.h.b16 %v1008
        %v3668 = vunpack.c.l.b16 %v1009
        %v3669 = vunpack.c.h.b16 %v1009
        %v3670 = vunpack.c.l.b16 %v1010
        %v3671 = vunpack.c.h.b16 %v1010
        %v3672 = vunpack.c.l.b16 %v1011
        %v3673 = vunpack.c.h.b16 %v1011
        %v3674 = vunpack.c.l.b16 %v1012
        %v3675 = vunpack.c.h.b16 %v1012
        %v3676 = vunpack.c.l.b16 %v1013
        %v3677 = vunpack.c.h.b16 %v1013
        %v3678 = vunpack.c.l.b16 %v1014
        %v3679 = vunpack.c.h.b16 %v1014
        %v3680 = vunpack.c.l.b16 %v1015
        %v3681 = vunpack.c.h.b16 %v1015
        %v3682 = vunpack.c.l.b16 %v1016
        %v3683 = vunpack.c.h.b16 %v1016
        %v3684 = vunpack.c.l.b16 %v1017
        %v3685 = vunpack.c.h.b16 %v1017
        %v3686 = vunpack.c.l.b16 %v1018
        %v3687 = vunpack.c.h.b16 %v1018
        %v3688 = vunpack.c.l.b16 %v1019
        %v3689 = vunpack.c.h.b16 %v1019
        %v3690 = vunpack.c.l.b16 %v1020
        %v3691 = vunpack.c.h.b16 %v1020
        %v3692 = vunpack.c.l.b16 %v1021
        %v3693 = vunpack.c.h.b16 %v1021
        %v3694 = vunpack.c.l.b16 %v1022
        %v3695 = vunpack.c.h.b16 %v1022
        %v3696 = vunpack.c.l.b16 %v1023
        %v3697 = vunpack.c.h.b16 %v1023
        %v3698 = vunpack.c.l.b16 %v1024
        %v3699 = vunpack.c.h.b16 %v1024
        %v3700 = vunpack.c.l.b16 %v1025
        %v3701 = vunpack.c.h.b16 %v1025
        %v3702 = vunpack.c.l.b16 %v1026
        %v3703 = vunpack.c.h.b16 %v1026
        %v3704 = vunpack.c.l.b16 %v1027
        %v3705 = vunpack.c.h.b16 %v1027
        %v3706 = vunpack.c.l.b16 %v1028
        %v3707 = vunpack.c.h.b16 %v1028
        %v3708 = vunpack.c.l.b16 %v1029
        %v3709 = vunpack.c.h.b16 %v1029
        %v3710 = vunpack.c.l.b16 %v1030
        %v3711 = vunpack.c.h.b16 %v1030
        %v3712 = vunpack.c.l.b16 %v1031
        %v3713 = vunpack.c.h.b16 %v1031
        %v3714 = vunpack.c.l.b16 %v1032
        %v3715 = vunpack.c.h.b16 %v1032
        %v3716 = vunpack.c.l.b16 %v1033
        %v3717 = vunpack.c.h.b16 %v1033
        %v3718 = vunpack.c.l.b16 %v1034
        %v3719 = vunpack.c.h.b16 %v1034
        %v3720 = vunpack.c.l.b16 %v1035
        %v3721 = vunpack.c.h.b16 %v1035
        %v3722 = vunpack.c.l.b16 %v1036
        %v3723 = vunpack.c.h.b16 %v1036
        %v3724 = vunpack.c.l.b16 %v1037
        %v3725 = vunpack.c.h.b16 %v1037
        %v3726 = vunpack.c.l.b16 %v1038
        %v3727 = vunpack.c.h.b16 %v1038
        %v3728 = vunpack.c.l.b16 %v1039
        %v3729 = vunpack.c.h.b16 %v1039
        %v3730 = vunpack.c.l.b16 %v1040
        %v3731 = vunpack.c.h.b16 %v1040
        %v3732 = vunpack.c.l.b16 %v1041
        %v3733 = vunpack.c.h.b16 %v1041
        %v3734 = vunpack.c.l.b16 %v1042
        %v3735 = vunpack.c.h.b16 %v1042
        %v3736 = vunpack.c.l.b16 %v1043
        %v3737 = vunpack.c.h.b16 %v1043
        %v3738 = vunpack.c.l.b16 %v1044
        %v3739 = vunpack.c.h.b16 %v1044
        %v3740 = vunpack.c.l.b16 %v1045
        %v3741 = vunpack.c.h.b16 %v1045
        %v3742 = vunpack.c.l.b16 %v1046
        %v3743 = vunpack.c.h.b16 %v1046
        %v3744 = vunpack.c.l.b16 %v1047
        %v3745 = vunpack.c.h.b16 %v1047
        %v3746 = vunpack.c.l.b16 %v1048
        %v3747 = vunpack.c.h.b16 %v1048
        %v3748 = vunpack.c.l.b16 %v1049
        %v3749 = vunpack.c.h.b16 %v1049
        %v3750 = vunpack.c.l.b16 %v1050
        %v3751 = vunpack.c.h.b16 %v1050
        %v3752 = vunpack.c.l.b16 %v1051
        %v3753 = vunpack.c.h.b16 %v1051
        %v3754 = vunpack.c.l.b16 %v1052
        %v3755 = vunpack.c.h.b16 %v1052
        %v3756 = vunpack.c.l.b16 %v1053
        %v3757 = vunpack.c.h.b16 %v1053
        %v3758 = vunpack.c.l.b16 %v1054
        %v3759 = vunpack.c.h.b16 %v1054
        %v3760 = vunpack.c.l.b16 %v1055
        %v3761 = vunpack.c.h.b16 %v1055
        %v3762 = vunpack.c.l.b16 %v1056
        %v3763 = vunpack.c.h.b16 %v1056
        %v3764 = vunpack.c.l.b16 %v1057
        %v3765 = vunpack.c.h.b16 %v1057
        %v3766 = vunpack.c.l.b16 %v1058
        %v3767 = vunpack.c.h.b16 %v1058
        %v3768 = vunpack.c.l.b16 %v1059
        %v3769 = vunpack.c.h.b16 %v1059
        %v3770 = vunpack.c.l.b16 %v1060
        %v3771 = vunpack.c.h.b16 %v1060
        %v3772 = vunpack.c.l.b16 %v1061
        %v3773 = vunpack.c.h.b16 %v1061
        %v3774 = vunpack.c.l.b16 %v1062
        %v3775 = vunpack.c.h.b16 %v1062
        %v3776 = vunpack.c.l.b16 %v1063
        %v3777 = vunpack.c.h.b16 %v1063
        %v3778 = vunpack.c.l.b16 %v1064
        %v3779 = vunpack.c.h.b16 %v1064
        %v3780 = vunpack.c.l.b16 %v1065
        %v3781 = vunpack.c.h.b16 %v1065
        %v3782 = vunpack.c.l.b16 %v1066
        %v3783 = vunpack.c.h.b16 %v1066
        %v3784 = vunpack.c.l.b16 %v1067
        %v3785 = vunpack.c.h.b16 %v1067
        %v3786 = vunpack.c.l.b16 %v1068
        %v3787 = vunpack.c.h.b16 %v1068
        %v3788 = vunpack.c.l.b16 %v1069
        %v3789 = vunpack.c.h.b16 %v1069
        %v3790 = vunpack.c.l.b16 %v1070
        %v3791 = vunpack.c.h.b16 %v1070
        %v3792 = vunpack.c.l.b16 %v1071
        %v3793 = vunpack.c.h.b16 %v1071
        %v3794 = vunpack.c.l.b16 %v1072
        %v3795 = vunpack.c.h.b16 %v1072
        %v3796 = vunpack.c.l.b16 %v1073
        %v3797 = vunpack.c.h.b16 %v1073
        %v3798 = vunpack.c.l.b16 %v1074
        %v3799 = vunpack.c.h.b16 %v1074
        %v3800 = vunpack.c.l.b16 %v1075
        %v3801 = vunpack.c.h.b16 %v1075
        %v3802 = vunpack.c.l.b16 %v1076
        %v3803 = vunpack.c.h.b16 %v1076
        %v3804 = vunpack.c.l.b16 %v1077
        %v3805 = vunpack.c.h.b16 %v1077
        %v3806 = vunpack.c.l.b16 %v1078
        %v3807 = vunpack.c.h.b16 %v1078
        %v3808 = vunpack.c.l.b16 %v1079
        %v3809 = vunpack.c.h.b16 %v1079
        %v3810 = vunpack.c.l.b16 %v1080
        %v3811 = vunpack.c.h.b16 %v1080
        %v3812 = vunpack.c.l.b16 %v1081
        %v3813 = vunpack.c.h.b16 %v1081
        %v3814 = vunpack.c.l.b16 %v1082
        %v3815 = vunpack.c.h.b16 %v1082
        %v3816 = vunpack.c.l.b16 %v1083
        %v3817 = vunpack.c.h.b16 %v1083
        %v3818 = vunpack.c.l.b16 %v1084
        %v3819 = vunpack.c.h.b16 %v1084
        %v3820 = vunpack.c.l.b16 %v1085
        %v3821 = vunpack.c.h.b16 %v1085
        %v3822 = vunpack.c.l.b16 %v1086
        %v3823 = vunpack.c.h.b16 %v1086
        %v3824 = vunpack.c.l.b16 %v1087
        %v3825 = vunpack.c.h.b16 %v1087
        %v3826 = vunpack.c.l.b16 %v1088
        %v3827 = vunpack.c.h.b16 %v1088
        %v3828 = vunpack.c.l.b16 %v1089
        %v3829 = vunpack.c.h.b16 %v1089
        %v3830 = vunpack.c.l.b16 %v1090
        %v3831 = vunpack.c.h.b16 %v1090
        %v3832 = vunpack.c.l.b16 %v1091
        %v3833 = vunpack.c.h.b16 %v1091
        %v3834 = vunpack.c.l.b16 %v1092
        %v3835 = vunpack.c.h.b16 %v1092
        %v3836 = vunpack.c.l.b16 %v1093
        %v3837 = vunpack.c.h.b16 %v1093
        %v3838 = vunpack.c.l.b16 %v1094
        %v3839 = vunpack.c.h.b16 %v1094
        %v3840 = vunpack.c.l.b16 %v1095
        %v3841 = vunpack.c.h.b16 %v1095
        %v3842 = vunpack.c.l.b16 %v1096
        %v3843 = vunpack.c.h.b16 %v1096
        %v3844 = vunpack.c.l.b16 %v1097
        %v3845 = vunpack.c.h.b16 %v1097
        %v3846 = vunpack.c.l.b16 %v1098
        %v3847 = vunpack.c.h.b16 %v1098
        %v3848 = vunpack.c.l.b16 %v1099
        %v3849 = vunpack.c.h.b16 %v1099
        %v3850 = vunpack.c.l.b16 %v1100
        %v3851 = vunpack.c.h.b16 %v1100
        %v3852 = vunpack.c.l.b16 %v1101
        %v3853 = vunpack.c.h.b16 %v1101
        %v3854 = vunpack.c.l.b16 %v1102
        %v3855 = vunpack.c.h.b16 %v1102
        %v3856 = vunpack.c.l.b16 %v1103
        %v3857 = vunpack.c.h.b16 %v1103
        %v3858 = vunpack.c.l.b16 %v1104
        %v3859 = vunpack.c.h.b16 %v1104
        %v3860 = vunpack.c.l.b16 %v1105
        %v3861 = vunpack.c.h.b16 %v1105
        %v3862 = vunpack.c.l.b16 %v1106
        %v3863 = vunpack.c.h.b16 %v1106
        %v3864 = vunpack.c.l.b16 %v1107
        %v3865 = vunpack.c.h.b16 %v1107
        %v3866 = vunpack.c.l.b16 %v1108
        %v3867 = vunpack.c.h.b16 %v1108
        %v3868 = vunpack.c.l.b16 %v1109
        %v3869 = vunpack.c.h.b16 %v1109
        %v3870 = vunpack.c.l.b16 %v1110
        %v3871 = vunpack.c.h.b16 %v1110
        %v3872 = vunpack.c.l.b16 %v1111
        %v3873 = vunpack.c.h.b16 %v1111
        %v3874 = vunpack.c.l.b16 %v1112
        %v3875 = vunpack.c.h.b16 %v1112
        %v3876 = vunpack.c.l.b16 %v1113
        %v3877 = vunpack.c.h.b16 %v1113
        %v3878 = vunpack.c.l.b16 %v1114
        %v3879 = vunpack.c.h.b16 %v1114
        %v3880 = vunpack.c.l.b16 %v1115
        %v3881 = vunpack.c.h.b16 %v1115
        %v3882 = vunpack.c.l.b16 %v1116
        %v3883 = vunpack.c.h.b16 %v1116
        %v3884 = vunpack.c.l.b16 %v1117
        %v3885 = vunpack.c.h.b16 %v1117
        %v3886 = vunpack.c.l.b16 %v1118
        %v3887 = vunpack.c.h.b16 %v1118
        %v3888 = vunpack.c.l.b16 %v1119
        %v3889 = vunpack.c.h.b16 %v1119
        %v3890 = vunpack.c.l.b16 %v1120
        %v3891 = vunpack.c.h.b16 %v1120
        %v3892 = vunpack.c.l.b16 %v1121
        %v3893 = vunpack.c.h.b16 %v1121
        %v3894 = vunpack.c.l.b16 %v1122
        %v3895 = vunpack.c.h.b16 %v1122
        %v3896 = vunpack.c.l.b16 %v1123
        %v3897 = vunpack.c.h.b16 %v1123
        %v3898 = vunpack.c.l.b16 %v1124
        %v3899 = vunpack.c.h.b16 %v1124
        %v3900 = vunpack.c.l.b16 %v1125
        %v3901 = vunpack.c.h.b16 %v1125
        %v3902 = vunpack.c.l.b16 %v1126
        %v3903 = vunpack.c.h.b16 %v1126
        %v3904 = vunpack.c.l.b16 %v1127
        %v3905 = vunpack.c.h.b16 %v1127
        %v3906 = vunpack.c.l.b16 %v1128
        %v3907 = vunpack.c.h.b16 %v1128
        %v3908 = vunpack.c.l.b16 %v1129
        %v3909 = vunpack.c.h.b16 %v1129
        %v3910 = vunpack.c.l.b16 %v1130
        %v3911 = vunpack.c.h.b16 %v1130
        %v3912 = vunpack.c.l.b16 %v1131
        %v3913 = vunpack.c.h.b16 %v1131
        %v3914 = vunpack.c.l.b16 %v1132
        %v3915 = vunpack.c.h.b16 %v1132
        %v3916 = vunpack.c.l.b16 %v1133
        %v3917 = vunpack.c.h.b16 %v1133
        %v3918 = vunpack.c.l.b16 %v1134
        %v3919 = vunpack.c.h.b16 %v1134
        %v3920 = vunpack.c.l.b16 %v1135
        %v3921 = vunpack.c.h.b16 %v1135
        %v3922 = vunpack.c.l.b16 %v1136
        %v3923 = vunpack.c.h.b16 %v1136
        %v3924 = vunpack.c.l.b16 %v1137
        %v3925 = vunpack.c.h.b16 %v1137
        %v3926 = vunpack.c.l.b16 %v1138
        %v3927 = vunpack.c.h.b16 %v1138
        %v3928 = vunpack.c.l.b16 %v1139
        %v3929 = vunpack.c.h.b16 %v1139
        %v3930 = vunpack.c.l.b16 %v1140
        %v3931 = vunpack.c.h.b16 %v1140
        %v3932 = vunpack.c.l.b16 %v1141
        %v3933 = vunpack.c.h.b16 %v1141
        %v3934 = vunpack.c.l.b16 %v1142
        %v3935 = vunpack.c.h.b16 %v1142
        %v3936 = vunpack.c.l.b16 %v1143
        %v3937 = vunpack.c.h.b16 %v1143
        %v3938 = vunpack.c.l.b16 %v1144
        %v3939 = vunpack.c.h.b16 %v1144
        %v3940 = vunpack.c.l.b16 %v1145
        %v3941 = vunpack.c.h.b16 %v1145
        %v3942 = vunpack.c.l.b16 %v1146
        %v3943 = vunpack.c.h.b16 %v1146
        %v3944 = vunpack.c.l.b16 %v1147
        %v3945 = vunpack.c.h.b16 %v1147
        %v3946 = vunpack.c.l.b16 %v1148
        %v3947 = vunpack.c.h.b16 %v1148
        %v3948 = vunpack.c.l.b16 %v1149
        %v3949 = vunpack.c.h.b16 %v1149
        %v3950 = vunpack.c.l.b16 %v1150
        %v3951 = vunpack.c.h.b16 %v1150
        %v3952 = vunpack.c.l.b16 %v1151
        %v3953 = vunpack.c.h.b16 %v1151
        %v3954 = vunpack.c.l.b16 %v1152
        %v3955 = vunpack.c.h.b16 %v1152
        %v3956 = vunpack.c.l.b16 %v1153
        %v3957 = vunpack.c.h.b16 %v1153
        %v3958 = vunpack.c.l.b16 %v1154
        %v3959 = vunpack.c.h.b16 %v1154
        %v3960 = vunpack.c.l.b16 %v1155
        %v3961 = vunpack.c.h.b16 %v1155
        %v3962 = vunpack.c.l.b16 %v1156
        %v3963 = vunpack.c.h.b16 %v1156
        %v3964 = vunpack.c.l.b16 %v1157
        %v3965 = vunpack.c.h.b16 %v1157
        %v3966 = vunpack.c.l.b16 %v1158
        %v3967 = vunpack.c.h.b16 %v1158
        %v3968 = vunpack.c.l.b16 %v1159
        %v3969 = vunpack.c.h.b16 %v1159
        %v3970 = vunpack.c.l.b16 %v1160
        %v3971 = vunpack.c.h.b16 %v1160
        %v3972 = vunpack.c.l.b16 %v1161
        %v3973 = vunpack.c.h.b16 %v1161
        %v3974 = vunpack.c.l.b16 %v1162
        %v3975 = vunpack.c.h.b16 %v1162
        %v3976 = vunpack.c.l.b16 %v1163
        %v3977 = vunpack.c.h.b16 %v1163
        %v3978 = vunpack.c.l.b16 %v1164
        %v3979 = vunpack.c.h.b16 %v1164
        %v3980 = vunpack.c.l.b16 %v1165
        %v3981 = vunpack.c.h.b16 %v1165
        %v3982 = vunpack.c.l.b16 %v1166
        %v3983 = vunpack.c.h.b16 %v1166
        %v3984 = vunpack.c.l.b16 %v1167
        %v3985 = vunpack.c.h.b16 %v1167
        %v3986 = vunpack.c.l.b16 %v1168
        %v3987 = vunpack.c.h.b16 %v1168
        %v3988 = vunpack.c.l.b16 %v1169
        %v3989 = vunpack.c.h.b16 %v1169
        %v3990 = vunpack.c.l.b16 %v1170
        %v3991 = vunpack.c.h.b16 %v1170
        %v3992 = vunpack.c.l.b16 %v1171
        %v3993 = vunpack.c.h.b16 %v1171
        %v3994 = vunpack.c.l.b16 %v1172
        %v3995 = vunpack.c.h.b16 %v1172
        %v3996 = vunpack.c.l.b16 %v1173
        %v3997 = vunpack.c.h.b16 %v1173
        %v3998 = vunpack.c.l.b16 %v1174
        %v3999 = vunpack.c.h.b16 %v1174
        %v4000 = vunpack.c.l.b16 %v1175
        %v4001 = vunpack.c.h.b16 %v1175
        %v4002 = vunpack.c.l.b16 %v1176
        %v4003 = vunpack.c.h.b16 %v1176
        %v4004 = vunpack.c.l.b16 %v1177
        %v4005 = vunpack.c.h.b16 %v1177
        %v4006 = vunpack.c.l.b16 %v1178
        %v4007 = vunpack.c.h.b16 %v1178
        %v4008 = vunpack.c.l.b16 %v1179
        %v4009 = vunpack.c.h.b16 %v1179
        %v4010 = vunpack.c.l.b16 %v1180
        %v4011 = vunpack.c.h.b16 %v1180
        %v4012 = vunpack.c.l.b16 %v1181
        %v4013 = vunpack.c.h.b16 %v1181
        %v4014 = vunpack.c.l.b16 %v1182
        %v4015 = vunpack.c.h.b16 %v1182
        %v4016 = vunpack.c.l.b16 %v1183
        %v4017 = vunpack.c.h.b16 %v1183
        %v4018 = vunpack.c.l.b16 %v1184
        %v4019 = vunpack.c.h.b16 %v1184
        %v4020 = vunpack.c.l.b16 %v1185
        %v4021 = vunpack.c.h.b16 %v1185
        %v4022 = vunpack.c.l.b16 %v1186
        %v4023 = vunpack.c.h.b16 %v1186
        %v4024 = vunpack.c.l.b16 %v1187
        %v4025 = vunpack.c.h.b16 %v1187
        %v4026 = vunpack.c.l.b16 %v1188
        %v4027 = vunpack.c.h.b16 %v1188
        %v4028 = vunpack.c.l.b16 %v1189
        %v4029 = vunpack.c.h.b16 %v1189
        %v4030 = vunpack.c.l.b16 %v1190
        %v4031 = vunpack.c.h.b16 %v1190
        %v4032 = vunpack.c.l.b16 %v1191
        %v4033 = vunpack.c.h.b16 %v1191
        %v4034 = vunpack.c.l.b16 %v1192
        %v4035 = vunpack.c.h.b16 %v1192
        %v4036 = vunpack.c.l.b16 %v1193
        %v4037 = vunpack.c.h.b16 %v1193
        %v4038 = vunpack.c.l.b16 %v1194
        %v4039 = vunpack.c.h.b16 %v1194
        %v4040 = vunpack.c.l.b16 %v1195
        %v4041 = vunpack.c.h.b16 %v1195
        %v4042 = vunpack.c.l.b16 %v1196
        %v4043 = vunpack.c.h.b16 %v1196
        %v4044 = vunpack.c.l.b16 %v1197
        %v4045 = vunpack.c.h.b16 %v1197
        %v4046 = vunpack.c.l.b16 %v1198
        %v4047 = vunpack.c.h.b16 %v1198
        %v4048 = vunpack.c.l.b16 %v1199
        %v4049 = vunpack.c.h.b16 %v1199
        %v4050 = vunpack.c.l.b16 %v1200
        %v4051 = vunpack.c.h.b16 %v1200
        %v4052 = vunpack.c.l.b16 %v1201
        %v4053 = vunpack.c.h.b16 %v1201
        %v4054 = vunpack.c.l.b16 %v1202
        %v4055 = vunpack.c.h.b16 %v1202
        %v4056 = vunpack.c.l.b16 %v1203
        %v4057 = vunpack.c.h.b16 %v1203
        %v4058 = vunpack.c.l.b16 %v1204
        %v4059 = vunpack.c.h.b16 %v1204
        %v4060 = vunpack.c.l.b16 %v1205
        %v4061 = vunpack.c.h.b16 %v1205
        %v4062 = vunpack.c.l.b16 %v1206
        %v4063 = vunpack.c.h.b16 %v1206
        %v4064 = vunpack.c.l.b16 %v1207
        %v4065 = vunpack.c.h.b16 %v1207
        %v4066 = vunpack.c.l.b16 %v1208
        %v4067 = vunpack.c.h.b16 %v1208
        %v4068 = vunpack.c.l.b16 %v1209
        %v4069 = vunpack.c.h.b16 %v1209
        %v4070 = vunpack.c.l.b16 %v1210
        %v4071 = vunpack.c.h.b16 %v1210
        %v4072 = vunpack.c.l.b16 %v1211
        %v4073 = vunpack.c.h.b16 %v1211
        %v4074 = vunpack.c.l.b16 %v1212
        %v4075 = vunpack.c.h.b16 %v1212
        %v4076 = vunpack.c.l.b16 %v1213
        %v4077 = vunpack.c.h.b16 %v1213
        %v4078 = vunpack.c.l.b16 %v1214
        %v4079 = vunpack.c.h.b16 %v1214
        %v4080 = vunpack.c.l.b16 %v1215
        %v4081 = vunpack.c.h.b16 %v1215
        %v4082 = vunpack.c.l.b16 %v1216
        %v4083 = vunpack.c.h.b16 %v1216
        %v4084 = vunpack.c.l.b16 %v1217
        %v4085 = vunpack.c.h.b16 %v1217
        %v4086 = vunpack.c.l.b16 %v1218
        %v4087 = vunpack.c.h.b16 %v1218
        %v4088 = vunpack.c.l.b16 %v1219
        %v4089 = vunpack.c.h.b16 %v1219
        %v4090 = vunpack.c.l.b16 %v1220
        %v4091 = vunpack.c.h.b16 %v1220
        %v4092 = vunpack.c.l.b16 %v1221
        %v4093 = vunpack.c.h.b16 %v1221
        %v4094 = vunpack.c.l.b16 %v1222
        %v4095 = vunpack.c.h.b16 %v1222
        %v4096 = vunpack.c.l.b16 %v1223
        %v4097 = vunpack.c.h.b16 %v1223
        %v4098 = vunpack.c.l.b16 %v1224
        %v4099 = vunpack.c.h.b16 %v1224
        %v4100 = vunpack.c.l.b16 %v1225
        %v4101 = vunpack.c.h.b16 %v1225
        %v4102 = vunpack.c.l.b16 %v1226
        %v4103 = vunpack.c.h.b16 %v1226
        %v4104 = vunpack.c.l.b16 %v1227
        %v4105 = vunpack.c.h.b16 %v1227
        %v4106 = vunpack.c.l.b16 %v1228
        %v4107 = vunpack.c.h.b16 %v1228
        %v4108 = vunpack.c.l.b16 %v1229
        %v4109 = vunpack.c.h.b16 %v1229
        %v4110 = vunpack.c.l.b16 %v1230
        %v4111 = vunpack.c.h.b16 %v1230
        %v4112 = vunpack.c.l.b16 %v1231
        %v4113 = vunpack.c.h.b16 %v1231
        %v4114 = vunpack.c.l.b16 %v1232
        %v4115 = vunpack.c.h.b16 %v1232
        %v4116 = vunpack.c.l.b16 %v1233
        %v4117 = vunpack.c.h.b16 %v1233
        %v4118 = vunpack.c.l.b16 %v1234
        %v4119 = vunpack.c.h.b16 %v1234
        %v4120 = vunpack.c.l.b16 %v1235
        %v4121 = vunpack.c.h.b16 %v1235
        %v4122 = vunpack.c.l.b16 %v1236
        %v4123 = vunpack.c.h.b16 %v1236
        %v4124 = vunpack.c.l.b16 %v1237
        %v4125 = vunpack.c.h.b16 %v1237
        %v4126 = vunpack.c.l.b16 %v1238
        %v4127 = vunpack.c.h.b16 %v1238
        %v4128 = vunpack.c.l.b16 %v1239
        %v4129 = vunpack.c.h.b16 %v1239
        %v4130 = vunpack.c.l.b16 %v1240
        %v4131 = vunpack.c.h.b16 %v1240
        %v4132 = vunpack.c.l.b16 %v1241
        %v4133 = vunpack.c.h.b16 %v1241
        %v4134 = vunpack.c.l.b16 %v1242
        %v4135 = vunpack.c.h.b16 %v1242
        %v4136 = vunpack.c.l.b16 %v1243
        %v4137 = vunpack.c.h.b16 %v1243
        %v4138 = vunpack.c.l.b16 %v1244
        %v4139 = vunpack.c.h.b16 %v1244
        %v4140 = vunpack.c.l.b16 %v1245
        %v4141 = vunpack.c.h.b16 %v1245
        %v4142 = vunpack.c.l.b16 %v1246
        %v4143 = vunpack.c.h.b16 %v1246
        %v4144 = vunpack.c.l.b16 %v1247
        %v4145 = vunpack.c.h.b16 %v1247
        %v4146 = vunpack.c.l.b16 %v1248
        %v4147 = vunpack.c.h.b16 %v1248
        %v4148 = vunpack.c.l.b16 %v1249
        %v4149 = vunpack.c.h.b16 %v1249
        %v4150 = vunpack.c.l.b16 %v1250
        %v4151 = vunpack.c.h.b16 %v1250
        %v4152 = vunpack.c.l.b16 %v1251
        %v4153 = vunpack.c.h.b16 %v1251
        %v4154 = vunpack.c.l.b16 %v1252
        %v4155 = vunpack.c.h.b16 %v1252
        %v4156 = vunpack.c.l.b16 %v1253
        %v4157 = vunpack.c.h.b16 %v1253
        %v4158 = vunpack.c.l.b16 %v1254
        %v4159 = vunpack.c.h.b16 %v1254
        %v4160 = vunpack.c.l.b16 %v1255
        %v4161 = vunpack.c.h.b16 %v1255
        %v4162 = vunpack.c.l.b16 %v1256
        %v4163 = vunpack.c.h.b16 %v1256
        %v4164 = vunpack.c.l.b16 %v1257
        %v4165 = vunpack.c.h.b16 %v1257
        %v4166 = vunpack.c.l.b16 %v1258
        %v4167 = vunpack.c.h.b16 %v1258
        %v4168 = vunpack.c.l.b16 %v1259
        %v4169 = vunpack.c.h.b16 %v1259
        %v4170 = vunpack.c.l.b16 %v1260
        %v4171 = vunpack.c.h.b16 %v1260
        %v4172 = vunpack.c.l.b16 %v1261
        %v4173 = vunpack.c.h.b16 %v1261
        %v4174 = vunpack.c.l.b16 %v1262
        %v4175 = vunpack.c.h.b16 %v1262
        %v4176 = vunpack.c.l.b16 %v1263
        %v4177 = vunpack.c.h.b16 %v1263
        %v4178 = vunpack.c.l.b16 %v1264
        %v4179 = vunpack.c.h.b16 %v1264
        %v4180 = vunpack.c.l.b16 %v1265
        %v4181 = vunpack.c.h.b16 %v1265
        %v4182 = vunpack.c.l.b16 %v1266
        %v4183 = vunpack.c.h.b16 %v1266
        %v4184 = vunpack.c.l.b16 %v1267
        %v4185 = vunpack.c.h.b16 %v1267
        %v4186 = vunpack.c.l.b16 %v1268
        %v4187 = vunpack.c.h.b16 %v1268
        %v4188 = vunpack.c.l.b16 %v1269
        %v4189 = vunpack.c.h.b16 %v1269
        %v4190 = vunpack.c.l.b16 %v1270
        %v4191 = vunpack.c.h.b16 %v1270
        %v4192 = vunpack.c.l.b16 %v1271
        %v4193 = vunpack.c.h.b16 %v1271
        %v4194 = vunpack.c.l.b16 %v1272
        %v4195 = vunpack.c.h.b16 %v1272
        %v4196 = vunpack.c.l.b16 %v1273
        %v4197 = vunpack.c.h.b16 %v1273
        %v4198 = vunpack.c.l.b16 %v1274
        %v4199 = vunpack.c.h.b16 %v1274
        %v4200 = vunpack.c.l.b16 %v1275
        %v4201 = vunpack.c.h.b16 %v1275
        %v4202 = vunpack.c.l.b16 %v1276
        %v4203 = vunpack.c.h.b16 %v1276
        %v4204 = vunpack.c.l.b16 %v1277
        %v4205 = vunpack.c.h.b16 %v1277
        %v4206 = vunpack.c.l.b16 %v1278
        %v4207 = vunpack.c.h.b16 %v1278
        %v4208 = vunpack.c.l.b16 %v1279
        %v4209 = vunpack.c.h.b16 %v1279
        %v4210 = vunpack.c.l.b16 %v1280
        %v4211 = vunpack.c.h.b16 %v1280
        %v4212 = vunpack.c.l.b16 %v1281
        %v4213 = vunpack.c.h.b16 %v1281
        %v4214 = vunpack.c.l.b16 %v1282
        %v4215 = vunpack.c.h.b16 %v1282
        %v4216 = vunpack.c.l.b16 %v1283
        %v4217 = vunpack.c.h.b16 %v1283
        %v4218 = vunpack.c.l.b16 %v1284
        %v4219 = vunpack.c.h.b16 %v1284
        %v4220 = vunpack.c.l.b16 %v1285
        %v4221 = vunpack.c.h.b16 %v1285
        %v4222 = vunpack.c.l.b16 %v1286
        %v4223 = vunpack.c.h.b16 %v1286
        %v4224 = vunpack.c.l.b16 %v1287
        %v4225 = vunpack.c.h.b16 %v1287
        %v4226 = vunpack.c.l.b16 %v1288
        %v4227 = vunpack.c.h.b16 %v1288
        %v4228 = vunpack.c.l.b16 %v1289
        %v4229 = vunpack.c.h.b16 %v1289
        %v4230 = vunpack.c.l.b16 %v1290
        %v4231 = vunpack.c.h.b16 %v1290
        %v4232 = vunpack.c.l.b16 %v1291
        %v4233 = vunpack.c.h.b16 %v1291
        %v4234 = vunpack.c.l.b16 %v1292
        %v4235 = vunpack.c.h.b16 %v1292
        %v4236 = vunpack.c.l.b16 %v1293
        %v4237 = vunpack.c.h.b16 %v1293
        %v4238 = vunpack.c.l.b16 %v1294
        %v4239 = vunpack.c.h.b16 %v1294
        %v4240 = vunpack.c.l.b16 %v1295
        %v4241 = vunpack.c.h.b16 %v1295
        %v4242 = vunpack.c.l.b16 %v1296
        %v4243 = vunpack.c.h.b16 %v1296
        %v4244 = vunpack.c.l.b16 %v1297
        %v4245 = vunpack.c.h.b16 %v1297
        %v4246 = vunpack.c.l.b16 %v1298
        %v4247 = vunpack.c.h.b16 %v1298
        %v4248 = vunpack.c.l.b16 %v1299
        %v4249 = vunpack.c.h.b16 %v1299
        %v4250 = vunpack.c.l.b16 %v1300
        %v4251 = vunpack.c.h.b16 %v1300
        %v4252 = vunpack.c.l.b16 %v1301
        %v4253 = vunpack.c.h.b16 %v1301
        %v4254 = vunpack.c.l.b16 %v1302
        %v4255 = vunpack.c.h.b16 %v1302
        %v4256 = vunpack.c.l.b16 %v1303
        %v4257 = vunpack.c.h.b16 %v1303
        %v4258 = vunpack.c.l.b16 %v1304
        %v4259 = vunpack.c.h.b16 %v1304
        %v4260 = vunpack.c.l.b16 %v1305
        %v4261 = vunpack.c.h.b16 %v1305
        %v4262 = vunpack.c.l.b16 %v1306
        %v4263 = vunpack.c.h.b16 %v1306
        %v4264 = vunpack.c.l.b16 %v1307
        %v4265 = vunpack.c.h.b16 %v1307
        %v4266 = vunpack.c.l.b16 %v1308
        %v4267 = vunpack.c.h.b16 %v1308
        %v4268 = vunpack.c.l.b16 %v1309
        %v4269 = vunpack.c.h.b16 %v1309
        %v4270 = vunpack.c.l.b16 %v1310
        %v4271 = vunpack.c.h.b16 %v1310
        %v4272 = vunpack.c.l.b16 %v1311
        %v4273 = vunpack.c.h.b16 %v1311
        %v4274 = vunpack.c.l.b16 %v1312
        %v4275 = vunpack.c.h.b16 %v1312
        %v4276 = vunpack.c.l.b16 %v1313
        %v4277 = vunpack.c.h.b16 %v1313
        %v4278 = vunpack.c.l.b16 %v1314
        %v4279 = vunpack.c.h.b16 %v1314
        %v4280 = vunpack.c.l.b16 %v1315
        %v4281 = vunpack.c.h.b16 %v1315
        %v4282 = vunpack.c.l.b16 %v1316
        %v4283 = vunpack.c.h.b16 %v1316
        %v4284 = vunpack.c.l.b16 %v1317
        %v4285 = vunpack.c.h.b16 %v1317
        %v4286 = vunpack.c.l.b16 %v1318
        %v4287 = vunpack.c.h.b16 %v1318
        %v4288 = vunpack.c.l.b16 %v1319
        %v4289 = vunpack.c.h.b16 %v1319
        %v4290 = vunpack.c.l.b16 %v1320
        %v4291 = vunpack.c.h.b16 %v1320
        %v4292 = vunpack.c.l.b16 %v1321
        %v4293 = vunpack.c.h.b16 %v1321
        %v4294 = vunpack.c.l.b16 %v1322
        %v4295 = vunpack.c.h.b16 %v1322
        %v4296 = vunpack.c.l.b16 %v1323
        %v4297 = vunpack.c.h.b16 %v1323
        %v4298 = vunpack.c.l.b16 %v1324
        %v4299 = vunpack.c.h.b16 %v1324
        %v4300 = vunpack.c.l.b16 %v1325
        %v4301 = vunpack.c.h.b16 %v1325
        %v4302 = vunpack.c.l.b16 %v1326
        %v4303 = vunpack.c.h.b16 %v1326
        %v4304 = vunpack.c.l.b16 %v1327
        %v4305 = vunpack.c.h.b16 %v1327
        %v4306 = vunpack.c.l.b16 %v1328
        %v4307 = vunpack.c.h.b16 %v1328
        %v4308 = vunpack.c.l.b16 %v1329
        %v4309 = vunpack.c.h.b16 %v1329
        %v4310 = vunpack.c.l.b16 %v1330
        %v4311 = vunpack.c.h.b16 %v1330
        %v4312 = vunpack.c.l.b16 %v1331
        %v4313 = vunpack.c.h.b16 %v1331
        %v4314 = vunpack.c.l.b16 %v1332
        %v4315 = vunpack.c.h.b16 %v1332
        %v4316 = vunpack.c.l.b16 %v1333
        %v4317 = vunpack.c.h.b16 %v1333
        %v4318 = vunpack.c.l.b16 %v1334
        %v4319 = vunpack.c.h.b16 %v1334
        %v4320 = vunpack.c.l.b16 %v1335
        %v4321 = vunpack.c.h.b16 %v1335
        %v4322 = vunpack.c.l.b16 %v1336
        %v4323 = vunpack.c.h.b16 %v1336
        %v4324 = vunpack.c.l.b16 %v1337
        %v4325 = vunpack.c.h.b16 %v1337
        %v4326 = vunpack.c.l.b16 %v1338
        %v4327 = vunpack.c.h.b16 %v1338
        %v4328 = vunpack.c.l.b16 %v1339
        %v4329 = vunpack.c.h.b16 %v1339
        %v4330 = vunpack.c.l.b16 %v1340
        %v4331 = vunpack.c.h.b16 %v1340
        %v4332 = vunpack.c.l.b16 %v1341
        %v4333 = vunpack.c.h.b16 %v1341
        %v4334 = vunpack.c.l.b16 %v1342
        %v4335 = vunpack.c.h.b16 %v1342
        %v4336 = vunpack.c.l.b16 %v1343
        %v4337 = vunpack.c.h.b16 %v1343
        %v4338 = vunpack.c.l.b16 %v1344
        %v4339 = vunpack.c.h.b16 %v1344
        %v4340 = vunpack.c.l.b16 %v1345
        %v4341 = vunpack.c.h.b16 %v1345
        %v4342 = vunpack.c.l.b16 %v1346
        %v4343 = vunpack.c.h.b16 %v1346
        %v4344 = vunpack.c.l.b16 %v1347
        %v4345 = vunpack.c.h.b16 %v1347
        %v4346 = vunpack.c.l.b16 %v1348
        %v4347 = vunpack.c.h.b16 %v1348
        %v4348 = vunpack.c.l.b16 %v1349
        %v4349 = vunpack.c.h.b16 %v1349
        %v4350 = vunpack.c.l.b16 %v1350
        %v4351 = vunpack.c.h.b16 %v1350
        %v4352 = vunpack.c.l.b16 %v1351
        %v4353 = vunpack.c.h.b16 %v1351
        %v4354 = vunpack.c.l.b16 %v1352
        %v4355 = vunpack.c.h.b16 %v1352
        %v4356 = vunpack.c.l.b16 %v1353
        %v4357 = vunpack.c.h.b16 %v1353
        %v4358 = vunpack.c.l.b16 %v1354
        %v4359 = vunpack.c.h.b16 %v1354
        %v4360 = vunpack.c.l.b16 %v1355
        %v4361 = vunpack.c.h.b16 %v1355
        %v4362 = vunpack.c.l.b16 %v1356
        %v4363 = vunpack.c.h.b16 %v1356
        %v4364 = vunpack.c.l.b16 %v1357
        %v4365 = vunpack.c.h.b16 %v1357
        %v4366 = vunpack.c.l.b16 %v1358
        %v4367 = vunpack.c.h.b16 %v1358
        %v4368 = vunpack.c.l.b16 %v1359
        %v4369 = vunpack.c.h.b16 %v1359
        %v4370 = vunpack.c.l.b16 %v1360
        %v4371 = vunpack.c.h.b16 %v1360
        %v4372 = vunpack.c.l.b16 %v1361
        %v4373 = vunpack.c.h.b16 %v1361
        %v4374 = vunpack.c.l.b16 %v1362
        %v4375 = vunpack.c.h.b16 %v1362
        %v4376 = vunpack.c.l.b16 %v1363
        %v4377 = vunpack.c.h.b16 %v1363
        %v4378 = vunpack.c.l.b16 %v1364
        %v4379 = vunpack.c.h.b16 %v1364
        %v4380 = vunpack.c.l.b16 %v1365
        %v4381 = vunpack.c.h.b16 %v1365
        %v4382 = vunpack.c.l.b16 %v1366
        %v4383 = vunpack.c.h.b16 %v1366
        %v4384 = vunpack.c.l.b16 %v1367
        %v4385 = vunpack.c.h.b16 %v1367
        %v4386 = vunpack.c.l.b16 %v1368
        %v4387 = vunpack.c.h.b16 %v1368
        %v4388 = vunpack.c.l.b16 %v1369
        %v4389 = vunpack.c.h.b16 %v1369
        %v4390 = vunpack.c.l.b16 %v1370
        %v4391 = vunpack.c.h.b16 %v1370
        %v4392 = vunpack.c.l.b16 %v1371
        %v4393 = vunpack.c.h.b16 %v1371
        %v4394 = vunpack.c.l.b16 %v1372
        %v4395 = vunpack.c.h.b16 %v1372
        %v4396 = vunpack.c.l.b16 %v1373
        %v4397 = vunpack.c.h.b16 %v1373
        %v4398 = vunpack.c.l.b16 %v1374
        %v4399 = vunpack.c.h.b16 %v1374
        %v4400 = vunpack.c.l.b16 %v1375
        %v4401 = vunpack.c.h.b16 %v1375
        %v4402 = vunpack.c.l.b16 %v1376
        %v4403 = vunpack.c.h.b16 %v1376
        %v4404 = vunpack.c.l.b16 %v1377
        %v4405 = vunpack.c.h.b16 %v1377
        %v4406 = vunpack.c.l.b16 %v1378
        %v4407 = vunpack.c.h.b16 %v1378
        %v4408 = vunpack.c.l.b16 %v1379
        %v4409 = vunpack.c.h.b16 %v1379
        %v4410 = vunpack.c.l.b16 %v1380
        %v4411 = vunpack.c.h.b16 %v1380
        %v4412 = vunpack.c.l.b16 %v1381
        %v4413 = vunpack.c.h.b16 %v1381
        %v4414 = vunpack.c.l.b16 %v1382
        %v4415 = vunpack.c.h.b16 %v1382
        %v4416 = vunpack.c.l.b16 %v1383
        %v4417 = vunpack.c.h.b16 %v1383
        %v4418 = vunpack.c.l.b16 %v1384
        %v4419 = vunpack.c.h.b16 %v1384
        %v4420 = vunpack.c.l.b16 %v1385
        %v4421 = vunpack.c.h.b16 %v1385
        %v4422 = vunpack.c.l.b16 %v1386
        %v4423 = vunpack.c.h.b16 %v1386
        %v4424 = vunpack.c.l.b16 %v1387
        %v4425 = vunpack.c.h.b16 %v1387
        %v4426 = vunpack.c.l.b16 %v1388
        %v4427 = vunpack.c.h.b16 %v1388
        %v4428 = vunpack.c.l.b16 %v1389
        %v4429 = vunpack.c.h.b16 %v1389
        %v4430 = vunpack.c.l.b16 %v1390
        %v4431 = vunpack.c.h.b16 %v1390
        %v4432 = vunpack.c.l.b16 %v1391
        %v4433 = vunpack.c.h.b16 %v1391
        %v4434 = vunpack.c.l.b16 %v1392
        %v4435 = vunpack.c.h.b16 %v1392
        %v4436 = vunpack.c.l.b16 %v1393
        %v4437 = vunpack.c.h.b16 %v1393
        %v4438 = vunpack.c.l.b16 %v1394
        %v4439 = vunpack.c.h.b16 %v1394
        %v4440 = vunpack.c.l.b16 %v1395
        %v4441 = vunpack.c.h.b16 %v1395
        %v4442 = vunpack.c.l.b16 %v1396
        %v4443 = vunpack.c.h.b16 %v1396
        %v4444 = vunpack.c.l.b16 %v1397
        %v4445 = vunpack.c.h.b16 %v1397
        %v4446 = vunpack.c.l.b16 %v1398
        %v4447 = vunpack.c.h.b16 %v1398
        %v4448 = vunpack.c.l.b16 %v1399
        %v4449 = vunpack.c.h.b16 %v1399
        %v4450 = vunpack.c.l.b16 %v1400
        %v4451 = vunpack.c.h.b16 %v1400
        %v4452 = vunpack.c.l.b16 %v1401
        %v4453 = vunpack.c.h.b16 %v1401
        %v4454 = vunpack.c.l.b16 %v1402
        %v4455 = vunpack.c.h.b16 %v1402
        %v4456 = vunpack.c.l.b16 %v1403
        %v4457 = vunpack.c.h.b16 %v1403
        %v4458 = vunpack.c.l.b16 %v1404
        %v4459 = vunpack.c.h.b16 %v1404
        %v4460 = vunpack.c.l.b16 %v1405
        %v4461 = vunpack.c.h.b16 %v1405
        %v4462 = vunpack.c.l.b16 %v1406
        %v4463 = vunpack.c.h.b16 %v1406
        %v4464 = vunpack.c.l.b16 %v1407
        %v4465 = vunpack.c.h.b16 %v1407
        %v4466 = vunpack.c.l.b16 %v1408
        %v4467 = vunpack.c.h.b16 %v1408
        %v4468 = vunpack.c.l.b16 %v1409
        %v4469 = vunpack.c.h.b16 %v1409
        %v4470 = vunpack.c.l.b16 %v1410
        %v4471 = vunpack.c.h.b16 %v1410
        %v4472 = vunpack.c.l.b16 %v1411
        %v4473 = vunpack.c.h.b16 %v1411
        %v4474 = vunpack.c.l.b16 %v1412
        %v4475 = vunpack.c.h.b16 %v1412
        %v4476 = vunpack.c.l.b16 %v1413
        %v4477 = vunpack.c.h.b16 %v1413
        %v4478 = vunpack.c.l.b16 %v1414
        %v4479 = vunpack.c.h.b16 %v1414
        %v4480 = vunpack.c.l.b16 %v1415
        %v4481 = vunpack.c.h.b16 %v1415
        %v4482 = vunpack.c.l.b16 %v1416
        %v4483 = vunpack.c.h.b16 %v1416
        %v4484 = vunpack.c.l.b16 %v1417
        %v4485 = vunpack.c.h.b16 %v1417
        %v4486 = vunpack.c.l.b16 %v1418
        %v4487 = vunpack.c.h.b16 %v1418
        %v4488 = vunpack.c.l.b16 %v1419
        %v4489 = vunpack.c.h.b16 %v1419
        %v4490 = vunpack.c.l.b16 %v1420
        %v4491 = vunpack.c.h.b16 %v1420
        %v4492 = vunpack.c.l.b16 %v1421
        %v4493 = vunpack.c.h.b16 %v1421
        %v4494 = vunpack.c.l.b16 %v1422
        %v4495 = vunpack.c.h.b16 %v1422
        %v4496 = vunpack.c.l.b16 %v1423
        %v4497 = vunpack.c.h.b16 %v1423
        %v4498 = vunpack.c.l.b16 %v1424
        %v4499 = vunpack.c.h.b16 %v1424
        %v4500 = vunpack.c.l.b16 %v1425
        %v4501 = vunpack.c.h.b16 %v1425
        %v4502 = vunpack.c.l.b16 %v1426
        %v4503 = vunpack.c.h.b16 %v1426
        %v4504 = vunpack.c.l.b16 %v1427
        %v4505 = vunpack.c.h.b16 %v1427
        %v4506 = vunpack.c.l.b16 %v1428
        %v4507 = vunpack.c.h.b16 %v1428
        %v4508 = vunpack.c.l.b16 %v1429
        %v4509 = vunpack.c.h.b16 %v1429
        %v4510 = vunpack.c.l.b16 %v1430
        %v4511 = vunpack.c.h.b16 %v1430
        %v4512 = vunpack.c.l.b16 %v1431
        %v4513 = vunpack.c.h.b16 %v1431
        %v4514 = vunpack.c.l.b16 %v1432
        %v4515 = vunpack.c.h.b16 %v1432
        %v4516 = vunpack.c.l.b16 %v1433
        %v4517 = vunpack.c.h.b16 %v1433
        %v4518 = vunpack.c.l.b16 %v1434
        %v4519 = vunpack.c.h.b16 %v1434
        %v4520 = vunpack.c.l.b16 %v1435
        %v4521 = vunpack.c.h.b16 %v1435
        %v4522 = vunpack.c.l.b16 %v1436
        %v4523 = vunpack.c.h.b16 %v1436
        %v4524 = vunpack.c.l.b16 %v1437
        %v4525 = vunpack.c.h.b16 %v1437
        %v4526 = vunpack.c.l.b16 %v1438
        %v4527 = vunpack.c.h.b16 %v1438
        %v4528 = vunpack.c.l.b16 %v1439
        %v4529 = vunpack.c.h.b16 %v1439
        %v4530 = vunpack.c.l.b16 %v1440
        %v4531 = vunpack.c.h.b16 %v1440
        %v4532 = vunpack.c.l.b16 %v1441
        %v4533 = vunpack.c.h.b16 %v1441
        %v4534 = vunpack.c.l.b16 %v1442
        %v4535 = vunpack.c.h.b16 %v1442
        %v4536 = vunpack.c.l.b16 %v1443
        %v4537 = vunpack.c.h.b16 %v1443
        %v4538 = vunpack.c.l.b16 %v1444
        %v4539 = vunpack.c.h.b16 %v1444
        %v4540 = vunpack.c.l.b16 %v1445
        %v4541 = vunpack.c.h.b16 %v1445
        %v4542 = vunpack.c.l.b16 %v1446
        %v4543 = vunpack.c.h.b16 %v1446
        %v4544 = vunpack.c.l.b16 %v1447
        %v4545 = vunpack.c.h.b16 %v1447
        %v4546 = vunpack.c.l.b16 %v1448
        %v4547 = vunpack.c.h.b16 %v1448
        %v4548 = vunpack.c.l.b16 %v1449
        %v4549 = vunpack.c.h.b16 %v1449
        %v4550 = vunpack.c.l.b16 %v1450
        %v4551 = vunpack.c.h.b16 %v1450
        %v4552 = vunpack.c.l.b16 %v1451
        %v4553 = vunpack.c.h.b16 %v1451
        %v4554 = vunpack.c.l.b16 %v1452
        %v4555 = vunpack.c.h.b16 %v1452
        %v4556 = vunpack.c.l.b16 %v1453
        %v4557 = vunpack.c.h.b16 %v1453
        %v4558 = vunpack.c.l.b16 %v1454
        %v4559 = vunpack.c.h.b16 %v1454
        %v4560 = vunpack.c.l.b16 %v1455
        %v4561 = vunpack.c.h.b16 %v1455
        %v4562 = vunpack.c.l.b16 %v1456
        %v4563 = vunpack.c.h.b16 %v1456
        %v4564 = vunpack.c.l.b16 %v1457
        %v4565 = vunpack.c.h.b16 %v1457
        %v4566 = vunpack.c.l.b16 %v1458
        %v4567 = vunpack.c.h.b16 %v1458
        %v4568 = vunpack.c.l.b16 %v1459
        %v4569 = vunpack.c.h.b16 %v1459
        %v4570 = vunpack.c.l.b16 %v1460
        %v4571 = vunpack.c.h.b16 %v1460
        %v4572 = vunpack.c.l.b16 %v1461
        %v4573 = vunpack.c.h.b16 %v1461
        %v4574 = vunpack.c.l.b16 %v1462
        %v4575 = vunpack.c.h.b16 %v1462
        %v4576 = vunpack.c.l.b16 %v1463
        %v4577 = vunpack.c.h.b16 %v1463
        %v4578 = vunpack.c.l.b16 %v1464
        %v4579 = vunpack.c.h.b16 %v1464
        %v4580 = vunpack.c.l.b16 %v1465
        %v4581 = vunpack.c.h.b16 %v1465
        %v4582 = vunpack.c.l.b16 %v1466
        %v4583 = vunpack.c.h.b16 %v1466
        %v4584 = vunpack.c.l.b16 %v1467
        %v4585 = vunpack.c.h.b16 %v1467
        %v4586 = vunpack.c.l.b16 %v1468
        %v4587 = vunpack.c.h.b16 %v1468
        %v4588 = vunpack.c.l.b16 %v1469
        %v4589 = vunpack.c.h.b16 %v1469
        %v4590 = vunpack.c.l.b16 %v1470
        %v4591 = vunpack.c.h.b16 %v1470
        %v4592 = vunpack.c.l.b16 %v1471
        %v4593 = vunpack.c.h.b16 %v1471
        %v4594 = vunpack.c.l.b16 %v1472
        %v4595 = vunpack.c.h.b16 %v1472
        %v4596 = vunpack.c.l.b16 %v1473
        %v4597 = vunpack.c.h.b16 %v1473
        %v4598 = vunpack.c.l.b16 %v1474
        %v4599 = vunpack.c.h.b16 %v1474
        %v4600 = vunpack.c.l.b16 %v1475
        %v4601 = vunpack.c.h.b16 %v1475
        %v4602 = vunpack.c.l.b16 %v1476
        %v4603 = vunpack.c.h.b16 %v1476
        %v4604 = vunpack.c.l.b16 %v1477
        %v4605 = vunpack.c.h.b16 %v1477
        %v4606 = vunpack.c.l.b16 %v1478
        %v4607 = vunpack.c.h.b16 %v1478
        %v4608 = vunpack.c.l.b16 %v1479
        %v4609 = vunpack.c.h.b16 %v1479
        %v4610 = vunpack.c.l.b16 %v1480
        %v4611 = vunpack.c.h.b16 %v1480
        %v4612 = vunpack.c.l.b16 %v1481
        %v4613 = vunpack.c.h.b16 %v1481
        %v4614 = vunpack.c.l.b16 %v1482
        %v4615 = vunpack.c.h.b16 %v1482
        %v4616 = vunpack.c.l.b16 %v1483
        %v4617 = vunpack.c.h.b16 %v1483
        %v4618 = vunpack.c.l.b16 %v1484
        %v4619 = vunpack.c.h.b16 %v1484
        %v4620 = vunpack.c.l.b16 %v1485
        %v4621 = vunpack.c.h.b16 %v1485
        %v4622 = vunpack.c.l.b16 %v1486
        %v4623 = vunpack.c.h.b16 %v1486
        %v4624 = vunpack.c.l.b16 %v1487
        %v4625 = vunpack.c.h.b16 %v1487
        %v4626 = vunpack.c.l.b16 %v1488
        %v4627 = vunpack.c.h.b16 %v1488
        %v4628 = vunpack.c.l.b16 %v1489
        %v4629 = vunpack.c.h.b16 %v1489
        %v4630 = vunpack.c.l.b16 %v1490
        %v4631 = vunpack.c.h.b16 %v1490
        %v4632 = vunpack.c.l.b16 %v1491
        %v4633 = vunpack.c.h.b16 %v1491
        %v4634 = vunpack.c.l.b16 %v1492
        %v4635 = vunpack.c.h.b16 %v1492
        %v4636 = vunpack.c.l.b16 %v1493
        %v4637 = vunpack.c.h.b16 %v1493
        %v4638 = vunpack.c.l.b16 %v1494
        %v4639 = vunpack.c.h.b16 %v1494
        %v4640 = vunpack.c.l.b16 %v1495
        %v4641 = vunpack.c.h.b16 %v1495
        %v4642 = vunpack.c.l.b16 %v1496
        %v4643 = vunpack.c.h.b16 %v1496
        %v4644 = vunpack.c.l.b16 %v1497
        %v4645 = vunpack.c.h.b16 %v1497
        %v4646 = vunpack.c.l.b16 %v1498
        %v4647 = vunpack.c.h.b16 %v1498
        %v4648 = vunpack.c.l.b16 %v1499
        %v4649 = vunpack.c.h.b16 %v1499
        %v4650 = vunpack.c.l.b16 %v1500
        %v4651 = vunpack.c.h.b16 %v1500
        %v4652 = vunpack.c.l.b16 %v1501
        %v4653 = vunpack.c.h.b16 %v1501
        %v4654 = vunpack.c.l.b16 %v1502
        %v4655 = vunpack.c.h.b16 %v1502
        %v4656 = vunpack.c.l.b16 %v1503
        %v4657 = vunpack.c.h.b16 %v1503
        %v4658 = vunpack.c.l.b16 %v1504
        %v4659 = vunpack.c.h.b16 %v1504
        %v4660 = vunpack.c.l.b16 %v1505
        %v4661 = vunpack.c.h.b16 %v1505
        %v4662 = vunpack.c.l.b16 %v1506
        %v4663 = vunpack.c.h.b16 %v1506
        %v4664 = vunpack.c.l.b16 %v1507
        %v4665 = vunpack.c.h.b16 %v1507
        %v4666 = vunpack.c.l.b16 %v1508
        %v4667 = vunpack.c.h.b16 %v1508
        %v4668 = vunpack.c.l.b16 %v1509
        %v4669 = vunpack.c.h.b16 %v1509
        %v4670 = vunpack.c.l.b16 %v1510
        %v4671 = vunpack.c.h.b16 %v1510
        %v4672 = vunpack.c.l.b16 %v1511
        %v4673 = vunpack.c.h.b16 %v1511
        %v4674 = vunpack.c.l.b16 %v1512
        %v4675 = vunpack.c.h.b16 %v1512
        %v4676 = vunpack.c.l.b16 %v1513
        %v4677 = vunpack.c.h.b16 %v1513
        %v4678 = vunpack.c.l.b16 %v1514
        %v4679 = vunpack.c.h.b16 %v1514
        %v4680 = vunpack.c.l.b16 %v1515
        %v4681 = vunpack.c.h.b16 %v1515
        %v4682 = vunpack.c.l.b16 %v1516
        %v4683 = vunpack.c.h.b16 %v1516
        %v4684 = vunpack.c.l.b16 %v1517
        %v4685 = vunpack.c.h.b16 %v1517
        %v4686 = vunpack.c.l.b16 %v1518
        %v4687 = vunpack.c.h.b16 %v1518
        %v4688 = vunpack.c.l.b16 %v1519
        %v4689 = vunpack.c.h.b16 %v1519
        %v4690 = vunpack.c.l.b16 %v1520
        %v4691 = vunpack.c.h.b16 %v1520
        %v4692 = vunpack.c.l.b16 %v1521
        %v4693 = vunpack.c.h.b16 %v1521
        %v4694 = vunpack.c.l.b16 %v1522
        %v4695 = vunpack.c.h.b16 %v1522
        %v4696 = vunpack.c.l.b16 %v1523
        %v4697 = vunpack.c.h.b16 %v1523
        %v4698 = vunpack.c.l.b16 %v1524
        %v4699 = vunpack.c.h.b16 %v1524
        %v4700 = vunpack.c.l.b16 %v1525
        %v4701 = vunpack.c.h.b16 %v1525
        %v4702 = vunpack.c.l.b16 %v1526
        %v4703 = vunpack.c.h.b16 %v1526
        %v4704 = vunpack.c.l.b16 %v1527
        %v4705 = vunpack.c.h.b16 %v1527
        %v4706 = vunpack.c.l.b16 %v1528
        %v4707 = vunpack.c.h.b16 %v1528
        %v4708 = vunpack.c.l.b16 %v1529
        %v4709 = vunpack.c.h.b16 %v1529
        %v4710 = vunpack.c.l.b16 %v1530
        %v4711 = vunpack.c.h.b16 %v1530
        %v4712 = vunpack.c.l.b16 %v1531
        %v4713 = vunpack.c.h.b16 %v1531
        %v4714 = vunpack.c.l.b16 %v1532
        %v4715 = vunpack.c.h.b16 %v1532
        %v4716 = vunpack.c.l.b16 %v1533
        %v4717 = vunpack.c.h.b16 %v1533
        %v4718 = vunpack.c.l.b16 %v1534
        %v4719 = vunpack.c.h.b16 %v1534
        %v4720 = vunpack.c.l.b16 %v1535
        %v4721 = vunpack.c.h.b16 %v1535
        %v4722 = vunpack.c.l.b16 %v1536
        %v4723 = vunpack.c.h.b16 %v1536
        %v4724 = vunpack.c.l.b16 %v1537
        %v4725 = vunpack.c.h.b16 %v1537
        %v4726 = vpack.c.b16 %v2686, %v2678
        %v4727 = vpack.c.b16 %v2687, %v2679
        %v4728 = vpack.c.b16 %v2688, %v2680
        %v4729 = vpack.c.b16 %v2689, %v2681
        %v4730 = vpack.c.b16 %v2690, %v2682
        %v4731 = vpack.c.b16 %v2691, %v2683
        %v4732 = vpack.c.b16 %v2692, %v2684
        %v4733 = vpack.c.b16 %v2693, %v2685
        %v4734 = vpack.c.b16 %v2702, %v2694
        %v4735 = vpack.c.b16 %v2703, %v2695
        %v4736 = vpack.c.b16 %v2704, %v2696
        %v4737 = vpack.c.b16 %v2705, %v2697
        %v4738 = vpack.c.b16 %v2706, %v2698
        %v4739 = vpack.c.b16 %v2707, %v2699
        %v4740 = vpack.c.b16 %v2708, %v2700
        %v4741 = vpack.c.b16 %v2709, %v2701
        %v4742 = vpack.c.b16 %v2718, %v2710
        %v4743 = vpack.c.b16 %v2719, %v2711
        %v4744 = vpack.c.b16 %v2720, %v2712
        %v4745 = vpack.c.b16 %v2721, %v2713
        %v4746 = vpack.c.b16 %v2722, %v2714
        %v4747 = vpack.c.b16 %v2723, %v2715
        %v4748 = vpack.c.b16 %v2724, %v2716
        %v4749 = vpack.c.b16 %v2725, %v2717
        %v4750 = vpack.c.b16 %v2734, %v2726
        %v4751 = vpack.c.b16 %v2735, %v2727
        %v4752 = vpack.c.b16 %v2736, %v2728
        %v4753 = vpack.c.b16 %v2737, %v2729
        %v4754 = vpack.c.b16 %v2738, %v2730
        %v4755 = vpack.c.b16 %v2739, %v2731
        %v4756 = vpack.c.b16 %v2740, %v2732
        %v4757 = vpack.c.b16 %v2741, %v2733
        %v4758 = vpack.c.b16 %v2750, %v2742
        %v4759 = vpack.c.b16 %v2751, %v2743
        %v4760 = vpack.c.b16 %v2752, %v2744
        %v4761 = vpack.c.b16 %v2753, %v2745
        %v4762 = vpack.c.b16 %v2754, %v2746
        %v4763 = vpack.c.b16 %v2755, %v2747
        %v4764 = vpack.c.b16 %v2756, %v2748
        %v4765 = vpack.c.b16 %v2757, %v2749
        %v4766 = vpack.c.b16 %v2766, %v2758
        %v4767 = vpack.c.b16 %v2767, %v2759
        %v4768 = vpack.c.b16 %v2768, %v2760
        %v4769 = vpack.c.b16 %v2769, %v2761
        %v4770 = vpack.c.b16 %v2770, %v2762
        %v4771 = vpack.c.b16 %v2771, %v2763
        %v4772 = vpack.c.b16 %v2772, %v2764
        %v4773 = vpack.c.b16 %v2773, %v2765
        %v4774 = vpack.c.b16 %v2782, %v2774
        %v4775 = vpack.c.b16 %v2783, %v2775
        %v4776 = vpack.c.b16 %v2784, %v2776
        %v4777 = vpack.c.b16 %v2785, %v2777
        %v4778 = vpack.c.b16 %v2786, %v2778
        %v4779 = vpack.c.b16 %v2787, %v2779
        %v4780 = vpack.c.b16 %v2788, %v2780
        %v4781 = vpack.c.b16 %v2789, %v2781
        %v4782 = vpack.c.b16 %v2798, %v2790
        %v4783 = vpack.c.b16 %v2799, %v2791
        %v4784 = vpack.c.b16 %v2800, %v2792
        %v4785 = vpack.c.b16 %v2801, %v2793
        %v4786 = vpack.c.b16 %v2802, %v2794
        %v4787 = vpack.c.b16 %v2803, %v2795
        %v4788 = vpack.c.b16 %v2804, %v2796
        %v4789 = vpack.c.b16 %v2805, %v2797
        %v4790 = vpack.c.b16 %v2814, %v2806
        %v4791 = vpack.c.b16 %v2815, %v2807
        %v4792 = vpack.c.b16 %v2816, %v2808
        %v4793 = vpack.c.b16 %v2817, %v2809
        %v4794 = vpack.c.b16 %v2818, %v2810
        %v4795 = vpack.c.b16 %v2819, %v2811
        %v4796 = vpack.c.b16 %v2820, %v2812
        %v4797 = vpack.c.b16 %v2821, %v2813
        %v4798 = vpack.c.b16 %v2830, %v2822
        %v4799 = vpack.c.b16 %v2831, %v2823
        %v4800 = vpack.c.b16 %v2832, %v2824
        %v4801 = vpack.c.b16 %v2833, %v2825
        %v4802 = vpack.c.b16 %v2834, %v2826
        %v4803 = vpack.c.b16 %v2835, %v2827
        %v4804 = vpack.c.b16 %v2836, %v2828
        %v4805 = vpack.c.b16 %v2837, %v2829
        %v4806 = vpack.c.b16 %v2846, %v2838
        %v4807 = vpack.c.b16 %v2847, %v2839
        %v4808 = vpack.c.b16 %v2848, %v2840
        %v4809 = vpack.c.b16 %v2849, %v2841
        %v4810 = vpack.c.b16 %v2850, %v2842
        %v4811 = vpack.c.b16 %v2851, %v2843
        %v4812 = vpack.c.b16 %v2852, %v2844
        %v4813 = vpack.c.b16 %v2853, %v2845
        %v4814 = vpack.c.b16 %v2862, %v2854
        %v4815 = vpack.c.b16 %v2863, %v2855
        %v4816 = vpack.c.b16 %v2864, %v2856
        %v4817 = vpack.c.b16 %v2865, %v2857
        %v4818 = vpack.c.b16 %v2866, %v2858
        %v4819 = vpack.c.b16 %v2867, %v2859
        %v4820 = vpack.c.b16 %v2868, %v2860
        %v4821 = vpack.c.b16 %v2869, %v2861
        %v4822 = vpack.c.b16 %v2878, %v2870
        %v4823 = vpack.c.b16 %v2879, %v2871
        %v4824 = vpack.c.b16 %v2880, %v2872
        %v4825 = vpack.c.b16 %v2881, %v2873
        %v4826 = vpack.c.b16 %v2882, %v2874
        %v4827 = vpack.c.b16 %v2883, %v2875
        %v4828 = vpack.c.b16 %v2884, %v2876
        %v4829 = vpack.c.b16 %v2885, %v2877
        %v4830 = vpack.c.b16 %v2894, %v2886
        %v4831 = vpack.c.b16 %v2895, %v2887
        %v4832 = vpack.c.b16 %v2896, %v2888
        %v4833 = vpack.c.b16 %v2897, %v2889
        %v4834 = vpack.c.b16 %v2898, %v2890
        %v4835 = vpack.c.b16 %v2899, %v2891
        %v4836 = vpack.c.b16 %v2900, %v2892
        %v4837 = vpack.c.b16 %v2901, %v2893
        %v4838 = vpack.c.b16 %v2910, %v2902
        %v4839 = vpack.c.b16 %v2911, %v2903
        %v4840 = vpack.c.b16 %v2912, %v2904
        %v4841 = vpack.c.b16 %v2913, %v2905
        %v4842 = vpack.c.b16 %v2914, %v2906
        %v4843 = vpack.c.b16 %v2915, %v2907
        %v4844 = vpack.c.b16 %v2916, %v2908
        %v4845 = vpack.c.b16 %v2917, %v2909
        %v4846 = vpack.c.b16 %v2926, %v2918
        %v4847 = vpack.c.b16 %v2927, %v2919
        %v4848 = vpack.c.b16 %v2928, %v2920
        %v4849 = vpack.c.b16 %v2929, %v2921
        %v4850 = vpack.c.b16 %v2930, %v2922
        %v4851 = vpack.c.b16 %v2931, %v2923
        %v4852 = vpack.c.b16 %v2932, %v2924
        %v4853 = vpack.c.b16 %v2933, %v2925
        %v4854 = vpack.c.b16 %v2942, %v2934
        %v4855 = vpack.c.b16 %v2943, %v2935
        %v4856 = vpack.c.b16 %v2944, %v2936
        %v4857 = vpack.c.b16 %v2945, %v2937
        %v4858 = vpack.c.b16 %v2946, %v2938
        %v4859 = vpack.c.b16 %v2947, %v2939
        %v4860 = vpack.c.b16 %v2948, %v2940
        %v4861 = vpack.c.b16 %v2949, %v2941
        %v4862 = vpack.c.b16 %v2958, %v2950
        %v4863 = vpack.c.b16 %v2959, %v2951
        %v4864 = vpack.c.b16 %v2960, %v2952
        %v4865 = vpack.c.b16 %v2961, %v2953
        %v4866 = vpack.c.b16 %v2962, %v2954
        %v4867 = vpack.c.b16 %v2963, %v2955
        %v4868 = vpack.c.b16 %v2964, %v2956
        %v4869 = vpack.c.b16 %v2965, %v2957
        %v4870 = vpack.c.b16 %v2974, %v2966
        %v4871 = vpack.c.b16 %v2975, %v2967
        %v4872 = vpack.c.b16 %v2976, %v2968
        %v4873 = vpack.c.b16 %v2977, %v2969
        %v4874 = vpack.c.b16 %v2978, %v2970
        %v4875 = vpack.c.b16 %v2979, %v2971
        %v4876 = vpack.c.b16 %v2980, %v2972
        %v4877 = vpack.c.b16 %v2981, %v2973
        %v4878 = vpack.c.b16 %v2990, %v2982
        %v4879 = vpack.c.b16 %v2991, %v2983
        %v4880 = vpack.c.b16 %v2992, %v2984
        %v4881 = vpack.c.b16 %v2993, %v2985
        %v4882 = vpack.c.b16 %v2994, %v2986
        %v4883 = vpack.c.b16 %v2995, %v2987
        %v4884 = vpack.c.b16 %v2996, %v2988
        %v4885 = vpack.c.b16 %v2997, %v2989
        %v4886 = vpack.c.b16 %v3006, %v2998
        %v4887 = vpack.c.b16 %v3007, %v2999
        %v4888 = vpack.c.b16 %v3008, %v3000
        %v4889 = vpack.c.b16 %v3009, %v3001
        %v4890 = vpack.c.b16 %v3010, %v3002
        %v4891 = vpack.c.b16 %v3011, %v3003
        %v4892 = vpack.c.b16 %v3012, %v3004
        %v4893 = vpack.c.b16 %v3013, %v3005
        %v4894 = vpack.c.b16 %v3022, %v3014
        %v4895 = vpack.c.b16 %v3023, %v3015
        %v4896 = vpack.c.b16 %v3024, %v3016
        %v4897 = vpack.c.b16 %v3025, %v3017
        %v4898 = vpack.c.b16 %v3026, %v3018
        %v4899 = vpack.c.b16 %v3027, %v3019
        %v4900 = vpack.c.b16 %v3028, %v3020
        %v4901 = vpack.c.b16 %v3029, %v3021
        %v4902 = vpack.c.b16 %v3038, %v3030
        %v4903 = vpack.c.b16 %v3039, %v3031
        %v4904 = vpack.c.b16 %v3040, %v3032
        %v4905 = vpack.c.b16 %v3041, %v3033
        %v4906 = vpack.c.b16 %v3042, %v3034
        %v4907 = vpack.c.b16 %v3043, %v3035
        %v4908 = vpack.c.b16 %v3044, %v3036
        %v4909 = vpack.c.b16 %v3045, %v3037
        %v4910 = vpack.c.b16 %v3054, %v3046
        %v4911 = vpack.c.b16 %v3055, %v3047
        %v4912 = vpack.c.b16 %v3056, %v3048
        %v4913 = vpack.c.b16 %v3057, %v3049
        %v4914 = vpack.c.b16 %v3058, %v3050
        %v4915 = vpack.c.b16 %v3059, %v3051
        %v4916 = vpack.c.b16 %v3060, %v3052
        %v4917 = vpack.c.b16 %v3061, %v3053
        %v4918 = vpack.c.b16 %v3070, %v3062
        %v4919 = vpack.c.b16 %v3071, %v3063
        %v4920 = vpack.c.b16 %v3072, %v3064
        %v4921 = vpack.c.b16 %v3073, %v3065
        %v4922 = vpack.c.b16 %v3074, %v3066
        %v4923 = vpack.c.b16 %v3075, %v3067
        %v4924 = vpack.c.b16 %v3076, %v3068
        %v4925 = vpack.c.b16 %v3077, %v3069
        %v4926 = vpack.c.b16 %v3086, %v3078
        %v4927 = vpack.c.b16 %v3087, %v3079
        %v4928 = vpack.c.b16 %v3088, %v3080
        %v4929 = vpack.c.b16 %v3089, %v3081
        %v4930 = vpack.c.b16 %v3090, %v3082
        %v4931 = vpack.c.b16 %v3091, %v3083
        %v4932 = vpack.c.b16 %v3092, %v3084
        %v4933 = vpack.c.b16 %v3093, %v3085
        %v4934 = vpack.c.b16 %v3102, %v3094
        %v4935 = vpack.c.b16 %v3103, %v3095
        %v4936 = vpack.c.b16 %v3104, %v3096
        %v4937 = vpack.c.b16 %v3105, %v3097
        %v4938 = vpack.c.b16 %v3106, %v3098
        %v4939 = vpack.c.b16 %v3107, %v3099
        %v4940 = vpack.c.b16 %v3108, %v3100
        %v4941 = vpack.c.b16 %v3109, %v3101
        %v4942 = vpack.c.b16 %v3118, %v3110
        %v4943 = vpack.c.b16 %v3119, %v3111
        %v4944 = vpack.c.b16 %v3120, %v3112
        %v4945 = vpack.c.b16 %v3121, %v3113
        %v4946 = vpack.c.b16 %v3122, %v3114
        %v4947 = vpack.c.b16 %v3123, %v3115
        %v4948 = vpack.c.b16 %v3124, %v3116
        %v4949 = vpack.c.b16 %v3125, %v3117
        %v4950 = vpack.c.b16 %v3134, %v3126
        %v4951 = vpack.c.b16 %v3135, %v3127
        %v4952 = vpack.c.b16 %v3136, %v3128
        %v4953 = vpack.c.b16 %v3137, %v3129
        %v4954 = vpack.c.b16 %v3138, %v3130
        %v4955 = vpack.c.b16 %v3139, %v3131
        %v4956 = vpack.c.b16 %v3140, %v3132
        %v4957 = vpack.c.b16 %v3141, %v3133
        %v4958 = vpack.c.b16 %v3150, %v3142
        %v4959 = vpack.c.b16 %v3151, %v3143
        %v4960 = vpack.c.b16 %v3152, %v3144
        %v4961 = vpack.c.b16 %v3153, %v3145
        %v4962 = vpack.c.b16 %v3154, %v3146
        %v4963 = vpack.c.b16 %v3155, %v3147
        %v4964 = vpack.c.b16 %v3156, %v3148
        %v4965 = vpack.c.b16 %v3157, %v3149
        %v4966 = vpack.c.b16 %v3166, %v3158
        %v4967 = vpack.c.b16 %v3167, %v3159
        %v4968 = vpack.c.b16 %v3168, %v3160
        %v4969 = vpack.c.b16 %v3169, %v3161
        %v4970 = vpack.c.b16 %v3170, %v3162
        %v4971 = vpack.c.b16 %v3171, %v3163
        %v4972 = vpack.c.b16 %v3172, %v3164
        %v4973 = vpack.c.b16 %v3173, %v3165
        %v4974 = vpack.c.b16 %v3182, %v3174
        %v4975 = vpack.c.b16 %v3183, %v3175
        %v4976 = vpack.c.b16 %v3184, %v3176
        %v4977 = vpack.c.b16 %v3185, %v3177
        %v4978 = vpack.c.b16 %v3186, %v3178
        %v4979 = vpack.c.b16 %v3187, %v3179
        %v4980 = vpack.c.b16 %v3188, %v3180
        %v4981 = vpack.c.b16 %v3189, %v3181
        %v4982 = vpack.c.b16 %v3198, %v3190
        %v4983 = vpack.c.b16 %v3199, %v3191
        %v4984 = vpack.c.b16 %v3200, %v3192
        %v4985 = vpack.c.b16 %v3201, %v3193
        %v4986 = vpack.c.b16 %v3202, %v3194
        %v4987 = vpack.c.b16 %v3203, %v3195
        %v4988 = vpack.c.b16 %v3204, %v3196
        %v4989 = vpack.c.b16 %v3205, %v3197
        %v4990 = vpack.c.b16 %v3214, %v3206
        %v4991 = vpack.c.b16 %v3215, %v3207
        %v4992 = vpack.c.b16 %v3216, %v3208
        %v4993 = vpack.c.b16 %v3217, %v3209
        %v4994 = vpack.c.b16 %v3218, %v3210
        %v4995 = vpack.c.b16 %v3219, %v3211
        %v4996 = vpack.c.b16 %v3220, %v3212
        %v4997 = vpack.c.b16 %v3221, %v3213
        %v4998 = vpack.c.b16 %v3230, %v3222
        %v4999 = vpack.c.b16 %v3231, %v3223
        %v5000 = vpack.c.b16 %v3232, %v3224
        %v5001 = vpack.c.b16 %v3233, %v3225
        %v5002 = vpack.c.b16 %v3234, %v3226
        %v5003 = vpack.c.b16 %v3235, %v3227
        %v5004 = vpack.c.b16 %v3236, %v3228
        %v5005 = vpack.c.b16 %v3237, %v3229
        %v5006 = vpack.c.b16 %v3246, %v3238
        %v5007 = vpack.c.b16 %v3247, %v3239
        %v5008 = vpack.c.b16 %v3248, %v3240
        %v5009 = vpack.c.b16 %v3249, %v3241
        %v5010 = vpack.c.b16 %v3250, %v3242
        %v5011 = vpack.c.b16 %v3251, %v3243
        %v5012 = vpack.c.b16 %v3252, %v3244
        %v5013 = vpack.c.b16 %v3253, %v3245
        %v5014 = vpack.c.b16 %v3262, %v3254
        %v5015 = vpack.c.b16 %v3263, %v3255
        %v5016 = vpack.c.b16 %v3264, %v3256
        %v5017 = vpack.c.b16 %v3265, %v3257
        %v5018 = vpack.c.b16 %v3266, %v3258
        %v5019 = vpack.c.b16 %v3267, %v3259
        %v5020 = vpack.c.b16 %v3268, %v3260
        %v5021 = vpack.c.b16 %v3269, %v3261
        %v5022 = vpack.c.b16 %v3278, %v3270
        %v5023 = vpack.c.b16 %v3279, %v3271
        %v5024 = vpack.c.b16 %v3280, %v3272
        %v5025 = vpack.c.b16 %v3281, %v3273
        %v5026 = vpack.c.b16 %v3282, %v3274
        %v5027 = vpack.c.b16 %v3283, %v3275
        %v5028 = vpack.c.b16 %v3284, %v3276
        %v5029 = vpack.c.b16 %v3285, %v3277
        %v5030 = vpack.c.b16 %v3294, %v3286
        %v5031 = vpack.c.b16 %v3295, %v3287
        %v5032 = vpack.c.b16 %v3296, %v3288
        %v5033 = vpack.c.b16 %v3297, %v3289
        %v5034 = vpack.c.b16 %v3298, %v3290
        %v5035 = vpack.c.b16 %v3299, %v3291
        %v5036 = vpack.c.b16 %v3300, %v3292
        %v5037 = vpack.c.b16 %v3301, %v3293
        %v5038 = vpack.c.b16 %v3310, %v3302
        %v5039 = vpack.c.b16 %v3311, %v3303
        %v5040 = vpack.c.b16 %v3312, %v3304
        %v5041 = vpack.c.b16 %v3313, %v3305
        %v5042 = vpack.c.b16 %v3314, %v3306
        %v5043 = vpack.c.b16 %v3315, %v3307
        %v5044 = vpack.c.b16 %v3316, %v3308
        %v5045 = vpack.c.b16 %v3317, %v3309
        %v5046 = vpack.c.b16 %v3326, %v3318
        %v5047 = vpack.c.b16 %v3327, %v3319
        %v5048 = vpack.c.b16 %v3328, %v3320
        %v5049 = vpack.c.b16 %v3329, %v3321
        %v5050 = vpack.c.b16 %v3330, %v3322
        %v5051 = vpack.c.b16 %v3331, %v3323
        %v5052 = vpack.c.b16 %v3332, %v3324
        %v5053 = vpack.c.b16 %v3333, %v3325
        %v5054 = vpack.c.b16 %v3342, %v3334
        %v5055 = vpack.c.b16 %v3343, %v3335
        %v5056 = vpack.c.b16 %v3344, %v3336
        %v5057 = vpack.c.b16 %v3345, %v3337
        %v5058 = vpack.c.b16 %v3346, %v3338
        %v5059 = vpack.c.b16 %v3347, %v3339
        %v5060 = vpack.c.b16 %v3348, %v3340
        %v5061 = vpack.c.b16 %v3349, %v3341
        %v5062 = vpack.c.b16 %v3358, %v3350
        %v5063 = vpack.c.b16 %v3359, %v3351
        %v5064 = vpack.c.b16 %v3360, %v3352
        %v5065 = vpack.c.b16 %v3361, %v3353
        %v5066 = vpack.c.b16 %v3362, %v3354
        %v5067 = vpack.c.b16 %v3363, %v3355
        %v5068 = vpack.c.b16 %v3364, %v3356
        %v5069 = vpack.c.b16 %v3365, %v3357
        %v5070 = vpack.c.b16 %v3374, %v3366
        %v5071 = vpack.c.b16 %v3375, %v3367
        %v5072 = vpack.c.b16 %v3376, %v3368
        %v5073 = vpack.c.b16 %v3377, %v3369
        %v5074 = vpack.c.b16 %v3378, %v3370
        %v5075 = vpack.c.b16 %v3379, %v3371
        %v5076 = vpack.c.b16 %v3380, %v3372
        %v5077 = vpack.c.b16 %v3381, %v3373
        %v5078 = vpack.c.b16 %v3390, %v3382
        %v5079 = vpack.c.b16 %v3391, %v3383
        %v5080 = vpack.c.b16 %v3392, %v3384
        %v5081 = vpack.c.b16 %v3393, %v3385
        %v5082 = vpack.c.b16 %v3394, %v3386
        %v5083 = vpack.c.b16 %v3395, %v3387
        %v5084 = vpack.c.b16 %v3396, %v3388
        %v5085 = vpack.c.b16 %v3397, %v3389
        %v5086 = vpack.c.b16 %v3406, %v3398
        %v5087 = vpack.c.b16 %v3407, %v3399
        %v5088 = vpack.c.b16 %v3408, %v3400
        %v5089 = vpack.c.b16 %v3409, %v3401
        %v5090 = vpack.c.b16 %v3410, %v3402
        %v5091 = vpack.c.b16 %v3411, %v3403
        %v5092 = vpack.c.b16 %v3412, %v3404
        %v5093 = vpack.c.b16 %v3413, %v3405
        %v5094 = vpack.c.b16 %v3422, %v3414
        %v5095 = vpack.c.b16 %v3423, %v3415
        %v5096 = vpack.c.b16 %v3424, %v3416
        %v5097 = vpack.c.b16 %v3425, %v3417
        %v5098 = vpack.c.b16 %v3426, %v3418
        %v5099 = vpack.c.b16 %v3427, %v3419
        %v5100 = vpack.c.b16 %v3428, %v3420
        %v5101 = vpack.c.b16 %v3429, %v3421
        %v5102 = vpack.c.b16 %v3438, %v3430
        %v5103 = vpack.c.b16 %v3439, %v3431
        %v5104 = vpack.c.b16 %v3440, %v3432
        %v5105 = vpack.c.b16 %v3441, %v3433
        %v5106 = vpack.c.b16 %v3442, %v3434
        %v5107 = vpack.c.b16 %v3443, %v3435
        %v5108 = vpack.c.b16 %v3444, %v3436
        %v5109 = vpack.c.b16 %v3445, %v3437
        %v5110 = vpack.c.b16 %v3454, %v3446
        %v5111 = vpack.c.b16 %v3455, %v3447
        %v5112 = vpack.c.b16 %v3456, %v3448
        %v5113 = vpack.c.b16 %v3457, %v3449
        %v5114 = vpack.c.b16 %v3458, %v3450
        %v5115 = vpack.c.b16 %v3459, %v3451
        %v5116 = vpack.c.b16 %v3460, %v3452
        %v5117 = vpack.c.b16 %v3461, %v3453
        %v5118 = vpack.c.b16 %v3470, %v3462
        %v5119 = vpack.c.b16 %v3471, %v3463
        %v5120 = vpack.c.b16 %v3472, %v3464
        %v5121 = vpack.c.b16 %v3473, %v3465
        %v5122 = vpack.c.b16 %v3474, %v3466
        %v5123 = vpack.c.b16 %v3475, %v3467
        %v5124 = vpack.c.b16 %v3476, %v3468
        %v5125 = vpack.c.b16 %v3477, %v3469
        %v5126 = vpack.c.b16 %v3486, %v3478
        %v5127 = vpack.c.b16 %v3487, %v3479
        %v5128 = vpack.c.b16 %v3488, %v3480
        %v5129 = vpack.c.b16 %v3489, %v3481
        %v5130 = vpack.c.b16 %v3490, %v3482
        %v5131 = vpack.c.b16 %v3491, %v3483
        %v5132 = vpack.c.b16 %v3492, %v3484
        %v5133 = vpack.c.b16 %v3493, %v3485
        %v5134 = vpack.c.b16 %v3502, %v3494
        %v5135 = vpack.c.b16 %v3503, %v3495
        %v5136 = vpack.c.b16 %v3504, %v3496
        %v5137 = vpack.c.b16 %v3505, %v3497
        %v5138 = vpack.c.b16 %v3506, %v3498
        %v5139 = vpack.c.b16 %v3507, %v3499
        %v5140 = vpack.c.b16 %v3508, %v3500
        %v5141 = vpack.c.b16 %v3509, %v3501
        %v5142 = vpack.c.b16 %v3518, %v3510
        %v5143 = vpack.c.b16 %v3519, %v3511
        %v5144 = vpack.c.b16 %v3520, %v3512
        %v5145 = vpack.c.b16 %v3521, %v3513
        %v5146 = vpack.c.b16 %v3522, %v3514
        %v5147 = vpack.c.b16 %v3523, %v3515
        %v5148 = vpack.c.b16 %v3524, %v3516
        %v5149 = vpack.c.b16 %v3525, %v3517
        %v5150 = vpack.c.b16 %v3534, %v3526
        %v5151 = vpack.c.b16 %v3535, %v3527
        %v5152 = vpack.c.b16 %v3536, %v3528
        %v5153 = vpack.c.b16 %v3537, %v3529
        %v5154 = vpack.c.b16 %v3538, %v3530
        %v5155 = vpack.c.b16 %v3539, %v3531
        %v5156 = vpack.c.b16 %v3540, %v3532
        %v5157 = vpack.c.b16 %v3541, %v3533
        %v5158 = vpack.c.b16 %v3550, %v3542
        %v5159 = vpack.c.b16 %v3551, %v3543
        %v5160 = vpack.c.b16 %v3552, %v3544
        %v5161 = vpack.c.b16 %v3553, %v3545
        %v5162 = vpack.c.b16 %v3554, %v3546
        %v5163 = vpack.c.b16 %v3555, %v3547
        %v5164 = vpack.c.b16 %v3556, %v3548
        %v5165 = vpack.c.b16 %v3557, %v3549
        %v5166 = vpack.c.b16 %v3566, %v3558
        %v5167 = vpack.c.b16 %v3567, %v3559
        %v5168 = vpack.c.b16 %v3568, %v3560
        %v5169 = vpack.c.b16 %v3569, %v3561
        %v5170 = vpack.c.b16 %v3570, %v3562
        %v5171 = vpack.c.b16 %v3571, %v3563
        %v5172 = vpack.c.b16 %v3572, %v3564
        %v5173 = vpack.c.b16 %v3573, %v3565
        %v5174 = vpack.c.b16 %v3582, %v3574
        %v5175 = vpack.c.b16 %v3583, %v3575
        %v5176 = vpack.c.b16 %v3584, %v3576
        %v5177 = vpack.c.b16 %v3585, %v3577
        %v5178 = vpack.c.b16 %v3586, %v3578
        %v5179 = vpack.c.b16 %v3587, %v3579
        %v5180 = vpack.c.b16 %v3588, %v3580
        %v5181 = vpack.c.b16 %v3589, %v3581
        %v5182 = vpack.c.b16 %v3598, %v3590
        %v5183 = vpack.c.b16 %v3599, %v3591
        %v5184 = vpack.c.b16 %v3600, %v3592
        %v5185 = vpack.c.b16 %v3601, %v3593
        %v5186 = vpack.c.b16 %v3602, %v3594
        %v5187 = vpack.c.b16 %v3603, %v3595
        %v5188 = vpack.c.b16 %v3604, %v3596
        %v5189 = vpack.c.b16 %v3605, %v3597
        %v5190 = vpack.c.b16 %v3614, %v3606
        %v5191 = vpack.c.b16 %v3615, %v3607
        %v5192 = vpack.c.b16 %v3616, %v3608
        %v5193 = vpack.c.b16 %v3617, %v3609
        %v5194 = vpack.c.b16 %v3618, %v3610
        %v5195 = vpack.c.b16 %v3619, %v3611
        %v5196 = vpack.c.b16 %v3620, %v3612
        %v5197 = vpack.c.b16 %v3621, %v3613
        %v5198 = vpack.c.b16 %v3630, %v3622
        %v5199 = vpack.c.b16 %v3631, %v3623
        %v5200 = vpack.c.b16 %v3632, %v3624
        %v5201 = vpack.c.b16 %v3633, %v3625
        %v5202 = vpack.c.b16 %v3634, %v3626
        %v5203 = vpack.c.b16 %v3635, %v3627
        %v5204 = vpack.c.b16 %v3636, %v3628
        %v5205 = vpack.c.b16 %v3637, %v3629
        %v5206 = vpack.c.b16 %v3646, %v3638
        %v5207 = vpack.c.b16 %v3647, %v3639
        %v5208 = vpack.c.b16 %v3648, %v3640
        %v5209 = vpack.c.b16 %v3649, %v3641
        %v5210 = vpack.c.b16 %v3650, %v3642
        %v5211 = vpack.c.b16 %v3651, %v3643
        %v5212 = vpack.c.b16 %v3652, %v3644
        %v5213 = vpack.c.b16 %v3653, %v3645
        %v5214 = vpack.c.b16 %v3662, %v3654
        %v5215 = vpack.c.b16 %v3663, %v3655
        %v5216 = vpack.c.b16 %v3664, %v3656
        %v5217 = vpack.c.b16 %v3665, %v3657
        %v5218 = vpack.c.b16 %v3666, %v3658
        %v5219 = vpack.c.b16 %v3667, %v3659
        %v5220 = vpack.c.b16 %v3668, %v3660
        %v5221 = vpack.c.b16 %v3669, %v3661
        %v5222 = vpack.c.b16 %v3678, %v3670
        %v5223 = vpack.c.b16 %v3679, %v3671
        %v5224 = vpack.c.b16 %v3680, %v3672
        %v5225 = vpack.c.b16 %v3681, %v3673
        %v5226 = vpack.c.b16 %v3682, %v3674
        %v5227 = vpack.c.b16 %v3683, %v3675
        %v5228 = vpack.c.b16 %v3684, %v3676
        %v5229 = vpack.c.b16 %v3685, %v3677
        %v5230 = vpack.c.b16 %v3694, %v3686
        %v5231 = vpack.c.b16 %v3695, %v3687
        %v5232 = vpack.c.b16 %v3696, %v3688
        %v5233 = vpack.c.b16 %v3697, %v3689
        %v5234 = vpack.c.b16 %v3698, %v3690
        %v5235 = vpack.c.b16 %v3699, %v3691
        %v5236 = vpack.c.b16 %v3700, %v3692
        %v5237 = vpack.c.b16 %v3701, %v3693
        %v5238 = vpack.c.b16 %v3710, %v3702
        %v5239 = vpack.c.b16 %v3711, %v3703
        %v5240 = vpack.c.b16 %v3712, %v3704
        %v5241 = vpack.c.b16 %v3713, %v3705
        %v5242 = vpack.c.b16 %v3714, %v3706
        %v5243 = vpack.c.b16 %v3715, %v3707
        %v5244 = vpack.c.b16 %v3716, %v3708
        %v5245 = vpack.c.b16 %v3717, %v3709
        %v5246 = vpack.c.b16 %v3726, %v3718
        %v5247 = vpack.c.b16 %v3727, %v3719
        %v5248 = vpack.c.b16 %v3728, %v3720
        %v5249 = vpack.c.b16 %v3729, %v3721
        %v5250 = vpack.c.b16 %v3730, %v3722
        %v5251 = vpack.c.b16 %v3731, %v3723
        %v5252 = vpack.c.b16 %v3732, %v3724
        %v5253 = vpack.c.b16 %v3733, %v3725
        %v5254 = vpack.c.b16 %v3742, %v3734
        %v5255 = vpack.c.b16 %v3743, %v3735
        %v5256 = vpack.c.b16 %v3744, %v3736
        %v5257 = vpack.c.b16 %v3745, %v3737
        %v5258 = vpack.c.b16 %v3746, %v3738
        %v5259 = vpack.c.b16 %v3747, %v3739
        %v5260 = vpack.c.b16 %v3748, %v3740
        %v5261 = vpack.c.b16 %v3749, %v3741
        %v5262 = vpack.c.b16 %v3758, %v3750
        %v5263 = vpack.c.b16 %v3759, %v3751
        %v5264 = vpack.c.b16 %v3760, %v3752
        %v5265 = vpack.c.b16 %v3761, %v3753
        %v5266 = vpack.c.b16 %v3762, %v3754
        %v5267 = vpack.c.b16 %v3763, %v3755
        %v5268 = vpack.c.b16 %v3764, %v3756
        %v5269 = vpack.c.b16 %v3765, %v3757
        %v5270 = vpack.c.b16 %v3774, %v3766
        %v5271 = vpack.c.b16 %v3775, %v3767
        %v5272 = vpack.c.b16 %v3776, %v3768
        %v5273 = vpack.c.b16 %v3777, %v3769
        %v5274 = vpack.c.b16 %v3778, %v3770
        %v5275 = vpack.c.b16 %v3779, %v3771
        %v5276 = vpack.c.b16 %v3780, %v3772
        %v5277 = vpack.c.b16 %v3781, %v3773
        %v5278 = vpack.c.b16 %v3790, %v3782
        %v5279 = vpack.c.b16 %v3791, %v3783
        %v5280 = vpack.c.b16 %v3792, %v3784
        %v5281 = vpack.c.b16 %v3793, %v3785
        %v5282 = vpack.c.b16 %v3794, %v3786
        %v5283 = vpack.c.b16 %v3795, %v3787
        %v5284 = vpack.c.b16 %v3796, %v3788
        %v5285 = vpack.c.b16 %v3797, %v3789
        %v5286 = vpack.c.b16 %v3806, %v3798
        %v5287 = vpack.c.b16 %v3807, %v3799
        %v5288 = vpack.c.b16 %v3808, %v3800
        %v5289 = vpack.c.b16 %v3809, %v3801
        %v5290 = vpack.c.b16 %v3810, %v3802
        %v5291 = vpack.c.b16 %v3811, %v3803
        %v5292 = vpack.c.b16 %v3812, %v3804
        %v5293 = vpack.c.b16 %v3813, %v3805
        %v5294 = vpack.c.b16 %v3822, %v3814
        %v5295 = vpack.c.b16 %v3823, %v3815
        %v5296 = vpack.c.b16 %v3824, %v3816
        %v5297 = vpack.c.b16 %v3825, %v3817
        %v5298 = vpack.c.b16 %v3826, %v3818
        %v5299 = vpack.c.b16 %v3827, %v3819
        %v5300 = vpack.c.b16 %v3828, %v3820
        %v5301 = vpack.c.b16 %v3829, %v3821
        %v5302 = vpack.c.b16 %v3838, %v3830
        %v5303 = vpack.c.b16 %v3839, %v3831
        %v5304 = vpack.c.b16 %v3840, %v3832
        %v5305 = vpack.c.b16 %v3841, %v3833
        %v5306 = vpack.c.b16 %v3842, %v3834
        %v5307 = vpack.c.b16 %v3843, %v3835
        %v5308 = vpack.c.b16 %v3844, %v3836
        %v5309 = vpack.c.b16 %v3845, %v3837
        %v5310 = vpack.c.b16 %v3854, %v3846
        %v5311 = vpack.c.b16 %v3855, %v3847
        %v5312 = vpack.c.b16 %v3856, %v3848
        %v5313 = vpack.c.b16 %v3857, %v3849
        %v5314 = vpack.c.b16 %v3858, %v3850
        %v5315 = vpack.c.b16 %v3859, %v3851
        %v5316 = vpack.c.b16 %v3860, %v3852
        %v5317 = vpack.c.b16 %v3861, %v3853
        %v5318 = vpack.c.b16 %v3870, %v3862
        %v5319 = vpack.c.b16 %v3871, %v3863
        %v5320 = vpack.c.b16 %v3872, %v3864
        %v5321 = vpack.c.b16 %v3873, %v3865
        %v5322 = vpack.c.b16 %v3874, %v3866
        %v5323 = vpack.c.b16 %v3875, %v3867
        %v5324 = vpack.c.b16 %v3876, %v3868
        %v5325 = vpack.c.b16 %v3877, %v3869
        %v5326 = vpack.c.b16 %v3886, %v3878
        %v5327 = vpack.c.b16 %v3887, %v3879
        %v5328 = vpack.c.b16 %v3888, %v3880
        %v5329 = vpack.c.b16 %v3889, %v3881
        %v5330 = vpack.c.b16 %v3890, %v3882
        %v5331 = vpack.c.b16 %v3891, %v3883
        %v5332 = vpack.c.b16 %v3892, %v3884
        %v5333 = vpack.c.b16 %v3893, %v3885
        %v5334 = vpack.c.b16 %v3902, %v3894
        %v5335 = vpack.c.b16 %v3903, %v3895
        %v5336 = vpack.c.b16 %v3904, %v3896
        %v5337 = vpack.c.b16 %v3905, %v3897
        %v5338 = vpack.c.b16 %v3906, %v3898
        %v5339 = vpack.c.b16 %v3907, %v3899
        %v5340 = vpack.c.b16 %v3908, %v3900
        %v5341 = vpack.c.b16 %v3909, %v3901
        %v5342 = vpack.c.b16 %v3918, %v3910
        %v5343 = vpack.c.b16 %v3919, %v3911
        %v5344 = vpack.c.b16 %v3920, %v3912
        %v5345 = vpack.c.b16 %v3921, %v3913
        %v5346 = vpack.c.b16 %v3922, %v3914
        %v5347 = vpack.c.b16 %v3923, %v3915
        %v5348 = vpack.c.b16 %v3924, %v3916
        %v5349 = vpack.c.b16 %v3925, %v3917
        %v5350 = vpack.c.b16 %v3934, %v3926
        %v5351 = vpack.c.b16 %v3935, %v3927
        %v5352 = vpack.c.b16 %v3936, %v3928
        %v5353 = vpack.c.b16 %v3937, %v3929
        %v5354 = vpack.c.b16 %v3938, %v3930
        %v5355 = vpack.c.b16 %v3939, %v3931
        %v5356 = vpack.c.b16 %v3940, %v3932
        %v5357 = vpack.c.b16 %v3941, %v3933
        %v5358 = vpack.c.b16 %v3950, %v3942
        %v5359 = vpack.c.b16 %v3951, %v3943
        %v5360 = vpack.c.b16 %v3952, %v3944
        %v5361 = vpack.c.b16 %v3953, %v3945
        %v5362 = vpack.c.b16 %v3954, %v3946
        %v5363 = vpack.c.b16 %v3955, %v3947
        %v5364 = vpack.c.b16 %v3956, %v3948
        %v5365 = vpack.c.b16 %v3957, %v3949
        %v5366 = vpack.c.b16 %v3966, %v3958
        %v5367 = vpack.c.b16 %v3967, %v3959
        %v5368 = vpack.c.b16 %v3968, %v3960
        %v5369 = vpack.c.b16 %v3969, %v3961
        %v5370 = vpack.c.b16 %v3970, %v3962
        %v5371 = vpack.c.b16 %v3971, %v3963
        %v5372 = vpack.c.b16 %v3972, %v3964
        %v5373 = vpack.c.b16 %v3973, %v3965
        %v5374 = vpack.c.b16 %v3982, %v3974
        %v5375 = vpack.c.b16 %v3983, %v3975
        %v5376 = vpack.c.b16 %v3984, %v3976
        %v5377 = vpack.c.b16 %v3985, %v3977
        %v5378 = vpack.c.b16 %v3986, %v3978
        %v5379 = vpack.c.b16 %v3987, %v3979
        %v5380 = vpack.c.b16 %v3988, %v3980
        %v5381 = vpack.c.b16 %v3989, %v3981
        %v5382 = vpack.c.b16 %v3998, %v3990
        %v5383 = vpack.c.b16 %v3999, %v3991
        %v5384 = vpack.c.b16 %v4000, %v3992
        %v5385 = vpack.c.b16 %v4001, %v3993
        %v5386 = vpack.c.b16 %v4002, %v3994
        %v5387 = vpack.c.b16 %v4003, %v3995
        %v5388 = vpack.c.b16 %v4004, %v3996
        %v5389 = vpack.c.b16 %v4005, %v3997
        %v5390 = vpack.c.b16 %v4014, %v4006
        %v5391 = vpack.c.b16 %v4015, %v4007
        %v5392 = vpack.c.b16 %v4016, %v4008
        %v5393 = vpack.c.b16 %v4017, %v4009
        %v5394 = vpack.c.b16 %v4018, %v4010
        %v5395 = vpack.c.b16 %v4019, %v4011
        %v5396 = vpack.c.b16 %v4020, %v4012
        %v5397 = vpack.c.b16 %v4021, %v4013
        %v5398 = vpack.c.b16 %v4030, %v4022
        %v5399 = vpack.c.b16 %v4031, %v4023
        %v5400 = vpack.c.b16 %v4032, %v4024
        %v5401 = vpack.c.b16 %v4033, %v4025
        %v5402 = vpack.c.b16 %v4034, %v4026
        %v5403 = vpack.c.b16 %v4035, %v4027
        %v5404 = vpack.c.b16 %v4036, %v4028
        %v5405 = vpack.c.b16 %v4037, %v4029
        %v5406 = vpack.c.b16 %v4046, %v4038
        %v5407 = vpack.c.b16 %v4047, %v4039
        %v5408 = vpack.c.b16 %v4048, %v4040
        %v5409 = vpack.c.b16 %v4049, %v4041
        %v5410 = vpack.c.b16 %v4050, %v4042
        %v5411 = vpack.c.b16 %v4051, %v4043
        %v5412 = vpack.c.b16 %v4052, %v4044
        %v5413 = vpack.c.b16 %v4053, %v4045
        %v5414 = vpack.c.b16 %v4062, %v4054
        %v5415 = vpack.c.b16 %v4063, %v4055
        %v5416 = vpack.c.b16 %v4064, %v4056
        %v5417 = vpack.c.b16 %v4065, %v4057
        %v5418 = vpack.c.b16 %v4066, %v4058
        %v5419 = vpack.c.b16 %v4067, %v4059
        %v5420 = vpack.c.b16 %v4068, %v4060
        %v5421 = vpack.c.b16 %v4069, %v4061
        %v5422 = vpack.c.b16 %v4078, %v4070
        %v5423 = vpack.c.b16 %v4079, %v4071
        %v5424 = vpack.c.b16 %v4080, %v4072
        %v5425 = vpack.c.b16 %v4081, %v4073
        %v5426 = vpack.c.b16 %v4082, %v4074
        %v5427 = vpack.c.b16 %v4083, %v4075
        %v5428 = vpack.c.b16 %v4084, %v4076
        %v5429 = vpack.c.b16 %v4085, %v4077
        %v5430 = vpack.c.b16 %v4094, %v4086
        %v5431 = vpack.c.b16 %v4095, %v4087
        %v5432 = vpack.c.b16 %v4096, %v4088
        %v5433 = vpack.c.b16 %v4097, %v4089
        %v5434 = vpack.c.b16 %v4098, %v4090
        %v5435 = vpack.c.b16 %v4099, %v4091
        %v5436 = vpack.c.b16 %v4100, %v4092
        %v5437 = vpack.c.b16 %v4101, %v4093
        %v5438 = vpack.c.b16 %v4110, %v4102
        %v5439 = vpack.c.b16 %v4111, %v4103
        %v5440 = vpack.c.b16 %v4112, %v4104
        %v5441 = vpack.c.b16 %v4113, %v4105
        %v5442 = vpack.c.b16 %v4114, %v4106
        %v5443 = vpack.c.b16 %v4115, %v4107
        %v5444 = vpack.c.b16 %v4116, %v4108
        %v5445 = vpack.c.b16 %v4117, %v4109
        %v5446 = vpack.c.b16 %v4126, %v4118
        %v5447 = vpack.c.b16 %v4127, %v4119
        %v5448 = vpack.c.b16 %v4128, %v4120
        %v5449 = vpack.c.b16 %v4129, %v4121
        %v5450 = vpack.c.b16 %v4130, %v4122
        %v5451 = vpack.c.b16 %v4131, %v4123
        %v5452 = vpack.c.b16 %v4132, %v4124
        %v5453 = vpack.c.b16 %v4133, %v4125
        %v5454 = vpack.c.b16 %v4142, %v4134
        %v5455 = vpack.c.b16 %v4143, %v4135
        %v5456 = vpack.c.b16 %v4144, %v4136
        %v5457 = vpack.c.b16 %v4145, %v4137
        %v5458 = vpack.c.b16 %v4146, %v4138
        %v5459 = vpack.c.b16 %v4147, %v4139
        %v5460 = vpack.c.b16 %v4148, %v4140
        %v5461 = vpack.c.b16 %v4149, %v4141
        %v5462 = vpack.c.b16 %v4158, %v4150
        %v5463 = vpack.c.b16 %v4159, %v4151
        %v5464 = vpack.c.b16 %v4160, %v4152
        %v5465 = vpack.c.b16 %v4161, %v4153
        %v5466 = vpack.c.b16 %v4162, %v4154
        %v5467 = vpack.c.b16 %v4163, %v4155
        %v5468 = vpack.c.b16 %v4164, %v4156
        %v5469 = vpack.c.b16 %v4165, %v4157
        %v5470 = vpack.c.b16 %v4174, %v4166
        %v5471 = vpack.c.b16 %v4175, %v4167
        %v5472 = vpack.c.b16 %v4176, %v4168
        %v5473 = vpack.c.b16 %v4177, %v4169
        %v5474 = vpack.c.b16 %v4178, %v4170
        %v5475 = vpack.c.b16 %v4179, %v4171
        %v5476 = vpack.c.b16 %v4180, %v4172
        %v5477 = vpack.c.b16 %v4181, %v4173
        %v5478 = vpack.c.b16 %v4190, %v4182
        %v5479 = vpack.c.b16 %v4191, %v4183
        %v5480 = vpack.c.b16 %v4192, %v4184
        %v5481 = vpack.c.b16 %v4193, %v4185
        %v5482 = vpack.c.b16 %v4194, %v4186
        %v5483 = vpack.c.b16 %v4195, %v4187
        %v5484 = vpack.c.b16 %v4196, %v4188
        %v5485 = vpack.c.b16 %v4197, %v4189
        %v5486 = vpack.c.b16 %v4206, %v4198
        %v5487 = vpack.c.b16 %v4207, %v4199
        %v5488 = vpack.c.b16 %v4208, %v4200
        %v5489 = vpack.c.b16 %v4209, %v4201
        %v5490 = vpack.c.b16 %v4210, %v4202
        %v5491 = vpack.c.b16 %v4211, %v4203
        %v5492 = vpack.c.b16 %v4212, %v4204
        %v5493 = vpack.c.b16 %v4213, %v4205
        %v5494 = vpack.c.b16 %v4222, %v4214
        %v5495 = vpack.c.b16 %v4223, %v4215
        %v5496 = vpack.c.b16 %v4224, %v4216
        %v5497 = vpack.c.b16 %v4225, %v4217
        %v5498 = vpack.c.b16 %v4226, %v4218
        %v5499 = vpack.c.b16 %v4227, %v4219
        %v5500 = vpack.c.b16 %v4228, %v4220
        %v5501 = vpack.c.b16 %v4229, %v4221
        %v5502 = vpack.c.b16 %v4238, %v4230
        %v5503 = vpack.c.b16 %v4239, %v4231
        %v5504 = vpack.c.b16 %v4240, %v4232
        %v5505 = vpack.c.b16 %v4241, %v4233
        %v5506 = vpack.c.b16 %v4242, %v4234
        %v5507 = vpack.c.b16 %v4243, %v4235
        %v5508 = vpack.c.b16 %v4244, %v4236
        %v5509 = vpack.c.b16 %v4245, %v4237
        %v5510 = vpack.c.b16 %v4254, %v4246
        %v5511 = vpack.c.b16 %v4255, %v4247
        %v5512 = vpack.c.b16 %v4256, %v4248
        %v5513 = vpack.c.b16 %v4257, %v4249
        %v5514 = vpack.c.b16 %v4258, %v4250
        %v5515 = vpack.c.b16 %v4259, %v4251
        %v5516 = vpack.c.b16 %v4260, %v4252
        %v5517 = vpack.c.b16 %v4261, %v4253
        %v5518 = vpack.c.b16 %v4270, %v4262
        %v5519 = vpack.c.b16 %v4271, %v4263
        %v5520 = vpack.c.b16 %v4272, %v4264
        %v5521 = vpack.c.b16 %v4273, %v4265
        %v5522 = vpack.c.b16 %v4274, %v4266
        %v5523 = vpack.c.b16 %v4275, %v4267
        %v5524 = vpack.c.b16 %v4276, %v4268
        %v5525 = vpack.c.b16 %v4277, %v4269
        %v5526 = vpack.c.b16 %v4286, %v4278
        %v5527 = vpack.c.b16 %v4287, %v4279
        %v5528 = vpack.c.b16 %v4288, %v4280
        %v5529 = vpack.c.b16 %v4289, %v4281
        %v5530 = vpack.c.b16 %v4290, %v4282
        %v5531 = vpack.c.b16 %v4291, %v4283
        %v5532 = vpack.c.b16 %v4292, %v4284
        %v5533 = vpack.c.b16 %v4293, %v4285
        %v5534 = vpack.c.b16 %v4302, %v4294
        %v5535 = vpack.c.b16 %v4303, %v4295
        %v5536 = vpack.c.b16 %v4304, %v4296
        %v5537 = vpack.c.b16 %v4305, %v4297
        %v5538 = vpack.c.b16 %v4306, %v4298
        %v5539 = vpack.c.b16 %v4307, %v4299
        %v5540 = vpack.c.b16 %v4308, %v4300
        %v5541 = vpack.c.b16 %v4309, %v4301
        %v5542 = vpack.c.b16 %v4318, %v4310
        %v5543 = vpack.c.b16 %v4319, %v4311
        %v5544 = vpack.c.b16 %v4320, %v4312
        %v5545 = vpack.c.b16 %v4321, %v4313
        %v5546 = vpack.c.b16 %v4322, %v4314
        %v5547 = vpack.c.b16 %v4323, %v4315
        %v5548 = vpack.c.b16 %v4324, %v4316
        %v5549 = vpack.c.b16 %v4325, %v4317
        %v5550 = vpack.c.b16 %v4334, %v4326
        %v5551 = vpack.c.b16 %v4335, %v4327
        %v5552 = vpack.c.b16 %v4336, %v4328
        %v5553 = vpack.c.b16 %v4337, %v4329
        %v5554 = vpack.c.b16 %v4338, %v4330
        %v5555 = vpack.c.b16 %v4339, %v4331
        %v5556 = vpack.c.b16 %v4340, %v4332
        %v5557 = vpack.c.b16 %v4341, %v4333
        %v5558 = vpack.c.b16 %v4350, %v4342
        %v5559 = vpack.c.b16 %v4351, %v4343
        %v5560 = vpack.c.b16 %v4352, %v4344
        %v5561 = vpack.c.b16 %v4353, %v4345
        %v5562 = vpack.c.b16 %v4354, %v4346
        %v5563 = vpack.c.b16 %v4355, %v4347
        %v5564 = vpack.c.b16 %v4356, %v4348
        %v5565 = vpack.c.b16 %v4357, %v4349
        %v5566 = vpack.c.b16 %v4366, %v4358
        %v5567 = vpack.c.b16 %v4367, %v4359
        %v5568 = vpack.c.b16 %v4368, %v4360
        %v5569 = vpack.c.b16 %v4369, %v4361
        %v5570 = vpack.c.b16 %v4370, %v4362
        %v5571 = vpack.c.b16 %v4371, %v4363
        %v5572 = vpack.c.b16 %v4372, %v4364
        %v5573 = vpack.c.b16 %v4373, %v4365
        %v5574 = vpack.c.b16 %v4382, %v4374
        %v5575 = vpack.c.b16 %v4383, %v4375
        %v5576 = vpack.c.b16 %v4384, %v4376
        %v5577 = vpack.c.b16 %v4385, %v4377
        %v5578 = vpack.c.b16 %v4386, %v4378
        %v5579 = vpack.c.b16 %v4387, %v4379
        %v5580 = vpack.c.b16 %v4388, %v4380
        %v5581 = vpack.c.b16 %v4389, %v4381
        %v5582 = vpack.c.b16 %v4398, %v4390
        %v5583 = vpack.c.b16 %v4399, %v4391
        %v5584 = vpack.c.b16 %v4400, %v4392
        %v5585 = vpack.c.b16 %v4401, %v4393
        %v5586 = vpack.c.b16 %v4402, %v4394
        %v5587 = vpack.c.b16 %v4403, %v4395
        %v5588 = vpack.c.b16 %v4404, %v4396
        %v5589 = vpack.c.b16 %v4405, %v4397
        %v5590 = vpack.c.b16 %v4414, %v4406
        %v5591 = vpack.c.b16 %v4415, %v4407
        %v5592 = vpack.c.b16 %v4416, %v4408
        %v5593 = vpack.c.b16 %v4417, %v4409
        %v5594 = vpack.c.b16 %v4418, %v4410
        %v5595 = vpack.c.b16 %v4419, %v4411
        %v5596 = vpack.c.b16 %v4420, %v4412
        %v5597 = vpack.c.b16 %v4421, %v4413
        %v5598 = vpack.c.b16 %v4430, %v4422
        %v5599 = vpack.c.b16 %v4431, %v4423
        %v5600 = vpack.c.b16 %v4432, %v4424
        %v5601 = vpack.c.b16 %v4433, %v4425
        %v5602 = vpack.c.b16 %v4434, %v4426
        %v5603 = vpack.c.b16 %v4435, %v4427
        %v5604 = vpack.c.b16 %v4436, %v4428
        %v5605 = vpack.c.b16 %v4437, %v4429
        %v5606 = vpack.c.b16 %v4446, %v4438
        %v5607 = vpack.c.b16 %v4447, %v4439
        %v5608 = vpack.c.b16 %v4448, %v4440
        %v5609 = vpack.c.b16 %v4449, %v4441
        %v5610 = vpack.c.b16 %v4450, %v4442
        %v5611 = vpack.c.b16 %v4451, %v4443
        %v5612 = vpack.c.b16 %v4452, %v4444
        %v5613 = vpack.c.b16 %v4453, %v4445
        %v5614 = vpack.c.b16 %v4462, %v4454
        %v5615 = vpack.c.b16 %v4463, %v4455
        %v5616 = vpack.c.b16 %v4464, %v4456
        %v5617 = vpack.c.b16 %v4465, %v4457
        %v5618 = vpack.c.b16 %v4466, %v4458
        %v5619 = vpack.c.b16 %v4467, %v4459
        %v5620 = vpack.c.b16 %v4468, %v4460
        %v5621 = vpack.c.b16 %v4469, %v4461
        %v5622 = vpack.c.b16 %v4478, %v4470
        %v5623 = vpack.c.b16 %v4479, %v4471
        %v5624 = vpack.c.b16 %v4480, %v4472
        %v5625 = vpack.c.b16 %v4481, %v4473
        %v5626 = vpack.c.b16 %v4482, %v4474
        %v5627 = vpack.c.b16 %v4483, %v4475
        %v5628 = vpack.c.b16 %v4484, %v4476
        %v5629 = vpack.c.b16 %v4485, %v4477
        %v5630 = vpack.c.b16 %v4494, %v4486
        %v5631 = vpack.c.b16 %v4495, %v4487
        %v5632 = vpack.c.b16 %v4496, %v4488
        %v5633 = vpack.c.b16 %v4497, %v4489
        %v5634 = vpack.c.b16 %v4498, %v4490
        %v5635 = vpack.c.b16 %v4499, %v4491
        %v5636 = vpack.c.b16 %v4500, %v4492
        %v5637 = vpack.c.b16 %v4501, %v4493
        %v5638 = vpack.c.b16 %v4510, %v4502
        %v5639 = vpack.c.b16 %v4511, %v4503
        %v5640 = vpack.c.b16 %v4512, %v4504
        %v5641 = vpack.c.b16 %v4513, %v4505
        %v5642 = vpack.c.b16 %v4514, %v4506
        %v5643 = vpack.c.b16 %v4515, %v4507
        %v5644 = vpack.c.b16 %v4516, %v4508
        %v5645 = vpack.c.b16 %v4517, %v4509
        %v5646 = vpack.c.b16 %v4526, %v4518
        %v5647 = vpack.c.b16 %v4527, %v4519
        %v5648 = vpack.c.b16 %v4528, %v4520
        %v5649 = vpack.c.b16 %v4529, %v4521
        %v5650 = vpack.c.b16 %v4530, %v4522
        %v5651 = vpack.c.b16 %v4531, %v4523
        %v5652 = vpack.c.b16 %v4532, %v4524
        %v5653 = vpack.c.b16 %v4533, %v4525
        %v5654 = vpack.c.b16 %v4542, %v4534
        %v5655 = vpack.c.b16 %v4543, %v4535
        %v5656 = vpack.c.b16 %v4544, %v4536
        %v5657 = vpack.c.b16 %v4545, %v4537
        %v5658 = vpack.c.b16 %v4546, %v4538
        %v5659 = vpack.c.b16 %v4547, %v4539
        %v5660 = vpack.c.b16 %v4548, %v4540
        %v5661 = vpack.c.b16 %v4549, %v4541
        %v5662 = vpack.c.b16 %v4558, %v4550
        %v5663 = vpack.c.b16 %v4559, %v4551
        %v5664 = vpack.c.b16 %v4560, %v4552
        %v5665 = vpack.c.b16 %v4561, %v4553
        %v5666 = vpack.c.b16 %v4562, %v4554
        %v5667 = vpack.c.b16 %v4563, %v4555
        %v5668 = vpack.c.b16 %v4564, %v4556
        %v5669 = vpack.c.b16 %v4565, %v4557
        %v5670 = vpack.c.b16 %v4574, %v4566
        %v5671 = vpack.c.b16 %v4575, %v4567
        %v5672 = vpack.c.b16 %v4576, %v4568
        %v5673 = vpack.c.b16 %v4577, %v4569
        %v5674 = vpack.c.b16 %v4578, %v4570
        %v5675 = vpack.c.b16 %v4579, %v4571
        %v5676 = vpack.c.b16 %v4580, %v4572
        %v5677 = vpack.c.b16 %v4581, %v4573
        %v5678 = vpack.c.b16 %v4590, %v4582
        %v5679 = vpack.c.b16 %v4591, %v4583
        %v5680 = vpack.c.b16 %v4592, %v4584
        %v5681 = vpack.c.b16 %v4593, %v4585
        %v5682 = vpack.c.b16 %v4594, %v4586
        %v5683 = vpack.c.b16 %v4595, %v4587
        %v5684 = vpack.c.b16 %v4596, %v4588
        %v5685 = vpack.c.b16 %v4597, %v4589
        %v5686 = vpack.c.b16 %v4606, %v4598
        %v5687 = vpack.c.b16 %v4607, %v4599
        %v5688 = vpack.c.b16 %v4608, %v4600
        %v5689 = vpack.c.b16 %v4609, %v4601
        %v5690 = vpack.c.b16 %v4610, %v4602
        %v5691 = vpack.c.b16 %v4611, %v4603
        %v5692 = vpack.c.b16 %v4612, %v4604
        %v5693 = vpack.c.b16 %v4613, %v4605
        %v5694 = vpack.c.b16 %v4622, %v4614
        %v5695 = vpack.c.b16 %v4623, %v4615
        %v5696 = vpack.c.b16 %v4624, %v4616
        %v5697 = vpack.c.b16 %v4625, %v4617
        %v5698 = vpack.c.b16 %v4626, %v4618
        %v5699 = vpack.c.b16 %v4627, %v4619
        %v5700 = vpack.c.b16 %v4628, %v4620
        %v5701 = vpack.c.b16 %v4629, %v4621
        %v5702 = vpack.c.b16 %v4638, %v4630
        %v5703 = vpack.c.b16 %v4639, %v4631
        %v5704 = vpack.c.b16 %v4640, %v4632
        %v5705 = vpack.c.b16 %v4641, %v4633
        %v5706 = vpack.c.b16 %v4642, %v4634
        %v5707 = vpack.c.b16 %v4643, %v4635
        %v5708 = vpack.c.b16 %v4644, %v4636
        %v5709 = vpack.c.b16 %v4645, %v4637
        %v5710 = vpack.c.b16 %v4654, %v4646
        %v5711 = vpack.c.b16 %v4655, %v4647
        %v5712 = vpack.c.b16 %v4656, %v4648
        %v5713 = vpack.c.b16 %v4657, %v4649
        %v5714 = vpack.c.b16 %v4658, %v4650
        %v5715 = vpack.c.b16 %v4659, %v4651
        %v5716 = vpack.c.b16 %v4660, %v4652
        %v5717 = vpack.c.b16 %v4661, %v4653
        %v5718 = vpack.c.b16 %v4670, %v4662
        %v5719 = vpack.c.b16 %v4671, %v4663
        %v5720 = vpack.c.b16 %v4672, %v4664
        %v5721 = vpack.c.b16 %v4673, %v4665
        %v5722 = vpack.c.b16 %v4674, %v4666
        %v5723 = vpack.c.b16 %v4675, %v4667
        %v5724 = vpack.c.b16 %v4676, %v4668
        %v5725 = vpack.c.b16 %v4677, %v4669
        %v5726 = vpack.c.b16 %v4686, %v4678
        %v5727 = vpack.c.b16 %v4687, %v4679
        %v5728 = vpack.c.b16 %v4688, %v4680
        %v5729 = vpack.c.b16 %v4689, %v4681
        %v5730 = vpack.c.b16 %v4690, %v4682
        %v5731 = vpack.c.b16 %v4691, %v4683
        %v5732 = vpack.c.b16 %v4692, %v4684
        %v5733 = vpack.c.b16 %v4693, %v4685
        %v5734 = vpack.c.b16 %v4702, %v4694
        %v5735 = vpack.c.b16 %v4703, %v4695
        %v5736 = vpack.c.b16 %v4704, %v4696
        %v5737 = vpack.c.b16 %v4705, %v4697
        %v5738 = vpack.c.b16 %v4706, %v4698
        %v5739 = vpack.c.b16 %v4707, %v4699
        %v5740 = vpack.c.b16 %v4708, %v4700
        %v5741 = vpack.c.b16 %v4709, %v4701
        %v5742 = vpack.c.b16 %v4718, %v4710
        %v5743 = vpack.c.b16 %v4719, %v4711
        %v5744 = vpack.c.b16 %v4720, %v4712
        %v5745 = vpack.c.b16 %v4721, %v4713
        %v5746 = vpack.c.b16 %v4722, %v4714
        %v5747 = vpack.c.b16 %v4723, %v4715
        %v5748 = vpack.c.b16 %v4724, %v4716
        %v5749 = vpack.c.b16 %v4725, %v4717
        %6774 = vmatprep.subr.bf16.mxu0 %v4783
        %6775 = vmatpush1.bf16.msra.mxu0 %v4782
        %6776 = vmatprep.subr.bf16.mxu0 %v4775
        %6777 = vmatpush1.bf16.msra.mxu0 %v4774
        %6778 = vmatprep.subr.bf16.mxu0 %v4767
        %6779 = vmatpush1.bf16.msra.mxu0 %v4766
        %6780 = vmatprep.subr.bf16.mxu0 %v4759
        %6781 = vmatpush1.bf16.msra.mxu0 %v4758
        %6782 = vmatprep.subr.bf16.mxu0 %v4751
        %6783 = vmatpush1.bf16.msra.mxu0 %v4750
        %6784 = vmatprep.subr.bf16.mxu0 %v4743
        %6785 = vmatpush1.bf16.msra.mxu0 %v4742
        %6786 = vmatprep.subr.bf16.mxu0 %v4735
        %6787 = vmatpush1.bf16.msra.mxu0 %v4734
        %6788 = vmatprep.subr.bf16.mxu0 %v4727
        %6789 = vmatpush1.bf16.msra.mxu0 %v4726
        %6790 = vmatprep.subr.bf16.mxu0 %v4847
        %6791 = vmatpush2.bf16.msra.mxu0 %v4846
        %6792 = vmatprep.subr.bf16.mxu0 %v4839
        %6793 = vmatpush2.bf16.msra.mxu0 %v4838
        %6794 = vmatprep.subr.bf16.mxu0 %v4831
        %6795 = vmatpush2.bf16.msra.mxu0 %v4830
        %6796 = vmatprep.subr.bf16.mxu0 %v4823
        %6797 = vmatpush2.bf16.msra.mxu0 %v4822
        %6798 = vmatprep.subr.bf16.mxu0 %v4815
        %6799 = vmatpush2.bf16.msra.mxu0 %v4814
        %6800 = vmatprep.subr.bf16.mxu0 %v4807
        %6801 = vmatpush2.bf16.msra.mxu0 %v4806
        %6802 = vmatprep.subr.bf16.mxu0 %v4799
        %6803 = vmatpush2.bf16.msra.mxu0 %v4798
        %6804 = vmatprep.subr.bf16.mxu0 %v4791
        %6805 = vmatpush2.bf16.msra.mxu0 %v4790
        %6806 = vmatprep.mubr.bf16.mxu0 %v1577
        %6807 = vmatmul.mubr.bf16.gmra.mxu0 %v1563
        %v6808 = vpop.f32.mrf.mxu0
        %v6809 = vadd.f32 0.0, %v6808
        %v6810 = vpop.f32.mrf.mxu0
        %v6811 = vadd.f32 0.0, %v6810
        %v6812 = vpop.f32.mrf.mxu0
        %v6813 = vpop.f32.mrf.mxu0
        %6814 = vdwg.mxu0
        %6815 = vmatprep.subr.bf16.mxu0 %v4911
        %6816 = vmatpush1.bf16.msra.mxu0 %v4910
        %6817 = vmatprep.subr.bf16.mxu0 %v4903
        %6818 = vmatpush1.bf16.msra.mxu0 %v4902
        %6819 = vmatprep.subr.bf16.mxu0 %v4895
        %6820 = vmatpush1.bf16.msra.mxu0 %v4894
        %6821 = vmatprep.subr.bf16.mxu0 %v4887
        %6822 = vmatpush1.bf16.msra.mxu0 %v4886
        %6823 = vmatprep.subr.bf16.mxu0 %v4879
        %6824 = vmatpush1.bf16.msra.mxu0 %v4878
        %6825 = vmatprep.subr.bf16.mxu0 %v4871
        %6826 = vmatpush1.bf16.msra.mxu0 %v4870
        %6827 = vmatprep.subr.bf16.mxu0 %v4863
        %6828 = vmatpush1.bf16.msra.mxu0 %v4862
        %6829 = vmatprep.subr.bf16.mxu0 %v4855
        %6830 = vmatpush1.bf16.msra.mxu0 %v4854
        %6831 = vmatprep.subr.bf16.mxu0 %v4975
        %6832 = vmatpush2.bf16.msra.mxu0 %v4974
        %6833 = vmatprep.subr.bf16.mxu0 %v4967
        %6834 = vmatpush2.bf16.msra.mxu0 %v4966
        %6835 = vmatprep.subr.bf16.mxu0 %v4959
        %6836 = vmatpush2.bf16.msra.mxu0 %v4958
        %6837 = vmatprep.subr.bf16.mxu0 %v4951
        %6838 = vmatpush2.bf16.msra.mxu0 %v4950
        %6839 = vmatprep.subr.bf16.mxu0 %v4943
        %6840 = vmatpush2.bf16.msra.mxu0 %v4942
        %6841 = vmatprep.subr.bf16.mxu0 %v4935
        %6842 = vmatpush2.bf16.msra.mxu0 %v4934
        %6843 = vmatprep.subr.bf16.mxu0 %v4927
        %6844 = vmatpush2.bf16.msra.mxu0 %v4926
        %6845 = vmatprep.subr.bf16.mxu0 %v4919
        %6846 = vmatpush2.bf16.msra.mxu0 %v4918
        %6847 = vmatprep.mubr.bf16.mxu0 %v1587
        %6848 = vmatmul.mubr.bf16.gmra.mxu0 %v1585
        %v6849 = vpop.f32.mrf.mxu0
        %v6850 = vadd.f32 %v6809, %v6849
        %v6851 = vpop.f32.mrf.mxu0
        %v6852 = vadd.f32 %v6811, %v6851
        %v6853 = vpop.f32.mrf.mxu0
        %v6854 = vpop.f32.mrf.mxu0
        %6855 = vdwg.mxu0
        %6856 = vmatprep.subr.bf16.mxu0 %v5039
        %6857 = vmatpush1.bf16.msra.mxu0 %v5038
        %6858 = vmatprep.subr.bf16.mxu0 %v5031
        %6859 = vmatpush1.bf16.msra.mxu0 %v5030
        %6860 = vmatprep.subr.bf16.mxu0 %v5023
        %6861 = vmatpush1.bf16.msra.mxu0 %v5022
        %6862 = vmatprep.subr.bf16.mxu0 %v5015
        %6863 = vmatpush1.bf16.msra.mxu0 %v5014
        %6864 = vmatprep.subr.bf16.mxu0 %v5007
        %6865 = vmatpush1.bf16.msra.mxu0 %v5006
        %6866 = vmatprep.subr.bf16.mxu0 %v4999
        %6867 = vmatpush1.bf16.msra.mxu0 %v4998
        %6868 = vmatprep.subr.bf16.mxu0 %v4991
        %6869 = vmatpush1.bf16.msra.mxu0 %v4990
        %6870 = vmatprep.subr.bf16.mxu0 %v4983
        %6871 = vmatpush1.bf16.msra.mxu0 %v4982
        %6872 = vmatprep.subr.bf16.mxu0 %v5103
        %6873 = vmatpush2.bf16.msra.mxu0 %v5102
        %6874 = vmatprep.subr.bf16.mxu0 %v5095
        %6875 = vmatpush2.bf16.msra.mxu0 %v5094
        %6876 = vmatprep.subr.bf16.mxu0 %v5087
        %6877 = vmatpush2.bf16.msra.mxu0 %v5086
        %6878 = vmatprep.subr.bf16.mxu0 %v5079
        %6879 = vmatpush2.bf16.msra.mxu0 %v5078
        %6880 = vmatprep.subr.bf16.mxu0 %v5071
        %6881 = vmatpush2.bf16.msra.mxu0 %v5070
        %6882 = vmatprep.subr.bf16.mxu0 %v5063
        %6883 = vmatpush2.bf16.msra.mxu0 %v5062
        %6884 = vmatprep.subr.bf16.mxu0 %v5055
        %6885 = vmatpush2.bf16.msra.mxu0 %v5054
        %6886 = vmatprep.subr.bf16.mxu0 %v5047
        %6887 = vmatpush2.bf16.msra.mxu0 %v5046
        %6888 = vmatprep.mubr.bf16.mxu0 %v1584
        %6889 = vmatmul.mubr.bf16.gmra.mxu0 %v1570
        %v6890 = vpop.f32.mrf.mxu0
        %v6891 = vadd.f32 %v6850, %v6890
        %v6892 = vpop.f32.mrf.mxu0
        %v6893 = vadd.f32 %v6852, %v6892
        %v6894 = vpop.f32.mrf.mxu0
        %v6895 = vpop.f32.mrf.mxu0
        %6896 = vdwg.mxu0
        %6897 = vmatprep.subr.bf16.mxu0 %v5167
        %6898 = vmatpush1.bf16.msra.mxu0 %v5166
        %6899 = vmatprep.subr.bf16.mxu0 %v5159
        %6900 = vmatpush1.bf16.msra.mxu0 %v5158
        %6901 = vmatprep.subr.bf16.mxu0 %v5151
        %6902 = vmatpush1.bf16.msra.mxu0 %v5150
        %6903 = vmatprep.subr.bf16.mxu0 %v5143
        %6904 = vmatpush1.bf16.msra.mxu0 %v5142
        %6905 = vmatprep.subr.bf16.mxu0 %v5135
        %6906 = vmatpush1.bf16.msra.mxu0 %v5134
        %6907 = vmatprep.subr.bf16.mxu0 %v5127
        %6908 = vmatpush1.bf16.msra.mxu0 %v5126
        %6909 = vmatprep.subr.bf16.mxu0 %v5119
        %6910 = vmatpush1.bf16.msra.mxu0 %v5118
        %6911 = vmatprep.subr.bf16.mxu0 %v5111
        %6912 = vmatpush1.bf16.msra.mxu0 %v5110
        %6913 = vmatprep.subr.bf16.mxu0 %v5231
        %6914 = vmatpush2.bf16.msra.mxu0 %v5230
        %6915 = vmatprep.subr.bf16.mxu0 %v5223
        %6916 = vmatpush2.bf16.msra.mxu0 %v5222
        %6917 = vmatprep.subr.bf16.mxu0 %v5215
        %6918 = vmatpush2.bf16.msra.mxu0 %v5214
        %6919 = vmatprep.subr.bf16.mxu0 %v5207
        %6920 = vmatpush2.bf16.msra.mxu0 %v5206
        %6921 = vmatprep.subr.bf16.mxu0 %v5199
        %6922 = vmatpush2.bf16.msra.mxu0 %v5198
        %6923 = vmatprep.subr.bf16.mxu0 %v5191
        %6924 = vmatpush2.bf16.msra.mxu0 %v5190
        %6925 = vmatprep.subr.bf16.mxu0 %v5183
        %6926 = vmatpush2.bf16.msra.mxu0 %v5182
        %6927 = vmatprep.subr.bf16.mxu0 %v5175
        %6928 = vmatpush2.bf16.msra.mxu0 %v5174
        %6929 = vmatprep.mubr.bf16.mxu0 %v1588
        %6930 = vmatmul.mubr.bf16.gmra.mxu0 %v1586
        %v6931 = vpop.f32.mrf.mxu0
        %v6932 = vadd.f32 %v6891, %v6931
        %v6933 = vpop.f32.mrf.mxu0
        %v6934 = vadd.f32 %v6893, %v6933
        %v6935 = vpop.f32.mrf.mxu0
        %v6936 = vpop.f32.mrf.mxu0
        %6937 = vdwg.mxu0
        %6938 = vmatprep.subr.bf16.mxu0 %v5295
        %6939 = vmatpush1.bf16.msra.mxu0 %v5294
        %6940 = vmatprep.subr.bf16.mxu0 %v5287
        %6941 = vmatpush1.bf16.msra.mxu0 %v5286
        %6942 = vmatprep.subr.bf16.mxu0 %v5279
        %6943 = vmatpush1.bf16.msra.mxu0 %v5278
        %6944 = vmatprep.subr.bf16.mxu0 %v5271
        %6945 = vmatpush1.bf16.msra.mxu0 %v5270
        %6946 = vmatprep.subr.bf16.mxu0 %v5263
        %6947 = vmatpush1.bf16.msra.mxu0 %v5262
        %6948 = vmatprep.subr.bf16.mxu0 %v5255
        %6949 = vmatpush1.bf16.msra.mxu0 %v5254
        %6950 = vmatprep.subr.bf16.mxu0 %v5247
        %6951 = vmatpush1.bf16.msra.mxu0 %v5246
        %6952 = vmatprep.subr.bf16.mxu0 %v5239
        %6953 = vmatpush1.bf16.msra.mxu0 %v5238
        %6954 = vmatprep.subr.bf16.mxu0 %v5359
        %6955 = vmatpush2.bf16.msra.mxu0 %v5358
        %6956 = vmatprep.subr.bf16.mxu0 %v5351
        %6957 = vmatpush2.bf16.msra.mxu0 %v5350
        %6958 = vmatprep.subr.bf16.mxu0 %v5343
        %6959 = vmatpush2.bf16.msra.mxu0 %v5342
        %6960 = vmatprep.subr.bf16.mxu0 %v5335
        %6961 = vmatpush2.bf16.msra.mxu0 %v5334
        %6962 = vmatprep.subr.bf16.mxu0 %v5327
        %6963 = vmatpush2.bf16.msra.mxu0 %v5326
        %6964 = vmatprep.subr.bf16.mxu0 %v5319
        %6965 = vmatpush2.bf16.msra.mxu0 %v5318
        %6966 = vmatprep.subr.bf16.mxu0 %v5311
        %6967 = vmatpush2.bf16.msra.mxu0 %v5310
        %6968 = vmatprep.subr.bf16.mxu0 %v5303
        %6969 = vmatpush2.bf16.msra.mxu0 %v5302
        %6970 = vmatprep.mubr.bf16.mxu0 %v1626
        %6971 = vmatmul.mubr.bf16.gmra.mxu0 %v1612
        %v6972 = vpop.f32.mrf.mxu0
        %v6973 = vadd.f32 %v6932, %v6972
        %v6974 = vpop.f32.mrf.mxu0
        %v6975 = vadd.f32 %v6934, %v6974
        %v6976 = vpop.f32.mrf.mxu0
        %v6977 = vpop.f32.mrf.mxu0
        %6978 = vdwg.mxu0
        %6979 = vmatprep.subr.bf16.mxu0 %v5423
        %6980 = vmatpush1.bf16.msra.mxu0 %v5422
        %6981 = vmatprep.subr.bf16.mxu0 %v5415
        %6982 = vmatpush1.bf16.msra.mxu0 %v5414
        %6983 = vmatprep.subr.bf16.mxu0 %v5407
        %6984 = vmatpush1.bf16.msra.mxu0 %v5406
        %6985 = vmatprep.subr.bf16.mxu0 %v5399
        %6986 = vmatpush1.bf16.msra.mxu0 %v5398
        %6987 = vmatprep.subr.bf16.mxu0 %v5391
        %6988 = vmatpush1.bf16.msra.mxu0 %v5390
        %6989 = vmatprep.subr.bf16.mxu0 %v5383
        %6990 = vmatpush1.bf16.msra.mxu0 %v5382
        %6991 = vmatprep.subr.bf16.mxu0 %v5375
        %6992 = vmatpush1.bf16.msra.mxu0 %v5374
        %6993 = vmatprep.subr.bf16.mxu0 %v5367
        %6994 = vmatpush1.bf16.msra.mxu0 %v5366
        %6995 = vmatprep.subr.bf16.mxu0 %v5487
        %6996 = vmatpush2.bf16.msra.mxu0 %v5486
        %6997 = vmatprep.subr.bf16.mxu0 %v5479
        %6998 = vmatpush2.bf16.msra.mxu0 %v5478
        %6999 = vmatprep.subr.bf16.mxu0 %v5471
        %7000 = vmatpush2.bf16.msra.mxu0 %v5470
        %7001 = vmatprep.subr.bf16.mxu0 %v5463
        %7002 = vmatpush2.bf16.msra.mxu0 %v5462
        %7003 = vmatprep.subr.bf16.mxu0 %v5455
        %7004 = vmatpush2.bf16.msra.mxu0 %v5454
        %7005 = vmatprep.subr.bf16.mxu0 %v5447
        %7006 = vmatpush2.bf16.msra.mxu0 %v5446
        %7007 = vmatprep.subr.bf16.mxu0 %v5439
        %7008 = vmatpush2.bf16.msra.mxu0 %v5438
        %7009 = vmatprep.subr.bf16.mxu0 %v5431
        %7010 = vmatpush2.bf16.msra.mxu0 %v5430
        %7011 = vmatprep.mubr.bf16.mxu0 %v1636
        %7012 = vmatmul.mubr.bf16.gmra.mxu0 %v1634
        %v7013 = vpop.f32.mrf.mxu0
        %v7014 = vadd.f32 %v6973, %v7013
        %v7015 = vpop.f32.mrf.mxu0
        %v7016 = vadd.f32 %v6975, %v7015
        %v7017 = vpop.f32.mrf.mxu0
        %v7018 = vpop.f32.mrf.mxu0
        %7019 = vdwg.mxu0
        %7020 = vmatprep.subr.bf16.mxu0 %v5551
        %7021 = vmatpush1.bf16.msra.mxu0 %v5550
        %7022 = vmatprep.subr.bf16.mxu0 %v5543
        %7023 = vmatpush1.bf16.msra.mxu0 %v5542
        %7024 = vmatprep.subr.bf16.mxu0 %v5535
        %7025 = vmatpush1.bf16.msra.mxu0 %v5534
        %7026 = vmatprep.subr.bf16.mxu0 %v5527
        %7027 = vmatpush1.bf16.msra.mxu0 %v5526
        %7028 = vmatprep.subr.bf16.mxu0 %v5519
        %7029 = vmatpush1.bf16.msra.mxu0 %v5518
        %7030 = vmatprep.subr.bf16.mxu0 %v5511
        %7031 = vmatpush1.bf16.msra.mxu0 %v5510
        %7032 = vmatprep.subr.bf16.mxu0 %v5503
        %7033 = vmatpush1.bf16.msra.mxu0 %v5502
        %7034 = vmatprep.subr.bf16.mxu0 %v5495
        %7035 = vmatpush1.bf16.msra.mxu0 %v5494
        %7036 = vmatprep.subr.bf16.mxu0 %v5615
        %7037 = vmatpush2.bf16.msra.mxu0 %v5614
        %7038 = vmatprep.subr.bf16.mxu0 %v5607
        %7039 = vmatpush2.bf16.msra.mxu0 %v5606
        %7040 = vmatprep.subr.bf16.mxu0 %v5599
        %7041 = vmatpush2.bf16.msra.mxu0 %v5598
        %7042 = vmatprep.subr.bf16.mxu0 %v5591
        %7043 = vmatpush2.bf16.msra.mxu0 %v5590
        %7044 = vmatprep.subr.bf16.mxu0 %v5583
        %7045 = vmatpush2.bf16.msra.mxu0 %v5582
        %7046 = vmatprep.subr.bf16.mxu0 %v5575
        %7047 = vmatpush2.bf16.msra.mxu0 %v5574
        %7048 = vmatprep.subr.bf16.mxu0 %v5567
        %7049 = vmatpush2.bf16.msra.mxu0 %v5566
        %7050 = vmatprep.subr.bf16.mxu0 %v5559
        %7051 = vmatpush2.bf16.msra.mxu0 %v5558
        %7052 = vmatprep.mubr.bf16.mxu0 %v1633
        %7053 = vmatmul.mubr.bf16.gmra.mxu0 %v1619
        %v7054 = vpop.f32.mrf.mxu0
        %v7055 = vadd.f32 %v7014, %v7054
        %v7056 = vpop.f32.mrf.mxu0
        %v7057 = vadd.f32 %v7016, %v7056
        %v7058 = vpop.f32.mrf.mxu0
        %v7059 = vpop.f32.mrf.mxu0
        %7060 = vdwg.mxu0
        %7061 = vmatprep.subr.bf16.mxu0 %v5679
        %7062 = vmatpush1.bf16.msra.mxu0 %v5678
        %7063 = vmatprep.subr.bf16.mxu0 %v5671
        %7064 = vmatpush1.bf16.msra.mxu0 %v5670
        %7065 = vmatprep.subr.bf16.mxu0 %v5663
        %7066 = vmatpush1.bf16.msra.mxu0 %v5662
        %7067 = vmatprep.subr.bf16.mxu0 %v5655
        %7068 = vmatpush1.bf16.msra.mxu0 %v5654
        %7069 = vmatprep.subr.bf16.mxu0 %v5647
        %7070 = vmatpush1.bf16.msra.mxu0 %v5646
        %7071 = vmatprep.subr.bf16.mxu0 %v5639
        %7072 = vmatpush1.bf16.msra.mxu0 %v5638
        %7073 = vmatprep.subr.bf16.mxu0 %v5631
        %7074 = vmatpush1.bf16.msra.mxu0 %v5630
        %7075 = vmatprep.subr.bf16.mxu0 %v5623
        %7076 = vmatpush1.bf16.msra.mxu0 %v5622
        %7077 = vmatprep.subr.bf16.mxu0 %v5743
        %7078 = vmatpush2.bf16.msra.mxu0 %v5742
        %7079 = vmatprep.subr.bf16.mxu0 %v5735
        %7080 = vmatpush2.bf16.msra.mxu0 %v5734
        %7081 = vmatprep.subr.bf16.mxu0 %v5727
        %7082 = vmatpush2.bf16.msra.mxu0 %v5726
        %7083 = vmatprep.subr.bf16.mxu0 %v5719
        %7084 = vmatpush2.bf16.msra.mxu0 %v5718
        %7085 = vmatprep.subr.bf16.mxu0 %v5711
        %7086 = vmatpush2.bf16.msra.mxu0 %v5710
        %7087 = vmatprep.subr.bf16.mxu0 %v5703
        %7088 = vmatpush2.bf16.msra.mxu0 %v5702
        %7089 = vmatprep.subr.bf16.mxu0 %v5695
        %7090 = vmatpush2.bf16.msra.mxu0 %v5694
        %7091 = vmatprep.subr.bf16.mxu0 %v5687
        %7092 = vmatpush2.bf16.msra.mxu0 %v5686
        %7093 = vmatprep.mubr.bf16.mxu0 %v1637
        %7094 = vmatmul.mubr.bf16.gmra.mxu0 %v1635
        %v7095 = vpop.f32.mrf.mxu0
        %v7096 = vadd.f32 %v7055, %v7095
        %v7097 = vpop.f32.mrf.mxu0
        %v7098 = vadd.f32 %v7057, %v7097
        %v7099 = vpop.f32.mrf.mxu0
        %v7100 = vpop.f32.mrf.mxu0
        %7101 = vdwg.mxu0
        %7102 = vmatprep.subr.bf16.mxu0 %v4785
        %7103 = vmatpush1.bf16.msra.mxu0 %v4784
        %7104 = vmatprep.subr.bf16.mxu0 %v4777
        %7105 = vmatpush1.bf16.msra.mxu0 %v4776
        %7106 = vmatprep.subr.bf16.mxu0 %v4769
        %7107 = vmatpush1.bf16.msra.mxu0 %v4768
        %7108 = vmatprep.subr.bf16.mxu0 %v4761
        %7109 = vmatpush1.bf16.msra.mxu0 %v4760
        %7110 = vmatprep.subr.bf16.mxu0 %v4753
        %7111 = vmatpush1.bf16.msra.mxu0 %v4752
        %7112 = vmatprep.subr.bf16.mxu0 %v4745
        %7113 = vmatpush1.bf16.msra.mxu0 %v4744
        %7114 = vmatprep.subr.bf16.mxu0 %v4737
        %7115 = vmatpush1.bf16.msra.mxu0 %v4736
        %7116 = vmatprep.subr.bf16.mxu0 %v4729
        %7117 = vmatpush1.bf16.msra.mxu0 %v4728
        %7118 = vmatprep.subr.bf16.mxu0 %v4849
        %7119 = vmatpush2.bf16.msra.mxu0 %v4848
        %7120 = vmatprep.subr.bf16.mxu0 %v4841
        %7121 = vmatpush2.bf16.msra.mxu0 %v4840
        %7122 = vmatprep.subr.bf16.mxu0 %v4833
        %7123 = vmatpush2.bf16.msra.mxu0 %v4832
        %7124 = vmatprep.subr.bf16.mxu0 %v4825
        %7125 = vmatpush2.bf16.msra.mxu0 %v4824
        %7126 = vmatprep.subr.bf16.mxu0 %v4817
        %7127 = vmatpush2.bf16.msra.mxu0 %v4816
        %7128 = vmatprep.subr.bf16.mxu0 %v4809
        %7129 = vmatpush2.bf16.msra.mxu0 %v4808
        %7130 = vmatprep.subr.bf16.mxu0 %v4801
        %7131 = vmatpush2.bf16.msra.mxu0 %v4800
        %7132 = vmatprep.subr.bf16.mxu0 %v4793
        %7133 = vmatpush2.bf16.msra.mxu0 %v4792
        %7134 = vmatprep.mubr.bf16.mxu0 %v1577
        %7135 = vmatmul.mubr.bf16.gmra.mxu0 %v1563
        %v7136 = vpop.f32.mrf.mxu0
        %v7137 = vadd.f32 0.0, %v7136
        %v7138 = vpop.f32.mrf.mxu0
        %v7139 = vadd.f32 0.0, %v7138
        %v7140 = vpop.f32.mrf.mxu0
        %v7141 = vpop.f32.mrf.mxu0
        %7142 = vdwg.mxu0
        %7143 = vmatprep.subr.bf16.mxu0 %v4913
        %7144 = vmatpush1.bf16.msra.mxu0 %v4912
        %7145 = vmatprep.subr.bf16.mxu0 %v4905
        %7146 = vmatpush1.bf16.msra.mxu0 %v4904
        %7147 = vmatprep.subr.bf16.mxu0 %v4897
        %7148 = vmatpush1.bf16.msra.mxu0 %v4896
        %7149 = vmatprep.subr.bf16.mxu0 %v4889
        %7150 = vmatpush1.bf16.msra.mxu0 %v4888
        %7151 = vmatprep.subr.bf16.mxu0 %v4881
        %7152 = vmatpush1.bf16.msra.mxu0 %v4880
        %7153 = vmatprep.subr.bf16.mxu0 %v4873
        %7154 = vmatpush1.bf16.msra.mxu0 %v4872
        %7155 = vmatprep.subr.bf16.mxu0 %v4865
        %7156 = vmatpush1.bf16.msra.mxu0 %v4864
        %7157 = vmatprep.subr.bf16.mxu0 %v4857
        %7158 = vmatpush1.bf16.msra.mxu0 %v4856
        %7159 = vmatprep.subr.bf16.mxu0 %v4977
        %7160 = vmatpush2.bf16.msra.mxu0 %v4976
        %7161 = vmatprep.subr.bf16.mxu0 %v4969
        %7162 = vmatpush2.bf16.msra.mxu0 %v4968
        %7163 = vmatprep.subr.bf16.mxu0 %v4961
        %7164 = vmatpush2.bf16.msra.mxu0 %v4960
        %7165 = vmatprep.subr.bf16.mxu0 %v4953
        %7166 = vmatpush2.bf16.msra.mxu0 %v4952
        %7167 = vmatprep.subr.bf16.mxu0 %v4945
        %7168 = vmatpush2.bf16.msra.mxu0 %v4944
        %7169 = vmatprep.subr.bf16.mxu0 %v4937
        %7170 = vmatpush2.bf16.msra.mxu0 %v4936
        %7171 = vmatprep.subr.bf16.mxu0 %v4929
        %7172 = vmatpush2.bf16.msra.mxu0 %v4928
        %7173 = vmatprep.subr.bf16.mxu0 %v4921
        %7174 = vmatpush2.bf16.msra.mxu0 %v4920
        %7175 = vmatprep.mubr.bf16.mxu0 %v1587
        %7176 = vmatmul.mubr.bf16.gmra.mxu0 %v1585
        %v7177 = vpop.f32.mrf.mxu0
        %v7178 = vadd.f32 %v7137, %v7177
        %v7179 = vpop.f32.mrf.mxu0
        %v7180 = vadd.f32 %v7139, %v7179
        %v7181 = vpop.f32.mrf.mxu0
        %v7182 = vpop.f32.mrf.mxu0
        %7183 = vdwg.mxu0
        %7184 = vmatprep.subr.bf16.mxu0 %v5041
        %7185 = vmatpush1.bf16.msra.mxu0 %v5040
        %7186 = vmatprep.subr.bf16.mxu0 %v5033
        %7187 = vmatpush1.bf16.msra.mxu0 %v5032
        %7188 = vmatprep.subr.bf16.mxu0 %v5025
        %7189 = vmatpush1.bf16.msra.mxu0 %v5024
        %7190 = vmatprep.subr.bf16.mxu0 %v5017
        %7191 = vmatpush1.bf16.msra.mxu0 %v5016
        %7192 = vmatprep.subr.bf16.mxu0 %v5009
        %7193 = vmatpush1.bf16.msra.mxu0 %v5008
        %7194 = vmatprep.subr.bf16.mxu0 %v5001
        %7195 = vmatpush1.bf16.msra.mxu0 %v5000
        %7196 = vmatprep.subr.bf16.mxu0 %v4993
        %7197 = vmatpush1.bf16.msra.mxu0 %v4992
        %7198 = vmatprep.subr.bf16.mxu0 %v4985
        %7199 = vmatpush1.bf16.msra.mxu0 %v4984
        %7200 = vmatprep.subr.bf16.mxu0 %v5105
        %7201 = vmatpush2.bf16.msra.mxu0 %v5104
        %7202 = vmatprep.subr.bf16.mxu0 %v5097
        %7203 = vmatpush2.bf16.msra.mxu0 %v5096
        %7204 = vmatprep.subr.bf16.mxu0 %v5089
        %7205 = vmatpush2.bf16.msra.mxu0 %v5088
        %7206 = vmatprep.subr.bf16.mxu0 %v5081
        %7207 = vmatpush2.bf16.msra.mxu0 %v5080
        %7208 = vmatprep.subr.bf16.mxu0 %v5073
        %7209 = vmatpush2.bf16.msra.mxu0 %v5072
        %7210 = vmatprep.subr.bf16.mxu0 %v5065
        %7211 = vmatpush2.bf16.msra.mxu0 %v5064
        %7212 = vmatprep.subr.bf16.mxu0 %v5057
        %7213 = vmatpush2.bf16.msra.mxu0 %v5056
        %7214 = vmatprep.subr.bf16.mxu0 %v5049
        %7215 = vmatpush2.bf16.msra.mxu0 %v5048
        %7216 = vmatprep.mubr.bf16.mxu0 %v1584
        %7217 = vmatmul.mubr.bf16.gmra.mxu0 %v1570
        %v7218 = vpop.f32.mrf.mxu0
        %v7219 = vadd.f32 %v7178, %v7218
        %v7220 = vpop.f32.mrf.mxu0
        %v7221 = vadd.f32 %v7180, %v7220
        %v7222 = vpop.f32.mrf.mxu0
        %v7223 = vpop.f32.mrf.mxu0
        %7224 = vdwg.mxu0
        %7225 = vmatprep.subr.bf16.mxu0 %v5169
        %7226 = vmatpush1.bf16.msra.mxu0 %v5168
        %7227 = vmatprep.subr.bf16.mxu0 %v5161
        %7228 = vmatpush1.bf16.msra.mxu0 %v5160
        %7229 = vmatprep.subr.bf16.mxu0 %v5153
        %7230 = vmatpush1.bf16.msra.mxu0 %v5152
        %7231 = vmatprep.subr.bf16.mxu0 %v5145
        %7232 = vmatpush1.bf16.msra.mxu0 %v5144
        %7233 = vmatprep.subr.bf16.mxu0 %v5137
        %7234 = vmatpush1.bf16.msra.mxu0 %v5136
        %7235 = vmatprep.subr.bf16.mxu0 %v5129
        %7236 = vmatpush1.bf16.msra.mxu0 %v5128
        %7237 = vmatprep.subr.bf16.mxu0 %v5121
        %7238 = vmatpush1.bf16.msra.mxu0 %v5120
        %7239 = vmatprep.subr.bf16.mxu0 %v5113
        %7240 = vmatpush1.bf16.msra.mxu0 %v5112
        %7241 = vmatprep.subr.bf16.mxu0 %v5233
        %7242 = vmatpush2.bf16.msra.mxu0 %v5232
        %7243 = vmatprep.subr.bf16.mxu0 %v5225
        %7244 = vmatpush2.bf16.msra.mxu0 %v5224
        %7245 = vmatprep.subr.bf16.mxu0 %v5217
        %7246 = vmatpush2.bf16.msra.mxu0 %v5216
        %7247 = vmatprep.subr.bf16.mxu0 %v5209
        %7248 = vmatpush2.bf16.msra.mxu0 %v5208
        %7249 = vmatprep.subr.bf16.mxu0 %v5201
        %7250 = vmatpush2.bf16.msra.mxu0 %v5200
        %7251 = vmatprep.subr.bf16.mxu0 %v5193
        %7252 = vmatpush2.bf16.msra.mxu0 %v5192
        %7253 = vmatprep.subr.bf16.mxu0 %v5185
        %7254 = vmatpush2.bf16.msra.mxu0 %v5184
        %7255 = vmatprep.subr.bf16.mxu0 %v5177
        %7256 = vmatpush2.bf16.msra.mxu0 %v5176
        %7257 = vmatprep.mubr.bf16.mxu0 %v1588
        %7258 = vmatmul.mubr.bf16.gmra.mxu0 %v1586
        %v7259 = vpop.f32.mrf.mxu0
        %v7260 = vadd.f32 %v7219, %v7259
        %v7261 = vpop.f32.mrf.mxu0
        %v7262 = vadd.f32 %v7221, %v7261
        %v7263 = vpop.f32.mrf.mxu0
        %v7264 = vpop.f32.mrf.mxu0
        %7265 = vdwg.mxu0
        %7266 = vmatprep.subr.bf16.mxu0 %v5297
        %7267 = vmatpush1.bf16.msra.mxu0 %v5296
        %7268 = vmatprep.subr.bf16.mxu0 %v5289
        %7269 = vmatpush1.bf16.msra.mxu0 %v5288
        %7270 = vmatprep.subr.bf16.mxu0 %v5281
        %7271 = vmatpush1.bf16.msra.mxu0 %v5280
        %7272 = vmatprep.subr.bf16.mxu0 %v5273
        %7273 = vmatpush1.bf16.msra.mxu0 %v5272
        %7274 = vmatprep.subr.bf16.mxu0 %v5265
        %7275 = vmatpush1.bf16.msra.mxu0 %v5264
        %7276 = vmatprep.subr.bf16.mxu0 %v5257
        %7277 = vmatpush1.bf16.msra.mxu0 %v5256
        %7278 = vmatprep.subr.bf16.mxu0 %v5249
        %7279 = vmatpush1.bf16.msra.mxu0 %v5248
        %7280 = vmatprep.subr.bf16.mxu0 %v5241
        %7281 = vmatpush1.bf16.msra.mxu0 %v5240
        %7282 = vmatprep.subr.bf16.mxu0 %v5361
        %7283 = vmatpush2.bf16.msra.mxu0 %v5360
        %7284 = vmatprep.subr.bf16.mxu0 %v5353
        %7285 = vmatpush2.bf16.msra.mxu0 %v5352
        %7286 = vmatprep.subr.bf16.mxu0 %v5345
        %7287 = vmatpush2.bf16.msra.mxu0 %v5344
        %7288 = vmatprep.subr.bf16.mxu0 %v5337
        %7289 = vmatpush2.bf16.msra.mxu0 %v5336
        %7290 = vmatprep.subr.bf16.mxu0 %v5329
        %7291 = vmatpush2.bf16.msra.mxu0 %v5328
        %7292 = vmatprep.subr.bf16.mxu0 %v5321
        %7293 = vmatpush2.bf16.msra.mxu0 %v5320
        %7294 = vmatprep.subr.bf16.mxu0 %v5313
        %7295 = vmatpush2.bf16.msra.mxu0 %v5312
        %7296 = vmatprep.subr.bf16.mxu0 %v5305
        %7297 = vmatpush2.bf16.msra.mxu0 %v5304
        %7298 = vmatprep.mubr.bf16.mxu0 %v1626
        %7299 = vmatmul.mubr.bf16.gmra.mxu0 %v1612
        %v7300 = vpop.f32.mrf.mxu0
        %v7301 = vadd.f32 %v7260, %v7300
        %v7302 = vpop.f32.mrf.mxu0
        %v7303 = vadd.f32 %v7262, %v7302
        %v7304 = vpop.f32.mrf.mxu0
        %v7305 = vpop.f32.mrf.mxu0
        %7306 = vdwg.mxu0
        %7307 = vmatprep.subr.bf16.mxu0 %v5425
        %7308 = vmatpush1.bf16.msra.mxu0 %v5424
        %7309 = vmatprep.subr.bf16.mxu0 %v5417
        %7310 = vmatpush1.bf16.msra.mxu0 %v5416
        %7311 = vmatprep.subr.bf16.mxu0 %v5409
        %7312 = vmatpush1.bf16.msra.mxu0 %v5408
        %7313 = vmatprep.subr.bf16.mxu0 %v5401
        %7314 = vmatpush1.bf16.msra.mxu0 %v5400
        %7315 = vmatprep.subr.bf16.mxu0 %v5393
        %7316 = vmatpush1.bf16.msra.mxu0 %v5392
        %7317 = vmatprep.subr.bf16.mxu0 %v5385
        %7318 = vmatpush1.bf16.msra.mxu0 %v5384
        %7319 = vmatprep.subr.bf16.mxu0 %v5377
        %7320 = vmatpush1.bf16.msra.mxu0 %v5376
        %7321 = vmatprep.subr.bf16.mxu0 %v5369
        %7322 = vmatpush1.bf16.msra.mxu0 %v5368
        %7323 = vmatprep.subr.bf16.mxu0 %v5489
        %7324 = vmatpush2.bf16.msra.mxu0 %v5488
        %7325 = vmatprep.subr.bf16.mxu0 %v5481
        %7326 = vmatpush2.bf16.msra.mxu0 %v5480
        %7327 = vmatprep.subr.bf16.mxu0 %v5473
        %7328 = vmatpush2.bf16.msra.mxu0 %v5472
        %7329 = vmatprep.subr.bf16.mxu0 %v5465
        %7330 = vmatpush2.bf16.msra.mxu0 %v5464
        %7331 = vmatprep.subr.bf16.mxu0 %v5457
        %7332 = vmatpush2.bf16.msra.mxu0 %v5456
        %7333 = vmatprep.subr.bf16.mxu0 %v5449
        %7334 = vmatpush2.bf16.msra.mxu0 %v5448
        %7335 = vmatprep.subr.bf16.mxu0 %v5441
        %7336 = vmatpush2.bf16.msra.mxu0 %v5440
        %7337 = vmatprep.subr.bf16.mxu0 %v5433
        %7338 = vmatpush2.bf16.msra.mxu0 %v5432
        %7339 = vmatprep.mubr.bf16.mxu0 %v1636
        %7340 = vmatmul.mubr.bf16.gmra.mxu0 %v1634
        %v7341 = vpop.f32.mrf.mxu0
        %v7342 = vadd.f32 %v7301, %v7341
        %v7343 = vpop.f32.mrf.mxu0
        %v7344 = vadd.f32 %v7303, %v7343
        %v7345 = vpop.f32.mrf.mxu0
        %v7346 = vpop.f32.mrf.mxu0
        %7347 = vdwg.mxu0
        %7348 = vmatprep.subr.bf16.mxu0 %v5553
        %7349 = vmatpush1.bf16.msra.mxu0 %v5552
        %7350 = vmatprep.subr.bf16.mxu0 %v5545
        %7351 = vmatpush1.bf16.msra.mxu0 %v5544
        %7352 = vmatprep.subr.bf16.mxu0 %v5537
        %7353 = vmatpush1.bf16.msra.mxu0 %v5536
        %7354 = vmatprep.subr.bf16.mxu0 %v5529
        %7355 = vmatpush1.bf16.msra.mxu0 %v5528
        %7356 = vmatprep.subr.bf16.mxu0 %v5521
        %7357 = vmatpush1.bf16.msra.mxu0 %v5520
        %7358 = vmatprep.subr.bf16.mxu0 %v5513
        %7359 = vmatpush1.bf16.msra.mxu0 %v5512
        %7360 = vmatprep.subr.bf16.mxu0 %v5505
        %7361 = vmatpush1.bf16.msra.mxu0 %v5504
        %7362 = vmatprep.subr.bf16.mxu0 %v5497
        %7363 = vmatpush1.bf16.msra.mxu0 %v5496
        %7364 = vmatprep.subr.bf16.mxu0 %v5617
        %7365 = vmatpush2.bf16.msra.mxu0 %v5616
        %7366 = vmatprep.subr.bf16.mxu0 %v5609
        %7367 = vmatpush2.bf16.msra.mxu0 %v5608
        %7368 = vmatprep.subr.bf16.mxu0 %v5601
        %7369 = vmatpush2.bf16.msra.mxu0 %v5600
        %7370 = vmatprep.subr.bf16.mxu0 %v5593
        %7371 = vmatpush2.bf16.msra.mxu0 %v5592
        %7372 = vmatprep.subr.bf16.mxu0 %v5585
        %7373 = vmatpush2.bf16.msra.mxu0 %v5584
        %7374 = vmatprep.subr.bf16.mxu0 %v5577
        %7375 = vmatpush2.bf16.msra.mxu0 %v5576
        %7376 = vmatprep.subr.bf16.mxu0 %v5569
        %7377 = vmatpush2.bf16.msra.mxu0 %v5568
        %7378 = vmatprep.subr.bf16.mxu0 %v5561
        %7379 = vmatpush2.bf16.msra.mxu0 %v5560
        %7380 = vmatprep.mubr.bf16.mxu0 %v1633
        %7381 = vmatmul.mubr.bf16.gmra.mxu0 %v1619
        %v7382 = vpop.f32.mrf.mxu0
        %v7383 = vadd.f32 %v7342, %v7382
        %v7384 = vpop.f32.mrf.mxu0
        %v7385 = vadd.f32 %v7344, %v7384
        %v7386 = vpop.f32.mrf.mxu0
        %v7387 = vpop.f32.mrf.mxu0
        %7388 = vdwg.mxu0
        %7389 = vmatprep.subr.bf16.mxu0 %v5681
        %7390 = vmatpush1.bf16.msra.mxu0 %v5680
        %7391 = vmatprep.subr.bf16.mxu0 %v5673
        %7392 = vmatpush1.bf16.msra.mxu0 %v5672
        %7393 = vmatprep.subr.bf16.mxu0 %v5665
        %7394 = vmatpush1.bf16.msra.mxu0 %v5664
        %7395 = vmatprep.subr.bf16.mxu0 %v5657
        %7396 = vmatpush1.bf16.msra.mxu0 %v5656
        %7397 = vmatprep.subr.bf16.mxu0 %v5649
        %7398 = vmatpush1.bf16.msra.mxu0 %v5648
        %7399 = vmatprep.subr.bf16.mxu0 %v5641
        %7400 = vmatpush1.bf16.msra.mxu0 %v5640
        %7401 = vmatprep.subr.bf16.mxu0 %v5633
        %7402 = vmatpush1.bf16.msra.mxu0 %v5632
        %7403 = vmatprep.subr.bf16.mxu0 %v5625
        %7404 = vmatpush1.bf16.msra.mxu0 %v5624
        %7405 = vmatprep.subr.bf16.mxu0 %v5745
        %7406 = vmatpush2.bf16.msra.mxu0 %v5744
        %7407 = vmatprep.subr.bf16.mxu0 %v5737
        %7408 = vmatpush2.bf16.msra.mxu0 %v5736
        %7409 = vmatprep.subr.bf16.mxu0 %v5729
        %7410 = vmatpush2.bf16.msra.mxu0 %v5728
        %7411 = vmatprep.subr.bf16.mxu0 %v5721
        %7412 = vmatpush2.bf16.msra.mxu0 %v5720
        %7413 = vmatprep.subr.bf16.mxu0 %v5713
        %7414 = vmatpush2.bf16.msra.mxu0 %v5712
        %7415 = vmatprep.subr.bf16.mxu0 %v5705
        %7416 = vmatpush2.bf16.msra.mxu0 %v5704
        %7417 = vmatprep.subr.bf16.mxu0 %v5697
        %7418 = vmatpush2.bf16.msra.mxu0 %v5696
        %7419 = vmatprep.subr.bf16.mxu0 %v5689
        %7420 = vmatpush2.bf16.msra.mxu0 %v5688
        %7421 = vmatprep.mubr.bf16.mxu0 %v1637
        %7422 = vmatmul.mubr.bf16.gmra.mxu0 %v1635
        %v7423 = vpop.f32.mrf.mxu0
        %v7424 = vadd.f32 %v7383, %v7423
        %v7425 = vpop.f32.mrf.mxu0
        %v7426 = vadd.f32 %v7385, %v7425
        %v7427 = vpop.f32.mrf.mxu0
        %v7428 = vpop.f32.mrf.mxu0
        %7429 = vdwg.mxu0
        %7430 = vmatprep.subr.bf16.mxu0 %v4787
        %7431 = vmatpush1.bf16.msra.mxu0 %v4786
        %7432 = vmatprep.subr.bf16.mxu0 %v4779
        %7433 = vmatpush1.bf16.msra.mxu0 %v4778
        %7434 = vmatprep.subr.bf16.mxu0 %v4771
        %7435 = vmatpush1.bf16.msra.mxu0 %v4770
        %7436 = vmatprep.subr.bf16.mxu0 %v4763
        %7437 = vmatpush1.bf16.msra.mxu0 %v4762
        %7438 = vmatprep.subr.bf16.mxu0 %v4755
        %7439 = vmatpush1.bf16.msra.mxu0 %v4754
        %7440 = vmatprep.subr.bf16.mxu0 %v4747
        %7441 = vmatpush1.bf16.msra.mxu0 %v4746
        %7442 = vmatprep.subr.bf16.mxu0 %v4739
        %7443 = vmatpush1.bf16.msra.mxu0 %v4738
        %7444 = vmatprep.subr.bf16.mxu0 %v4731
        %7445 = vmatpush1.bf16.msra.mxu0 %v4730
        %7446 = vmatprep.subr.bf16.mxu0 %v4851
        %7447 = vmatpush2.bf16.msra.mxu0 %v4850
        %7448 = vmatprep.subr.bf16.mxu0 %v4843
        %7449 = vmatpush2.bf16.msra.mxu0 %v4842
        %7450 = vmatprep.subr.bf16.mxu0 %v4835
        %7451 = vmatpush2.bf16.msra.mxu0 %v4834
        %7452 = vmatprep.subr.bf16.mxu0 %v4827
        %7453 = vmatpush2.bf16.msra.mxu0 %v4826
        %7454 = vmatprep.subr.bf16.mxu0 %v4819
        %7455 = vmatpush2.bf16.msra.mxu0 %v4818
        %7456 = vmatprep.subr.bf16.mxu0 %v4811
        %7457 = vmatpush2.bf16.msra.mxu0 %v4810
        %7458 = vmatprep.subr.bf16.mxu0 %v4803
        %7459 = vmatpush2.bf16.msra.mxu0 %v4802
        %7460 = vmatprep.subr.bf16.mxu0 %v4795
        %7461 = vmatpush2.bf16.msra.mxu0 %v4794
        %7462 = vmatprep.mubr.bf16.mxu0 %v1577
        %7463 = vmatmul.mubr.bf16.gmra.mxu0 %v1563
        %v7464 = vpop.f32.mrf.mxu0
        %v7465 = vadd.f32 0.0, %v7464
        %v7466 = vpop.f32.mrf.mxu0
        %v7467 = vadd.f32 0.0, %v7466
        %v7468 = vpop.f32.mrf.mxu0
        %v7469 = vpop.f32.mrf.mxu0
        %7470 = vdwg.mxu0
        %7471 = vmatprep.subr.bf16.mxu0 %v4915
        %7472 = vmatpush1.bf16.msra.mxu0 %v4914
        %7473 = vmatprep.subr.bf16.mxu0 %v4907
        %7474 = vmatpush1.bf16.msra.mxu0 %v4906
        %7475 = vmatprep.subr.bf16.mxu0 %v4899
        %7476 = vmatpush1.bf16.msra.mxu0 %v4898
        %7477 = vmatprep.subr.bf16.mxu0 %v4891
        %7478 = vmatpush1.bf16.msra.mxu0 %v4890
        %7479 = vmatprep.subr.bf16.mxu0 %v4883
        %7480 = vmatpush1.bf16.msra.mxu0 %v4882
        %7481 = vmatprep.subr.bf16.mxu0 %v4875
        %7482 = vmatpush1.bf16.msra.mxu0 %v4874
        %7483 = vmatprep.subr.bf16.mxu0 %v4867
        %7484 = vmatpush1.bf16.msra.mxu0 %v4866
        %7485 = vmatprep.subr.bf16.mxu0 %v4859
        %7486 = vmatpush1.bf16.msra.mxu0 %v4858
        %7487 = vmatprep.subr.bf16.mxu0 %v4979
        %7488 = vmatpush2.bf16.msra.mxu0 %v4978
        %7489 = vmatprep.subr.bf16.mxu0 %v4971
        %7490 = vmatpush2.bf16.msra.mxu0 %v4970
        %7491 = vmatprep.subr.bf16.mxu0 %v4963
        %7492 = vmatpush2.bf16.msra.mxu0 %v4962
        %7493 = vmatprep.subr.bf16.mxu0 %v4955
        %7494 = vmatpush2.bf16.msra.mxu0 %v4954
        %7495 = vmatprep.subr.bf16.mxu0 %v4947
        %7496 = vmatpush2.bf16.msra.mxu0 %v4946
        %7497 = vmatprep.subr.bf16.mxu0 %v4939
        %7498 = vmatpush2.bf16.msra.mxu0 %v4938
        %7499 = vmatprep.subr.bf16.mxu0 %v4931
        %7500 = vmatpush2.bf16.msra.mxu0 %v4930
        %7501 = vmatprep.subr.bf16.mxu0 %v4923
        %7502 = vmatpush2.bf16.msra.mxu0 %v4922
        %7503 = vmatprep.mubr.bf16.mxu0 %v1587
        %7504 = vmatmul.mubr.bf16.gmra.mxu0 %v1585
        %v7505 = vpop.f32.mrf.mxu0
        %v7506 = vadd.f32 %v7465, %v7505
        %v7507 = vpop.f32.mrf.mxu0
        %v7508 = vadd.f32 %v7467, %v7507
        %v7509 = vpop.f32.mrf.mxu0
        %v7510 = vpop.f32.mrf.mxu0
        %7511 = vdwg.mxu0
        %7512 = vmatprep.subr.bf16.mxu0 %v5043
        %7513 = vmatpush1.bf16.msra.mxu0 %v5042
        %7514 = vmatprep.subr.bf16.mxu0 %v5035
        %7515 = vmatpush1.bf16.msra.mxu0 %v5034
        %7516 = vmatprep.subr.bf16.mxu0 %v5027
        %7517 = vmatpush1.bf16.msra.mxu0 %v5026
        %7518 = vmatprep.subr.bf16.mxu0 %v5019
        %7519 = vmatpush1.bf16.msra.mxu0 %v5018
        %7520 = vmatprep.subr.bf16.mxu0 %v5011
        %7521 = vmatpush1.bf16.msra.mxu0 %v5010
        %7522 = vmatprep.subr.bf16.mxu0 %v5003
        %7523 = vmatpush1.bf16.msra.mxu0 %v5002
        %7524 = vmatprep.subr.bf16.mxu0 %v4995
        %7525 = vmatpush1.bf16.msra.mxu0 %v4994
        %7526 = vmatprep.subr.bf16.mxu0 %v4987
        %7527 = vmatpush1.bf16.msra.mxu0 %v4986
        %7528 = vmatprep.subr.bf16.mxu0 %v5107
        %7529 = vmatpush2.bf16.msra.mxu0 %v5106
        %7530 = vmatprep.subr.bf16.mxu0 %v5099
        %7531 = vmatpush2.bf16.msra.mxu0 %v5098
        %7532 = vmatprep.subr.bf16.mxu0 %v5091
        %7533 = vmatpush2.bf16.msra.mxu0 %v5090
        %7534 = vmatprep.subr.bf16.mxu0 %v5083
        %7535 = vmatpush2.bf16.msra.mxu0 %v5082
        %7536 = vmatprep.subr.bf16.mxu0 %v5075
        %7537 = vmatpush2.bf16.msra.mxu0 %v5074
        %7538 = vmatprep.subr.bf16.mxu0 %v5067
        %7539 = vmatpush2.bf16.msra.mxu0 %v5066
        %7540 = vmatprep.subr.bf16.mxu0 %v5059
        %7541 = vmatpush2.bf16.msra.mxu0 %v5058
        %7542 = vmatprep.subr.bf16.mxu0 %v5051
        %7543 = vmatpush2.bf16.msra.mxu0 %v5050
        %7544 = vmatprep.mubr.bf16.mxu0 %v1584
        %7545 = vmatmul.mubr.bf16.gmra.mxu0 %v1570
        %v7546 = vpop.f32.mrf.mxu0
        %v7547 = vadd.f32 %v7506, %v7546
        %v7548 = vpop.f32.mrf.mxu0
        %v7549 = vadd.f32 %v7508, %v7548
        %v7550 = vpop.f32.mrf.mxu0
        %v7551 = vpop.f32.mrf.mxu0
        %7552 = vdwg.mxu0
        %7553 = vmatprep.subr.bf16.mxu0 %v5171
        %7554 = vmatpush1.bf16.msra.mxu0 %v5170
        %7555 = vmatprep.subr.bf16.mxu0 %v5163
        %7556 = vmatpush1.bf16.msra.mxu0 %v5162
        %7557 = vmatprep.subr.bf16.mxu0 %v5155
        %7558 = vmatpush1.bf16.msra.mxu0 %v5154
        %7559 = vmatprep.subr.bf16.mxu0 %v5147
        %7560 = vmatpush1.bf16.msra.mxu0 %v5146
        %7561 = vmatprep.subr.bf16.mxu0 %v5139
        %7562 = vmatpush1.bf16.msra.mxu0 %v5138
        %7563 = vmatprep.subr.bf16.mxu0 %v5131
        %7564 = vmatpush1.bf16.msra.mxu0 %v5130
        %7565 = vmatprep.subr.bf16.mxu0 %v5123
        %7566 = vmatpush1.bf16.msra.mxu0 %v5122
        %7567 = vmatprep.subr.bf16.mxu0 %v5115
        %7568 = vmatpush1.bf16.msra.mxu0 %v5114
        %7569 = vmatprep.subr.bf16.mxu0 %v5235
        %7570 = vmatpush2.bf16.msra.mxu0 %v5234
        %7571 = vmatprep.subr.bf16.mxu0 %v5227
        %7572 = vmatpush2.bf16.msra.mxu0 %v5226
        %7573 = vmatprep.subr.bf16.mxu0 %v5219
        %7574 = vmatpush2.bf16.msra.mxu0 %v5218
        %7575 = vmatprep.subr.bf16.mxu0 %v5211
        %7576 = vmatpush2.bf16.msra.mxu0 %v5210
        %7577 = vmatprep.subr.bf16.mxu0 %v5203
        %7578 = vmatpush2.bf16.msra.mxu0 %v5202
        %7579 = vmatprep.subr.bf16.mxu0 %v5195
        %7580 = vmatpush2.bf16.msra.mxu0 %v5194
        %7581 = vmatprep.subr.bf16.mxu0 %v5187
        %7582 = vmatpush2.bf16.msra.mxu0 %v5186
        %7583 = vmatprep.subr.bf16.mxu0 %v5179
        %7584 = vmatpush2.bf16.msra.mxu0 %v5178
        %7585 = vmatprep.mubr.bf16.mxu0 %v1588
        %7586 = vmatmul.mubr.bf16.gmra.mxu0 %v1586
        %v7587 = vpop.f32.mrf.mxu0
        %v7588 = vadd.f32 %v7547, %v7587
        %v7589 = vpop.f32.mrf.mxu0
        %v7590 = vadd.f32 %v7549, %v7589
        %v7591 = vpop.f32.mrf.mxu0
        %v7592 = vpop.f32.mrf.mxu0
        %7593 = vdwg.mxu0
        %7594 = vmatprep.subr.bf16.mxu0 %v5299
        %7595 = vmatpush1.bf16.msra.mxu0 %v5298
        %7596 = vmatprep.subr.bf16.mxu0 %v5291
        %7597 = vmatpush1.bf16.msra.mxu0 %v5290
        %7598 = vmatprep.subr.bf16.mxu0 %v5283
        %7599 = vmatpush1.bf16.msra.mxu0 %v5282
        %7600 = vmatprep.subr.bf16.mxu0 %v5275
        %7601 = vmatpush1.bf16.msra.mxu0 %v5274
        %7602 = vmatprep.subr.bf16.mxu0 %v5267
        %7603 = vmatpush1.bf16.msra.mxu0 %v5266
        %7604 = vmatprep.subr.bf16.mxu0 %v5259
        %7605 = vmatpush1.bf16.msra.mxu0 %v5258
        %7606 = vmatprep.subr.bf16.mxu0 %v5251
        %7607 = vmatpush1.bf16.msra.mxu0 %v5250
        %7608 = vmatprep.subr.bf16.mxu0 %v5243
        %7609 = vmatpush1.bf16.msra.mxu0 %v5242
        %7610 = vmatprep.subr.bf16.mxu0 %v5363
        %7611 = vmatpush2.bf16.msra.mxu0 %v5362
        %7612 = vmatprep.subr.bf16.mxu0 %v5355
        %7613 = vmatpush2.bf16.msra.mxu0 %v5354
        %7614 = vmatprep.subr.bf16.mxu0 %v5347
        %7615 = vmatpush2.bf16.msra.mxu0 %v5346
        %7616 = vmatprep.subr.bf16.mxu0 %v5339
        %7617 = vmatpush2.bf16.msra.mxu0 %v5338
        %7618 = vmatprep.subr.bf16.mxu0 %v5331
        %7619 = vmatpush2.bf16.msra.mxu0 %v5330
        %7620 = vmatprep.subr.bf16.mxu0 %v5323
        %7621 = vmatpush2.bf16.msra.mxu0 %v5322
        %7622 = vmatprep.subr.bf16.mxu0 %v5315
        %7623 = vmatpush2.bf16.msra.mxu0 %v5314
        %7624 = vmatprep.subr.bf16.mxu0 %v5307
        %7625 = vmatpush2.bf16.msra.mxu0 %v5306
        %7626 = vmatprep.mubr.bf16.mxu0 %v1626
        %7627 = vmatmul.mubr.bf16.gmra.mxu0 %v1612
        %v7628 = vpop.f32.mrf.mxu0
        %v7629 = vadd.f32 %v7588, %v7628
        %v7630 = vpop.f32.mrf.mxu0
        %v7631 = vadd.f32 %v7590, %v7630
        %v7632 = vpop.f32.mrf.mxu0
        %v7633 = vpop.f32.mrf.mxu0
        %7634 = vdwg.mxu0
        %7635 = vmatprep.subr.bf16.mxu0 %v5427
        %7636 = vmatpush1.bf16.msra.mxu0 %v5426
        %7637 = vmatprep.subr.bf16.mxu0 %v5419
        %7638 = vmatpush1.bf16.msra.mxu0 %v5418
        %7639 = vmatprep.subr.bf16.mxu0 %v5411
        %7640 = vmatpush1.bf16.msra.mxu0 %v5410
        %7641 = vmatprep.subr.bf16.mxu0 %v5403
        %7642 = vmatpush1.bf16.msra.mxu0 %v5402
        %7643 = vmatprep.subr.bf16.mxu0 %v5395
        %7644 = vmatpush1.bf16.msra.mxu0 %v5394
        %7645 = vmatprep.subr.bf16.mxu0 %v5387
        %7646 = vmatpush1.bf16.msra.mxu0 %v5386
        %7647 = vmatprep.subr.bf16.mxu0 %v5379
        %7648 = vmatpush1.bf16.msra.mxu0 %v5378
        %7649 = vmatprep.subr.bf16.mxu0 %v5371
        %7650 = vmatpush1.bf16.msra.mxu0 %v5370
        %7651 = vmatprep.subr.bf16.mxu0 %v5491
        %7652 = vmatpush2.bf16.msra.mxu0 %v5490
        %7653 = vmatprep.subr.bf16.mxu0 %v5483
        %7654 = vmatpush2.bf16.msra.mxu0 %v5482
        %7655 = vmatprep.subr.bf16.mxu0 %v5475
        %7656 = vmatpush2.bf16.msra.mxu0 %v5474
        %7657 = vmatprep.subr.bf16.mxu0 %v5467
        %7658 = vmatpush2.bf16.msra.mxu0 %v5466
        %7659 = vmatprep.subr.bf16.mxu0 %v5459
        %7660 = vmatpush2.bf16.msra.mxu0 %v5458
        %7661 = vmatprep.subr.bf16.mxu0 %v5451
        %7662 = vmatpush2.bf16.msra.mxu0 %v5450
        %7663 = vmatprep.subr.bf16.mxu0 %v5443
        %7664 = vmatpush2.bf16.msra.mxu0 %v5442
        %7665 = vmatprep.subr.bf16.mxu0 %v5435
        %7666 = vmatpush2.bf16.msra.mxu0 %v5434
        %7667 = vmatprep.mubr.bf16.mxu0 %v1636
        %7668 = vmatmul.mubr.bf16.gmra.mxu0 %v1634
        %v7669 = vpop.f32.mrf.mxu0
        %v7670 = vadd.f32 %v7629, %v7669
        %v7671 = vpop.f32.mrf.mxu0
        %v7672 = vadd.f32 %v7631, %v7671
        %v7673 = vpop.f32.mrf.mxu0
        %v7674 = vpop.f32.mrf.mxu0
        %7675 = vdwg.mxu0
        %7676 = vmatprep.subr.bf16.mxu0 %v5555
        %7677 = vmatpush1.bf16.msra.mxu0 %v5554
        %7678 = vmatprep.subr.bf16.mxu0 %v5547
        %7679 = vmatpush1.bf16.msra.mxu0 %v5546
        %7680 = vmatprep.subr.bf16.mxu0 %v5539
        %7681 = vmatpush1.bf16.msra.mxu0 %v5538
        %7682 = vmatprep.subr.bf16.mxu0 %v5531
        %7683 = vmatpush1.bf16.msra.mxu0 %v5530
        %7684 = vmatprep.subr.bf16.mxu0 %v5523
        %7685 = vmatpush1.bf16.msra.mxu0 %v5522
        %7686 = vmatprep.subr.bf16.mxu0 %v5515
        %7687 = vmatpush1.bf16.msra.mxu0 %v5514
        %7688 = vmatprep.subr.bf16.mxu0 %v5507
        %7689 = vmatpush1.bf16.msra.mxu0 %v5506
        %7690 = vmatprep.subr.bf16.mxu0 %v5499
        %7691 = vmatpush1.bf16.msra.mxu0 %v5498
        %7692 = vmatprep.subr.bf16.mxu0 %v5619
        %7693 = vmatpush2.bf16.msra.mxu0 %v5618
        %7694 = vmatprep.subr.bf16.mxu0 %v5611
        %7695 = vmatpush2.bf16.msra.mxu0 %v5610
        %7696 = vmatprep.subr.bf16.mxu0 %v5603
        %7697 = vmatpush2.bf16.msra.mxu0 %v5602
        %7698 = vmatprep.subr.bf16.mxu0 %v5595
        %7699 = vmatpush2.bf16.msra.mxu0 %v5594
        %7700 = vmatprep.subr.bf16.mxu0 %v5587
        %7701 = vmatpush2.bf16.msra.mxu0 %v5586
        %7702 = vmatprep.subr.bf16.mxu0 %v5579
        %7703 = vmatpush2.bf16.msra.mxu0 %v5578
        %7704 = vmatprep.subr.bf16.mxu0 %v5571
        %7705 = vmatpush2.bf16.msra.mxu0 %v5570
        %7706 = vmatprep.subr.bf16.mxu0 %v5563
        %7707 = vmatpush2.bf16.msra.mxu0 %v5562
        %7708 = vmatprep.mubr.bf16.mxu0 %v1633
        %7709 = vmatmul.mubr.bf16.gmra.mxu0 %v1619
        %v7710 = vpop.f32.mrf.mxu0
        %v7711 = vadd.f32 %v7670, %v7710
        %v7712 = vpop.f32.mrf.mxu0
        %v7713 = vadd.f32 %v7672, %v7712
        %v7714 = vpop.f32.mrf.mxu0
        %v7715 = vpop.f32.mrf.mxu0
        %7716 = vdwg.mxu0
        %7717 = vmatprep.subr.bf16.mxu0 %v5683
        %7718 = vmatpush1.bf16.msra.mxu0 %v5682
        %7719 = vmatprep.subr.bf16.mxu0 %v5675
        %7720 = vmatpush1.bf16.msra.mxu0 %v5674
        %7721 = vmatprep.subr.bf16.mxu0 %v5667
        %7722 = vmatpush1.bf16.msra.mxu0 %v5666
        %7723 = vmatprep.subr.bf16.mxu0 %v5659
        %7724 = vmatpush1.bf16.msra.mxu0 %v5658
        %7725 = vmatprep.subr.bf16.mxu0 %v5651
        %7726 = vmatpush1.bf16.msra.mxu0 %v5650
        %7727 = vmatprep.subr.bf16.mxu0 %v5643
        %7728 = vmatpush1.bf16.msra.mxu0 %v5642
        %7729 = vmatprep.subr.bf16.mxu0 %v5635
        %7730 = vmatpush1.bf16.msra.mxu0 %v5634
        %7731 = vmatprep.subr.bf16.mxu0 %v5627
        %7732 = vmatpush1.bf16.msra.mxu0 %v5626
        %7733 = vmatprep.subr.bf16.mxu0 %v5747
        %7734 = vmatpush2.bf16.msra.mxu0 %v5746
        %7735 = vmatprep.subr.bf16.mxu0 %v5739
        %7736 = vmatpush2.bf16.msra.mxu0 %v5738
        %7737 = vmatprep.subr.bf16.mxu0 %v5731
        %7738 = vmatpush2.bf16.msra.mxu0 %v5730
        %7739 = vmatprep.subr.bf16.mxu0 %v5723
        %7740 = vmatpush2.bf16.msra.mxu0 %v5722
        %7741 = vmatprep.subr.bf16.mxu0 %v5715
        %7742 = vmatpush2.bf16.msra.mxu0 %v5714
        %7743 = vmatprep.subr.bf16.mxu0 %v5707
        %7744 = vmatpush2.bf16.msra.mxu0 %v5706
        %7745 = vmatprep.subr.bf16.mxu0 %v5699
        %7746 = vmatpush2.bf16.msra.mxu0 %v5698
        %7747 = vmatprep.subr.bf16.mxu0 %v5691
        %7748 = vmatpush2.bf16.msra.mxu0 %v5690
        %7749 = vmatprep.mubr.bf16.mxu0 %v1637
        %7750 = vmatmul.mubr.bf16.gmra.mxu0 %v1635
        %v7751 = vpop.f32.mrf.mxu0
        %v7752 = vadd.f32 %v7711, %v7751
        %v7753 = vpop.f32.mrf.mxu0
        %v7754 = vadd.f32 %v7713, %v7753
        %v7755 = vpop.f32.mrf.mxu0
        %v7756 = vpop.f32.mrf.mxu0
        %7757 = vdwg.mxu0
        %7758 = vmatprep.subr.bf16.mxu0 %v4789
        %7759 = vmatpush1.bf16.msra.mxu0 %v4788
        %7760 = vmatprep.subr.bf16.mxu0 %v4781
        %7761 = vmatpush1.bf16.msra.mxu0 %v4780
        %7762 = vmatprep.subr.bf16.mxu0 %v4773
        %7763 = vmatpush1.bf16.msra.mxu0 %v4772
        %7764 = vmatprep.subr.bf16.mxu0 %v4765
        %7765 = vmatpush1.bf16.msra.mxu0 %v4764
        %7766 = vmatprep.subr.bf16.mxu0 %v4757
        %7767 = vmatpush1.bf16.msra.mxu0 %v4756
        %7768 = vmatprep.subr.bf16.mxu0 %v4749
        %7769 = vmatpush1.bf16.msra.mxu0 %v4748
        %7770 = vmatprep.subr.bf16.mxu0 %v4741
        %7771 = vmatpush1.bf16.msra.mxu0 %v4740
        %7772 = vmatprep.subr.bf16.mxu0 %v4733
        %7773 = vmatpush1.bf16.msra.mxu0 %v4732
        %7774 = vmatprep.subr.bf16.mxu0 %v4853
        %7775 = vmatpush2.bf16.msra.mxu0 %v4852
        %7776 = vmatprep.subr.bf16.mxu0 %v4845
        %7777 = vmatpush2.bf16.msra.mxu0 %v4844
        %7778 = vmatprep.subr.bf16.mxu0 %v4837
        %7779 = vmatpush2.bf16.msra.mxu0 %v4836
        %7780 = vmatprep.subr.bf16.mxu0 %v4829
        %7781 = vmatpush2.bf16.msra.mxu0 %v4828
        %7782 = vmatprep.subr.bf16.mxu0 %v4821
        %7783 = vmatpush2.bf16.msra.mxu0 %v4820
        %7784 = vmatprep.subr.bf16.mxu0 %v4813
        %7785 = vmatpush2.bf16.msra.mxu0 %v4812
        %7786 = vmatprep.subr.bf16.mxu0 %v4805
        %7787 = vmatpush2.bf16.msra.mxu0 %v4804
        %7788 = vmatprep.subr.bf16.mxu0 %v4797
        %7789 = vmatpush2.bf16.msra.mxu0 %v4796
        %7790 = vmatprep.mubr.bf16.mxu0 %v1577
        %7791 = vmatmul.mubr.bf16.gmra.mxu0 %v1563
        %v7792 = vpop.f32.mrf.mxu0
        %v7793 = vadd.f32 0.0, %v7792
        %v7794 = vpop.f32.mrf.mxu0
        %v7795 = vadd.f32 0.0, %v7794
        %v7796 = vpop.f32.mrf.mxu0
        %v7797 = vpop.f32.mrf.mxu0
        %7798 = vdwg.mxu0
        %7799 = vmatprep.subr.bf16.mxu0 %v4917
        %7800 = vmatpush1.bf16.msra.mxu0 %v4916
        %7801 = vmatprep.subr.bf16.mxu0 %v4909
        %7802 = vmatpush1.bf16.msra.mxu0 %v4908
        %7803 = vmatprep.subr.bf16.mxu0 %v4901
        %7804 = vmatpush1.bf16.msra.mxu0 %v4900
        %7805 = vmatprep.subr.bf16.mxu0 %v4893
        %7806 = vmatpush1.bf16.msra.mxu0 %v4892
        %7807 = vmatprep.subr.bf16.mxu0 %v4885
        %7808 = vmatpush1.bf16.msra.mxu0 %v4884
        %7809 = vmatprep.subr.bf16.mxu0 %v4877
        %7810 = vmatpush1.bf16.msra.mxu0 %v4876
        %7811 = vmatprep.subr.bf16.mxu0 %v4869
        %7812 = vmatpush1.bf16.msra.mxu0 %v4868
        %7813 = vmatprep.subr.bf16.mxu0 %v4861
        %7814 = vmatpush1.bf16.msra.mxu0 %v4860
        %7815 = vmatprep.subr.bf16.mxu0 %v4981
        %7816 = vmatpush2.bf16.msra.mxu0 %v4980
        %7817 = vmatprep.subr.bf16.mxu0 %v4973
        %7818 = vmatpush2.bf16.msra.mxu0 %v4972
        %7819 = vmatprep.subr.bf16.mxu0 %v4965
        %7820 = vmatpush2.bf16.msra.mxu0 %v4964
        %7821 = vmatprep.subr.bf16.mxu0 %v4957
        %7822 = vmatpush2.bf16.msra.mxu0 %v4956
        %7823 = vmatprep.subr.bf16.mxu0 %v4949
        %7824 = vmatpush2.bf16.msra.mxu0 %v4948
        %7825 = vmatprep.subr.bf16.mxu0 %v4941
        %7826 = vmatpush2.bf16.msra.mxu0 %v4940
        %7827 = vmatprep.subr.bf16.mxu0 %v4933
        %7828 = vmatpush2.bf16.msra.mxu0 %v4932
        %7829 = vmatprep.subr.bf16.mxu0 %v4925
        %7830 = vmatpush2.bf16.msra.mxu0 %v4924
        %7831 = vmatprep.mubr.bf16.mxu0 %v1587
        %7832 = vmatmul.mubr.bf16.gmra.mxu0 %v1585
        %v7833 = vpop.f32.mrf.mxu0
        %v7834 = vadd.f32 %v7793, %v7833
        %v7835 = vpop.f32.mrf.mxu0
        %v7836 = vadd.f32 %v7795, %v7835
        %v7837 = vpop.f32.mrf.mxu0
        %v7838 = vpop.f32.mrf.mxu0
        %7839 = vdwg.mxu0
        %7840 = vmatprep.subr.bf16.mxu0 %v5045
        %7841 = vmatpush1.bf16.msra.mxu0 %v5044
        %7842 = vmatprep.subr.bf16.mxu0 %v5037
        %7843 = vmatpush1.bf16.msra.mxu0 %v5036
        %7844 = vmatprep.subr.bf16.mxu0 %v5029
        %7845 = vmatpush1.bf16.msra.mxu0 %v5028
        %7846 = vmatprep.subr.bf16.mxu0 %v5021
        %7847 = vmatpush1.bf16.msra.mxu0 %v5020
        %7848 = vmatprep.subr.bf16.mxu0 %v5013
        %7849 = vmatpush1.bf16.msra.mxu0 %v5012
        %7850 = vmatprep.subr.bf16.mxu0 %v5005
        %7851 = vmatpush1.bf16.msra.mxu0 %v5004
        %7852 = vmatprep.subr.bf16.mxu0 %v4997
        %7853 = vmatpush1.bf16.msra.mxu0 %v4996
        %7854 = vmatprep.subr.bf16.mxu0 %v4989
        %7855 = vmatpush1.bf16.msra.mxu0 %v4988
        %7856 = vmatprep.subr.bf16.mxu0 %v5109
        %7857 = vmatpush2.bf16.msra.mxu0 %v5108
        %7858 = vmatprep.subr.bf16.mxu0 %v5101
        %7859 = vmatpush2.bf16.msra.mxu0 %v5100
        %7860 = vmatprep.subr.bf16.mxu0 %v5093
        %7861 = vmatpush2.bf16.msra.mxu0 %v5092
        %7862 = vmatprep.subr.bf16.mxu0 %v5085
        %7863 = vmatpush2.bf16.msra.mxu0 %v5084
        %7864 = vmatprep.subr.bf16.mxu0 %v5077
        %7865 = vmatpush2.bf16.msra.mxu0 %v5076
        %7866 = vmatprep.subr.bf16.mxu0 %v5069
        %7867 = vmatpush2.bf16.msra.mxu0 %v5068
        %7868 = vmatprep.subr.bf16.mxu0 %v5061
        %7869 = vmatpush2.bf16.msra.mxu0 %v5060
        %7870 = vmatprep.subr.bf16.mxu0 %v5053
        %7871 = vmatpush2.bf16.msra.mxu0 %v5052
        %7872 = vmatprep.mubr.bf16.mxu0 %v1584
        %7873 = vmatmul.mubr.bf16.gmra.mxu0 %v1570
        %v7874 = vpop.f32.mrf.mxu0
        %v7875 = vadd.f32 %v7834, %v7874
        %v7876 = vpop.f32.mrf.mxu0
        %v7877 = vadd.f32 %v7836, %v7876
        %v7878 = vpop.f32.mrf.mxu0
        %v7879 = vpop.f32.mrf.mxu0
        %7880 = vdwg.mxu0
        %7881 = vmatprep.subr.bf16.mxu0 %v5173
        %7882 = vmatpush1.bf16.msra.mxu0 %v5172
        %7883 = vmatprep.subr.bf16.mxu0 %v5165
        %7884 = vmatpush1.bf16.msra.mxu0 %v5164
        %7885 = vmatprep.subr.bf16.mxu0 %v5157
        %7886 = vmatpush1.bf16.msra.mxu0 %v5156
        %7887 = vmatprep.subr.bf16.mxu0 %v5149
        %7888 = vmatpush1.bf16.msra.mxu0 %v5148
        %7889 = vmatprep.subr.bf16.mxu0 %v5141
        %7890 = vmatpush1.bf16.msra.mxu0 %v5140
        %7891 = vmatprep.subr.bf16.mxu0 %v5133
        %7892 = vmatpush1.bf16.msra.mxu0 %v5132
        %7893 = vmatprep.subr.bf16.mxu0 %v5125
        %7894 = vmatpush1.bf16.msra.mxu0 %v5124
        %7895 = vmatprep.subr.bf16.mxu0 %v5117
        %7896 = vmatpush1.bf16.msra.mxu0 %v5116
        %7897 = vmatprep.subr.bf16.mxu0 %v5237
        %7898 = vmatpush2.bf16.msra.mxu0 %v5236
        %7899 = vmatprep.subr.bf16.mxu0 %v5229
        %7900 = vmatpush2.bf16.msra.mxu0 %v5228
        %7901 = vmatprep.subr.bf16.mxu0 %v5221
        %7902 = vmatpush2.bf16.msra.mxu0 %v5220
        %7903 = vmatprep.subr.bf16.mxu0 %v5213
        %7904 = vmatpush2.bf16.msra.mxu0 %v5212
        %7905 = vmatprep.subr.bf16.mxu0 %v5205
        %7906 = vmatpush2.bf16.msra.mxu0 %v5204
        %7907 = vmatprep.subr.bf16.mxu0 %v5197
        %7908 = vmatpush2.bf16.msra.mxu0 %v5196
        %7909 = vmatprep.subr.bf16.mxu0 %v5189
        %7910 = vmatpush2.bf16.msra.mxu0 %v5188
        %7911 = vmatprep.subr.bf16.mxu0 %v5181
        %7912 = vmatpush2.bf16.msra.mxu0 %v5180
        %7913 = vmatprep.mubr.bf16.mxu0 %v1588
        %7914 = vmatmul.mubr.bf16.gmra.mxu0 %v1586
        %v7915 = vpop.f32.mrf.mxu0
        %v7916 = vadd.f32 %v7875, %v7915
        %v7917 = vpop.f32.mrf.mxu0
        %v7918 = vadd.f32 %v7877, %v7917
        %v7919 = vpop.f32.mrf.mxu0
        %v7920 = vpop.f32.mrf.mxu0
        %7921 = vdwg.mxu0
        %7922 = vmatprep.subr.bf16.mxu0 %v5301
        %7923 = vmatpush1.bf16.msra.mxu0 %v5300
        %7924 = vmatprep.subr.bf16.mxu0 %v5293
        %7925 = vmatpush1.bf16.msra.mxu0 %v5292
        %7926 = vmatprep.subr.bf16.mxu0 %v5285
        %7927 = vmatpush1.bf16.msra.mxu0 %v5284
        %7928 = vmatprep.subr.bf16.mxu0 %v5277
        %7929 = vmatpush1.bf16.msra.mxu0 %v5276
        %7930 = vmatprep.subr.bf16.mxu0 %v5269
        %7931 = vmatpush1.bf16.msra.mxu0 %v5268
        %7932 = vmatprep.subr.bf16.mxu0 %v5261
        %7933 = vmatpush1.bf16.msra.mxu0 %v5260
        %7934 = vmatprep.subr.bf16.mxu0 %v5253
        %7935 = vmatpush1.bf16.msra.mxu0 %v5252
        %7936 = vmatprep.subr.bf16.mxu0 %v5245
        %7937 = vmatpush1.bf16.msra.mxu0 %v5244
        %7938 = vmatprep.subr.bf16.mxu0 %v5365
        %7939 = vmatpush2.bf16.msra.mxu0 %v5364
        %7940 = vmatprep.subr.bf16.mxu0 %v5357
        %7941 = vmatpush2.bf16.msra.mxu0 %v5356
        %7942 = vmatprep.subr.bf16.mxu0 %v5349
        %7943 = vmatpush2.bf16.msra.mxu0 %v5348
        %7944 = vmatprep.subr.bf16.mxu0 %v5341
        %7945 = vmatpush2.bf16.msra.mxu0 %v5340
        %7946 = vmatprep.subr.bf16.mxu0 %v5333
        %7947 = vmatpush2.bf16.msra.mxu0 %v5332
        %7948 = vmatprep.subr.bf16.mxu0 %v5325
        %7949 = vmatpush2.bf16.msra.mxu0 %v5324
        %7950 = vmatprep.subr.bf16.mxu0 %v5317
        %7951 = vmatpush2.bf16.msra.mxu0 %v5316
        %7952 = vmatprep.subr.bf16.mxu0 %v5309
        %7953 = vmatpush2.bf16.msra.mxu0 %v5308
        %7954 = vmatprep.mubr.bf16.mxu0 %v1626
        %7955 = vmatmul.mubr.bf16.gmra.mxu0 %v1612
        %v7956 = vpop.f32.mrf.mxu0
        %v7957 = vadd.f32 %v7916, %v7956
        %v7958 = vpop.f32.mrf.mxu0
        %v7959 = vadd.f32 %v7918, %v7958
        %v7960 = vpop.f32.mrf.mxu0
        %v7961 = vpop.f32.mrf.mxu0
        %7962 = vdwg.mxu0
        %7963 = vmatprep.subr.bf16.mxu0 %v5429
        %7964 = vmatpush1.bf16.msra.mxu0 %v5428
        %7965 = vmatprep.subr.bf16.mxu0 %v5421
        %7966 = vmatpush1.bf16.msra.mxu0 %v5420
        %7967 = vmatprep.subr.bf16.mxu0 %v5413
        %7968 = vmatpush1.bf16.msra.mxu0 %v5412
        %7969 = vmatprep.subr.bf16.mxu0 %v5405
        %7970 = vmatpush1.bf16.msra.mxu0 %v5404
        %7971 = vmatprep.subr.bf16.mxu0 %v5397
        %7972 = vmatpush1.bf16.msra.mxu0 %v5396
        %7973 = vmatprep.subr.bf16.mxu0 %v5389
        %7974 = vmatpush1.bf16.msra.mxu0 %v5388
        %7975 = vmatprep.subr.bf16.mxu0 %v5381
        %7976 = vmatpush1.bf16.msra.mxu0 %v5380
        %7977 = vmatprep.subr.bf16.mxu0 %v5373
        %7978 = vmatpush1.bf16.msra.mxu0 %v5372
        %7979 = vmatprep.subr.bf16.mxu0 %v5493
        %7980 = vmatpush2.bf16.msra.mxu0 %v5492
        %7981 = vmatprep.subr.bf16.mxu0 %v5485
        %7982 = vmatpush2.bf16.msra.mxu0 %v5484
        %7983 = vmatprep.subr.bf16.mxu0 %v5477
        %7984 = vmatpush2.bf16.msra.mxu0 %v5476
        %7985 = vmatprep.subr.bf16.mxu0 %v5469
        %7986 = vmatpush2.bf16.msra.mxu0 %v5468
        %7987 = vmatprep.subr.bf16.mxu0 %v5461
        %7988 = vmatpush2.bf16.msra.mxu0 %v5460
        %7989 = vmatprep.subr.bf16.mxu0 %v5453
        %7990 = vmatpush2.bf16.msra.mxu0 %v5452
        %7991 = vmatprep.subr.bf16.mxu0 %v5445
        %7992 = vmatpush2.bf16.msra.mxu0 %v5444
        %7993 = vmatprep.subr.bf16.mxu0 %v5437
        %7994 = vmatpush2.bf16.msra.mxu0 %v5436
        %7995 = vmatprep.mubr.bf16.mxu0 %v1636
        %7996 = vmatmul.mubr.bf16.gmra.mxu0 %v1634
        %v7997 = vpop.f32.mrf.mxu0
        %v7998 = vadd.f32 %v7957, %v7997
        %v7999 = vpop.f32.mrf.mxu0
        %v8000 = vadd.f32 %v7959, %v7999
        %v8001 = vpop.f32.mrf.mxu0
        %v8002 = vpop.f32.mrf.mxu0
        %8003 = vdwg.mxu0
        %8004 = vmatprep.subr.bf16.mxu0 %v5557
        %8005 = vmatpush1.bf16.msra.mxu0 %v5556
        %8006 = vmatprep.subr.bf16.mxu0 %v5549
        %8007 = vmatpush1.bf16.msra.mxu0 %v5548
        %8008 = vmatprep.subr.bf16.mxu0 %v5541
        %8009 = vmatpush1.bf16.msra.mxu0 %v5540
        %8010 = vmatprep.subr.bf16.mxu0 %v5533
        %8011 = vmatpush1.bf16.msra.mxu0 %v5532
        %8012 = vmatprep.subr.bf16.mxu0 %v5525
        %8013 = vmatpush1.bf16.msra.mxu0 %v5524
        %8014 = vmatprep.subr.bf16.mxu0 %v5517
        %8015 = vmatpush1.bf16.msra.mxu0 %v5516
        %8016 = vmatprep.subr.bf16.mxu0 %v5509
        %8017 = vmatpush1.bf16.msra.mxu0 %v5508
        %8018 = vmatprep.subr.bf16.mxu0 %v5501
        %8019 = vmatpush1.bf16.msra.mxu0 %v5500
        %8020 = vmatprep.subr.bf16.mxu0 %v5621
        %8021 = vmatpush2.bf16.msra.mxu0 %v5620
        %8022 = vmatprep.subr.bf16.mxu0 %v5613
        %8023 = vmatpush2.bf16.msra.mxu0 %v5612
        %8024 = vmatprep.subr.bf16.mxu0 %v5605
        %8025 = vmatpush2.bf16.msra.mxu0 %v5604
        %8026 = vmatprep.subr.bf16.mxu0 %v5597
        %8027 = vmatpush2.bf16.msra.mxu0 %v5596
        %8028 = vmatprep.subr.bf16.mxu0 %v5589
        %8029 = vmatpush2.bf16.msra.mxu0 %v5588
        %8030 = vmatprep.subr.bf16.mxu0 %v5581
        %8031 = vmatpush2.bf16.msra.mxu0 %v5580
        %8032 = vmatprep.subr.bf16.mxu0 %v5573
        %8033 = vmatpush2.bf16.msra.mxu0 %v5572
        %8034 = vmatprep.subr.bf16.mxu0 %v5565
        %8035 = vmatpush2.bf16.msra.mxu0 %v5564
        %8036 = vmatprep.mubr.bf16.mxu0 %v1633
        %8037 = vmatmul.mubr.bf16.gmra.mxu0 %v1619
        %v8038 = vpop.f32.mrf.mxu0
        %v8039 = vadd.f32 %v7998, %v8038
        %v8040 = vpop.f32.mrf.mxu0
        %v8041 = vadd.f32 %v8000, %v8040
        %v8042 = vpop.f32.mrf.mxu0
        %v8043 = vpop.f32.mrf.mxu0
        %8044 = vdwg.mxu0
        %8045 = vmatprep.subr.bf16.mxu0 %v5685
        %8046 = vmatpush1.bf16.msra.mxu0 %v5684
        %8047 = vmatprep.subr.bf16.mxu0 %v5677
        %8048 = vmatpush1.bf16.msra.mxu0 %v5676
        %8049 = vmatprep.subr.bf16.mxu0 %v5669
        %8050 = vmatpush1.bf16.msra.mxu0 %v5668
        %8051 = vmatprep.subr.bf16.mxu0 %v5661
        %8052 = vmatpush1.bf16.msra.mxu0 %v5660
        %8053 = vmatprep.subr.bf16.mxu0 %v5653
        %8054 = vmatpush1.bf16.msra.mxu0 %v5652
        %8055 = vmatprep.subr.bf16.mxu0 %v5645
        %8056 = vmatpush1.bf16.msra.mxu0 %v5644
        %8057 = vmatprep.subr.bf16.mxu0 %v5637
        %8058 = vmatpush1.bf16.msra.mxu0 %v5636
        %8059 = vmatprep.subr.bf16.mxu0 %v5629
        %8060 = vmatpush1.bf16.msra.mxu0 %v5628
        %8061 = vmatprep.subr.bf16.mxu0 %v5749
        %8062 = vmatpush2.bf16.msra.mxu0 %v5748
        %8063 = vmatprep.subr.bf16.mxu0 %v5741
        %8064 = vmatpush2.bf16.msra.mxu0 %v5740
        %8065 = vmatprep.subr.bf16.mxu0 %v5733
        %8066 = vmatpush2.bf16.msra.mxu0 %v5732
        %8067 = vmatprep.subr.bf16.mxu0 %v5725
        %8068 = vmatpush2.bf16.msra.mxu0 %v5724
        %8069 = vmatprep.subr.bf16.mxu0 %v5717
        %8070 = vmatpush2.bf16.msra.mxu0 %v5716
        %8071 = vmatprep.subr.bf16.mxu0 %v5709
        %8072 = vmatpush2.bf16.msra.mxu0 %v5708
        %8073 = vmatprep.subr.bf16.mxu0 %v5701
        %8074 = vmatpush2.bf16.msra.mxu0 %v5700
        %8075 = vmatprep.subr.bf16.mxu0 %v5693
        %8076 = vmatpush2.bf16.msra.mxu0 %v5692
        %8077 = vmatprep.mubr.bf16.mxu0 %v1637
        %8078 = vmatmul.mubr.bf16.gmra.mxu0 %v1635
        %v8079 = vpop.f32.mrf.mxu0
        %v8080 = vadd.f32 %v8039, %v8079
        %v8081 = vpop.f32.mrf.mxu0
        %v8082 = vadd.f32 %v8041, %v8081
        %v8083 = vpop.f32.mrf.mxu0
        %v8084 = vpop.f32.mrf.mxu0
        %8085 = vdwg.mxu0
        %v8086 = vld [vmem:[%s426] sm:$0xff]
        %v8088 = vlaneseq
        %v8089 = vshrl.u32 %v8088, 7
        %v8090 = vsub.s32 0, %v8089
        %v8091 = vrot.slane %v8086, %v8090
        %v8092 = vlaneseq
        %v8093 = vshrl.u32 %v8092, 7
        %v8094 = vsub.s32 1, %v8093
        %v8095 = vrot.slane %v8086, %v8094
        %v8096 = vlaneseq
        %v8097 = vshrl.u32 %v8096, 7
        %v8098 = vsub.s32 2, %v8097
        %v8099 = vrot.slane %v8086, %v8098
        %v8100 = vlaneseq
        %v8101 = vshrl.u32 %v8100, 7
        %v8102 = vsub.s32 3, %v8101
        %v8103 = vrot.slane %v8086, %v8102
        %v8104 = vlaneseq
        %v8105 = vshrl.u32 %v8104, 7
        %v8106 = vsub.s32 4, %v8105
        %v8107 = vrot.slane %v8086, %v8106
        %v8108 = vlaneseq
        %v8109 = vshrl.u32 %v8108, 7
        %v8110 = vsub.s32 5, %v8109
        %v8111 = vrot.slane %v8086, %v8110
        %v8112 = vlaneseq
        %v8113 = vshrl.u32 %v8112, 7
        %v8114 = vsub.s32 6, %v8113
        %v8115 = vrot.slane %v8086, %v8114
        %v8116 = vlaneseq
        %v8117 = vshrl.u32 %v8116, 7
        %v8118 = vsub.s32 7, %v8117
        %v8119 = vrot.slane %v8086, %v8118
        %v8128 = vmul.f32 %v7096, %v8091
        %v8129 = vmul.f32 %v7098, %v8095
        %v8130 = vmul.f32 %v7424, %v8099
        %v8131 = vmul.f32 %v7426, %v8103
        %v8132 = vmul.f32 %v7752, %v8107
        %v8133 = vmul.f32 %v7754, %v8111
        %v8134 = vmul.f32 %v8080, %v8115
        %v8135 = vmul.f32 %v8082, %v8119
        %v8136 = vld [vmem:[%s435] sm:$0xff]
        %v8138 = vlaneseq
        %v8139 = vshrl.u32 %v8138, 7
        %v8140 = vsub.s32 0, %v8139
        %v8141 = vrot.slane %v8136, %v8140
        %v8142 = vlaneseq
        %v8143 = vshrl.u32 %v8142, 7
        %v8144 = vsub.s32 1, %v8143
        %v8145 = vrot.slane %v8136, %v8144
        %v8146 = vlaneseq
        %v8147 = vshrl.u32 %v8146, 7
        %v8148 = vsub.s32 2, %v8147
        %v8149 = vrot.slane %v8136, %v8148
        %v8150 = vlaneseq
        %v8151 = vshrl.u32 %v8150, 7
        %v8152 = vsub.s32 3, %v8151
        %v8153 = vrot.slane %v8136, %v8152
        %v8154 = vlaneseq
        %v8155 = vshrl.u32 %v8154, 7
        %v8156 = vsub.s32 4, %v8155
        %v8157 = vrot.slane %v8136, %v8156
        %v8158 = vlaneseq
        %v8159 = vshrl.u32 %v8158, 7
        %v8160 = vsub.s32 5, %v8159
        %v8161 = vrot.slane %v8136, %v8160
        %v8162 = vlaneseq
        %v8163 = vshrl.u32 %v8162, 7
        %v8164 = vsub.s32 6, %v8163
        %v8165 = vrot.slane %v8136, %v8164
        %v8166 = vlaneseq
        %v8167 = vshrl.u32 %v8166, 7
        %v8168 = vsub.s32 7, %v8167
        %v8169 = vrot.slane %v8136, %v8168
        %v8178 = vadd.f32 %v8128, %v8141
        %v8179 = vadd.f32 %v8129, %v8145
        %v8180 = vadd.f32 %v8130, %v8149
        %v8181 = vadd.f32 %v8131, %v8153
        %v8182 = vadd.f32 %v8132, %v8157
        %v8183 = vadd.f32 %v8133, %v8161
        %v8184 = vadd.f32 %v8134, %v8165
        %v8185 = vadd.f32 %v8135, %v8169
        %v8186 = vmax.f32 %v8178, 0.0
        %v8187 = vmax.f32 %v8179, 0.0
        %v8188 = vmax.f32 %v8180, 0.0
        %v8189 = vmax.f32 %v8181, 0.0
        %v8190 = vmax.f32 %v8182, 0.0
        %v8191 = vmax.f32 %v8183, 0.0
        %v8192 = vmax.f32 %v8184, 0.0
        %v8193 = vmax.f32 %v8185, 0.0
        %v8194 = vld [vmem:[#allocation2] sm:$0xff]
        %v8195 = vld [vmem:[#allocation2 + $0x8] sm:$0xff]
        %v8196 = vpack.c.bf16 %v8186, %v8186
        %v8197 = vpack.c.bf16 %v8187, %v8187
        %v8198 = vpack.c.bf16 %v8188, %v8188
        %v8199 = vpack.c.bf16 %v8189, %v8189
        %v8200 = vpack.c.bf16 %v8190, %v8190
        %v8201 = vpack.c.bf16 %v8191, %v8191
        %v8202 = vpack.c.bf16 %v8192, %v8192
        %v8203 = vpack.c.bf16 %v8193, %v8193
        %v8204 = vld [vmem:[%s444] sm:$0xff]
        %v8205 = vld [vmem:[%s444 + $0x8] sm:$0xff]
        %v8206 = vld [vmem:[%s444 + $0x10] sm:$0xff]
        %v8207 = vld [vmem:[%s444 + $0x18] sm:$0xff]
        %v8208 = vld [vmem:[%s444 + $0x20] sm:$0xff]
        %v8209 = vld [vmem:[%s444 + $0x28] sm:$0xff]
        %v8210 = vld [vmem:[%s444 + $0x30] sm:$0xff]
        %v8211 = vld [vmem:[%s444 + $0x38] sm:$0xff]
        %v8212 = vld [vmem:[%s444 + $0x40] sm:$0xff]
        %v8213 = vld [vmem:[%s444 + $0x48] sm:$0xff]
        %v8214 = vld [vmem:[%s444 + $0x50] sm:$0xff]
        %v8215 = vld [vmem:[%s444 + $0x58] sm:$0xff]
        %v8216 = vld [vmem:[%s444 + $0x60] sm:$0xff]
        %v8217 = vld [vmem:[%s444 + $0x68] sm:$0xff]
        %v8218 = vld [vmem:[%s444 + $0x70] sm:$0xff]
        %v8219 = vld [vmem:[%s444 + $0x78] sm:$0xff]
        %v8220 = vld [vmem:[%s444 + $0x80] sm:$0xff]
        %v8221 = vld [vmem:[%s444 + $0x88] sm:$0xff]
        %v8222 = vld [vmem:[%s444 + $0x90] sm:$0xff]
        %v8223 = vld [vmem:[%s444 + $0x98] sm:$0xff]
        %v8224 = vld [vmem:[%s444 + $0xa0] sm:$0xff]
        %v8225 = vld [vmem:[%s444 + $0xa8] sm:$0xff]
        %v8226 = vld [vmem:[%s444 + $0xb0] sm:$0xff]
        %v8227 = vld [vmem:[%s444 + $0xb8] sm:$0xff]
        %v8228 = vld [vmem:[%s444 + $0xc0] sm:$0xff]
        %v8229 = vld [vmem:[%s444 + $0xc8] sm:$0xff]
        %v8230 = vld [vmem:[%s444 + $0xd0] sm:$0xff]
        %v8231 = vld [vmem:[%s444 + $0xd8] sm:$0xff]
        %v8232 = vld [vmem:[%s444 + $0xe0] sm:$0xff]
        %v8233 = vld [vmem:[%s444 + $0xe8] sm:$0xff]
        %v8234 = vld [vmem:[%s444 + $0xf0] sm:$0xff]
        %v8235 = vld [vmem:[%s444 + $0xf8] sm:$0xff]
        %v8236 = vld [vmem:[%s444 + $0x100] sm:$0xff]
        %v8237 = vld [vmem:[%s444 + $0x108] sm:$0xff]
        %v8238 = vld [vmem:[%s444 + $0x110] sm:$0xff]
        %v8239 = vld [vmem:[%s444 + $0x118] sm:$0xff]
        %v8240 = vld [vmem:[%s444 + $0x120] sm:$0xff]
        %v8241 = vld [vmem:[%s444 + $0x128] sm:$0xff]
        %v8242 = vld [vmem:[%s444 + $0x130] sm:$0xff]
        %v8243 = vld [vmem:[%s444 + $0x138] sm:$0xff]
        %v8244 = vld [vmem:[%s444 + $0x140] sm:$0xff]
        %v8245 = vld [vmem:[%s444 + $0x148] sm:$0xff]
        %v8246 = vld [vmem:[%s444 + $0x150] sm:$0xff]
        %v8247 = vld [vmem:[%s444 + $0x158] sm:$0xff]
        %v8248 = vld [vmem:[%s444 + $0x160] sm:$0xff]
        %v8249 = vld [vmem:[%s444 + $0x168] sm:$0xff]
        %v8250 = vld [vmem:[%s444 + $0x170] sm:$0xff]
        %v8251 = vld [vmem:[%s444 + $0x178] sm:$0xff]
        %v8252 = vld [vmem:[%s444 + $0x180] sm:$0xff]
        %v8253 = vld [vmem:[%s444 + $0x188] sm:$0xff]
        %v8254 = vld [vmem:[%s444 + $0x190] sm:$0xff]
        %v8255 = vld [vmem:[%s444 + $0x198] sm:$0xff]
        %v8256 = vld [vmem:[%s444 + $0x1a0] sm:$0xff]
        %v8257 = vld [vmem:[%s444 + $0x1a8] sm:$0xff]
        %v8258 = vld [vmem:[%s444 + $0x1b0] sm:$0xff]
        %v8259 = vld [vmem:[%s444 + $0x1b8] sm:$0xff]
        %v8260 = vld [vmem:[%s444 + $0x1c0] sm:$0xff]
        %v8261 = vld [vmem:[%s444 + $0x1c8] sm:$0xff]
        %v8262 = vld [vmem:[%s444 + $0x1d0] sm:$0xff]
        %v8263 = vld [vmem:[%s444 + $0x1d8] sm:$0xff]
        %v8264 = vld [vmem:[%s444 + $0x1e0] sm:$0xff]
        %v8265 = vld [vmem:[%s444 + $0x1e8] sm:$0xff]
        %v8266 = vld [vmem:[%s444 + $0x1f0] sm:$0xff]
        %v8267 = vld [vmem:[%s444 + $0x1f8] sm:$0xff]
        %v8268 = vld [vmem:[%s444 + $0x200] sm:$0xff]
        %v8269 = vld [vmem:[%s444 + $0x208] sm:$0xff]
        %v8270 = vld [vmem:[%s444 + $0x210] sm:$0xff]
        %v8271 = vld [vmem:[%s444 + $0x218] sm:$0xff]
        %v8272 = vld [vmem:[%s444 + $0x220] sm:$0xff]
        %v8273 = vld [vmem:[%s444 + $0x228] sm:$0xff]
        %v8274 = vld [vmem:[%s444 + $0x230] sm:$0xff]
        %v8275 = vld [vmem:[%s444 + $0x238] sm:$0xff]
        %v8276 = vld [vmem:[%s444 + $0x240] sm:$0xff]
        %v8277 = vld [vmem:[%s444 + $0x248] sm:$0xff]
        %v8278 = vld [vmem:[%s444 + $0x250] sm:$0xff]
        %v8279 = vld [vmem:[%s444 + $0x258] sm:$0xff]
        %v8280 = vld [vmem:[%s444 + $0x260] sm:$0xff]
        %v8281 = vld [vmem:[%s444 + $0x268] sm:$0xff]
        %v8282 = vld [vmem:[%s444 + $0x270] sm:$0xff]
        %v8283 = vld [vmem:[%s444 + $0x278] sm:$0xff]
        %v8284 = vld [vmem:[%s444 + $0x280] sm:$0xff]
        %v8285 = vld [vmem:[%s444 + $0x288] sm:$0xff]
        %v8286 = vld [vmem:[%s444 + $0x290] sm:$0xff]
        %v8287 = vld [vmem:[%s444 + $0x298] sm:$0xff]
        %v8288 = vld [vmem:[%s444 + $0x2a0] sm:$0xff]
        %v8289 = vld [vmem:[%s444 + $0x2a8] sm:$0xff]
        %v8290 = vld [vmem:[%s444 + $0x2b0] sm:$0xff]
        %v8291 = vld [vmem:[%s444 + $0x2b8] sm:$0xff]
        %v8292 = vld [vmem:[%s444 + $0x2c0] sm:$0xff]
        %v8293 = vld [vmem:[%s444 + $0x2c8] sm:$0xff]
        %v8294 = vld [vmem:[%s444 + $0x2d0] sm:$0xff]
        %v8295 = vld [vmem:[%s444 + $0x2d8] sm:$0xff]
        %v8296 = vld [vmem:[%s444 + $0x2e0] sm:$0xff]
        %v8297 = vld [vmem:[%s444 + $0x2e8] sm:$0xff]
        %v8298 = vld [vmem:[%s444 + $0x2f0] sm:$0xff]
        %v8299 = vld [vmem:[%s444 + $0x2f8] sm:$0xff]
        %v8300 = vld [vmem:[%s444 + $0x300] sm:$0xff]
        %v8301 = vld [vmem:[%s444 + $0x308] sm:$0xff]
        %v8302 = vld [vmem:[%s444 + $0x310] sm:$0xff]
        %v8303 = vld [vmem:[%s444 + $0x318] sm:$0xff]
        %v8304 = vld [vmem:[%s444 + $0x320] sm:$0xff]
        %v8305 = vld [vmem:[%s444 + $0x328] sm:$0xff]
        %v8306 = vld [vmem:[%s444 + $0x330] sm:$0xff]
        %v8307 = vld [vmem:[%s444 + $0x338] sm:$0xff]
        %v8308 = vld [vmem:[%s444 + $0x340] sm:$0xff]
        %v8309 = vld [vmem:[%s444 + $0x348] sm:$0xff]
        %v8310 = vld [vmem:[%s444 + $0x350] sm:$0xff]
        %v8311 = vld [vmem:[%s444 + $0x358] sm:$0xff]
        %v8312 = vld [vmem:[%s444 + $0x360] sm:$0xff]
        %v8313 = vld [vmem:[%s444 + $0x368] sm:$0xff]
        %v8314 = vld [vmem:[%s444 + $0x370] sm:$0xff]
        %v8315 = vld [vmem:[%s444 + $0x378] sm:$0xff]
        %v8316 = vld [vmem:[%s444 + $0x380] sm:$0xff]
        %v8317 = vld [vmem:[%s444 + $0x388] sm:$0xff]
        %v8318 = vld [vmem:[%s444 + $0x390] sm:$0xff]
        %v8319 = vld [vmem:[%s444 + $0x398] sm:$0xff]
        %v8320 = vld [vmem:[%s444 + $0x3a0] sm:$0xff]
        %v8321 = vld [vmem:[%s444 + $0x3a8] sm:$0xff]
        %v8322 = vld [vmem:[%s444 + $0x3b0] sm:$0xff]
        %v8323 = vld [vmem:[%s444 + $0x3b8] sm:$0xff]
        %v8324 = vld [vmem:[%s444 + $0x3c0] sm:$0xff]
        %v8325 = vld [vmem:[%s444 + $0x3c8] sm:$0xff]
        %v8326 = vld [vmem:[%s444 + $0x3d0] sm:$0xff]
        %v8327 = vld [vmem:[%s444 + $0x3d8] sm:$0xff]
        %v8328 = vld [vmem:[%s444 + $0x3e0] sm:$0xff]
        %v8329 = vld [vmem:[%s444 + $0x3e8] sm:$0xff]
        %v8330 = vld [vmem:[%s444 + $0x3f0] sm:$0xff]
        %v8331 = vld [vmem:[%s444 + $0x3f8] sm:$0xff]
        %v8332 = vld [vmem:[%s444 + $0x400] sm:$0xff]
        %v8333 = vld [vmem:[%s444 + $0x408] sm:$0xff]
        %v8334 = vld [vmem:[%s444 + $0x410] sm:$0xff]
        %v8335 = vld [vmem:[%s444 + $0x418] sm:$0xff]
        %v8336 = vld [vmem:[%s444 + $0x420] sm:$0xff]
        %v8337 = vld [vmem:[%s444 + $0x428] sm:$0xff]
        %v8338 = vld [vmem:[%s444 + $0x430] sm:$0xff]
        %v8339 = vld [vmem:[%s444 + $0x438] sm:$0xff]
        %v8340 = vld [vmem:[%s444 + $0x440] sm:$0xff]
        %v8341 = vld [vmem:[%s444 + $0x448] sm:$0xff]
        %v8342 = vld [vmem:[%s444 + $0x450] sm:$0xff]
        %v8343 = vld [vmem:[%s444 + $0x458] sm:$0xff]
        %v8344 = vld [vmem:[%s444 + $0x460] sm:$0xff]
        %v8345 = vld [vmem:[%s444 + $0x468] sm:$0xff]
        %v8346 = vld [vmem:[%s444 + $0x470] sm:$0xff]
        %v8347 = vld [vmem:[%s444 + $0x478] sm:$0xff]
        %v8348 = vld [vmem:[%s444 + $0x480] sm:$0xff]
        %v8349 = vld [vmem:[%s444 + $0x488] sm:$0xff]
        %v8350 = vld [vmem:[%s444 + $0x490] sm:$0xff]
        %v8351 = vld [vmem:[%s444 + $0x498] sm:$0xff]
        %v8352 = vld [vmem:[%s444 + $0x4a0] sm:$0xff]
        %v8353 = vld [vmem:[%s444 + $0x4a8] sm:$0xff]
        %v8354 = vld [vmem:[%s444 + $0x4b0] sm:$0xff]
        %v8355 = vld [vmem:[%s444 + $0x4b8] sm:$0xff]
        %v8356 = vld [vmem:[%s444 + $0x4c0] sm:$0xff]
        %v8357 = vld [vmem:[%s444 + $0x4c8] sm:$0xff]
        %v8358 = vld [vmem:[%s444 + $0x4d0] sm:$0xff]
        %v8359 = vld [vmem:[%s444 + $0x4d8] sm:$0xff]
        %v8360 = vld [vmem:[%s444 + $0x4e0] sm:$0xff]
        %v8361 = vld [vmem:[%s444 + $0x4e8] sm:$0xff]
        %v8362 = vld [vmem:[%s444 + $0x4f0] sm:$0xff]
        %v8363 = vld [vmem:[%s444 + $0x4f8] sm:$0xff]
        %v8364 = vld [vmem:[%s444 + $0x500] sm:$0xff]
        %v8365 = vld [vmem:[%s444 + $0x508] sm:$0xff]
        %v8366 = vld [vmem:[%s444 + $0x510] sm:$0xff]
        %v8367 = vld [vmem:[%s444 + $0x518] sm:$0xff]
        %v8368 = vld [vmem:[%s444 + $0x520] sm:$0xff]
        %v8369 = vld [vmem:[%s444 + $0x528] sm:$0xff]
        %v8370 = vld [vmem:[%s444 + $0x530] sm:$0xff]
        %v8371 = vld [vmem:[%s444 + $0x538] sm:$0xff]
        %v8372 = vld [vmem:[%s444 + $0x540] sm:$0xff]
        %v8373 = vld [vmem:[%s444 + $0x548] sm:$0xff]
        %v8374 = vld [vmem:[%s444 + $0x550] sm:$0xff]
        %v8375 = vld [vmem:[%s444 + $0x558] sm:$0xff]
        %v8376 = vld [vmem:[%s444 + $0x560] sm:$0xff]
        %v8377 = vld [vmem:[%s444 + $0x568] sm:$0xff]
        %v8378 = vld [vmem:[%s444 + $0x570] sm:$0xff]
        %v8379 = vld [vmem:[%s444 + $0x578] sm:$0xff]
        %v8380 = vld [vmem:[%s444 + $0x580] sm:$0xff]
        %v8381 = vld [vmem:[%s444 + $0x588] sm:$0xff]
        %v8382 = vld [vmem:[%s444 + $0x590] sm:$0xff]
        %v8383 = vld [vmem:[%s444 + $0x598] sm:$0xff]
        %v8384 = vld [vmem:[%s444 + $0x5a0] sm:$0xff]
        %v8385 = vld [vmem:[%s444 + $0x5a8] sm:$0xff]
        %v8386 = vld [vmem:[%s444 + $0x5b0] sm:$0xff]
        %v8387 = vld [vmem:[%s444 + $0x5b8] sm:$0xff]
        %v8388 = vld [vmem:[%s444 + $0x5c0] sm:$0xff]
        %v8389 = vld [vmem:[%s444 + $0x5c8] sm:$0xff]
        %v8390 = vld [vmem:[%s444 + $0x5d0] sm:$0xff]
        %v8391 = vld [vmem:[%s444 + $0x5d8] sm:$0xff]
        %v8392 = vld [vmem:[%s444 + $0x5e0] sm:$0xff]
        %v8393 = vld [vmem:[%s444 + $0x5e8] sm:$0xff]
        %v8394 = vld [vmem:[%s444 + $0x5f0] sm:$0xff]
        %v8395 = vld [vmem:[%s444 + $0x5f8] sm:$0xff]
        %v8396 = vld [vmem:[%s444 + $0x600] sm:$0xff]
        %v8397 = vld [vmem:[%s444 + $0x608] sm:$0xff]
        %v8398 = vld [vmem:[%s444 + $0x610] sm:$0xff]
        %v8399 = vld [vmem:[%s444 + $0x618] sm:$0xff]
        %v8400 = vld [vmem:[%s444 + $0x620] sm:$0xff]
        %v8401 = vld [vmem:[%s444 + $0x628] sm:$0xff]
        %v8402 = vld [vmem:[%s444 + $0x630] sm:$0xff]
        %v8403 = vld [vmem:[%s444 + $0x638] sm:$0xff]
        %v8404 = vld [vmem:[%s444 + $0x640] sm:$0xff]
        %v8405 = vld [vmem:[%s444 + $0x648] sm:$0xff]
        %v8406 = vld [vmem:[%s444 + $0x650] sm:$0xff]
        %v8407 = vld [vmem:[%s444 + $0x658] sm:$0xff]
        %v8408 = vld [vmem:[%s444 + $0x660] sm:$0xff]
        %v8409 = vld [vmem:[%s444 + $0x668] sm:$0xff]
        %v8410 = vld [vmem:[%s444 + $0x670] sm:$0xff]
        %v8411 = vld [vmem:[%s444 + $0x678] sm:$0xff]
        %v8412 = vld [vmem:[%s444 + $0x680] sm:$0xff]
        %v8413 = vld [vmem:[%s444 + $0x688] sm:$0xff]
        %v8414 = vld [vmem:[%s444 + $0x690] sm:$0xff]
        %v8415 = vld [vmem:[%s444 + $0x698] sm:$0xff]
        %v8416 = vld [vmem:[%s444 + $0x6a0] sm:$0xff]
        %v8417 = vld [vmem:[%s444 + $0x6a8] sm:$0xff]
        %v8418 = vld [vmem:[%s444 + $0x6b0] sm:$0xff]
        %v8419 = vld [vmem:[%s444 + $0x6b8] sm:$0xff]
        %v8420 = vld [vmem:[%s444 + $0x6c0] sm:$0xff]
        %v8421 = vld [vmem:[%s444 + $0x6c8] sm:$0xff]
        %v8422 = vld [vmem:[%s444 + $0x6d0] sm:$0xff]
        %v8423 = vld [vmem:[%s444 + $0x6d8] sm:$0xff]
        %v8424 = vld [vmem:[%s444 + $0x6e0] sm:$0xff]
        %v8425 = vld [vmem:[%s444 + $0x6e8] sm:$0xff]
        %v8426 = vld [vmem:[%s444 + $0x6f0] sm:$0xff]
        %v8427 = vld [vmem:[%s444 + $0x6f8] sm:$0xff]
        %v8428 = vld [vmem:[%s444 + $0x700] sm:$0xff]
        %v8429 = vld [vmem:[%s444 + $0x708] sm:$0xff]
        %v8430 = vld [vmem:[%s444 + $0x710] sm:$0xff]
        %v8431 = vld [vmem:[%s444 + $0x718] sm:$0xff]
        %v8432 = vld [vmem:[%s444 + $0x720] sm:$0xff]
        %v8433 = vld [vmem:[%s444 + $0x728] sm:$0xff]
        %v8434 = vld [vmem:[%s444 + $0x730] sm:$0xff]
        %v8435 = vld [vmem:[%s444 + $0x738] sm:$0xff]
        %v8436 = vld [vmem:[%s444 + $0x740] sm:$0xff]
        %v8437 = vld [vmem:[%s444 + $0x748] sm:$0xff]
        %v8438 = vld [vmem:[%s444 + $0x750] sm:$0xff]
        %v8439 = vld [vmem:[%s444 + $0x758] sm:$0xff]
        %v8440 = vld [vmem:[%s444 + $0x760] sm:$0xff]
        %v8441 = vld [vmem:[%s444 + $0x768] sm:$0xff]
        %v8442 = vld [vmem:[%s444 + $0x770] sm:$0xff]
        %v8443 = vld [vmem:[%s444 + $0x778] sm:$0xff]
        %v8444 = vld [vmem:[%s444 + $0x780] sm:$0xff]
        %v8445 = vld [vmem:[%s444 + $0x788] sm:$0xff]
        %v8446 = vld [vmem:[%s444 + $0x790] sm:$0xff]
        %v8447 = vld [vmem:[%s444 + $0x798] sm:$0xff]
        %v8448 = vld [vmem:[%s444 + $0x7a0] sm:$0xff]
        %v8449 = vld [vmem:[%s444 + $0x7a8] sm:$0xff]
        %v8450 = vld [vmem:[%s444 + $0x7b0] sm:$0xff]
        %v8451 = vld [vmem:[%s444 + $0x7b8] sm:$0xff]
        %v8452 = vld [vmem:[%s444 + $0x7c0] sm:$0xff]
        %v8453 = vld [vmem:[%s444 + $0x7c8] sm:$0xff]
        %v8454 = vld [vmem:[%s444 + $0x7d0] sm:$0xff]
        %v8455 = vld [vmem:[%s444 + $0x7d8] sm:$0xff]
        %v8456 = vld [vmem:[%s444 + $0x7e0] sm:$0xff]
        %v8457 = vld [vmem:[%s444 + $0x7e8] sm:$0xff]
        %v8458 = vld [vmem:[%s444 + $0x7f0] sm:$0xff]
        %v8459 = vld [vmem:[%s444 + $0x7f8] sm:$0xff]
        %v8460 = vld [vmem:[%s444 + $0x800] sm:$0xff]
        %v8461 = vld [vmem:[%s444 + $0x808] sm:$0xff]
        %v8462 = vld [vmem:[%s444 + $0x810] sm:$0xff]
        %v8463 = vld [vmem:[%s444 + $0x818] sm:$0xff]
        %v8464 = vld [vmem:[%s444 + $0x820] sm:$0xff]
        %v8465 = vld [vmem:[%s444 + $0x828] sm:$0xff]
        %v8466 = vld [vmem:[%s444 + $0x830] sm:$0xff]
        %v8467 = vld [vmem:[%s444 + $0x838] sm:$0xff]
        %v8468 = vld [vmem:[%s444 + $0x840] sm:$0xff]
        %v8469 = vld [vmem:[%s444 + $0x848] sm:$0xff]
        %v8470 = vld [vmem:[%s444 + $0x850] sm:$0xff]
        %v8471 = vld [vmem:[%s444 + $0x858] sm:$0xff]
        %v8472 = vld [vmem:[%s444 + $0x860] sm:$0xff]
        %v8473 = vld [vmem:[%s444 + $0x868] sm:$0xff]
        %v8474 = vld [vmem:[%s444 + $0x870] sm:$0xff]
        %v8475 = vld [vmem:[%s444 + $0x878] sm:$0xff]
        %v8476 = vld [vmem:[%s444 + $0x880] sm:$0xff]
        %v8477 = vld [vmem:[%s444 + $0x888] sm:$0xff]
        %v8478 = vld [vmem:[%s444 + $0x890] sm:$0xff]
        %v8479 = vld [vmem:[%s444 + $0x898] sm:$0xff]
        %v8480 = vld [vmem:[%s444 + $0x8a0] sm:$0xff]
        %v8481 = vld [vmem:[%s444 + $0x8a8] sm:$0xff]
        %v8482 = vld [vmem:[%s444 + $0x8b0] sm:$0xff]
        %v8483 = vld [vmem:[%s444 + $0x8b8] sm:$0xff]
        %v8484 = vld [vmem:[%s444 + $0x8c0] sm:$0xff]
        %v8485 = vld [vmem:[%s444 + $0x8c8] sm:$0xff]
        %v8486 = vld [vmem:[%s444 + $0x8d0] sm:$0xff]
        %v8487 = vld [vmem:[%s444 + $0x8d8] sm:$0xff]
        %v8488 = vld [vmem:[%s444 + $0x8e0] sm:$0xff]
        %v8489 = vld [vmem:[%s444 + $0x8e8] sm:$0xff]
        %v8490 = vld [vmem:[%s444 + $0x8f0] sm:$0xff]
        %v8491 = vld [vmem:[%s444 + $0x8f8] sm:$0xff]
        %v8492 = vld [vmem:[%s444 + $0x900] sm:$0xff]
        %v8493 = vld [vmem:[%s444 + $0x908] sm:$0xff]
        %v8494 = vld [vmem:[%s444 + $0x910] sm:$0xff]
        %v8495 = vld [vmem:[%s444 + $0x918] sm:$0xff]
        %v8496 = vld [vmem:[%s444 + $0x920] sm:$0xff]
        %v8497 = vld [vmem:[%s444 + $0x928] sm:$0xff]
        %v8498 = vld [vmem:[%s444 + $0x930] sm:$0xff]
        %v8499 = vld [vmem:[%s444 + $0x938] sm:$0xff]
        %v8500 = vld [vmem:[%s444 + $0x940] sm:$0xff]
        %v8501 = vld [vmem:[%s444 + $0x948] sm:$0xff]
        %v8502 = vld [vmem:[%s444 + $0x950] sm:$0xff]
        %v8503 = vld [vmem:[%s444 + $0x958] sm:$0xff]
        %v8504 = vld [vmem:[%s444 + $0x960] sm:$0xff]
        %v8505 = vld [vmem:[%s444 + $0x968] sm:$0xff]
        %v8506 = vld [vmem:[%s444 + $0x970] sm:$0xff]
        %v8507 = vld [vmem:[%s444 + $0x978] sm:$0xff]
        %v8508 = vld [vmem:[%s444 + $0x980] sm:$0xff]
        %v8509 = vld [vmem:[%s444 + $0x988] sm:$0xff]
        %v8510 = vld [vmem:[%s444 + $0x990] sm:$0xff]
        %v8511 = vld [vmem:[%s444 + $0x998] sm:$0xff]
        %v8512 = vld [vmem:[%s444 + $0x9a0] sm:$0xff]
        %v8513 = vld [vmem:[%s444 + $0x9a8] sm:$0xff]
        %v8514 = vld [vmem:[%s444 + $0x9b0] sm:$0xff]
        %v8515 = vld [vmem:[%s444 + $0x9b8] sm:$0xff]
        %v8516 = vld [vmem:[%s444 + $0x9c0] sm:$0xff]
        %v8517 = vld [vmem:[%s444 + $0x9c8] sm:$0xff]
        %v8518 = vld [vmem:[%s444 + $0x9d0] sm:$0xff]
        %v8519 = vld [vmem:[%s444 + $0x9d8] sm:$0xff]
        %v8520 = vld [vmem:[%s444 + $0x9e0] sm:$0xff]
        %v8521 = vld [vmem:[%s444 + $0x9e8] sm:$0xff]
        %v8522 = vld [vmem:[%s444 + $0x9f0] sm:$0xff]
        %v8523 = vld [vmem:[%s444 + $0x9f8] sm:$0xff]
        %v8524 = vld [vmem:[%s444 + $0xa00] sm:$0xff]
        %v8525 = vld [vmem:[%s444 + $0xa08] sm:$0xff]
        %v8526 = vld [vmem:[%s444 + $0xa10] sm:$0xff]
        %v8527 = vld [vmem:[%s444 + $0xa18] sm:$0xff]
        %v8528 = vld [vmem:[%s444 + $0xa20] sm:$0xff]
        %v8529 = vld [vmem:[%s444 + $0xa28] sm:$0xff]
        %v8530 = vld [vmem:[%s444 + $0xa30] sm:$0xff]
        %v8531 = vld [vmem:[%s444 + $0xa38] sm:$0xff]
        %v8532 = vld [vmem:[%s444 + $0xa40] sm:$0xff]
        %v8533 = vld [vmem:[%s444 + $0xa48] sm:$0xff]
        %v8534 = vld [vmem:[%s444 + $0xa50] sm:$0xff]
        %v8535 = vld [vmem:[%s444 + $0xa58] sm:$0xff]
        %v8536 = vld [vmem:[%s444 + $0xa60] sm:$0xff]
        %v8537 = vld [vmem:[%s444 + $0xa68] sm:$0xff]
        %v8538 = vld [vmem:[%s444 + $0xa70] sm:$0xff]
        %v8539 = vld [vmem:[%s444 + $0xa78] sm:$0xff]
        %v8540 = vld [vmem:[%s444 + $0xa80] sm:$0xff]
        %v8541 = vld [vmem:[%s444 + $0xa88] sm:$0xff]
        %v8542 = vld [vmem:[%s444 + $0xa90] sm:$0xff]
        %v8543 = vld [vmem:[%s444 + $0xa98] sm:$0xff]
        %v8544 = vld [vmem:[%s444 + $0xaa0] sm:$0xff]
        %v8545 = vld [vmem:[%s444 + $0xaa8] sm:$0xff]
        %v8546 = vld [vmem:[%s444 + $0xab0] sm:$0xff]
        %v8547 = vld [vmem:[%s444 + $0xab8] sm:$0xff]
        %v8548 = vld [vmem:[%s444 + $0xac0] sm:$0xff]
        %v8549 = vld [vmem:[%s444 + $0xac8] sm:$0xff]
        %v8550 = vld [vmem:[%s444 + $0xad0] sm:$0xff]
        %v8551 = vld [vmem:[%s444 + $0xad8] sm:$0xff]
        %v8552 = vld [vmem:[%s444 + $0xae0] sm:$0xff]
        %v8553 = vld [vmem:[%s444 + $0xae8] sm:$0xff]
        %v8554 = vld [vmem:[%s444 + $0xaf0] sm:$0xff]
        %v8555 = vld [vmem:[%s444 + $0xaf8] sm:$0xff]
        %v8556 = vld [vmem:[%s444 + $0xb00] sm:$0xff]
        %v8557 = vld [vmem:[%s444 + $0xb08] sm:$0xff]
        %v8558 = vld [vmem:[%s444 + $0xb10] sm:$0xff]
        %v8559 = vld [vmem:[%s444 + $0xb18] sm:$0xff]
        %v8560 = vld [vmem:[%s444 + $0xb20] sm:$0xff]
        %v8561 = vld [vmem:[%s444 + $0xb28] sm:$0xff]
        %v8562 = vld [vmem:[%s444 + $0xb30] sm:$0xff]
        %v8563 = vld [vmem:[%s444 + $0xb38] sm:$0xff]
        %v8564 = vld [vmem:[%s444 + $0xb40] sm:$0xff]
        %v8565 = vld [vmem:[%s444 + $0xb48] sm:$0xff]
        %v8566 = vld [vmem:[%s444 + $0xb50] sm:$0xff]
        %v8567 = vld [vmem:[%s444 + $0xb58] sm:$0xff]
        %v8568 = vld [vmem:[%s444 + $0xb60] sm:$0xff]
        %v8569 = vld [vmem:[%s444 + $0xb68] sm:$0xff]
        %v8570 = vld [vmem:[%s444 + $0xb70] sm:$0xff]
        %v8571 = vld [vmem:[%s444 + $0xb78] sm:$0xff]
        %v8572 = vld [vmem:[%s444 + $0xb80] sm:$0xff]
        %v8573 = vld [vmem:[%s444 + $0xb88] sm:$0xff]
        %v8574 = vld [vmem:[%s444 + $0xb90] sm:$0xff]
        %v8575 = vld [vmem:[%s444 + $0xb98] sm:$0xff]
        %v8576 = vld [vmem:[%s444 + $0xba0] sm:$0xff]
        %v8577 = vld [vmem:[%s444 + $0xba8] sm:$0xff]
        %v8578 = vld [vmem:[%s444 + $0xbb0] sm:$0xff]
        %v8579 = vld [vmem:[%s444 + $0xbb8] sm:$0xff]
        %v8580 = vld [vmem:[%s444 + $0xbc0] sm:$0xff]
        %v8581 = vld [vmem:[%s444 + $0xbc8] sm:$0xff]
        %v8582 = vld [vmem:[%s444 + $0xbd0] sm:$0xff]
        %v8583 = vld [vmem:[%s444 + $0xbd8] sm:$0xff]
        %v8584 = vld [vmem:[%s444 + $0xbe0] sm:$0xff]
        %v8585 = vld [vmem:[%s444 + $0xbe8] sm:$0xff]
        %v8586 = vld [vmem:[%s444 + $0xbf0] sm:$0xff]
        %v8587 = vld [vmem:[%s444 + $0xbf8] sm:$0xff]
        %v8588 = vld [vmem:[%s444 + $0xc00] sm:$0xff]
        %v8589 = vld [vmem:[%s444 + $0xc08] sm:$0xff]
        %v8590 = vld [vmem:[%s444 + $0xc10] sm:$0xff]
        %v8591 = vld [vmem:[%s444 + $0xc18] sm:$0xff]
        %v8592 = vld [vmem:[%s444 + $0xc20] sm:$0xff]
        %v8593 = vld [vmem:[%s444 + $0xc28] sm:$0xff]
        %v8594 = vld [vmem:[%s444 + $0xc30] sm:$0xff]
        %v8595 = vld [vmem:[%s444 + $0xc38] sm:$0xff]
        %v8596 = vld [vmem:[%s444 + $0xc40] sm:$0xff]
        %v8597 = vld [vmem:[%s444 + $0xc48] sm:$0xff]
        %v8598 = vld [vmem:[%s444 + $0xc50] sm:$0xff]
        %v8599 = vld [vmem:[%s444 + $0xc58] sm:$0xff]
        %v8600 = vld [vmem:[%s444 + $0xc60] sm:$0xff]
        %v8601 = vld [vmem:[%s444 + $0xc68] sm:$0xff]
        %v8602 = vld [vmem:[%s444 + $0xc70] sm:$0xff]
        %v8603 = vld [vmem:[%s444 + $0xc78] sm:$0xff]
        %v8604 = vld [vmem:[%s444 + $0xc80] sm:$0xff]
        %v8605 = vld [vmem:[%s444 + $0xc88] sm:$0xff]
        %v8606 = vld [vmem:[%s444 + $0xc90] sm:$0xff]
        %v8607 = vld [vmem:[%s444 + $0xc98] sm:$0xff]
        %v8608 = vld [vmem:[%s444 + $0xca0] sm:$0xff]
        %v8609 = vld [vmem:[%s444 + $0xca8] sm:$0xff]
        %v8610 = vld [vmem:[%s444 + $0xcb0] sm:$0xff]
        %v8611 = vld [vmem:[%s444 + $0xcb8] sm:$0xff]
        %v8612 = vld [vmem:[%s444 + $0xcc0] sm:$0xff]
        %v8613 = vld [vmem:[%s444 + $0xcc8] sm:$0xff]
        %v8614 = vld [vmem:[%s444 + $0xcd0] sm:$0xff]
        %v8615 = vld [vmem:[%s444 + $0xcd8] sm:$0xff]
        %v8616 = vld [vmem:[%s444 + $0xce0] sm:$0xff]
        %v8617 = vld [vmem:[%s444 + $0xce8] sm:$0xff]
        %v8618 = vld [vmem:[%s444 + $0xcf0] sm:$0xff]
        %v8619 = vld [vmem:[%s444 + $0xcf8] sm:$0xff]
        %v8620 = vld [vmem:[%s444 + $0xd00] sm:$0xff]
        %v8621 = vld [vmem:[%s444 + $0xd08] sm:$0xff]
        %v8622 = vld [vmem:[%s444 + $0xd10] sm:$0xff]
        %v8623 = vld [vmem:[%s444 + $0xd18] sm:$0xff]
        %v8624 = vld [vmem:[%s444 + $0xd20] sm:$0xff]
        %v8625 = vld [vmem:[%s444 + $0xd28] sm:$0xff]
        %v8626 = vld [vmem:[%s444 + $0xd30] sm:$0xff]
        %v8627 = vld [vmem:[%s444 + $0xd38] sm:$0xff]
        %v8628 = vld [vmem:[%s444 + $0xd40] sm:$0xff]
        %v8629 = vld [vmem:[%s444 + $0xd48] sm:$0xff]
        %v8630 = vld [vmem:[%s444 + $0xd50] sm:$0xff]
        %v8631 = vld [vmem:[%s444 + $0xd58] sm:$0xff]
        %v8632 = vld [vmem:[%s444 + $0xd60] sm:$0xff]
        %v8633 = vld [vmem:[%s444 + $0xd68] sm:$0xff]
        %v8634 = vld [vmem:[%s444 + $0xd70] sm:$0xff]
        %v8635 = vld [vmem:[%s444 + $0xd78] sm:$0xff]
        %v8636 = vld [vmem:[%s444 + $0xd80] sm:$0xff]
        %v8637 = vld [vmem:[%s444 + $0xd88] sm:$0xff]
        %v8638 = vld [vmem:[%s444 + $0xd90] sm:$0xff]
        %v8639 = vld [vmem:[%s444 + $0xd98] sm:$0xff]
        %v8640 = vld [vmem:[%s444 + $0xda0] sm:$0xff]
        %v8641 = vld [vmem:[%s444 + $0xda8] sm:$0xff]
        %v8642 = vld [vmem:[%s444 + $0xdb0] sm:$0xff]
        %v8643 = vld [vmem:[%s444 + $0xdb8] sm:$0xff]
        %v8644 = vld [vmem:[%s444 + $0xdc0] sm:$0xff]
        %v8645 = vld [vmem:[%s444 + $0xdc8] sm:$0xff]
        %v8646 = vld [vmem:[%s444 + $0xdd0] sm:$0xff]
        %v8647 = vld [vmem:[%s444 + $0xdd8] sm:$0xff]
        %v8648 = vld [vmem:[%s444 + $0xde0] sm:$0xff]
        %v8649 = vld [vmem:[%s444 + $0xde8] sm:$0xff]
        %v8650 = vld [vmem:[%s444 + $0xdf0] sm:$0xff]
        %v8651 = vld [vmem:[%s444 + $0xdf8] sm:$0xff]
        %v8652 = vld [vmem:[%s444 + $0xe00] sm:$0xff]
        %v8653 = vld [vmem:[%s444 + $0xe08] sm:$0xff]
        %v8654 = vld [vmem:[%s444 + $0xe10] sm:$0xff]
        %v8655 = vld [vmem:[%s444 + $0xe18] sm:$0xff]
        %v8656 = vld [vmem:[%s444 + $0xe20] sm:$0xff]
        %v8657 = vld [vmem:[%s444 + $0xe28] sm:$0xff]
        %v8658 = vld [vmem:[%s444 + $0xe30] sm:$0xff]
        %v8659 = vld [vmem:[%s444 + $0xe38] sm:$0xff]
        %v8660 = vld [vmem:[%s444 + $0xe40] sm:$0xff]
        %v8661 = vld [vmem:[%s444 + $0xe48] sm:$0xff]
        %v8662 = vld [vmem:[%s444 + $0xe50] sm:$0xff]
        %v8663 = vld [vmem:[%s444 + $0xe58] sm:$0xff]
        %v8664 = vld [vmem:[%s444 + $0xe60] sm:$0xff]
        %v8665 = vld [vmem:[%s444 + $0xe68] sm:$0xff]
        %v8666 = vld [vmem:[%s444 + $0xe70] sm:$0xff]
        %v8667 = vld [vmem:[%s444 + $0xe78] sm:$0xff]
        %v8668 = vld [vmem:[%s444 + $0xe80] sm:$0xff]
        %v8669 = vld [vmem:[%s444 + $0xe88] sm:$0xff]
        %v8670 = vld [vmem:[%s444 + $0xe90] sm:$0xff]
        %v8671 = vld [vmem:[%s444 + $0xe98] sm:$0xff]
        %v8672 = vld [vmem:[%s444 + $0xea0] sm:$0xff]
        %v8673 = vld [vmem:[%s444 + $0xea8] sm:$0xff]
        %v8674 = vld [vmem:[%s444 + $0xeb0] sm:$0xff]
        %v8675 = vld [vmem:[%s444 + $0xeb8] sm:$0xff]
        %v8676 = vld [vmem:[%s444 + $0xec0] sm:$0xff]
        %v8677 = vld [vmem:[%s444 + $0xec8] sm:$0xff]
        %v8678 = vld [vmem:[%s444 + $0xed0] sm:$0xff]
        %v8679 = vld [vmem:[%s444 + $0xed8] sm:$0xff]
        %v8680 = vld [vmem:[%s444 + $0xee0] sm:$0xff]
        %v8681 = vld [vmem:[%s444 + $0xee8] sm:$0xff]
        %v8682 = vld [vmem:[%s444 + $0xef0] sm:$0xff]
        %v8683 = vld [vmem:[%s444 + $0xef8] sm:$0xff]
        %v8684 = vld [vmem:[%s444 + $0xf00] sm:$0xff]
        %v8685 = vld [vmem:[%s444 + $0xf08] sm:$0xff]
        %v8686 = vld [vmem:[%s444 + $0xf10] sm:$0xff]
        %v8687 = vld [vmem:[%s444 + $0xf18] sm:$0xff]
        %v8688 = vld [vmem:[%s444 + $0xf20] sm:$0xff]
        %v8689 = vld [vmem:[%s444 + $0xf28] sm:$0xff]
        %v8690 = vld [vmem:[%s444 + $0xf30] sm:$0xff]
        %v8691 = vld [vmem:[%s444 + $0xf38] sm:$0xff]
        %v8692 = vld [vmem:[%s444 + $0xf40] sm:$0xff]
        %v8693 = vld [vmem:[%s444 + $0xf48] sm:$0xff]
        %v8694 = vld [vmem:[%s444 + $0xf50] sm:$0xff]
        %v8695 = vld [vmem:[%s444 + $0xf58] sm:$0xff]
        %v8696 = vld [vmem:[%s444 + $0xf60] sm:$0xff]
        %v8697 = vld [vmem:[%s444 + $0xf68] sm:$0xff]
        %v8698 = vld [vmem:[%s444 + $0xf70] sm:$0xff]
        %v8699 = vld [vmem:[%s444 + $0xf78] sm:$0xff]
        %v8700 = vld [vmem:[%s444 + $0xf80] sm:$0xff]
        %v8701 = vld [vmem:[%s444 + $0xf88] sm:$0xff]
        %v8702 = vld [vmem:[%s444 + $0xf90] sm:$0xff]
        %v8703 = vld [vmem:[%s444 + $0xf98] sm:$0xff]
        %v8704 = vld [vmem:[%s444 + $0xfa0] sm:$0xff]
        %v8705 = vld [vmem:[%s444 + $0xfa8] sm:$0xff]
        %v8706 = vld [vmem:[%s444 + $0xfb0] sm:$0xff]
        %v8707 = vld [vmem:[%s444 + $0xfb8] sm:$0xff]
        %v8708 = vld [vmem:[%s444 + $0xfc0] sm:$0xff]
        %v8709 = vld [vmem:[%s444 + $0xfc8] sm:$0xff]
        %v8710 = vld [vmem:[%s444 + $0xfd0] sm:$0xff]
        %v8711 = vld [vmem:[%s444 + $0xfd8] sm:$0xff]
        %v8712 = vld [vmem:[%s444 + $0xfe0] sm:$0xff]
        %v8713 = vld [vmem:[%s444 + $0xfe8] sm:$0xff]
        %v8714 = vld [vmem:[%s444 + $0xff0] sm:$0xff]
        %v8715 = vld [vmem:[%s444 + $0xff8] sm:$0xff]
        %v9228 = vunpack.c.l.b16 %v8204
        %v9229 = vunpack.c.h.b16 %v8204
        %v9230 = vunpack.c.l.b16 %v8205
        %v9231 = vunpack.c.h.b16 %v8205
        %v9232 = vunpack.c.l.b16 %v8206
        %v9233 = vunpack.c.h.b16 %v8206
        %v9234 = vunpack.c.l.b16 %v8207
        %v9235 = vunpack.c.h.b16 %v8207
        %v9236 = vunpack.c.l.b16 %v8208
        %v9237 = vunpack.c.h.b16 %v8208
        %v9238 = vunpack.c.l.b16 %v8209
        %v9239 = vunpack.c.h.b16 %v8209
        %v9240 = vunpack.c.l.b16 %v8210
        %v9241 = vunpack.c.h.b16 %v8210
        %v9242 = vunpack.c.l.b16 %v8211
        %v9243 = vunpack.c.h.b16 %v8211
        %v9244 = vunpack.c.l.b16 %v8212
        %v9245 = vunpack.c.h.b16 %v8212
        %v9246 = vunpack.c.l.b16 %v8213
        %v9247 = vunpack.c.h.b16 %v8213
        %v9248 = vunpack.c.l.b16 %v8214
        %v9249 = vunpack.c.h.b16 %v8214
        %v9250 = vunpack.c.l.b16 %v8215
        %v9251 = vunpack.c.h.b16 %v8215
        %v9252 = vunpack.c.l.b16 %v8216
        %v9253 = vunpack.c.h.b16 %v8216
        %v9254 = vunpack.c.l.b16 %v8217
        %v9255 = vunpack.c.h.b16 %v8217
        %v9256 = vunpack.c.l.b16 %v8218
        %v9257 = vunpack.c.h.b16 %v8218
        %v9258 = vunpack.c.l.b16 %v8219
        %v9259 = vunpack.c.h.b16 %v8219
        %v9260 = vunpack.c.l.b16 %v8220
        %v9261 = vunpack.c.h.b16 %v8220
        %v9262 = vunpack.c.l.b16 %v8221
        %v9263 = vunpack.c.h.b16 %v8221
        %v9264 = vunpack.c.l.b16 %v8222
        %v9265 = vunpack.c.h.b16 %v8222
        %v9266 = vunpack.c.l.b16 %v8223
        %v9267 = vunpack.c.h.b16 %v8223
        %v9268 = vunpack.c.l.b16 %v8224
        %v9269 = vunpack.c.h.b16 %v8224
        %v9270 = vunpack.c.l.b16 %v8225
        %v9271 = vunpack.c.h.b16 %v8225
        %v9272 = vunpack.c.l.b16 %v8226
        %v9273 = vunpack.c.h.b16 %v8226
        %v9274 = vunpack.c.l.b16 %v8227
        %v9275 = vunpack.c.h.b16 %v8227
        %v9276 = vunpack.c.l.b16 %v8228
        %v9277 = vunpack.c.h.b16 %v8228
        %v9278 = vunpack.c.l.b16 %v8229
        %v9279 = vunpack.c.h.b16 %v8229
        %v9280 = vunpack.c.l.b16 %v8230
        %v9281 = vunpack.c.h.b16 %v8230
        %v9282 = vunpack.c.l.b16 %v8231
        %v9283 = vunpack.c.h.b16 %v8231
        %v9284 = vunpack.c.l.b16 %v8232
        %v9285 = vunpack.c.h.b16 %v8232
        %v9286 = vunpack.c.l.b16 %v8233
        %v9287 = vunpack.c.h.b16 %v8233
        %v9288 = vunpack.c.l.b16 %v8234
        %v9289 = vunpack.c.h.b16 %v8234
        %v9290 = vunpack.c.l.b16 %v8235
        %v9291 = vunpack.c.h.b16 %v8235
        %v9292 = vunpack.c.l.b16 %v8236
        %v9293 = vunpack.c.h.b16 %v8236
        %v9294 = vunpack.c.l.b16 %v8237
        %v9295 = vunpack.c.h.b16 %v8237
        %v9296 = vunpack.c.l.b16 %v8238
        %v9297 = vunpack.c.h.b16 %v8238
        %v9298 = vunpack.c.l.b16 %v8239
        %v9299 = vunpack.c.h.b16 %v8239
        %v9300 = vunpack.c.l.b16 %v8240
        %v9301 = vunpack.c.h.b16 %v8240
        %v9302 = vunpack.c.l.b16 %v8241
        %v9303 = vunpack.c.h.b16 %v8241
        %v9304 = vunpack.c.l.b16 %v8242
        %v9305 = vunpack.c.h.b16 %v8242
        %v9306 = vunpack.c.l.b16 %v8243
        %v9307 = vunpack.c.h.b16 %v8243
        %v9308 = vunpack.c.l.b16 %v8244
        %v9309 = vunpack.c.h.b16 %v8244
        %v9310 = vunpack.c.l.b16 %v8245
        %v9311 = vunpack.c.h.b16 %v8245
        %v9312 = vunpack.c.l.b16 %v8246
        %v9313 = vunpack.c.h.b16 %v8246
        %v9314 = vunpack.c.l.b16 %v8247
        %v9315 = vunpack.c.h.b16 %v8247
        %v9316 = vunpack.c.l.b16 %v8248
        %v9317 = vunpack.c.h.b16 %v8248
        %v9318 = vunpack.c.l.b16 %v8249
        %v9319 = vunpack.c.h.b16 %v8249
        %v9320 = vunpack.c.l.b16 %v8250
        %v9321 = vunpack.c.h.b16 %v8250
        %v9322 = vunpack.c.l.b16 %v8251
        %v9323 = vunpack.c.h.b16 %v8251
        %v9324 = vunpack.c.l.b16 %v8252
        %v9325 = vunpack.c.h.b16 %v8252
        %v9326 = vunpack.c.l.b16 %v8253
        %v9327 = vunpack.c.h.b16 %v8253
        %v9328 = vunpack.c.l.b16 %v8254
        %v9329 = vunpack.c.h.b16 %v8254
        %v9330 = vunpack.c.l.b16 %v8255
        %v9331 = vunpack.c.h.b16 %v8255
        %v9332 = vunpack.c.l.b16 %v8256
        %v9333 = vunpack.c.h.b16 %v8256
        %v9334 = vunpack.c.l.b16 %v8257
        %v9335 = vunpack.c.h.b16 %v8257
        %v9336 = vunpack.c.l.b16 %v8258
        %v9337 = vunpack.c.h.b16 %v8258
        %v9338 = vunpack.c.l.b16 %v8259
        %v9339 = vunpack.c.h.b16 %v8259
        %v9340 = vunpack.c.l.b16 %v8260
        %v9341 = vunpack.c.h.b16 %v8260
        %v9342 = vunpack.c.l.b16 %v8261
        %v9343 = vunpack.c.h.b16 %v8261
        %v9344 = vunpack.c.l.b16 %v8262
        %v9345 = vunpack.c.h.b16 %v8262
        %v9346 = vunpack.c.l.b16 %v8263
        %v9347 = vunpack.c.h.b16 %v8263
        %v9348 = vunpack.c.l.b16 %v8264
        %v9349 = vunpack.c.h.b16 %v8264
        %v9350 = vunpack.c.l.b16 %v8265
        %v9351 = vunpack.c.h.b16 %v8265
        %v9352 = vunpack.c.l.b16 %v8266
        %v9353 = vunpack.c.h.b16 %v8266
        %v9354 = vunpack.c.l.b16 %v8267
        %v9355 = vunpack.c.h.b16 %v8267
        %v9356 = vunpack.c.l.b16 %v8268
        %v9357 = vunpack.c.h.b16 %v8268
        %v9358 = vunpack.c.l.b16 %v8269
        %v9359 = vunpack.c.h.b16 %v8269
        %v9360 = vunpack.c.l.b16 %v8270
        %v9361 = vunpack.c.h.b16 %v8270
        %v9362 = vunpack.c.l.b16 %v8271
        %v9363 = vunpack.c.h.b16 %v8271
        %v9364 = vunpack.c.l.b16 %v8272
        %v9365 = vunpack.c.h.b16 %v8272
        %v9366 = vunpack.c.l.b16 %v8273
        %v9367 = vunpack.c.h.b16 %v8273
        %v9368 = vunpack.c.l.b16 %v8274
        %v9369 = vunpack.c.h.b16 %v8274
        %v9370 = vunpack.c.l.b16 %v8275
        %v9371 = vunpack.c.h.b16 %v8275
        %v9372 = vunpack.c.l.b16 %v8276
        %v9373 = vunpack.c.h.b16 %v8276
        %v9374 = vunpack.c.l.b16 %v8277
        %v9375 = vunpack.c.h.b16 %v8277
        %v9376 = vunpack.c.l.b16 %v8278
        %v9377 = vunpack.c.h.b16 %v8278
        %v9378 = vunpack.c.l.b16 %v8279
        %v9379 = vunpack.c.h.b16 %v8279
        %v9380 = vunpack.c.l.b16 %v8280
        %v9381 = vunpack.c.h.b16 %v8280
        %v9382 = vunpack.c.l.b16 %v8281
        %v9383 = vunpack.c.h.b16 %v8281
        %v9384 = vunpack.c.l.b16 %v8282
        %v9385 = vunpack.c.h.b16 %v8282
        %v9386 = vunpack.c.l.b16 %v8283
        %v9387 = vunpack.c.h.b16 %v8283
        %v9388 = vunpack.c.l.b16 %v8284
        %v9389 = vunpack.c.h.b16 %v8284
        %v9390 = vunpack.c.l.b16 %v8285
        %v9391 = vunpack.c.h.b16 %v8285
        %v9392 = vunpack.c.l.b16 %v8286
        %v9393 = vunpack.c.h.b16 %v8286
        %v9394 = vunpack.c.l.b16 %v8287
        %v9395 = vunpack.c.h.b16 %v8287
        %v9396 = vunpack.c.l.b16 %v8288
        %v9397 = vunpack.c.h.b16 %v8288
        %v9398 = vunpack.c.l.b16 %v8289
        %v9399 = vunpack.c.h.b16 %v8289
        %v9400 = vunpack.c.l.b16 %v8290
        %v9401 = vunpack.c.h.b16 %v8290
        %v9402 = vunpack.c.l.b16 %v8291
        %v9403 = vunpack.c.h.b16 %v8291
        %v9404 = vunpack.c.l.b16 %v8292
        %v9405 = vunpack.c.h.b16 %v8292
        %v9406 = vunpack.c.l.b16 %v8293
        %v9407 = vunpack.c.h.b16 %v8293
        %v9408 = vunpack.c.l.b16 %v8294
        %v9409 = vunpack.c.h.b16 %v8294
        %v9410 = vunpack.c.l.b16 %v8295
        %v9411 = vunpack.c.h.b16 %v8295
        %v9412 = vunpack.c.l.b16 %v8296
        %v9413 = vunpack.c.h.b16 %v8296
        %v9414 = vunpack.c.l.b16 %v8297
        %v9415 = vunpack.c.h.b16 %v8297
        %v9416 = vunpack.c.l.b16 %v8298
        %v9417 = vunpack.c.h.b16 %v8298
        %v9418 = vunpack.c.l.b16 %v8299
        %v9419 = vunpack.c.h.b16 %v8299
        %v9420 = vunpack.c.l.b16 %v8300
        %v9421 = vunpack.c.h.b16 %v8300
        %v9422 = vunpack.c.l.b16 %v8301
        %v9423 = vunpack.c.h.b16 %v8301
        %v9424 = vunpack.c.l.b16 %v8302
        %v9425 = vunpack.c.h.b16 %v8302
        %v9426 = vunpack.c.l.b16 %v8303
        %v9427 = vunpack.c.h.b16 %v8303
        %v9428 = vunpack.c.l.b16 %v8304
        %v9429 = vunpack.c.h.b16 %v8304
        %v9430 = vunpack.c.l.b16 %v8305
        %v9431 = vunpack.c.h.b16 %v8305
        %v9432 = vunpack.c.l.b16 %v8306
        %v9433 = vunpack.c.h.b16 %v8306
        %v9434 = vunpack.c.l.b16 %v8307
        %v9435 = vunpack.c.h.b16 %v8307
        %v9436 = vunpack.c.l.b16 %v8308
        %v9437 = vunpack.c.h.b16 %v8308
        %v9438 = vunpack.c.l.b16 %v8309
        %v9439 = vunpack.c.h.b16 %v8309
        %v9440 = vunpack.c.l.b16 %v8310
        %v9441 = vunpack.c.h.b16 %v8310
        %v9442 = vunpack.c.l.b16 %v8311
        %v9443 = vunpack.c.h.b16 %v8311
        %v9444 = vunpack.c.l.b16 %v8312
        %v9445 = vunpack.c.h.b16 %v8312
        %v9446 = vunpack.c.l.b16 %v8313
        %v9447 = vunpack.c.h.b16 %v8313
        %v9448 = vunpack.c.l.b16 %v8314
        %v9449 = vunpack.c.h.b16 %v8314
        %v9450 = vunpack.c.l.b16 %v8315
        %v9451 = vunpack.c.h.b16 %v8315
        %v9452 = vunpack.c.l.b16 %v8316
        %v9453 = vunpack.c.h.b16 %v8316
        %v9454 = vunpack.c.l.b16 %v8317
        %v9455 = vunpack.c.h.b16 %v8317
        %v9456 = vunpack.c.l.b16 %v8318
        %v9457 = vunpack.c.h.b16 %v8318
        %v9458 = vunpack.c.l.b16 %v8319
        %v9459 = vunpack.c.h.b16 %v8319
        %v9460 = vunpack.c.l.b16 %v8320
        %v9461 = vunpack.c.h.b16 %v8320
        %v9462 = vunpack.c.l.b16 %v8321
        %v9463 = vunpack.c.h.b16 %v8321
        %v9464 = vunpack.c.l.b16 %v8322
        %v9465 = vunpack.c.h.b16 %v8322
        %v9466 = vunpack.c.l.b16 %v8323
        %v9467 = vunpack.c.h.b16 %v8323
        %v9468 = vunpack.c.l.b16 %v8324
        %v9469 = vunpack.c.h.b16 %v8324
        %v9470 = vunpack.c.l.b16 %v8325
        %v9471 = vunpack.c.h.b16 %v8325
        %v9472 = vunpack.c.l.b16 %v8326
        %v9473 = vunpack.c.h.b16 %v8326
        %v9474 = vunpack.c.l.b16 %v8327
        %v9475 = vunpack.c.h.b16 %v8327
        %v9476 = vunpack.c.l.b16 %v8328
        %v9477 = vunpack.c.h.b16 %v8328
        %v9478 = vunpack.c.l.b16 %v8329
        %v9479 = vunpack.c.h.b16 %v8329
        %v9480 = vunpack.c.l.b16 %v8330
        %v9481 = vunpack.c.h.b16 %v8330
        %v9482 = vunpack.c.l.b16 %v8331
        %v9483 = vunpack.c.h.b16 %v8331
        %v9484 = vunpack.c.l.b16 %v8332
        %v9485 = vunpack.c.h.b16 %v8332
        %v9486 = vunpack.c.l.b16 %v8333
        %v9487 = vunpack.c.h.b16 %v8333
        %v9488 = vunpack.c.l.b16 %v8334
        %v9489 = vunpack.c.h.b16 %v8334
        %v9490 = vunpack.c.l.b16 %v8335
        %v9491 = vunpack.c.h.b16 %v8335
        %v9492 = vunpack.c.l.b16 %v8336
        %v9493 = vunpack.c.h.b16 %v8336
        %v9494 = vunpack.c.l.b16 %v8337
        %v9495 = vunpack.c.h.b16 %v8337
        %v9496 = vunpack.c.l.b16 %v8338
        %v9497 = vunpack.c.h.b16 %v8338
        %v9498 = vunpack.c.l.b16 %v8339
        %v9499 = vunpack.c.h.b16 %v8339
        %v9500 = vunpack.c.l.b16 %v8340
        %v9501 = vunpack.c.h.b16 %v8340
        %v9502 = vunpack.c.l.b16 %v8341
        %v9503 = vunpack.c.h.b16 %v8341
        %v9504 = vunpack.c.l.b16 %v8342
        %v9505 = vunpack.c.h.b16 %v8342
        %v9506 = vunpack.c.l.b16 %v8343
        %v9507 = vunpack.c.h.b16 %v8343
        %v9508 = vunpack.c.l.b16 %v8344
        %v9509 = vunpack.c.h.b16 %v8344
        %v9510 = vunpack.c.l.b16 %v8345
        %v9511 = vunpack.c.h.b16 %v8345
        %v9512 = vunpack.c.l.b16 %v8346
        %v9513 = vunpack.c.h.b16 %v8346
        %v9514 = vunpack.c.l.b16 %v8347
        %v9515 = vunpack.c.h.b16 %v8347
        %v9516 = vunpack.c.l.b16 %v8348
        %v9517 = vunpack.c.h.b16 %v8348
        %v9518 = vunpack.c.l.b16 %v8349
        %v9519 = vunpack.c.h.b16 %v8349
        %v9520 = vunpack.c.l.b16 %v8350
        %v9521 = vunpack.c.h.b16 %v8350
        %v9522 = vunpack.c.l.b16 %v8351
        %v9523 = vunpack.c.h.b16 %v8351
        %v9524 = vunpack.c.l.b16 %v8352
        %v9525 = vunpack.c.h.b16 %v8352
        %v9526 = vunpack.c.l.b16 %v8353
        %v9527 = vunpack.c.h.b16 %v8353
        %v9528 = vunpack.c.l.b16 %v8354
        %v9529 = vunpack.c.h.b16 %v8354
        %v9530 = vunpack.c.l.b16 %v8355
        %v9531 = vunpack.c.h.b16 %v8355
        %v9532 = vunpack.c.l.b16 %v8356
        %v9533 = vunpack.c.h.b16 %v8356
        %v9534 = vunpack.c.l.b16 %v8357
        %v9535 = vunpack.c.h.b16 %v8357
        %v9536 = vunpack.c.l.b16 %v8358
        %v9537 = vunpack.c.h.b16 %v8358
        %v9538 = vunpack.c.l.b16 %v8359
        %v9539 = vunpack.c.h.b16 %v8359
        %v9540 = vunpack.c.l.b16 %v8360
        %v9541 = vunpack.c.h.b16 %v8360
        %v9542 = vunpack.c.l.b16 %v8361
        %v9543 = vunpack.c.h.b16 %v8361
        %v9544 = vunpack.c.l.b16 %v8362
        %v9545 = vunpack.c.h.b16 %v8362
        %v9546 = vunpack.c.l.b16 %v8363
        %v9547 = vunpack.c.h.b16 %v8363
        %v9548 = vunpack.c.l.b16 %v8364
        %v9549 = vunpack.c.h.b16 %v8364
        %v9550 = vunpack.c.l.b16 %v8365
        %v9551 = vunpack.c.h.b16 %v8365
        %v9552 = vunpack.c.l.b16 %v8366
        %v9553 = vunpack.c.h.b16 %v8366
        %v9554 = vunpack.c.l.b16 %v8367
        %v9555 = vunpack.c.h.b16 %v8367
        %v9556 = vunpack.c.l.b16 %v8368
        %v9557 = vunpack.c.h.b16 %v8368
        %v9558 = vunpack.c.l.b16 %v8369
        %v9559 = vunpack.c.h.b16 %v8369
        %v9560 = vunpack.c.l.b16 %v8370
        %v9561 = vunpack.c.h.b16 %v8370
        %v9562 = vunpack.c.l.b16 %v8371
        %v9563 = vunpack.c.h.b16 %v8371
        %v9564 = vunpack.c.l.b16 %v8372
        %v9565 = vunpack.c.h.b16 %v8372
        %v9566 = vunpack.c.l.b16 %v8373
        %v9567 = vunpack.c.h.b16 %v8373
        %v9568 = vunpack.c.l.b16 %v8374
        %v9569 = vunpack.c.h.b16 %v8374
        %v9570 = vunpack.c.l.b16 %v8375
        %v9571 = vunpack.c.h.b16 %v8375
        %v9572 = vunpack.c.l.b16 %v8376
        %v9573 = vunpack.c.h.b16 %v8376
        %v9574 = vunpack.c.l.b16 %v8377
        %v9575 = vunpack.c.h.b16 %v8377
        %v9576 = vunpack.c.l.b16 %v8378
        %v9577 = vunpack.c.h.b16 %v8378
        %v9578 = vunpack.c.l.b16 %v8379
        %v9579 = vunpack.c.h.b16 %v8379
        %v9580 = vunpack.c.l.b16 %v8380
        %v9581 = vunpack.c.h.b16 %v8380
        %v9582 = vunpack.c.l.b16 %v8381
        %v9583 = vunpack.c.h.b16 %v8381
        %v9584 = vunpack.c.l.b16 %v8382
        %v9585 = vunpack.c.h.b16 %v8382
        %v9586 = vunpack.c.l.b16 %v8383
        %v9587 = vunpack.c.h.b16 %v8383
        %v9588 = vunpack.c.l.b16 %v8384
        %v9589 = vunpack.c.h.b16 %v8384
        %v9590 = vunpack.c.l.b16 %v8385
        %v9591 = vunpack.c.h.b16 %v8385
        %v9592 = vunpack.c.l.b16 %v8386
        %v9593 = vunpack.c.h.b16 %v8386
        %v9594 = vunpack.c.l.b16 %v8387
        %v9595 = vunpack.c.h.b16 %v8387
        %v9596 = vunpack.c.l.b16 %v8388
        %v9597 = vunpack.c.h.b16 %v8388
        %v9598 = vunpack.c.l.b16 %v8389
        %v9599 = vunpack.c.h.b16 %v8389
        %v9600 = vunpack.c.l.b16 %v8390
        %v9601 = vunpack.c.h.b16 %v8390
        %v9602 = vunpack.c.l.b16 %v8391
        %v9603 = vunpack.c.h.b16 %v8391
        %v9604 = vunpack.c.l.b16 %v8392
        %v9605 = vunpack.c.h.b16 %v8392
        %v9606 = vunpack.c.l.b16 %v8393
        %v9607 = vunpack.c.h.b16 %v8393
        %v9608 = vunpack.c.l.b16 %v8394
        %v9609 = vunpack.c.h.b16 %v8394
        %v9610 = vunpack.c.l.b16 %v8395
        %v9611 = vunpack.c.h.b16 %v8395
        %v9612 = vunpack.c.l.b16 %v8396
        %v9613 = vunpack.c.h.b16 %v8396
        %v9614 = vunpack.c.l.b16 %v8397
        %v9615 = vunpack.c.h.b16 %v8397
        %v9616 = vunpack.c.l.b16 %v8398
        %v9617 = vunpack.c.h.b16 %v8398
        %v9618 = vunpack.c.l.b16 %v8399
        %v9619 = vunpack.c.h.b16 %v8399
        %v9620 = vunpack.c.l.b16 %v8400
        %v9621 = vunpack.c.h.b16 %v8400
        %v9622 = vunpack.c.l.b16 %v8401
        %v9623 = vunpack.c.h.b16 %v8401
        %v9624 = vunpack.c.l.b16 %v8402
        %v9625 = vunpack.c.h.b16 %v8402
        %v9626 = vunpack.c.l.b16 %v8403
        %v9627 = vunpack.c.h.b16 %v8403
        %v9628 = vunpack.c.l.b16 %v8404
        %v9629 = vunpack.c.h.b16 %v8404
        %v9630 = vunpack.c.l.b16 %v8405
        %v9631 = vunpack.c.h.b16 %v8405
        %v9632 = vunpack.c.l.b16 %v8406
        %v9633 = vunpack.c.h.b16 %v8406
        %v9634 = vunpack.c.l.b16 %v8407
        %v9635 = vunpack.c.h.b16 %v8407
        %v9636 = vunpack.c.l.b16 %v8408
        %v9637 = vunpack.c.h.b16 %v8408
        %v9638 = vunpack.c.l.b16 %v8409
        %v9639 = vunpack.c.h.b16 %v8409
        %v9640 = vunpack.c.l.b16 %v8410
        %v9641 = vunpack.c.h.b16 %v8410
        %v9642 = vunpack.c.l.b16 %v8411
        %v9643 = vunpack.c.h.b16 %v8411
        %v9644 = vunpack.c.l.b16 %v8412
        %v9645 = vunpack.c.h.b16 %v8412
        %v9646 = vunpack.c.l.b16 %v8413
        %v9647 = vunpack.c.h.b16 %v8413
        %v9648 = vunpack.c.l.b16 %v8414
        %v9649 = vunpack.c.h.b16 %v8414
        %v9650 = vunpack.c.l.b16 %v8415
        %v9651 = vunpack.c.h.b16 %v8415
        %v9652 = vunpack.c.l.b16 %v8416
        %v9653 = vunpack.c.h.b16 %v8416
        %v9654 = vunpack.c.l.b16 %v8417
        %v9655 = vunpack.c.h.b16 %v8417
        %v9656 = vunpack.c.l.b16 %v8418
        %v9657 = vunpack.c.h.b16 %v8418
        %v9658 = vunpack.c.l.b16 %v8419
        %v9659 = vunpack.c.h.b16 %v8419
        %v9660 = vunpack.c.l.b16 %v8420
        %v9661 = vunpack.c.h.b16 %v8420
        %v9662 = vunpack.c.l.b16 %v8421
        %v9663 = vunpack.c.h.b16 %v8421
        %v9664 = vunpack.c.l.b16 %v8422
        %v9665 = vunpack.c.h.b16 %v8422
        %v9666 = vunpack.c.l.b16 %v8423
        %v9667 = vunpack.c.h.b16 %v8423
        %v9668 = vunpack.c.l.b16 %v8424
        %v9669 = vunpack.c.h.b16 %v8424
        %v9670 = vunpack.c.l.b16 %v8425
        %v9671 = vunpack.c.h.b16 %v8425
        %v9672 = vunpack.c.l.b16 %v8426
        %v9673 = vunpack.c.h.b16 %v8426
        %v9674 = vunpack.c.l.b16 %v8427
        %v9675 = vunpack.c.h.b16 %v8427
        %v9676 = vunpack.c.l.b16 %v8428
        %v9677 = vunpack.c.h.b16 %v8428
        %v9678 = vunpack.c.l.b16 %v8429
        %v9679 = vunpack.c.h.b16 %v8429
        %v9680 = vunpack.c.l.b16 %v8430
        %v9681 = vunpack.c.h.b16 %v8430
        %v9682 = vunpack.c.l.b16 %v8431
        %v9683 = vunpack.c.h.b16 %v8431
        %v9684 = vunpack.c.l.b16 %v8432
        %v9685 = vunpack.c.h.b16 %v8432
        %v9686 = vunpack.c.l.b16 %v8433
        %v9687 = vunpack.c.h.b16 %v8433
        %v9688 = vunpack.c.l.b16 %v8434
        %v9689 = vunpack.c.h.b16 %v8434
        %v9690 = vunpack.c.l.b16 %v8435
        %v9691 = vunpack.c.h.b16 %v8435
        %v9692 = vunpack.c.l.b16 %v8436
        %v9693 = vunpack.c.h.b16 %v8436
        %v9694 = vunpack.c.l.b16 %v8437
        %v9695 = vunpack.c.h.b16 %v8437
        %v9696 = vunpack.c.l.b16 %v8438
        %v9697 = vunpack.c.h.b16 %v8438
        %v9698 = vunpack.c.l.b16 %v8439
        %v9699 = vunpack.c.h.b16 %v8439
        %v9700 = vunpack.c.l.b16 %v8440
        %v9701 = vunpack.c.h.b16 %v8440
        %v9702 = vunpack.c.l.b16 %v8441
        %v9703 = vunpack.c.h.b16 %v8441
        %v9704 = vunpack.c.l.b16 %v8442
        %v9705 = vunpack.c.h.b16 %v8442
        %v9706 = vunpack.c.l.b16 %v8443
        %v9707 = vunpack.c.h.b16 %v8443
        %v9708 = vunpack.c.l.b16 %v8444
        %v9709 = vunpack.c.h.b16 %v8444
        %v9710 = vunpack.c.l.b16 %v8445
        %v9711 = vunpack.c.h.b16 %v8445
        %v9712 = vunpack.c.l.b16 %v8446
        %v9713 = vunpack.c.h.b16 %v8446
        %v9714 = vunpack.c.l.b16 %v8447
        %v9715 = vunpack.c.h.b16 %v8447
        %v9716 = vunpack.c.l.b16 %v8448
        %v9717 = vunpack.c.h.b16 %v8448
        %v9718 = vunpack.c.l.b16 %v8449
        %v9719 = vunpack.c.h.b16 %v8449
        %v9720 = vunpack.c.l.b16 %v8450
        %v9721 = vunpack.c.h.b16 %v8450
        %v9722 = vunpack.c.l.b16 %v8451
        %v9723 = vunpack.c.h.b16 %v8451
        %v9724 = vunpack.c.l.b16 %v8452
        %v9725 = vunpack.c.h.b16 %v8452
        %v9726 = vunpack.c.l.b16 %v8453
        %v9727 = vunpack.c.h.b16 %v8453
        %v9728 = vunpack.c.l.b16 %v8454
        %v9729 = vunpack.c.h.b16 %v8454
        %v9730 = vunpack.c.l.b16 %v8455
        %v9731 = vunpack.c.h.b16 %v8455
        %v9732 = vunpack.c.l.b16 %v8456
        %v9733 = vunpack.c.h.b16 %v8456
        %v9734 = vunpack.c.l.b16 %v8457
        %v9735 = vunpack.c.h.b16 %v8457
        %v9736 = vunpack.c.l.b16 %v8458
        %v9737 = vunpack.c.h.b16 %v8458
        %v9738 = vunpack.c.l.b16 %v8459
        %v9739 = vunpack.c.h.b16 %v8459
        %v9740 = vunpack.c.l.b16 %v8460
        %v9741 = vunpack.c.h.b16 %v8460
        %v9742 = vunpack.c.l.b16 %v8461
        %v9743 = vunpack.c.h.b16 %v8461
        %v9744 = vunpack.c.l.b16 %v8462
        %v9745 = vunpack.c.h.b16 %v8462
        %v9746 = vunpack.c.l.b16 %v8463
        %v9747 = vunpack.c.h.b16 %v8463
        %v9748 = vunpack.c.l.b16 %v8464
        %v9749 = vunpack.c.h.b16 %v8464
        %v9750 = vunpack.c.l.b16 %v8465
        %v9751 = vunpack.c.h.b16 %v8465
        %v9752 = vunpack.c.l.b16 %v8466
        %v9753 = vunpack.c.h.b16 %v8466
        %v9754 = vunpack.c.l.b16 %v8467
        %v9755 = vunpack.c.h.b16 %v8467
        %v9756 = vunpack.c.l.b16 %v8468
        %v9757 = vunpack.c.h.b16 %v8468
        %v9758 = vunpack.c.l.b16 %v8469
        %v9759 = vunpack.c.h.b16 %v8469
        %v9760 = vunpack.c.l.b16 %v8470
        %v9761 = vunpack.c.h.b16 %v8470
        %v9762 = vunpack.c.l.b16 %v8471
        %v9763 = vunpack.c.h.b16 %v8471
        %v9764 = vunpack.c.l.b16 %v8472
        %v9765 = vunpack.c.h.b16 %v8472
        %v9766 = vunpack.c.l.b16 %v8473
        %v9767 = vunpack.c.h.b16 %v8473
        %v9768 = vunpack.c.l.b16 %v8474
        %v9769 = vunpack.c.h.b16 %v8474
        %v9770 = vunpack.c.l.b16 %v8475
        %v9771 = vunpack.c.h.b16 %v8475
        %v9772 = vunpack.c.l.b16 %v8476
        %v9773 = vunpack.c.h.b16 %v8476
        %v9774 = vunpack.c.l.b16 %v8477
        %v9775 = vunpack.c.h.b16 %v8477
        %v9776 = vunpack.c.l.b16 %v8478
        %v9777 = vunpack.c.h.b16 %v8478
        %v9778 = vunpack.c.l.b16 %v8479
        %v9779 = vunpack.c.h.b16 %v8479
        %v9780 = vunpack.c.l.b16 %v8480
        %v9781 = vunpack.c.h.b16 %v8480
        %v9782 = vunpack.c.l.b16 %v8481
        %v9783 = vunpack.c.h.b16 %v8481
        %v9784 = vunpack.c.l.b16 %v8482
        %v9785 = vunpack.c.h.b16 %v8482
        %v9786 = vunpack.c.l.b16 %v8483
        %v9787 = vunpack.c.h.b16 %v8483
        %v9788 = vunpack.c.l.b16 %v8484
        %v9789 = vunpack.c.h.b16 %v8484
        %v9790 = vunpack.c.l.b16 %v8485
        %v9791 = vunpack.c.h.b16 %v8485
        %v9792 = vunpack.c.l.b16 %v8486
        %v9793 = vunpack.c.h.b16 %v8486
        %v9794 = vunpack.c.l.b16 %v8487
        %v9795 = vunpack.c.h.b16 %v8487
        %v9796 = vunpack.c.l.b16 %v8488
        %v9797 = vunpack.c.h.b16 %v8488
        %v9798 = vunpack.c.l.b16 %v8489
        %v9799 = vunpack.c.h.b16 %v8489
        %v9800 = vunpack.c.l.b16 %v8490
        %v9801 = vunpack.c.h.b16 %v8490
        %v9802 = vunpack.c.l.b16 %v8491
        %v9803 = vunpack.c.h.b16 %v8491
        %v9804 = vunpack.c.l.b16 %v8492
        %v9805 = vunpack.c.h.b16 %v8492
        %v9806 = vunpack.c.l.b16 %v8493
        %v9807 = vunpack.c.h.b16 %v8493
        %v9808 = vunpack.c.l.b16 %v8494
        %v9809 = vunpack.c.h.b16 %v8494
        %v9810 = vunpack.c.l.b16 %v8495
        %v9811 = vunpack.c.h.b16 %v8495
        %v9812 = vunpack.c.l.b16 %v8496
        %v9813 = vunpack.c.h.b16 %v8496
        %v9814 = vunpack.c.l.b16 %v8497
        %v9815 = vunpack.c.h.b16 %v8497
        %v9816 = vunpack.c.l.b16 %v8498
        %v9817 = vunpack.c.h.b16 %v8498
        %v9818 = vunpack.c.l.b16 %v8499
        %v9819 = vunpack.c.h.b16 %v8499
        %v9820 = vunpack.c.l.b16 %v8500
        %v9821 = vunpack.c.h.b16 %v8500
        %v9822 = vunpack.c.l.b16 %v8501
        %v9823 = vunpack.c.h.b16 %v8501
        %v9824 = vunpack.c.l.b16 %v8502
        %v9825 = vunpack.c.h.b16 %v8502
        %v9826 = vunpack.c.l.b16 %v8503
        %v9827 = vunpack.c.h.b16 %v8503
        %v9828 = vunpack.c.l.b16 %v8504
        %v9829 = vunpack.c.h.b16 %v8504
        %v9830 = vunpack.c.l.b16 %v8505
        %v9831 = vunpack.c.h.b16 %v8505
        %v9832 = vunpack.c.l.b16 %v8506
        %v9833 = vunpack.c.h.b16 %v8506
        %v9834 = vunpack.c.l.b16 %v8507
        %v9835 = vunpack.c.h.b16 %v8507
        %v9836 = vunpack.c.l.b16 %v8508
        %v9837 = vunpack.c.h.b16 %v8508
        %v9838 = vunpack.c.l.b16 %v8509
        %v9839 = vunpack.c.h.b16 %v8509
        %v9840 = vunpack.c.l.b16 %v8510
        %v9841 = vunpack.c.h.b16 %v8510
        %v9842 = vunpack.c.l.b16 %v8511
        %v9843 = vunpack.c.h.b16 %v8511
        %v9844 = vunpack.c.l.b16 %v8512
        %v9845 = vunpack.c.h.b16 %v8512
        %v9846 = vunpack.c.l.b16 %v8513
        %v9847 = vunpack.c.h.b16 %v8513
        %v9848 = vunpack.c.l.b16 %v8514
        %v9849 = vunpack.c.h.b16 %v8514
        %v9850 = vunpack.c.l.b16 %v8515
        %v9851 = vunpack.c.h.b16 %v8515
        %v9852 = vunpack.c.l.b16 %v8516
        %v9853 = vunpack.c.h.b16 %v8516
        %v9854 = vunpack.c.l.b16 %v8517
        %v9855 = vunpack.c.h.b16 %v8517
        %v9856 = vunpack.c.l.b16 %v8518
        %v9857 = vunpack.c.h.b16 %v8518
        %v9858 = vunpack.c.l.b16 %v8519
        %v9859 = vunpack.c.h.b16 %v8519
        %v9860 = vunpack.c.l.b16 %v8520
        %v9861 = vunpack.c.h.b16 %v8520
        %v9862 = vunpack.c.l.b16 %v8521
        %v9863 = vunpack.c.h.b16 %v8521
        %v9864 = vunpack.c.l.b16 %v8522
        %v9865 = vunpack.c.h.b16 %v8522
        %v9866 = vunpack.c.l.b16 %v8523
        %v9867 = vunpack.c.h.b16 %v8523
        %v9868 = vunpack.c.l.b16 %v8524
        %v9869 = vunpack.c.h.b16 %v8524
        %v9870 = vunpack.c.l.b16 %v8525
        %v9871 = vunpack.c.h.b16 %v8525
        %v9872 = vunpack.c.l.b16 %v8526
        %v9873 = vunpack.c.h.b16 %v8526
        %v9874 = vunpack.c.l.b16 %v8527
        %v9875 = vunpack.c.h.b16 %v8527
        %v9876 = vunpack.c.l.b16 %v8528
        %v9877 = vunpack.c.h.b16 %v8528
        %v9878 = vunpack.c.l.b16 %v8529
        %v9879 = vunpack.c.h.b16 %v8529
        %v9880 = vunpack.c.l.b16 %v8530
        %v9881 = vunpack.c.h.b16 %v8530
        %v9882 = vunpack.c.l.b16 %v8531
        %v9883 = vunpack.c.h.b16 %v8531
        %v9884 = vunpack.c.l.b16 %v8532
        %v9885 = vunpack.c.h.b16 %v8532
        %v9886 = vunpack.c.l.b16 %v8533
        %v9887 = vunpack.c.h.b16 %v8533
        %v9888 = vunpack.c.l.b16 %v8534
        %v9889 = vunpack.c.h.b16 %v8534
        %v9890 = vunpack.c.l.b16 %v8535
        %v9891 = vunpack.c.h.b16 %v8535
        %v9892 = vunpack.c.l.b16 %v8536
        %v9893 = vunpack.c.h.b16 %v8536
        %v9894 = vunpack.c.l.b16 %v8537
        %v9895 = vunpack.c.h.b16 %v8537
        %v9896 = vunpack.c.l.b16 %v8538
        %v9897 = vunpack.c.h.b16 %v8538
        %v9898 = vunpack.c.l.b16 %v8539
        %v9899 = vunpack.c.h.b16 %v8539
        %v9900 = vunpack.c.l.b16 %v8540
        %v9901 = vunpack.c.h.b16 %v8540
        %v9902 = vunpack.c.l.b16 %v8541
        %v9903 = vunpack.c.h.b16 %v8541
        %v9904 = vunpack.c.l.b16 %v8542
        %v9905 = vunpack.c.h.b16 %v8542
        %v9906 = vunpack.c.l.b16 %v8543
        %v9907 = vunpack.c.h.b16 %v8543
        %v9908 = vunpack.c.l.b16 %v8544
        %v9909 = vunpack.c.h.b16 %v8544
        %v9910 = vunpack.c.l.b16 %v8545
        %v9911 = vunpack.c.h.b16 %v8545
        %v9912 = vunpack.c.l.b16 %v8546
        %v9913 = vunpack.c.h.b16 %v8546
        %v9914 = vunpack.c.l.b16 %v8547
        %v9915 = vunpack.c.h.b16 %v8547
        %v9916 = vunpack.c.l.b16 %v8548
        %v9917 = vunpack.c.h.b16 %v8548
        %v9918 = vunpack.c.l.b16 %v8549
        %v9919 = vunpack.c.h.b16 %v8549
        %v9920 = vunpack.c.l.b16 %v8550
        %v9921 = vunpack.c.h.b16 %v8550
        %v9922 = vunpack.c.l.b16 %v8551
        %v9923 = vunpack.c.h.b16 %v8551
        %v9924 = vunpack.c.l.b16 %v8552
        %v9925 = vunpack.c.h.b16 %v8552
        %v9926 = vunpack.c.l.b16 %v8553
        %v9927 = vunpack.c.h.b16 %v8553
        %v9928 = vunpack.c.l.b16 %v8554
        %v9929 = vunpack.c.h.b16 %v8554
        %v9930 = vunpack.c.l.b16 %v8555
        %v9931 = vunpack.c.h.b16 %v8555
        %v9932 = vunpack.c.l.b16 %v8556
        %v9933 = vunpack.c.h.b16 %v8556
        %v9934 = vunpack.c.l.b16 %v8557
        %v9935 = vunpack.c.h.b16 %v8557
        %v9936 = vunpack.c.l.b16 %v8558
        %v9937 = vunpack.c.h.b16 %v8558
        %v9938 = vunpack.c.l.b16 %v8559
        %v9939 = vunpack.c.h.b16 %v8559
        %v9940 = vunpack.c.l.b16 %v8560
        %v9941 = vunpack.c.h.b16 %v8560
        %v9942 = vunpack.c.l.b16 %v8561
        %v9943 = vunpack.c.h.b16 %v8561
        %v9944 = vunpack.c.l.b16 %v8562
        %v9945 = vunpack.c.h.b16 %v8562
        %v9946 = vunpack.c.l.b16 %v8563
        %v9947 = vunpack.c.h.b16 %v8563
        %v9948 = vunpack.c.l.b16 %v8564
        %v9949 = vunpack.c.h.b16 %v8564
        %v9950 = vunpack.c.l.b16 %v8565
        %v9951 = vunpack.c.h.b16 %v8565
        %v9952 = vunpack.c.l.b16 %v8566
        %v9953 = vunpack.c.h.b16 %v8566
        %v9954 = vunpack.c.l.b16 %v8567
        %v9955 = vunpack.c.h.b16 %v8567
        %v9956 = vunpack.c.l.b16 %v8568
        %v9957 = vunpack.c.h.b16 %v8568
        %v9958 = vunpack.c.l.b16 %v8569
        %v9959 = vunpack.c.h.b16 %v8569
        %v9960 = vunpack.c.l.b16 %v8570
        %v9961 = vunpack.c.h.b16 %v8570
        %v9962 = vunpack.c.l.b16 %v8571
        %v9963 = vunpack.c.h.b16 %v8571
        %v9964 = vunpack.c.l.b16 %v8572
        %v9965 = vunpack.c.h.b16 %v8572
        %v9966 = vunpack.c.l.b16 %v8573
        %v9967 = vunpack.c.h.b16 %v8573
        %v9968 = vunpack.c.l.b16 %v8574
        %v9969 = vunpack.c.h.b16 %v8574
        %v9970 = vunpack.c.l.b16 %v8575
        %v9971 = vunpack.c.h.b16 %v8575
        %v9972 = vunpack.c.l.b16 %v8576
        %v9973 = vunpack.c.h.b16 %v8576
        %v9974 = vunpack.c.l.b16 %v8577
        %v9975 = vunpack.c.h.b16 %v8577
        %v9976 = vunpack.c.l.b16 %v8578
        %v9977 = vunpack.c.h.b16 %v8578
        %v9978 = vunpack.c.l.b16 %v8579
        %v9979 = vunpack.c.h.b16 %v8579
        %v9980 = vunpack.c.l.b16 %v8580
        %v9981 = vunpack.c.h.b16 %v8580
        %v9982 = vunpack.c.l.b16 %v8581
        %v9983 = vunpack.c.h.b16 %v8581
        %v9984 = vunpack.c.l.b16 %v8582
        %v9985 = vunpack.c.h.b16 %v8582
        %v9986 = vunpack.c.l.b16 %v8583
        %v9987 = vunpack.c.h.b16 %v8583
        %v9988 = vunpack.c.l.b16 %v8584
        %v9989 = vunpack.c.h.b16 %v8584
        %v9990 = vunpack.c.l.b16 %v8585
        %v9991 = vunpack.c.h.b16 %v8585
        %v9992 = vunpack.c.l.b16 %v8586
        %v9993 = vunpack.c.h.b16 %v8586
        %v9994 = vunpack.c.l.b16 %v8587
        %v9995 = vunpack.c.h.b16 %v8587
        %v9996 = vunpack.c.l.b16 %v8588
        %v9997 = vunpack.c.h.b16 %v8588
        %v9998 = vunpack.c.l.b16 %v8589
        %v9999 = vunpack.c.h.b16 %v8589
        %v10000 = vunpack.c.l.b16 %v8590
        %v10001 = vunpack.c.h.b16 %v8590
        %v10002 = vunpack.c.l.b16 %v8591
        %v10003 = vunpack.c.h.b16 %v8591
        %v10004 = vunpack.c.l.b16 %v8592
        %v10005 = vunpack.c.h.b16 %v8592
        %v10006 = vunpack.c.l.b16 %v8593
        %v10007 = vunpack.c.h.b16 %v8593
        %v10008 = vunpack.c.l.b16 %v8594
        %v10009 = vunpack.c.h.b16 %v8594
        %v10010 = vunpack.c.l.b16 %v8595
        %v10011 = vunpack.c.h.b16 %v8595
        %v10012 = vunpack.c.l.b16 %v8596
        %v10013 = vunpack.c.h.b16 %v8596
        %v10014 = vunpack.c.l.b16 %v8597
        %v10015 = vunpack.c.h.b16 %v8597
        %v10016 = vunpack.c.l.b16 %v8598
        %v10017 = vunpack.c.h.b16 %v8598
        %v10018 = vunpack.c.l.b16 %v8599
        %v10019 = vunpack.c.h.b16 %v8599
        %v10020 = vunpack.c.l.b16 %v8600
        %v10021 = vunpack.c.h.b16 %v8600
        %v10022 = vunpack.c.l.b16 %v8601
        %v10023 = vunpack.c.h.b16 %v8601
        %v10024 = vunpack.c.l.b16 %v8602
        %v10025 = vunpack.c.h.b16 %v8602
        %v10026 = vunpack.c.l.b16 %v8603
        %v10027 = vunpack.c.h.b16 %v8603
        %v10028 = vunpack.c.l.b16 %v8604
        %v10029 = vunpack.c.h.b16 %v8604
        %v10030 = vunpack.c.l.b16 %v8605
        %v10031 = vunpack.c.h.b16 %v8605
        %v10032 = vunpack.c.l.b16 %v8606
        %v10033 = vunpack.c.h.b16 %v8606
        %v10034 = vunpack.c.l.b16 %v8607
        %v10035 = vunpack.c.h.b16 %v8607
        %v10036 = vunpack.c.l.b16 %v8608
        %v10037 = vunpack.c.h.b16 %v8608
        %v10038 = vunpack.c.l.b16 %v8609
        %v10039 = vunpack.c.h.b16 %v8609
        %v10040 = vunpack.c.l.b16 %v8610
        %v10041 = vunpack.c.h.b16 %v8610
        %v10042 = vunpack.c.l.b16 %v8611
        %v10043 = vunpack.c.h.b16 %v8611
        %v10044 = vunpack.c.l.b16 %v8612
        %v10045 = vunpack.c.h.b16 %v8612
        %v10046 = vunpack.c.l.b16 %v8613
        %v10047 = vunpack.c.h.b16 %v8613
        %v10048 = vunpack.c.l.b16 %v8614
        %v10049 = vunpack.c.h.b16 %v8614
        %v10050 = vunpack.c.l.b16 %v8615
        %v10051 = vunpack.c.h.b16 %v8615
        %v10052 = vunpack.c.l.b16 %v8616
        %v10053 = vunpack.c.h.b16 %v8616
        %v10054 = vunpack.c.l.b16 %v8617
        %v10055 = vunpack.c.h.b16 %v8617
        %v10056 = vunpack.c.l.b16 %v8618
        %v10057 = vunpack.c.h.b16 %v8618
        %v10058 = vunpack.c.l.b16 %v8619
        %v10059 = vunpack.c.h.b16 %v8619
        %v10060 = vunpack.c.l.b16 %v8620
        %v10061 = vunpack.c.h.b16 %v8620
        %v10062 = vunpack.c.l.b16 %v8621
        %v10063 = vunpack.c.h.b16 %v8621
        %v10064 = vunpack.c.l.b16 %v8622
        %v10065 = vunpack.c.h.b16 %v8622
        %v10066 = vunpack.c.l.b16 %v8623
        %v10067 = vunpack.c.h.b16 %v8623
        %v10068 = vunpack.c.l.b16 %v8624
        %v10069 = vunpack.c.h.b16 %v8624
        %v10070 = vunpack.c.l.b16 %v8625
        %v10071 = vunpack.c.h.b16 %v8625
        %v10072 = vunpack.c.l.b16 %v8626
        %v10073 = vunpack.c.h.b16 %v8626
        %v10074 = vunpack.c.l.b16 %v8627
        %v10075 = vunpack.c.h.b16 %v8627
        %v10076 = vunpack.c.l.b16 %v8628
        %v10077 = vunpack.c.h.b16 %v8628
        %v10078 = vunpack.c.l.b16 %v8629
        %v10079 = vunpack.c.h.b16 %v8629
        %v10080 = vunpack.c.l.b16 %v8630
        %v10081 = vunpack.c.h.b16 %v8630
        %v10082 = vunpack.c.l.b16 %v8631
        %v10083 = vunpack.c.h.b16 %v8631
        %v10084 = vunpack.c.l.b16 %v8632
        %v10085 = vunpack.c.h.b16 %v8632
        %v10086 = vunpack.c.l.b16 %v8633
        %v10087 = vunpack.c.h.b16 %v8633
        %v10088 = vunpack.c.l.b16 %v8634
        %v10089 = vunpack.c.h.b16 %v8634
        %v10090 = vunpack.c.l.b16 %v8635
        %v10091 = vunpack.c.h.b16 %v8635
        %v10092 = vunpack.c.l.b16 %v8636
        %v10093 = vunpack.c.h.b16 %v8636
        %v10094 = vunpack.c.l.b16 %v8637
        %v10095 = vunpack.c.h.b16 %v8637
        %v10096 = vunpack.c.l.b16 %v8638
        %v10097 = vunpack.c.h.b16 %v8638
        %v10098 = vunpack.c.l.b16 %v8639
        %v10099 = vunpack.c.h.b16 %v8639
        %v10100 = vunpack.c.l.b16 %v8640
        %v10101 = vunpack.c.h.b16 %v8640
        %v10102 = vunpack.c.l.b16 %v8641
        %v10103 = vunpack.c.h.b16 %v8641
        %v10104 = vunpack.c.l.b16 %v8642
        %v10105 = vunpack.c.h.b16 %v8642
        %v10106 = vunpack.c.l.b16 %v8643
        %v10107 = vunpack.c.h.b16 %v8643
        %v10108 = vunpack.c.l.b16 %v8644
        %v10109 = vunpack.c.h.b16 %v8644
        %v10110 = vunpack.c.l.b16 %v8645
        %v10111 = vunpack.c.h.b16 %v8645
        %v10112 = vunpack.c.l.b16 %v8646
        %v10113 = vunpack.c.h.b16 %v8646
        %v10114 = vunpack.c.l.b16 %v8647
        %v10115 = vunpack.c.h.b16 %v8647
        %v10116 = vunpack.c.l.b16 %v8648
        %v10117 = vunpack.c.h.b16 %v8648
        %v10118 = vunpack.c.l.b16 %v8649
        %v10119 = vunpack.c.h.b16 %v8649
        %v10120 = vunpack.c.l.b16 %v8650
        %v10121 = vunpack.c.h.b16 %v8650
        %v10122 = vunpack.c.l.b16 %v8651
        %v10123 = vunpack.c.h.b16 %v8651
        %v10124 = vunpack.c.l.b16 %v8652
        %v10125 = vunpack.c.h.b16 %v8652
        %v10126 = vunpack.c.l.b16 %v8653
        %v10127 = vunpack.c.h.b16 %v8653
        %v10128 = vunpack.c.l.b16 %v8654
        %v10129 = vunpack.c.h.b16 %v8654
        %v10130 = vunpack.c.l.b16 %v8655
        %v10131 = vunpack.c.h.b16 %v8655
        %v10132 = vunpack.c.l.b16 %v8656
        %v10133 = vunpack.c.h.b16 %v8656
        %v10134 = vunpack.c.l.b16 %v8657
        %v10135 = vunpack.c.h.b16 %v8657
        %v10136 = vunpack.c.l.b16 %v8658
        %v10137 = vunpack.c.h.b16 %v8658
        %v10138 = vunpack.c.l.b16 %v8659
        %v10139 = vunpack.c.h.b16 %v8659
        %v10140 = vunpack.c.l.b16 %v8660
        %v10141 = vunpack.c.h.b16 %v8660
        %v10142 = vunpack.c.l.b16 %v8661
        %v10143 = vunpack.c.h.b16 %v8661
        %v10144 = vunpack.c.l.b16 %v8662
        %v10145 = vunpack.c.h.b16 %v8662
        %v10146 = vunpack.c.l.b16 %v8663
        %v10147 = vunpack.c.h.b16 %v8663
        %v10148 = vunpack.c.l.b16 %v8664
        %v10149 = vunpack.c.h.b16 %v8664
        %v10150 = vunpack.c.l.b16 %v8665
        %v10151 = vunpack.c.h.b16 %v8665
        %v10152 = vunpack.c.l.b16 %v8666
        %v10153 = vunpack.c.h.b16 %v8666
        %v10154 = vunpack.c.l.b16 %v8667
        %v10155 = vunpack.c.h.b16 %v8667
        %v10156 = vunpack.c.l.b16 %v8668
        %v10157 = vunpack.c.h.b16 %v8668
        %v10158 = vunpack.c.l.b16 %v8669
        %v10159 = vunpack.c.h.b16 %v8669
        %v10160 = vunpack.c.l.b16 %v8670
        %v10161 = vunpack.c.h.b16 %v8670
        %v10162 = vunpack.c.l.b16 %v8671
        %v10163 = vunpack.c.h.b16 %v8671
        %v10164 = vunpack.c.l.b16 %v8672
        %v10165 = vunpack.c.h.b16 %v8672
        %v10166 = vunpack.c.l.b16 %v8673
        %v10167 = vunpack.c.h.b16 %v8673
        %v10168 = vunpack.c.l.b16 %v8674
        %v10169 = vunpack.c.h.b16 %v8674
        %v10170 = vunpack.c.l.b16 %v8675
        %v10171 = vunpack.c.h.b16 %v8675
        %v10172 = vunpack.c.l.b16 %v8676
        %v10173 = vunpack.c.h.b16 %v8676
        %v10174 = vunpack.c.l.b16 %v8677
        %v10175 = vunpack.c.h.b16 %v8677
        %v10176 = vunpack.c.l.b16 %v8678
        %v10177 = vunpack.c.h.b16 %v8678
        %v10178 = vunpack.c.l.b16 %v8679
        %v10179 = vunpack.c.h.b16 %v8679
        %v10180 = vunpack.c.l.b16 %v8680
        %v10181 = vunpack.c.h.b16 %v8680
        %v10182 = vunpack.c.l.b16 %v8681
        %v10183 = vunpack.c.h.b16 %v8681
        %v10184 = vunpack.c.l.b16 %v8682
        %v10185 = vunpack.c.h.b16 %v8682
        %v10186 = vunpack.c.l.b16 %v8683
        %v10187 = vunpack.c.h.b16 %v8683
        %v10188 = vunpack.c.l.b16 %v8684
        %v10189 = vunpack.c.h.b16 %v8684
        %v10190 = vunpack.c.l.b16 %v8685
        %v10191 = vunpack.c.h.b16 %v8685
        %v10192 = vunpack.c.l.b16 %v8686
        %v10193 = vunpack.c.h.b16 %v8686
        %v10194 = vunpack.c.l.b16 %v8687
        %v10195 = vunpack.c.h.b16 %v8687
        %v10196 = vunpack.c.l.b16 %v8688
        %v10197 = vunpack.c.h.b16 %v8688
        %v10198 = vunpack.c.l.b16 %v8689
        %v10199 = vunpack.c.h.b16 %v8689
        %v10200 = vunpack.c.l.b16 %v8690
        %v10201 = vunpack.c.h.b16 %v8690
        %v10202 = vunpack.c.l.b16 %v8691
        %v10203 = vunpack.c.h.b16 %v8691
        %v10204 = vunpack.c.l.b16 %v8692
        %v10205 = vunpack.c.h.b16 %v8692
        %v10206 = vunpack.c.l.b16 %v8693
        %v10207 = vunpack.c.h.b16 %v8693
        %v10208 = vunpack.c.l.b16 %v8694
        %v10209 = vunpack.c.h.b16 %v8694
        %v10210 = vunpack.c.l.b16 %v8695
        %v10211 = vunpack.c.h.b16 %v8695
        %v10212 = vunpack.c.l.b16 %v8696
        %v10213 = vunpack.c.h.b16 %v8696
        %v10214 = vunpack.c.l.b16 %v8697
        %v10215 = vunpack.c.h.b16 %v8697
        %v10216 = vunpack.c.l.b16 %v8698
        %v10217 = vunpack.c.h.b16 %v8698
        %v10218 = vunpack.c.l.b16 %v8699
        %v10219 = vunpack.c.h.b16 %v8699
        %v10220 = vunpack.c.l.b16 %v8700
        %v10221 = vunpack.c.h.b16 %v8700
        %v10222 = vunpack.c.l.b16 %v8701
        %v10223 = vunpack.c.h.b16 %v8701
        %v10224 = vunpack.c.l.b16 %v8702
        %v10225 = vunpack.c.h.b16 %v8702
        %v10226 = vunpack.c.l.b16 %v8703
        %v10227 = vunpack.c.h.b16 %v8703
        %v10228 = vunpack.c.l.b16 %v8704
        %v10229 = vunpack.c.h.b16 %v8704
        %v10230 = vunpack.c.l.b16 %v8705
        %v10231 = vunpack.c.h.b16 %v8705
        %v10232 = vunpack.c.l.b16 %v8706
        %v10233 = vunpack.c.h.b16 %v8706
        %v10234 = vunpack.c.l.b16 %v8707
        %v10235 = vunpack.c.h.b16 %v8707
        %v10236 = vunpack.c.l.b16 %v8708
        %v10237 = vunpack.c.h.b16 %v8708
        %v10238 = vunpack.c.l.b16 %v8709
        %v10239 = vunpack.c.h.b16 %v8709
        %v10240 = vunpack.c.l.b16 %v8710
        %v10241 = vunpack.c.h.b16 %v8710
        %v10242 = vunpack.c.l.b16 %v8711
        %v10243 = vunpack.c.h.b16 %v8711
        %v10244 = vunpack.c.l.b16 %v8712
        %v10245 = vunpack.c.h.b16 %v8712
        %v10246 = vunpack.c.l.b16 %v8713
        %v10247 = vunpack.c.h.b16 %v8713
        %v10248 = vunpack.c.l.b16 %v8714
        %v10249 = vunpack.c.h.b16 %v8714
        %v10250 = vunpack.c.l.b16 %v8715
        %v10251 = vunpack.c.h.b16 %v8715
        %v10252 = vpack.c.b16 %v9236, %v9228
        %v10253 = vpack.c.b16 %v9237, %v9229
        %v10254 = vpack.c.b16 %v9238, %v9230
        %v10255 = vpack.c.b16 %v9239, %v9231
        %v10256 = vpack.c.b16 %v9240, %v9232
        %v10257 = vpack.c.b16 %v9241, %v9233
        %v10258 = vpack.c.b16 %v9242, %v9234
        %v10259 = vpack.c.b16 %v9243, %v9235
        %v10260 = vpack.c.b16 %v9252, %v9244
        %v10261 = vpack.c.b16 %v9253, %v9245
        %v10262 = vpack.c.b16 %v9254, %v9246
        %v10263 = vpack.c.b16 %v9255, %v9247
        %v10264 = vpack.c.b16 %v9256, %v9248
        %v10265 = vpack.c.b16 %v9257, %v9249
        %v10266 = vpack.c.b16 %v9258, %v9250
        %v10267 = vpack.c.b16 %v9259, %v9251
        %v10268 = vpack.c.b16 %v9268, %v9260
        %v10269 = vpack.c.b16 %v9269, %v9261
        %v10270 = vpack.c.b16 %v9270, %v9262
        %v10271 = vpack.c.b16 %v9271, %v9263
        %v10272 = vpack.c.b16 %v9272, %v9264
        %v10273 = vpack.c.b16 %v9273, %v9265
        %v10274 = vpack.c.b16 %v9274, %v9266
        %v10275 = vpack.c.b16 %v9275, %v9267
        %v10276 = vpack.c.b16 %v9284, %v9276
        %v10277 = vpack.c.b16 %v9285, %v9277
        %v10278 = vpack.c.b16 %v9286, %v9278
        %v10279 = vpack.c.b16 %v9287, %v9279
        %v10280 = vpack.c.b16 %v9288, %v9280
        %v10281 = vpack.c.b16 %v9289, %v9281
        %v10282 = vpack.c.b16 %v9290, %v9282
        %v10283 = vpack.c.b16 %v9291, %v9283
        %v10284 = vpack.c.b16 %v9300, %v9292
        %v10285 = vpack.c.b16 %v9301, %v9293
        %v10286 = vpack.c.b16 %v9302, %v9294
        %v10287 = vpack.c.b16 %v9303, %v9295
        %v10288 = vpack.c.b16 %v9304, %v9296
        %v10289 = vpack.c.b16 %v9305, %v9297
        %v10290 = vpack.c.b16 %v9306, %v9298
        %v10291 = vpack.c.b16 %v9307, %v9299
        %v10292 = vpack.c.b16 %v9316, %v9308
        %v10293 = vpack.c.b16 %v9317, %v9309
        %v10294 = vpack.c.b16 %v9318, %v9310
        %v10295 = vpack.c.b16 %v9319, %v9311
        %v10296 = vpack.c.b16 %v9320, %v9312
        %v10297 = vpack.c.b16 %v9321, %v9313
        %v10298 = vpack.c.b16 %v9322, %v9314
        %v10299 = vpack.c.b16 %v9323, %v9315
        %v10300 = vpack.c.b16 %v9332, %v9324
        %v10301 = vpack.c.b16 %v9333, %v9325
        %v10302 = vpack.c.b16 %v9334, %v9326
        %v10303 = vpack.c.b16 %v9335, %v9327
        %v10304 = vpack.c.b16 %v9336, %v9328
        %v10305 = vpack.c.b16 %v9337, %v9329
        %v10306 = vpack.c.b16 %v9338, %v9330
        %v10307 = vpack.c.b16 %v9339, %v9331
        %v10308 = vpack.c.b16 %v9348, %v9340
        %v10309 = vpack.c.b16 %v9349, %v9341
        %v10310 = vpack.c.b16 %v9350, %v9342
        %v10311 = vpack.c.b16 %v9351, %v9343
        %v10312 = vpack.c.b16 %v9352, %v9344
        %v10313 = vpack.c.b16 %v9353, %v9345
        %v10314 = vpack.c.b16 %v9354, %v9346
        %v10315 = vpack.c.b16 %v9355, %v9347
        %v10316 = vpack.c.b16 %v9364, %v9356
        %v10317 = vpack.c.b16 %v9365, %v9357
        %v10318 = vpack.c.b16 %v9366, %v9358
        %v10319 = vpack.c.b16 %v9367, %v9359
        %v10320 = vpack.c.b16 %v9368, %v9360
        %v10321 = vpack.c.b16 %v9369, %v9361
        %v10322 = vpack.c.b16 %v9370, %v9362
        %v10323 = vpack.c.b16 %v9371, %v9363
        %v10324 = vpack.c.b16 %v9380, %v9372
        %v10325 = vpack.c.b16 %v9381, %v9373
        %v10326 = vpack.c.b16 %v9382, %v9374
        %v10327 = vpack.c.b16 %v9383, %v9375
        %v10328 = vpack.c.b16 %v9384, %v9376
        %v10329 = vpack.c.b16 %v9385, %v9377
        %v10330 = vpack.c.b16 %v9386, %v9378
        %v10331 = vpack.c.b16 %v9387, %v9379
        %v10332 = vpack.c.b16 %v9396, %v9388
        %v10333 = vpack.c.b16 %v9397, %v9389
        %v10334 = vpack.c.b16 %v9398, %v9390
        %v10335 = vpack.c.b16 %v9399, %v9391
        %v10336 = vpack.c.b16 %v9400, %v9392
        %v10337 = vpack.c.b16 %v9401, %v9393
        %v10338 = vpack.c.b16 %v9402, %v9394
        %v10339 = vpack.c.b16 %v9403, %v9395
        %v10340 = vpack.c.b16 %v9412, %v9404
        %v10341 = vpack.c.b16 %v9413, %v9405
        %v10342 = vpack.c.b16 %v9414, %v9406
        %v10343 = vpack.c.b16 %v9415, %v9407
        %v10344 = vpack.c.b16 %v9416, %v9408
        %v10345 = vpack.c.b16 %v9417, %v9409
        %v10346 = vpack.c.b16 %v9418, %v9410
        %v10347 = vpack.c.b16 %v9419, %v9411
        %v10348 = vpack.c.b16 %v9428, %v9420
        %v10349 = vpack.c.b16 %v9429, %v9421
        %v10350 = vpack.c.b16 %v9430, %v9422
        %v10351 = vpack.c.b16 %v9431, %v9423
        %v10352 = vpack.c.b16 %v9432, %v9424
        %v10353 = vpack.c.b16 %v9433, %v9425
        %v10354 = vpack.c.b16 %v9434, %v9426
        %v10355 = vpack.c.b16 %v9435, %v9427
        %v10356 = vpack.c.b16 %v9444, %v9436
        %v10357 = vpack.c.b16 %v9445, %v9437
        %v10358 = vpack.c.b16 %v9446, %v9438
        %v10359 = vpack.c.b16 %v9447, %v9439
        %v10360 = vpack.c.b16 %v9448, %v9440
        %v10361 = vpack.c.b16 %v9449, %v9441
        %v10362 = vpack.c.b16 %v9450, %v9442
        %v10363 = vpack.c.b16 %v9451, %v9443
        %v10364 = vpack.c.b16 %v9460, %v9452
        %v10365 = vpack.c.b16 %v9461, %v9453
        %v10366 = vpack.c.b16 %v9462, %v9454
        %v10367 = vpack.c.b16 %v9463, %v9455
        %v10368 = vpack.c.b16 %v9464, %v9456
        %v10369 = vpack.c.b16 %v9465, %v9457
        %v10370 = vpack.c.b16 %v9466, %v9458
        %v10371 = vpack.c.b16 %v9467, %v9459
        %v10372 = vpack.c.b16 %v9476, %v9468
        %v10373 = vpack.c.b16 %v9477, %v9469
        %v10374 = vpack.c.b16 %v9478, %v9470
        %v10375 = vpack.c.b16 %v9479, %v9471
        %v10376 = vpack.c.b16 %v9480, %v9472
        %v10377 = vpack.c.b16 %v9481, %v9473
        %v10378 = vpack.c.b16 %v9482, %v9474
        %v10379 = vpack.c.b16 %v9483, %v9475
        %v10380 = vpack.c.b16 %v9492, %v9484
        %v10381 = vpack.c.b16 %v9493, %v9485
        %v10382 = vpack.c.b16 %v9494, %v9486
        %v10383 = vpack.c.b16 %v9495, %v9487
        %v10384 = vpack.c.b16 %v9496, %v9488
        %v10385 = vpack.c.b16 %v9497, %v9489
        %v10386 = vpack.c.b16 %v9498, %v9490
        %v10387 = vpack.c.b16 %v9499, %v9491
        %v10388 = vpack.c.b16 %v9508, %v9500
        %v10389 = vpack.c.b16 %v9509, %v9501
        %v10390 = vpack.c.b16 %v9510, %v9502
        %v10391 = vpack.c.b16 %v9511, %v9503
        %v10392 = vpack.c.b16 %v9512, %v9504
        %v10393 = vpack.c.b16 %v9513, %v9505
        %v10394 = vpack.c.b16 %v9514, %v9506
        %v10395 = vpack.c.b16 %v9515, %v9507
        %v10396 = vpack.c.b16 %v9524, %v9516
        %v10397 = vpack.c.b16 %v9525, %v9517
        %v10398 = vpack.c.b16 %v9526, %v9518
        %v10399 = vpack.c.b16 %v9527, %v9519
        %v10400 = vpack.c.b16 %v9528, %v9520
        %v10401 = vpack.c.b16 %v9529, %v9521
        %v10402 = vpack.c.b16 %v9530, %v9522
        %v10403 = vpack.c.b16 %v9531, %v9523
        %v10404 = vpack.c.b16 %v9540, %v9532
        %v10405 = vpack.c.b16 %v9541, %v9533
        %v10406 = vpack.c.b16 %v9542, %v9534
        %v10407 = vpack.c.b16 %v9543, %v9535
        %v10408 = vpack.c.b16 %v9544, %v9536
        %v10409 = vpack.c.b16 %v9545, %v9537
        %v10410 = vpack.c.b16 %v9546, %v9538
        %v10411 = vpack.c.b16 %v9547, %v9539
        %v10412 = vpack.c.b16 %v9556, %v9548
        %v10413 = vpack.c.b16 %v9557, %v9549
        %v10414 = vpack.c.b16 %v9558, %v9550
        %v10415 = vpack.c.b16 %v9559, %v9551
        %v10416 = vpack.c.b16 %v9560, %v9552
        %v10417 = vpack.c.b16 %v9561, %v9553
        %v10418 = vpack.c.b16 %v9562, %v9554
        %v10419 = vpack.c.b16 %v9563, %v9555
        %v10420 = vpack.c.b16 %v9572, %v9564
        %v10421 = vpack.c.b16 %v9573, %v9565
        %v10422 = vpack.c.b16 %v9574, %v9566
        %v10423 = vpack.c.b16 %v9575, %v9567
        %v10424 = vpack.c.b16 %v9576, %v9568
        %v10425 = vpack.c.b16 %v9577, %v9569
        %v10426 = vpack.c.b16 %v9578, %v9570
        %v10427 = vpack.c.b16 %v9579, %v9571
        %v10428 = vpack.c.b16 %v9588, %v9580
        %v10429 = vpack.c.b16 %v9589, %v9581
        %v10430 = vpack.c.b16 %v9590, %v9582
        %v10431 = vpack.c.b16 %v9591, %v9583
        %v10432 = vpack.c.b16 %v9592, %v9584
        %v10433 = vpack.c.b16 %v9593, %v9585
        %v10434 = vpack.c.b16 %v9594, %v9586
        %v10435 = vpack.c.b16 %v9595, %v9587
        %v10436 = vpack.c.b16 %v9604, %v9596
        %v10437 = vpack.c.b16 %v9605, %v9597
        %v10438 = vpack.c.b16 %v9606, %v9598
        %v10439 = vpack.c.b16 %v9607, %v9599
        %v10440 = vpack.c.b16 %v9608, %v9600
        %v10441 = vpack.c.b16 %v9609, %v9601
        %v10442 = vpack.c.b16 %v9610, %v9602
        %v10443 = vpack.c.b16 %v9611, %v9603
        %v10444 = vpack.c.b16 %v9620, %v9612
        %v10445 = vpack.c.b16 %v9621, %v9613
        %v10446 = vpack.c.b16 %v9622, %v9614
        %v10447 = vpack.c.b16 %v9623, %v9615
        %v10448 = vpack.c.b16 %v9624, %v9616
        %v10449 = vpack.c.b16 %v9625, %v9617
        %v10450 = vpack.c.b16 %v9626, %v9618
        %v10451 = vpack.c.b16 %v9627, %v9619
        %v10452 = vpack.c.b16 %v9636, %v9628
        %v10453 = vpack.c.b16 %v9637, %v9629
        %v10454 = vpack.c.b16 %v9638, %v9630
        %v10455 = vpack.c.b16 %v9639, %v9631
        %v10456 = vpack.c.b16 %v9640, %v9632
        %v10457 = vpack.c.b16 %v9641, %v9633
        %v10458 = vpack.c.b16 %v9642, %v9634
        %v10459 = vpack.c.b16 %v9643, %v9635
        %v10460 = vpack.c.b16 %v9652, %v9644
        %v10461 = vpack.c.b16 %v9653, %v9645
        %v10462 = vpack.c.b16 %v9654, %v9646
        %v10463 = vpack.c.b16 %v9655, %v9647
        %v10464 = vpack.c.b16 %v9656, %v9648
        %v10465 = vpack.c.b16 %v9657, %v9649
        %v10466 = vpack.c.b16 %v9658, %v9650
        %v10467 = vpack.c.b16 %v9659, %v9651
        %v10468 = vpack.c.b16 %v9668, %v9660
        %v10469 = vpack.c.b16 %v9669, %v9661
        %v10470 = vpack.c.b16 %v9670, %v9662
        %v10471 = vpack.c.b16 %v9671, %v9663
        %v10472 = vpack.c.b16 %v9672, %v9664
        %v10473 = vpack.c.b16 %v9673, %v9665
        %v10474 = vpack.c.b16 %v9674, %v9666
        %v10475 = vpack.c.b16 %v9675, %v9667
        %v10476 = vpack.c.b16 %v9684, %v9676
        %v10477 = vpack.c.b16 %v9685, %v9677
        %v10478 = vpack.c.b16 %v9686, %v9678
        %v10479 = vpack.c.b16 %v9687, %v9679
        %v10480 = vpack.c.b16 %v9688, %v9680
        %v10481 = vpack.c.b16 %v9689, %v9681
        %v10482 = vpack.c.b16 %v9690, %v9682
        %v10483 = vpack.c.b16 %v9691, %v9683
        %v10484 = vpack.c.b16 %v9700, %v9692
        %v10485 = vpack.c.b16 %v9701, %v9693
        %v10486 = vpack.c.b16 %v9702, %v9694
        %v10487 = vpack.c.b16 %v9703, %v9695
        %v10488 = vpack.c.b16 %v9704, %v9696
        %v10489 = vpack.c.b16 %v9705, %v9697
        %v10490 = vpack.c.b16 %v9706, %v9698
        %v10491 = vpack.c.b16 %v9707, %v9699
        %v10492 = vpack.c.b16 %v9716, %v9708
        %v10493 = vpack.c.b16 %v9717, %v9709
        %v10494 = vpack.c.b16 %v9718, %v9710
        %v10495 = vpack.c.b16 %v9719, %v9711
        %v10496 = vpack.c.b16 %v9720, %v9712
        %v10497 = vpack.c.b16 %v9721, %v9713
        %v10498 = vpack.c.b16 %v9722, %v9714
        %v10499 = vpack.c.b16 %v9723, %v9715
        %v10500 = vpack.c.b16 %v9732, %v9724
        %v10501 = vpack.c.b16 %v9733, %v9725
        %v10502 = vpack.c.b16 %v9734, %v9726
        %v10503 = vpack.c.b16 %v9735, %v9727
        %v10504 = vpack.c.b16 %v9736, %v9728
        %v10505 = vpack.c.b16 %v9737, %v9729
        %v10506 = vpack.c.b16 %v9738, %v9730
        %v10507 = vpack.c.b16 %v9739, %v9731
        %v10508 = vpack.c.b16 %v9748, %v9740
        %v10509 = vpack.c.b16 %v9749, %v9741
        %v10510 = vpack.c.b16 %v9750, %v9742
        %v10511 = vpack.c.b16 %v9751, %v9743
        %v10512 = vpack.c.b16 %v9752, %v9744
        %v10513 = vpack.c.b16 %v9753, %v9745
        %v10514 = vpack.c.b16 %v9754, %v9746
        %v10515 = vpack.c.b16 %v9755, %v9747
        %v10516 = vpack.c.b16 %v9764, %v9756
        %v10517 = vpack.c.b16 %v9765, %v9757
        %v10518 = vpack.c.b16 %v9766, %v9758
        %v10519 = vpack.c.b16 %v9767, %v9759
        %v10520 = vpack.c.b16 %v9768, %v9760
        %v10521 = vpack.c.b16 %v9769, %v9761
        %v10522 = vpack.c.b16 %v9770, %v9762
        %v10523 = vpack.c.b16 %v9771, %v9763
        %v10524 = vpack.c.b16 %v9780, %v9772
        %v10525 = vpack.c.b16 %v9781, %v9773
        %v10526 = vpack.c.b16 %v9782, %v9774
        %v10527 = vpack.c.b16 %v9783, %v9775
        %v10528 = vpack.c.b16 %v9784, %v9776
        %v10529 = vpack.c.b16 %v9785, %v9777
        %v10530 = vpack.c.b16 %v9786, %v9778
        %v10531 = vpack.c.b16 %v9787, %v9779
        %v10532 = vpack.c.b16 %v9796, %v9788
        %v10533 = vpack.c.b16 %v9797, %v9789
        %v10534 = vpack.c.b16 %v9798, %v9790
        %v10535 = vpack.c.b16 %v9799, %v9791
        %v10536 = vpack.c.b16 %v9800, %v9792
        %v10537 = vpack.c.b16 %v9801, %v9793
        %v10538 = vpack.c.b16 %v9802, %v9794
        %v10539 = vpack.c.b16 %v9803, %v9795
        %v10540 = vpack.c.b16 %v9812, %v9804
        %v10541 = vpack.c.b16 %v9813, %v9805
        %v10542 = vpack.c.b16 %v9814, %v9806
        %v10543 = vpack.c.b16 %v9815, %v9807
        %v10544 = vpack.c.b16 %v9816, %v9808
        %v10545 = vpack.c.b16 %v9817, %v9809
        %v10546 = vpack.c.b16 %v9818, %v9810
        %v10547 = vpack.c.b16 %v9819, %v9811
        %v10548 = vpack.c.b16 %v9828, %v9820
        %v10549 = vpack.c.b16 %v9829, %v9821
        %v10550 = vpack.c.b16 %v9830, %v9822
        %v10551 = vpack.c.b16 %v9831, %v9823
        %v10552 = vpack.c.b16 %v9832, %v9824
        %v10553 = vpack.c.b16 %v9833, %v9825
        %v10554 = vpack.c.b16 %v9834, %v9826
        %v10555 = vpack.c.b16 %v9835, %v9827
        %v10556 = vpack.c.b16 %v9844, %v9836
        %v10557 = vpack.c.b16 %v9845, %v9837
        %v10558 = vpack.c.b16 %v9846, %v9838
        %v10559 = vpack.c.b16 %v9847, %v9839
        %v10560 = vpack.c.b16 %v9848, %v9840
        %v10561 = vpack.c.b16 %v9849, %v9841
        %v10562 = vpack.c.b16 %v9850, %v9842
        %v10563 = vpack.c.b16 %v9851, %v9843
        %v10564 = vpack.c.b16 %v9860, %v9852
        %v10565 = vpack.c.b16 %v9861, %v9853
        %v10566 = vpack.c.b16 %v9862, %v9854
        %v10567 = vpack.c.b16 %v9863, %v9855
        %v10568 = vpack.c.b16 %v9864, %v9856
        %v10569 = vpack.c.b16 %v9865, %v9857
        %v10570 = vpack.c.b16 %v9866, %v9858
        %v10571 = vpack.c.b16 %v9867, %v9859
        %v10572 = vpack.c.b16 %v9876, %v9868
        %v10573 = vpack.c.b16 %v9877, %v9869
        %v10574 = vpack.c.b16 %v9878, %v9870
        %v10575 = vpack.c.b16 %v9879, %v9871
        %v10576 = vpack.c.b16 %v9880, %v9872
        %v10577 = vpack.c.b16 %v9881, %v9873
        %v10578 = vpack.c.b16 %v9882, %v9874
        %v10579 = vpack.c.b16 %v9883, %v9875
        %v10580 = vpack.c.b16 %v9892, %v9884
        %v10581 = vpack.c.b16 %v9893, %v9885
        %v10582 = vpack.c.b16 %v9894, %v9886
        %v10583 = vpack.c.b16 %v9895, %v9887
        %v10584 = vpack.c.b16 %v9896, %v9888
        %v10585 = vpack.c.b16 %v9897, %v9889
        %v10586 = vpack.c.b16 %v9898, %v9890
        %v10587 = vpack.c.b16 %v9899, %v9891
        %v10588 = vpack.c.b16 %v9908, %v9900
        %v10589 = vpack.c.b16 %v9909, %v9901
        %v10590 = vpack.c.b16 %v9910, %v9902
        %v10591 = vpack.c.b16 %v9911, %v9903
        %v10592 = vpack.c.b16 %v9912, %v9904
        %v10593 = vpack.c.b16 %v9913, %v9905
        %v10594 = vpack.c.b16 %v9914, %v9906
        %v10595 = vpack.c.b16 %v9915, %v9907
        %v10596 = vpack.c.b16 %v9924, %v9916
        %v10597 = vpack.c.b16 %v9925, %v9917
        %v10598 = vpack.c.b16 %v9926, %v9918
        %v10599 = vpack.c.b16 %v9927, %v9919
        %v10600 = vpack.c.b16 %v9928, %v9920
        %v10601 = vpack.c.b16 %v9929, %v9921
        %v10602 = vpack.c.b16 %v9930, %v9922
        %v10603 = vpack.c.b16 %v9931, %v9923
        %v10604 = vpack.c.b16 %v9940, %v9932
        %v10605 = vpack.c.b16 %v9941, %v9933
        %v10606 = vpack.c.b16 %v9942, %v9934
        %v10607 = vpack.c.b16 %v9943, %v9935
        %v10608 = vpack.c.b16 %v9944, %v9936
        %v10609 = vpack.c.b16 %v9945, %v9937
        %v10610 = vpack.c.b16 %v9946, %v9938
        %v10611 = vpack.c.b16 %v9947, %v9939
        %v10612 = vpack.c.b16 %v9956, %v9948
        %v10613 = vpack.c.b16 %v9957, %v9949
        %v10614 = vpack.c.b16 %v9958, %v9950
        %v10615 = vpack.c.b16 %v9959, %v9951
        %v10616 = vpack.c.b16 %v9960, %v9952
        %v10617 = vpack.c.b16 %v9961, %v9953
        %v10618 = vpack.c.b16 %v9962, %v9954
        %v10619 = vpack.c.b16 %v9963, %v9955
        %v10620 = vpack.c.b16 %v9972, %v9964
        %v10621 = vpack.c.b16 %v9973, %v9965
        %v10622 = vpack.c.b16 %v9974, %v9966
        %v10623 = vpack.c.b16 %v9975, %v9967
        %v10624 = vpack.c.b16 %v9976, %v9968
        %v10625 = vpack.c.b16 %v9977, %v9969
        %v10626 = vpack.c.b16 %v9978, %v9970
        %v10627 = vpack.c.b16 %v9979, %v9971
        %v10628 = vpack.c.b16 %v9988, %v9980
        %v10629 = vpack.c.b16 %v9989, %v9981
        %v10630 = vpack.c.b16 %v9990, %v9982
        %v10631 = vpack.c.b16 %v9991, %v9983
        %v10632 = vpack.c.b16 %v9992, %v9984
        %v10633 = vpack.c.b16 %v9993, %v9985
        %v10634 = vpack.c.b16 %v9994, %v9986
        %v10635 = vpack.c.b16 %v9995, %v9987
        %v10636 = vpack.c.b16 %v10004, %v9996
        %v10637 = vpack.c.b16 %v10005, %v9997
        %v10638 = vpack.c.b16 %v10006, %v9998
        %v10639 = vpack.c.b16 %v10007, %v9999
        %v10640 = vpack.c.b16 %v10008, %v10000
        %v10641 = vpack.c.b16 %v10009, %v10001
        %v10642 = vpack.c.b16 %v10010, %v10002
        %v10643 = vpack.c.b16 %v10011, %v10003
        %v10644 = vpack.c.b16 %v10020, %v10012
        %v10645 = vpack.c.b16 %v10021, %v10013
        %v10646 = vpack.c.b16 %v10022, %v10014
        %v10647 = vpack.c.b16 %v10023, %v10015
        %v10648 = vpack.c.b16 %v10024, %v10016
        %v10649 = vpack.c.b16 %v10025, %v10017
        %v10650 = vpack.c.b16 %v10026, %v10018
        %v10651 = vpack.c.b16 %v10027, %v10019
        %v10652 = vpack.c.b16 %v10036, %v10028
        %v10653 = vpack.c.b16 %v10037, %v10029
        %v10654 = vpack.c.b16 %v10038, %v10030
        %v10655 = vpack.c.b16 %v10039, %v10031
        %v10656 = vpack.c.b16 %v10040, %v10032
        %v10657 = vpack.c.b16 %v10041, %v10033
        %v10658 = vpack.c.b16 %v10042, %v10034
        %v10659 = vpack.c.b16 %v10043, %v10035
        %v10660 = vpack.c.b16 %v10052, %v10044
        %v10661 = vpack.c.b16 %v10053, %v10045
        %v10662 = vpack.c.b16 %v10054, %v10046
        %v10663 = vpack.c.b16 %v10055, %v10047
        %v10664 = vpack.c.b16 %v10056, %v10048
        %v10665 = vpack.c.b16 %v10057, %v10049
        %v10666 = vpack.c.b16 %v10058, %v10050
        %v10667 = vpack.c.b16 %v10059, %v10051
        %v10668 = vpack.c.b16 %v10068, %v10060
        %v10669 = vpack.c.b16 %v10069, %v10061
        %v10670 = vpack.c.b16 %v10070, %v10062
        %v10671 = vpack.c.b16 %v10071, %v10063
        %v10672 = vpack.c.b16 %v10072, %v10064
        %v10673 = vpack.c.b16 %v10073, %v10065
        %v10674 = vpack.c.b16 %v10074, %v10066
        %v10675 = vpack.c.b16 %v10075, %v10067
        %v10676 = vpack.c.b16 %v10084, %v10076
        %v10677 = vpack.c.b16 %v10085, %v10077
        %v10678 = vpack.c.b16 %v10086, %v10078
        %v10679 = vpack.c.b16 %v10087, %v10079
        %v10680 = vpack.c.b16 %v10088, %v10080
        %v10681 = vpack.c.b16 %v10089, %v10081
        %v10682 = vpack.c.b16 %v10090, %v10082
        %v10683 = vpack.c.b16 %v10091, %v10083
        %v10684 = vpack.c.b16 %v10100, %v10092
        %v10685 = vpack.c.b16 %v10101, %v10093
        %v10686 = vpack.c.b16 %v10102, %v10094
        %v10687 = vpack.c.b16 %v10103, %v10095
        %v10688 = vpack.c.b16 %v10104, %v10096
        %v10689 = vpack.c.b16 %v10105, %v10097
        %v10690 = vpack.c.b16 %v10106, %v10098
        %v10691 = vpack.c.b16 %v10107, %v10099
        %v10692 = vpack.c.b16 %v10116, %v10108
        %v10693 = vpack.c.b16 %v10117, %v10109
        %v10694 = vpack.c.b16 %v10118, %v10110
        %v10695 = vpack.c.b16 %v10119, %v10111
        %v10696 = vpack.c.b16 %v10120, %v10112
        %v10697 = vpack.c.b16 %v10121, %v10113
        %v10698 = vpack.c.b16 %v10122, %v10114
        %v10699 = vpack.c.b16 %v10123, %v10115
        %v10700 = vpack.c.b16 %v10132, %v10124
        %v10701 = vpack.c.b16 %v10133, %v10125
        %v10702 = vpack.c.b16 %v10134, %v10126
        %v10703 = vpack.c.b16 %v10135, %v10127
        %v10704 = vpack.c.b16 %v10136, %v10128
        %v10705 = vpack.c.b16 %v10137, %v10129
        %v10706 = vpack.c.b16 %v10138, %v10130
        %v10707 = vpack.c.b16 %v10139, %v10131
        %v10708 = vpack.c.b16 %v10148, %v10140
        %v10709 = vpack.c.b16 %v10149, %v10141
        %v10710 = vpack.c.b16 %v10150, %v10142
        %v10711 = vpack.c.b16 %v10151, %v10143
        %v10712 = vpack.c.b16 %v10152, %v10144
        %v10713 = vpack.c.b16 %v10153, %v10145
        %v10714 = vpack.c.b16 %v10154, %v10146
        %v10715 = vpack.c.b16 %v10155, %v10147
        %v10716 = vpack.c.b16 %v10164, %v10156
        %v10717 = vpack.c.b16 %v10165, %v10157
        %v10718 = vpack.c.b16 %v10166, %v10158
        %v10719 = vpack.c.b16 %v10167, %v10159
        %v10720 = vpack.c.b16 %v10168, %v10160
        %v10721 = vpack.c.b16 %v10169, %v10161
        %v10722 = vpack.c.b16 %v10170, %v10162
        %v10723 = vpack.c.b16 %v10171, %v10163
        %v10724 = vpack.c.b16 %v10180, %v10172
        %v10725 = vpack.c.b16 %v10181, %v10173
        %v10726 = vpack.c.b16 %v10182, %v10174
        %v10727 = vpack.c.b16 %v10183, %v10175
        %v10728 = vpack.c.b16 %v10184, %v10176
        %v10729 = vpack.c.b16 %v10185, %v10177
        %v10730 = vpack.c.b16 %v10186, %v10178
        %v10731 = vpack.c.b16 %v10187, %v10179
        %v10732 = vpack.c.b16 %v10196, %v10188
        %v10733 = vpack.c.b16 %v10197, %v10189
        %v10734 = vpack.c.b16 %v10198, %v10190
        %v10735 = vpack.c.b16 %v10199, %v10191
        %v10736 = vpack.c.b16 %v10200, %v10192
        %v10737 = vpack.c.b16 %v10201, %v10193
        %v10738 = vpack.c.b16 %v10202, %v10194
        %v10739 = vpack.c.b16 %v10203, %v10195
        %v10740 = vpack.c.b16 %v10212, %v10204
        %v10741 = vpack.c.b16 %v10213, %v10205
        %v10742 = vpack.c.b16 %v10214, %v10206
        %v10743 = vpack.c.b16 %v10215, %v10207
        %v10744 = vpack.c.b16 %v10216, %v10208
        %v10745 = vpack.c.b16 %v10217, %v10209
        %v10746 = vpack.c.b16 %v10218, %v10210
        %v10747 = vpack.c.b16 %v10219, %v10211
        %v10748 = vpack.c.b16 %v10228, %v10220
        %v10749 = vpack.c.b16 %v10229, %v10221
        %v10750 = vpack.c.b16 %v10230, %v10222
        %v10751 = vpack.c.b16 %v10231, %v10223
        %v10752 = vpack.c.b16 %v10232, %v10224
        %v10753 = vpack.c.b16 %v10233, %v10225
        %v10754 = vpack.c.b16 %v10234, %v10226
        %v10755 = vpack.c.b16 %v10235, %v10227
        %v10756 = vpack.c.b16 %v10244, %v10236
        %v10757 = vpack.c.b16 %v10245, %v10237
        %v10758 = vpack.c.b16 %v10246, %v10238
        %v10759 = vpack.c.b16 %v10247, %v10239
        %v10760 = vpack.c.b16 %v10248, %v10240
        %v10761 = vpack.c.b16 %v10249, %v10241
        %v10762 = vpack.c.b16 %v10250, %v10242
        %v10763 = vpack.c.b16 %v10251, %v10243
        %11276 = vmatprep.subr.bf16.mxu0 %v10309
        %11277 = vmatpush1.bf16.msra.mxu0 %v10308
        %11278 = vmatprep.subr.bf16.mxu0 %v10301
        %11279 = vmatpush1.bf16.msra.mxu0 %v10300
        %11280 = vmatprep.subr.bf16.mxu0 %v10293
        %11281 = vmatpush1.bf16.msra.mxu0 %v10292
        %11282 = vmatprep.subr.bf16.mxu0 %v10285
        %11283 = vmatpush1.bf16.msra.mxu0 %v10284
        %11284 = vmatprep.subr.bf16.mxu0 %v10277
        %11285 = vmatpush1.bf16.msra.mxu0 %v10276
        %11286 = vmatprep.subr.bf16.mxu0 %v10269
        %11287 = vmatpush1.bf16.msra.mxu0 %v10268
        %11288 = vmatprep.subr.bf16.mxu0 %v10261
        %11289 = vmatpush1.bf16.msra.mxu0 %v10260
        %11290 = vmatprep.subr.bf16.mxu0 %v10253
        %11291 = vmatpush1.bf16.msra.mxu0 %v10252
        %11292 = vmatprep.subr.bf16.mxu0 %v10373
        %11293 = vmatpush2.bf16.msra.mxu0 %v10372
        %11294 = vmatprep.subr.bf16.mxu0 %v10365
        %11295 = vmatpush2.bf16.msra.mxu0 %v10364
        %11296 = vmatprep.subr.bf16.mxu0 %v10357
        %11297 = vmatpush2.bf16.msra.mxu0 %v10356
        %11298 = vmatprep.subr.bf16.mxu0 %v10349
        %11299 = vmatpush2.bf16.msra.mxu0 %v10348
        %11300 = vmatprep.subr.bf16.mxu0 %v10341
        %11301 = vmatpush2.bf16.msra.mxu0 %v10340
        %11302 = vmatprep.subr.bf16.mxu0 %v10333
        %11303 = vmatpush2.bf16.msra.mxu0 %v10332
        %11304 = vmatprep.subr.bf16.mxu0 %v10325
        %11305 = vmatpush2.bf16.msra.mxu0 %v10324
        %11306 = vmatprep.subr.bf16.mxu0 %v10317
        %11307 = vmatpush2.bf16.msra.mxu0 %v10316
        %11308 = vmatprep.mubr.bf16.mxu0 %v8197
        %11309 = vmatmul.mubr.bf16.gmra.mxu0 %v8196
        %v11310 = vpop.f32.mrf.mxu0
        %v11311 = vadd.f32 0.0, %v11310
        %v11312 = vpop.f32.mrf.mxu0
        %v11313 = vadd.f32 0.0, %v11312
        %v11314 = vpop.f32.mrf.mxu0
        %v11315 = vpop.f32.mrf.mxu0
        %11316 = vdwg.mxu0
        %11317 = vmatprep.subr.bf16.mxu0 %v10437
        %11318 = vmatpush1.bf16.msra.mxu0 %v10436
        %11319 = vmatprep.subr.bf16.mxu0 %v10429
        %11320 = vmatpush1.bf16.msra.mxu0 %v10428
        %11321 = vmatprep.subr.bf16.mxu0 %v10421
        %11322 = vmatpush1.bf16.msra.mxu0 %v10420
        %11323 = vmatprep.subr.bf16.mxu0 %v10413
        %11324 = vmatpush1.bf16.msra.mxu0 %v10412
        %11325 = vmatprep.subr.bf16.mxu0 %v10405
        %11326 = vmatpush1.bf16.msra.mxu0 %v10404
        %11327 = vmatprep.subr.bf16.mxu0 %v10397
        %11328 = vmatpush1.bf16.msra.mxu0 %v10396
        %11329 = vmatprep.subr.bf16.mxu0 %v10389
        %11330 = vmatpush1.bf16.msra.mxu0 %v10388
        %11331 = vmatprep.subr.bf16.mxu0 %v10381
        %11332 = vmatpush1.bf16.msra.mxu0 %v10380
        %11333 = vmatprep.subr.bf16.mxu0 %v10501
        %11334 = vmatpush2.bf16.msra.mxu0 %v10500
        %11335 = vmatprep.subr.bf16.mxu0 %v10493
        %11336 = vmatpush2.bf16.msra.mxu0 %v10492
        %11337 = vmatprep.subr.bf16.mxu0 %v10485
        %11338 = vmatpush2.bf16.msra.mxu0 %v10484
        %11339 = vmatprep.subr.bf16.mxu0 %v10477
        %11340 = vmatpush2.bf16.msra.mxu0 %v10476
        %11341 = vmatprep.subr.bf16.mxu0 %v10469
        %11342 = vmatpush2.bf16.msra.mxu0 %v10468
        %11343 = vmatprep.subr.bf16.mxu0 %v10461
        %11344 = vmatpush2.bf16.msra.mxu0 %v10460
        %11345 = vmatprep.subr.bf16.mxu0 %v10453
        %11346 = vmatpush2.bf16.msra.mxu0 %v10452
        %11347 = vmatprep.subr.bf16.mxu0 %v10445
        %11348 = vmatpush2.bf16.msra.mxu0 %v10444
        %11349 = vmatprep.mubr.bf16.mxu0 %v8199
        %11350 = vmatmul.mubr.bf16.gmra.mxu0 %v8198
        %v11351 = vpop.f32.mrf.mxu0
        %v11352 = vadd.f32 %v11311, %v11351
        %v11353 = vpop.f32.mrf.mxu0
        %v11354 = vadd.f32 %v11313, %v11353
        %v11355 = vpop.f32.mrf.mxu0
        %v11356 = vpop.f32.mrf.mxu0
        %11357 = vdwg.mxu0
        %11358 = vmatprep.subr.bf16.mxu0 %v10565
        %11359 = vmatpush1.bf16.msra.mxu0 %v10564
        %11360 = vmatprep.subr.bf16.mxu0 %v10557
        %11361 = vmatpush1.bf16.msra.mxu0 %v10556
        %11362 = vmatprep.subr.bf16.mxu0 %v10549
        %11363 = vmatpush1.bf16.msra.mxu0 %v10548
        %11364 = vmatprep.subr.bf16.mxu0 %v10541
        %11365 = vmatpush1.bf16.msra.mxu0 %v10540
        %11366 = vmatprep.subr.bf16.mxu0 %v10533
        %11367 = vmatpush1.bf16.msra.mxu0 %v10532
        %11368 = vmatprep.subr.bf16.mxu0 %v10525
        %11369 = vmatpush1.bf16.msra.mxu0 %v10524
        %11370 = vmatprep.subr.bf16.mxu0 %v10517
        %11371 = vmatpush1.bf16.msra.mxu0 %v10516
        %11372 = vmatprep.subr.bf16.mxu0 %v10509
        %11373 = vmatpush1.bf16.msra.mxu0 %v10508
        %11374 = vmatprep.subr.bf16.mxu0 %v10629
        %11375 = vmatpush2.bf16.msra.mxu0 %v10628
        %11376 = vmatprep.subr.bf16.mxu0 %v10621
        %11377 = vmatpush2.bf16.msra.mxu0 %v10620
        %11378 = vmatprep.subr.bf16.mxu0 %v10613
        %11379 = vmatpush2.bf16.msra.mxu0 %v10612
        %11380 = vmatprep.subr.bf16.mxu0 %v10605
        %11381 = vmatpush2.bf16.msra.mxu0 %v10604
        %11382 = vmatprep.subr.bf16.mxu0 %v10597
        %11383 = vmatpush2.bf16.msra.mxu0 %v10596
        %11384 = vmatprep.subr.bf16.mxu0 %v10589
        %11385 = vmatpush2.bf16.msra.mxu0 %v10588
        %11386 = vmatprep.subr.bf16.mxu0 %v10581
        %11387 = vmatpush2.bf16.msra.mxu0 %v10580
        %11388 = vmatprep.subr.bf16.mxu0 %v10573
        %11389 = vmatpush2.bf16.msra.mxu0 %v10572
        %11390 = vmatprep.mubr.bf16.mxu0 %v8201
        %11391 = vmatmul.mubr.bf16.gmra.mxu0 %v8200
        %v11392 = vpop.f32.mrf.mxu0
        %v11393 = vadd.f32 %v11352, %v11392
        %v11394 = vpop.f32.mrf.mxu0
        %v11395 = vadd.f32 %v11354, %v11394
        %v11396 = vpop.f32.mrf.mxu0
        %v11397 = vpop.f32.mrf.mxu0
        %11398 = vdwg.mxu0
        %11399 = vmatprep.subr.bf16.mxu0 %v10693
        %11400 = vmatpush1.bf16.msra.mxu0 %v10692
        %11401 = vmatprep.subr.bf16.mxu0 %v10685
        %11402 = vmatpush1.bf16.msra.mxu0 %v10684
        %11403 = vmatprep.subr.bf16.mxu0 %v10677
        %11404 = vmatpush1.bf16.msra.mxu0 %v10676
        %11405 = vmatprep.subr.bf16.mxu0 %v10669
        %11406 = vmatpush1.bf16.msra.mxu0 %v10668
        %11407 = vmatprep.subr.bf16.mxu0 %v10661
        %11408 = vmatpush1.bf16.msra.mxu0 %v10660
        %11409 = vmatprep.subr.bf16.mxu0 %v10653
        %11410 = vmatpush1.bf16.msra.mxu0 %v10652
        %11411 = vmatprep.subr.bf16.mxu0 %v10645
        %11412 = vmatpush1.bf16.msra.mxu0 %v10644
        %11413 = vmatprep.subr.bf16.mxu0 %v10637
        %11414 = vmatpush1.bf16.msra.mxu0 %v10636
        %11415 = vmatprep.subr.bf16.mxu0 %v10757
        %11416 = vmatpush2.bf16.msra.mxu0 %v10756
        %11417 = vmatprep.subr.bf16.mxu0 %v10749
        %11418 = vmatpush2.bf16.msra.mxu0 %v10748
        %11419 = vmatprep.subr.bf16.mxu0 %v10741
        %11420 = vmatpush2.bf16.msra.mxu0 %v10740
        %11421 = vmatprep.subr.bf16.mxu0 %v10733
        %11422 = vmatpush2.bf16.msra.mxu0 %v10732
        %11423 = vmatprep.subr.bf16.mxu0 %v10725
        %11424 = vmatpush2.bf16.msra.mxu0 %v10724
        %11425 = vmatprep.subr.bf16.mxu0 %v10717
        %11426 = vmatpush2.bf16.msra.mxu0 %v10716
        %11427 = vmatprep.subr.bf16.mxu0 %v10709
        %11428 = vmatpush2.bf16.msra.mxu0 %v10708
        %11429 = vmatprep.subr.bf16.mxu0 %v10701
        %11430 = vmatpush2.bf16.msra.mxu0 %v10700
        %11431 = vmatprep.mubr.bf16.mxu0 %v8203
        %11432 = vmatmul.mubr.bf16.gmra.mxu0 %v8202
        %v11433 = vpop.f32.mrf.mxu0
        %v11434 = vadd.f32 %v11393, %v11433
        %v11435 = vpop.f32.mrf.mxu0
        %v11436 = vadd.f32 %v11395, %v11435
        %v11437 = vpop.f32.mrf.mxu0
        %v11438 = vpop.f32.mrf.mxu0
        %11439 = vdwg.mxu0
        %11440 = vmatprep.subr.bf16.mxu0 %v10311
        %11441 = vmatpush1.bf16.msra.mxu0 %v10310
        %11442 = vmatprep.subr.bf16.mxu0 %v10303
        %11443 = vmatpush1.bf16.msra.mxu0 %v10302
        %11444 = vmatprep.subr.bf16.mxu0 %v10295
        %11445 = vmatpush1.bf16.msra.mxu0 %v10294
        %11446 = vmatprep.subr.bf16.mxu0 %v10287
        %11447 = vmatpush1.bf16.msra.mxu0 %v10286
        %11448 = vmatprep.subr.bf16.mxu0 %v10279
        %11449 = vmatpush1.bf16.msra.mxu0 %v10278
        %11450 = vmatprep.subr.bf16.mxu0 %v10271
        %11451 = vmatpush1.bf16.msra.mxu0 %v10270
        %11452 = vmatprep.subr.bf16.mxu0 %v10263
        %11453 = vmatpush1.bf16.msra.mxu0 %v10262
        %11454 = vmatprep.subr.bf16.mxu0 %v10255
        %11455 = vmatpush1.bf16.msra.mxu0 %v10254
        %11456 = vmatprep.subr.bf16.mxu0 %v10375
        %11457 = vmatpush2.bf16.msra.mxu0 %v10374
        %11458 = vmatprep.subr.bf16.mxu0 %v10367
        %11459 = vmatpush2.bf16.msra.mxu0 %v10366
        %11460 = vmatprep.subr.bf16.mxu0 %v10359
        %11461 = vmatpush2.bf16.msra.mxu0 %v10358
        %11462 = vmatprep.subr.bf16.mxu0 %v10351
        %11463 = vmatpush2.bf16.msra.mxu0 %v10350
        %11464 = vmatprep.subr.bf16.mxu0 %v10343
        %11465 = vmatpush2.bf16.msra.mxu0 %v10342
        %11466 = vmatprep.subr.bf16.mxu0 %v10335
        %11467 = vmatpush2.bf16.msra.mxu0 %v10334
        %11468 = vmatprep.subr.bf16.mxu0 %v10327
        %11469 = vmatpush2.bf16.msra.mxu0 %v10326
        %11470 = vmatprep.subr.bf16.mxu0 %v10319
        %11471 = vmatpush2.bf16.msra.mxu0 %v10318
        %11472 = vmatprep.mubr.bf16.mxu0 %v8197
        %11473 = vmatmul.mubr.bf16.gmra.mxu0 %v8196
        %v11474 = vpop.f32.mrf.mxu0
        %v11475 = vadd.f32 0.0, %v11474
        %v11476 = vpop.f32.mrf.mxu0
        %v11477 = vadd.f32 0.0, %v11476
        %v11478 = vpop.f32.mrf.mxu0
        %v11479 = vpop.f32.mrf.mxu0
        %11480 = vdwg.mxu0
        %11481 = vmatprep.subr.bf16.mxu0 %v10439
        %11482 = vmatpush1.bf16.msra.mxu0 %v10438
        %11483 = vmatprep.subr.bf16.mxu0 %v10431
        %11484 = vmatpush1.bf16.msra.mxu0 %v10430
        %11485 = vmatprep.subr.bf16.mxu0 %v10423
        %11486 = vmatpush1.bf16.msra.mxu0 %v10422
        %11487 = vmatprep.subr.bf16.mxu0 %v10415
        %11488 = vmatpush1.bf16.msra.mxu0 %v10414
        %11489 = vmatprep.subr.bf16.mxu0 %v10407
        %11490 = vmatpush1.bf16.msra.mxu0 %v10406
        %11491 = vmatprep.subr.bf16.mxu0 %v10399
        %11492 = vmatpush1.bf16.msra.mxu0 %v10398
        %11493 = vmatprep.subr.bf16.mxu0 %v10391
        %11494 = vmatpush1.bf16.msra.mxu0 %v10390
        %11495 = vmatprep.subr.bf16.mxu0 %v10383
        %11496 = vmatpush1.bf16.msra.mxu0 %v10382
        %11497 = vmatprep.subr.bf16.mxu0 %v10503
        %11498 = vmatpush2.bf16.msra.mxu0 %v10502
        %11499 = vmatprep.subr.bf16.mxu0 %v10495
        %11500 = vmatpush2.bf16.msra.mxu0 %v10494
        %11501 = vmatprep.subr.bf16.mxu0 %v10487
        %11502 = vmatpush2.bf16.msra.mxu0 %v10486
        %11503 = vmatprep.subr.bf16.mxu0 %v10479
        %11504 = vmatpush2.bf16.msra.mxu0 %v10478
        %11505 = vmatprep.subr.bf16.mxu0 %v10471
        %11506 = vmatpush2.bf16.msra.mxu0 %v10470
        %11507 = vmatprep.subr.bf16.mxu0 %v10463
        %11508 = vmatpush2.bf16.msra.mxu0 %v10462
        %11509 = vmatprep.subr.bf16.mxu0 %v10455
        %11510 = vmatpush2.bf16.msra.mxu0 %v10454
        %11511 = vmatprep.subr.bf16.mxu0 %v10447
        %11512 = vmatpush2.bf16.msra.mxu0 %v10446
        %11513 = vmatprep.mubr.bf16.mxu0 %v8199
        %11514 = vmatmul.mubr.bf16.gmra.mxu0 %v8198
        %v11515 = vpop.f32.mrf.mxu0
        %v11516 = vadd.f32 %v11475, %v11515
        %v11517 = vpop.f32.mrf.mxu0
        %v11518 = vadd.f32 %v11477, %v11517
        %v11519 = vpop.f32.mrf.mxu0
        %v11520 = vpop.f32.mrf.mxu0
        %11521 = vdwg.mxu0
        %11522 = vmatprep.subr.bf16.mxu0 %v10567
        %11523 = vmatpush1.bf16.msra.mxu0 %v10566
        %11524 = vmatprep.subr.bf16.mxu0 %v10559
        %11525 = vmatpush1.bf16.msra.mxu0 %v10558
        %11526 = vmatprep.subr.bf16.mxu0 %v10551
        %11527 = vmatpush1.bf16.msra.mxu0 %v10550
        %11528 = vmatprep.subr.bf16.mxu0 %v10543
        %11529 = vmatpush1.bf16.msra.mxu0 %v10542
        %11530 = vmatprep.subr.bf16.mxu0 %v10535
        %11531 = vmatpush1.bf16.msra.mxu0 %v10534
        %11532 = vmatprep.subr.bf16.mxu0 %v10527
        %11533 = vmatpush1.bf16.msra.mxu0 %v10526
        %11534 = vmatprep.subr.bf16.mxu0 %v10519
        %11535 = vmatpush1.bf16.msra.mxu0 %v10518
        %11536 = vmatprep.subr.bf16.mxu0 %v10511
        %11537 = vmatpush1.bf16.msra.mxu0 %v10510
        %11538 = vmatprep.subr.bf16.mxu0 %v10631
        %11539 = vmatpush2.bf16.msra.mxu0 %v10630
        %11540 = vmatprep.subr.bf16.mxu0 %v10623
        %11541 = vmatpush2.bf16.msra.mxu0 %v10622
        %11542 = vmatprep.subr.bf16.mxu0 %v10615
        %11543 = vmatpush2.bf16.msra.mxu0 %v10614
        %11544 = vmatprep.subr.bf16.mxu0 %v10607
        %11545 = vmatpush2.bf16.msra.mxu0 %v10606
        %11546 = vmatprep.subr.bf16.mxu0 %v10599
        %11547 = vmatpush2.bf16.msra.mxu0 %v10598
        %11548 = vmatprep.subr.bf16.mxu0 %v10591
        %11549 = vmatpush2.bf16.msra.mxu0 %v10590
        %11550 = vmatprep.subr.bf16.mxu0 %v10583
        %11551 = vmatpush2.bf16.msra.mxu0 %v10582
        %11552 = vmatprep.subr.bf16.mxu0 %v10575
        %11553 = vmatpush2.bf16.msra.mxu0 %v10574
        %11554 = vmatprep.mubr.bf16.mxu0 %v8201
        %11555 = vmatmul.mubr.bf16.gmra.mxu0 %v8200
        %v11556 = vpop.f32.mrf.mxu0
        %v11557 = vadd.f32 %v11516, %v11556
        %v11558 = vpop.f32.mrf.mxu0
        %v11559 = vadd.f32 %v11518, %v11558
        %v11560 = vpop.f32.mrf.mxu0
        %v11561 = vpop.f32.mrf.mxu0
        %11562 = vdwg.mxu0
        %11563 = vmatprep.subr.bf16.mxu0 %v10695
        %11564 = vmatpush1.bf16.msra.mxu0 %v10694
        %11565 = vmatprep.subr.bf16.mxu0 %v10687
        %11566 = vmatpush1.bf16.msra.mxu0 %v10686
        %11567 = vmatprep.subr.bf16.mxu0 %v10679
        %11568 = vmatpush1.bf16.msra.mxu0 %v10678
        %11569 = vmatprep.subr.bf16.mxu0 %v10671
        %11570 = vmatpush1.bf16.msra.mxu0 %v10670
        %11571 = vmatprep.subr.bf16.mxu0 %v10663
        %11572 = vmatpush1.bf16.msra.mxu0 %v10662
        %11573 = vmatprep.subr.bf16.mxu0 %v10655
        %11574 = vmatpush1.bf16.msra.mxu0 %v10654
        %11575 = vmatprep.subr.bf16.mxu0 %v10647
        %11576 = vmatpush1.bf16.msra.mxu0 %v10646
        %11577 = vmatprep.subr.bf16.mxu0 %v10639
        %11578 = vmatpush1.bf16.msra.mxu0 %v10638
        %11579 = vmatprep.subr.bf16.mxu0 %v10759
        %11580 = vmatpush2.bf16.msra.mxu0 %v10758
        %11581 = vmatprep.subr.bf16.mxu0 %v10751
        %11582 = vmatpush2.bf16.msra.mxu0 %v10750
        %11583 = vmatprep.subr.bf16.mxu0 %v10743
        %11584 = vmatpush2.bf16.msra.mxu0 %v10742
        %11585 = vmatprep.subr.bf16.mxu0 %v10735
        %11586 = vmatpush2.bf16.msra.mxu0 %v10734
        %11587 = vmatprep.subr.bf16.mxu0 %v10727
        %11588 = vmatpush2.bf16.msra.mxu0 %v10726
        %11589 = vmatprep.subr.bf16.mxu0 %v10719
        %11590 = vmatpush2.bf16.msra.mxu0 %v10718
        %11591 = vmatprep.subr.bf16.mxu0 %v10711
        %11592 = vmatpush2.bf16.msra.mxu0 %v10710
        %11593 = vmatprep.subr.bf16.mxu0 %v10703
        %11594 = vmatpush2.bf16.msra.mxu0 %v10702
        %11595 = vmatprep.mubr.bf16.mxu0 %v8203
        %11596 = vmatmul.mubr.bf16.gmra.mxu0 %v8202
        %v11597 = vpop.f32.mrf.mxu0
        %v11598 = vadd.f32 %v11557, %v11597
        %v11599 = vpop.f32.mrf.mxu0
        %v11600 = vadd.f32 %v11559, %v11599
        %v11601 = vpop.f32.mrf.mxu0
        %v11602 = vpop.f32.mrf.mxu0
        %11603 = vdwg.mxu0
        %11604 = vmatprep.subr.bf16.mxu0 %v10313
        %11605 = vmatpush1.bf16.msra.mxu0 %v10312
        %11606 = vmatprep.subr.bf16.mxu0 %v10305
        %11607 = vmatpush1.bf16.msra.mxu0 %v10304
        %11608 = vmatprep.subr.bf16.mxu0 %v10297
        %11609 = vmatpush1.bf16.msra.mxu0 %v10296
        %11610 = vmatprep.subr.bf16.mxu0 %v10289
        %11611 = vmatpush1.bf16.msra.mxu0 %v10288
        %11612 = vmatprep.subr.bf16.mxu0 %v10281
        %11613 = vmatpush1.bf16.msra.mxu0 %v10280
        %11614 = vmatprep.subr.bf16.mxu0 %v10273
        %11615 = vmatpush1.bf16.msra.mxu0 %v10272
        %11616 = vmatprep.subr.bf16.mxu0 %v10265
        %11617 = vmatpush1.bf16.msra.mxu0 %v10264
        %11618 = vmatprep.subr.bf16.mxu0 %v10257
        %11619 = vmatpush1.bf16.msra.mxu0 %v10256
        %11620 = vmatprep.subr.bf16.mxu0 %v10377
        %11621 = vmatpush2.bf16.msra.mxu0 %v10376
        %11622 = vmatprep.subr.bf16.mxu0 %v10369
        %11623 = vmatpush2.bf16.msra.mxu0 %v10368
        %11624 = vmatprep.subr.bf16.mxu0 %v10361
        %11625 = vmatpush2.bf16.msra.mxu0 %v10360
        %11626 = vmatprep.subr.bf16.mxu0 %v10353
        %11627 = vmatpush2.bf16.msra.mxu0 %v10352
        %11628 = vmatprep.subr.bf16.mxu0 %v10345
        %11629 = vmatpush2.bf16.msra.mxu0 %v10344
        %11630 = vmatprep.subr.bf16.mxu0 %v10337
        %11631 = vmatpush2.bf16.msra.mxu0 %v10336
        %11632 = vmatprep.subr.bf16.mxu0 %v10329
        %11633 = vmatpush2.bf16.msra.mxu0 %v10328
        %11634 = vmatprep.subr.bf16.mxu0 %v10321
        %11635 = vmatpush2.bf16.msra.mxu0 %v10320
        %11636 = vmatprep.mubr.bf16.mxu0 %v8197
        %11637 = vmatmul.mubr.bf16.gmra.mxu0 %v8196
        %v11638 = vpop.f32.mrf.mxu0
        %v11639 = vadd.f32 0.0, %v11638
        %v11640 = vpop.f32.mrf.mxu0
        %v11641 = vadd.f32 0.0, %v11640
        %v11642 = vpop.f32.mrf.mxu0
        %v11643 = vpop.f32.mrf.mxu0
        %11644 = vdwg.mxu0
        %11645 = vmatprep.subr.bf16.mxu0 %v10441
        %11646 = vmatpush1.bf16.msra.mxu0 %v10440
        %11647 = vmatprep.subr.bf16.mxu0 %v10433
        %11648 = vmatpush1.bf16.msra.mxu0 %v10432
        %11649 = vmatprep.subr.bf16.mxu0 %v10425
        %11650 = vmatpush1.bf16.msra.mxu0 %v10424
        %11651 = vmatprep.subr.bf16.mxu0 %v10417
        %11652 = vmatpush1.bf16.msra.mxu0 %v10416
        %11653 = vmatprep.subr.bf16.mxu0 %v10409
        %11654 = vmatpush1.bf16.msra.mxu0 %v10408
        %11655 = vmatprep.subr.bf16.mxu0 %v10401
        %11656 = vmatpush1.bf16.msra.mxu0 %v10400
        %11657 = vmatprep.subr.bf16.mxu0 %v10393
        %11658 = vmatpush1.bf16.msra.mxu0 %v10392
        %11659 = vmatprep.subr.bf16.mxu0 %v10385
        %11660 = vmatpush1.bf16.msra.mxu0 %v10384
        %11661 = vmatprep.subr.bf16.mxu0 %v10505
        %11662 = vmatpush2.bf16.msra.mxu0 %v10504
        %11663 = vmatprep.subr.bf16.mxu0 %v10497
        %11664 = vmatpush2.bf16.msra.mxu0 %v10496
        %11665 = vmatprep.subr.bf16.mxu0 %v10489
        %11666 = vmatpush2.bf16.msra.mxu0 %v10488
        %11667 = vmatprep.subr.bf16.mxu0 %v10481
        %11668 = vmatpush2.bf16.msra.mxu0 %v10480
        %11669 = vmatprep.subr.bf16.mxu0 %v10473
        %11670 = vmatpush2.bf16.msra.mxu0 %v10472
        %11671 = vmatprep.subr.bf16.mxu0 %v10465
        %11672 = vmatpush2.bf16.msra.mxu0 %v10464
        %11673 = vmatprep.subr.bf16.mxu0 %v10457
        %11674 = vmatpush2.bf16.msra.mxu0 %v10456
        %11675 = vmatprep.subr.bf16.mxu0 %v10449
        %11676 = vmatpush2.bf16.msra.mxu0 %v10448
        %11677 = vmatprep.mubr.bf16.mxu0 %v8199
        %11678 = vmatmul.mubr.bf16.gmra.mxu0 %v8198
        %v11679 = vpop.f32.mrf.mxu0
        %v11680 = vadd.f32 %v11639, %v11679
        %v11681 = vpop.f32.mrf.mxu0
        %v11682 = vadd.f32 %v11641, %v11681
        %v11683 = vpop.f32.mrf.mxu0
        %v11684 = vpop.f32.mrf.mxu0
        %11685 = vdwg.mxu0
        %11686 = vmatprep.subr.bf16.mxu0 %v10569
        %11687 = vmatpush1.bf16.msra.mxu0 %v10568
        %11688 = vmatprep.subr.bf16.mxu0 %v10561
        %11689 = vmatpush1.bf16.msra.mxu0 %v10560
        %11690 = vmatprep.subr.bf16.mxu0 %v10553
        %11691 = vmatpush1.bf16.msra.mxu0 %v10552
        %11692 = vmatprep.subr.bf16.mxu0 %v10545
        %11693 = vmatpush1.bf16.msra.mxu0 %v10544
        %11694 = vmatprep.subr.bf16.mxu0 %v10537
        %11695 = vmatpush1.bf16.msra.mxu0 %v10536
        %11696 = vmatprep.subr.bf16.mxu0 %v10529
        %11697 = vmatpush1.bf16.msra.mxu0 %v10528
        %11698 = vmatprep.subr.bf16.mxu0 %v10521
        %11699 = vmatpush1.bf16.msra.mxu0 %v10520
        %11700 = vmatprep.subr.bf16.mxu0 %v10513
        %11701 = vmatpush1.bf16.msra.mxu0 %v10512
        %11702 = vmatprep.subr.bf16.mxu0 %v10633
        %11703 = vmatpush2.bf16.msra.mxu0 %v10632
        %11704 = vmatprep.subr.bf16.mxu0 %v10625
        %11705 = vmatpush2.bf16.msra.mxu0 %v10624
        %11706 = vmatprep.subr.bf16.mxu0 %v10617
        %11707 = vmatpush2.bf16.msra.mxu0 %v10616
        %11708 = vmatprep.subr.bf16.mxu0 %v10609
        %11709 = vmatpush2.bf16.msra.mxu0 %v10608
        %11710 = vmatprep.subr.bf16.mxu0 %v10601
        %11711 = vmatpush2.bf16.msra.mxu0 %v10600
        %11712 = vmatprep.subr.bf16.mxu0 %v10593
        %11713 = vmatpush2.bf16.msra.mxu0 %v10592
        %11714 = vmatprep.subr.bf16.mxu0 %v10585
        %11715 = vmatpush2.bf16.msra.mxu0 %v10584
        %11716 = vmatprep.subr.bf16.mxu0 %v10577
        %11717 = vmatpush2.bf16.msra.mxu0 %v10576
        %11718 = vmatprep.mubr.bf16.mxu0 %v8201
        %11719 = vmatmul.mubr.bf16.gmra.mxu0 %v8200
        %v11720 = vpop.f32.mrf.mxu0
        %v11721 = vadd.f32 %v11680, %v11720
        %v11722 = vpop.f32.mrf.mxu0
        %v11723 = vadd.f32 %v11682, %v11722
        %v11724 = vpop.f32.mrf.mxu0
        %v11725 = vpop.f32.mrf.mxu0
        %11726 = vdwg.mxu0
        %11727 = vmatprep.subr.bf16.mxu0 %v10697
        %11728 = vmatpush1.bf16.msra.mxu0 %v10696
        %11729 = vmatprep.subr.bf16.mxu0 %v10689
        %11730 = vmatpush1.bf16.msra.mxu0 %v10688
        %11731 = vmatprep.subr.bf16.mxu0 %v10681
        %11732 = vmatpush1.bf16.msra.mxu0 %v10680
        %11733 = vmatprep.subr.bf16.mxu0 %v10673
        %11734 = vmatpush1.bf16.msra.mxu0 %v10672
        %11735 = vmatprep.subr.bf16.mxu0 %v10665
        %11736 = vmatpush1.bf16.msra.mxu0 %v10664
        %11737 = vmatprep.subr.bf16.mxu0 %v10657
        %11738 = vmatpush1.bf16.msra.mxu0 %v10656
        %11739 = vmatprep.subr.bf16.mxu0 %v10649
        %11740 = vmatpush1.bf16.msra.mxu0 %v10648
        %11741 = vmatprep.subr.bf16.mxu0 %v10641
        %11742 = vmatpush1.bf16.msra.mxu0 %v10640
        %11743 = vmatprep.subr.bf16.mxu0 %v10761
        %11744 = vmatpush2.bf16.msra.mxu0 %v10760
        %11745 = vmatprep.subr.bf16.mxu0 %v10753
        %11746 = vmatpush2.bf16.msra.mxu0 %v10752
        %11747 = vmatprep.subr.bf16.mxu0 %v10745
        %11748 = vmatpush2.bf16.msra.mxu0 %v10744
        %11749 = vmatprep.subr.bf16.mxu0 %v10737
        %11750 = vmatpush2.bf16.msra.mxu0 %v10736
        %11751 = vmatprep.subr.bf16.mxu0 %v10729
        %11752 = vmatpush2.bf16.msra.mxu0 %v10728
        %11753 = vmatprep.subr.bf16.mxu0 %v10721
        %11754 = vmatpush2.bf16.msra.mxu0 %v10720
        %11755 = vmatprep.subr.bf16.mxu0 %v10713
        %11756 = vmatpush2.bf16.msra.mxu0 %v10712
        %11757 = vmatprep.subr.bf16.mxu0 %v10705
        %11758 = vmatpush2.bf16.msra.mxu0 %v10704
        %11759 = vmatprep.mubr.bf16.mxu0 %v8203
        %11760 = vmatmul.mubr.bf16.gmra.mxu0 %v8202
        %v11761 = vpop.f32.mrf.mxu0
        %v11762 = vadd.f32 %v11721, %v11761
        %v11763 = vpop.f32.mrf.mxu0
        %v11764 = vadd.f32 %v11723, %v11763
        %v11765 = vpop.f32.mrf.mxu0
        %v11766 = vpop.f32.mrf.mxu0
        %11767 = vdwg.mxu0
        %11768 = vmatprep.subr.bf16.mxu0 %v10315
        %11769 = vmatpush1.bf16.msra.mxu0 %v10314
        %11770 = vmatprep.subr.bf16.mxu0 %v10307
        %11771 = vmatpush1.bf16.msra.mxu0 %v10306
        %11772 = vmatprep.subr.bf16.mxu0 %v10299
        %11773 = vmatpush1.bf16.msra.mxu0 %v10298
        %11774 = vmatprep.subr.bf16.mxu0 %v10291
        %11775 = vmatpush1.bf16.msra.mxu0 %v10290
        %11776 = vmatprep.subr.bf16.mxu0 %v10283
        %11777 = vmatpush1.bf16.msra.mxu0 %v10282
        %11778 = vmatprep.subr.bf16.mxu0 %v10275
        %11779 = vmatpush1.bf16.msra.mxu0 %v10274
        %11780 = vmatprep.subr.bf16.mxu0 %v10267
        %11781 = vmatpush1.bf16.msra.mxu0 %v10266
        %11782 = vmatprep.subr.bf16.mxu0 %v10259
        %11783 = vmatpush1.bf16.msra.mxu0 %v10258
        %11784 = vmatprep.subr.bf16.mxu0 %v10379
        %11785 = vmatpush2.bf16.msra.mxu0 %v10378
        %11786 = vmatprep.subr.bf16.mxu0 %v10371
        %11787 = vmatpush2.bf16.msra.mxu0 %v10370
        %11788 = vmatprep.subr.bf16.mxu0 %v10363
        %11789 = vmatpush2.bf16.msra.mxu0 %v10362
        %11790 = vmatprep.subr.bf16.mxu0 %v10355
        %11791 = vmatpush2.bf16.msra.mxu0 %v10354
        %11792 = vmatprep.subr.bf16.mxu0 %v10347
        %11793 = vmatpush2.bf16.msra.mxu0 %v10346
        %11794 = vmatprep.subr.bf16.mxu0 %v10339
        %11795 = vmatpush2.bf16.msra.mxu0 %v10338
        %11796 = vmatprep.subr.bf16.mxu0 %v10331
        %11797 = vmatpush2.bf16.msra.mxu0 %v10330
        %11798 = vmatprep.subr.bf16.mxu0 %v10323
        %11799 = vmatpush2.bf16.msra.mxu0 %v10322
        %11800 = vmatprep.mubr.bf16.mxu0 %v8197
        %11801 = vmatmul.mubr.bf16.gmra.mxu0 %v8196
        %v11802 = vpop.f32.mrf.mxu0
        %v11803 = vadd.f32 0.0, %v11802
        %v11804 = vpop.f32.mrf.mxu0
        %v11805 = vadd.f32 0.0, %v11804
        %v11806 = vpop.f32.mrf.mxu0
        %v11807 = vpop.f32.mrf.mxu0
        %11808 = vdwg.mxu0
        %11809 = vmatprep.subr.bf16.mxu0 %v10443
        %11810 = vmatpush1.bf16.msra.mxu0 %v10442
        %11811 = vmatprep.subr.bf16.mxu0 %v10435
        %11812 = vmatpush1.bf16.msra.mxu0 %v10434
        %11813 = vmatprep.subr.bf16.mxu0 %v10427
        %11814 = vmatpush1.bf16.msra.mxu0 %v10426
        %11815 = vmatprep.subr.bf16.mxu0 %v10419
        %11816 = vmatpush1.bf16.msra.mxu0 %v10418
        %11817 = vmatprep.subr.bf16.mxu0 %v10411
        %11818 = vmatpush1.bf16.msra.mxu0 %v10410
        %11819 = vmatprep.subr.bf16.mxu0 %v10403
        %11820 = vmatpush1.bf16.msra.mxu0 %v10402
        %11821 = vmatprep.subr.bf16.mxu0 %v10395
        %11822 = vmatpush1.bf16.msra.mxu0 %v10394
        %11823 = vmatprep.subr.bf16.mxu0 %v10387
        %11824 = vmatpush1.bf16.msra.mxu0 %v10386
        %11825 = vmatprep.subr.bf16.mxu0 %v10507
        %11826 = vmatpush2.bf16.msra.mxu0 %v10506
        %11827 = vmatprep.subr.bf16.mxu0 %v10499
        %11828 = vmatpush2.bf16.msra.mxu0 %v10498
        %11829 = vmatprep.subr.bf16.mxu0 %v10491
        %11830 = vmatpush2.bf16.msra.mxu0 %v10490
        %11831 = vmatprep.subr.bf16.mxu0 %v10483
        %11832 = vmatpush2.bf16.msra.mxu0 %v10482
        %11833 = vmatprep.subr.bf16.mxu0 %v10475
        %11834 = vmatpush2.bf16.msra.mxu0 %v10474
        %11835 = vmatprep.subr.bf16.mxu0 %v10467
        %11836 = vmatpush2.bf16.msra.mxu0 %v10466
        %11837 = vmatprep.subr.bf16.mxu0 %v10459
        %11838 = vmatpush2.bf16.msra.mxu0 %v10458
        %11839 = vmatprep.subr.bf16.mxu0 %v10451
        %11840 = vmatpush2.bf16.msra.mxu0 %v10450
        %11841 = vmatprep.mubr.bf16.mxu0 %v8199
        %11842 = vmatmul.mubr.bf16.gmra.mxu0 %v8198
        %v11843 = vpop.f32.mrf.mxu0
        %v11844 = vadd.f32 %v11803, %v11843
        %v11845 = vpop.f32.mrf.mxu0
        %v11846 = vadd.f32 %v11805, %v11845
        %v11847 = vpop.f32.mrf.mxu0
        %v11848 = vpop.f32.mrf.mxu0
        %11849 = vdwg.mxu0
        %11850 = vmatprep.subr.bf16.mxu0 %v10571
        %11851 = vmatpush1.bf16.msra.mxu0 %v10570
        %11852 = vmatprep.subr.bf16.mxu0 %v10563
        %11853 = vmatpush1.bf16.msra.mxu0 %v10562
        %11854 = vmatprep.subr.bf16.mxu0 %v10555
        %11855 = vmatpush1.bf16.msra.mxu0 %v10554
        %11856 = vmatprep.subr.bf16.mxu0 %v10547
        %11857 = vmatpush1.bf16.msra.mxu0 %v10546
        %11858 = vmatprep.subr.bf16.mxu0 %v10539
        %11859 = vmatpush1.bf16.msra.mxu0 %v10538
        %11860 = vmatprep.subr.bf16.mxu0 %v10531
        %11861 = vmatpush1.bf16.msra.mxu0 %v10530
        %11862 = vmatprep.subr.bf16.mxu0 %v10523
        %11863 = vmatpush1.bf16.msra.mxu0 %v10522
        %11864 = vmatprep.subr.bf16.mxu0 %v10515
        %11865 = vmatpush1.bf16.msra.mxu0 %v10514
        %11866 = vmatprep.subr.bf16.mxu0 %v10635
        %11867 = vmatpush2.bf16.msra.mxu0 %v10634
        %11868 = vmatprep.subr.bf16.mxu0 %v10627
        %11869 = vmatpush2.bf16.msra.mxu0 %v10626
        %11870 = vmatprep.subr.bf16.mxu0 %v10619
        %11871 = vmatpush2.bf16.msra.mxu0 %v10618
        %11872 = vmatprep.subr.bf16.mxu0 %v10611
        %11873 = vmatpush2.bf16.msra.mxu0 %v10610
        %11874 = vmatprep.subr.bf16.mxu0 %v10603
        %11875 = vmatpush2.bf16.msra.mxu0 %v10602
        %11876 = vmatprep.subr.bf16.mxu0 %v10595
        %11877 = vmatpush2.bf16.msra.mxu0 %v10594
        %11878 = vmatprep.subr.bf16.mxu0 %v10587
        %11879 = vmatpush2.bf16.msra.mxu0 %v10586
        %11880 = vmatprep.subr.bf16.mxu0 %v10579
        %11881 = vmatpush2.bf16.msra.mxu0 %v10578
        %11882 = vmatprep.mubr.bf16.mxu0 %v8201
        %11883 = vmatmul.mubr.bf16.gmra.mxu0 %v8200
        %v11884 = vpop.f32.mrf.mxu0
        %v11885 = vadd.f32 %v11844, %v11884
        %v11886 = vpop.f32.mrf.mxu0
        %v11887 = vadd.f32 %v11846, %v11886
        %v11888 = vpop.f32.mrf.mxu0
        %v11889 = vpop.f32.mrf.mxu0
        %11890 = vdwg.mxu0
        %11891 = vmatprep.subr.bf16.mxu0 %v10699
        %11892 = vmatpush1.bf16.msra.mxu0 %v10698
        %11893 = vmatprep.subr.bf16.mxu0 %v10691
        %11894 = vmatpush1.bf16.msra.mxu0 %v10690
        %11895 = vmatprep.subr.bf16.mxu0 %v10683
        %11896 = vmatpush1.bf16.msra.mxu0 %v10682
        %11897 = vmatprep.subr.bf16.mxu0 %v10675
        %11898 = vmatpush1.bf16.msra.mxu0 %v10674
        %11899 = vmatprep.subr.bf16.mxu0 %v10667
        %11900 = vmatpush1.bf16.msra.mxu0 %v10666
        %11901 = vmatprep.subr.bf16.mxu0 %v10659
        %11902 = vmatpush1.bf16.msra.mxu0 %v10658
        %11903 = vmatprep.subr.bf16.mxu0 %v10651
        %11904 = vmatpush1.bf16.msra.mxu0 %v10650
        %11905 = vmatprep.subr.bf16.mxu0 %v10643
        %11906 = vmatpush1.bf16.msra.mxu0 %v10642
        %11907 = vmatprep.subr.bf16.mxu0 %v10763
        %11908 = vmatpush2.bf16.msra.mxu0 %v10762
        %11909 = vmatprep.subr.bf16.mxu0 %v10755
        %11910 = vmatpush2.bf16.msra.mxu0 %v10754
        %11911 = vmatprep.subr.bf16.mxu0 %v10747
        %11912 = vmatpush2.bf16.msra.mxu0 %v10746
        %11913 = vmatprep.subr.bf16.mxu0 %v10739
        %11914 = vmatpush2.bf16.msra.mxu0 %v10738
        %11915 = vmatprep.subr.bf16.mxu0 %v10731
        %11916 = vmatpush2.bf16.msra.mxu0 %v10730
        %11917 = vmatprep.subr.bf16.mxu0 %v10723
        %11918 = vmatpush2.bf16.msra.mxu0 %v10722
        %11919 = vmatprep.subr.bf16.mxu0 %v10715
        %11920 = vmatpush2.bf16.msra.mxu0 %v10714
        %11921 = vmatprep.subr.bf16.mxu0 %v10707
        %11922 = vmatpush2.bf16.msra.mxu0 %v10706
        %11923 = vmatprep.mubr.bf16.mxu0 %v8203
        %11924 = vmatmul.mubr.bf16.gmra.mxu0 %v8202
        %v11925 = vpop.f32.mrf.mxu0
        %v11926 = vadd.f32 %v11885, %v11925
        %v11927 = vpop.f32.mrf.mxu0
        %v11928 = vadd.f32 %v11887, %v11927
        %v11929 = vpop.f32.mrf.mxu0
        %v11930 = vpop.f32.mrf.mxu0
        %11931 = vdwg.mxu0
        %v11940 = vcombine.low %v11434, %v11436
        %v11941 = vcombine.low %v11598, %v11600
        %v11943 = vunpack.c.l.s4 1983009808
        %v11944 = vunpack.c.0.s8 %v11943
        %v11945 = vlaneseq
        %v11946 = vshrl.u32 %v11945, 7
        %v11947 = vsub.s32 %v11944, %v11946
        %v11948 = vrot.slane %v11940, %v11947
        %v11950 = vunpack.c.l.s4 1983009808
        %v11951 = vunpack.c.0.s8 %v11950
        %v11952 = vlaneseq
        %v11953 = vshrl.u32 %v11952, 7
        %v11954 = vsub.s32 %v11951, %v11953
        %v11955 = vrot.slane %v11941, %v11954
        %v11956 = vcombine.low %v11948, %v11955
        %v11957 = vcombine.low %v11762, %v11764
        %v11958 = vcombine.low %v11926, %v11928
        %v11960 = vunpack.c.l.s4 1983009808
        %v11961 = vunpack.c.0.s8 %v11960
        %v11962 = vlaneseq
        %v11963 = vshrl.u32 %v11962, 7
        %v11964 = vsub.s32 %v11961, %v11963
        %v11965 = vrot.slane %v11957, %v11964
        %v11967 = vunpack.c.l.s4 1983009808
        %v11968 = vunpack.c.0.s8 %v11967
        %v11969 = vlaneseq
        %v11970 = vshrl.u32 %v11969, 7
        %v11971 = vsub.s32 %v11968, %v11970
        %v11972 = vrot.slane %v11958, %v11971
        %v11973 = vcombine.low %v11965, %v11972
        %v11976 = vadd.f32 %v8194, %v11956
        %v11977 = vadd.f32 %v8195, %v11973
        %11978 = vst [vmem:[#allocation2] sm:$0xff] %v11976
        %11979 = vst [vmem:[#allocation2 + $0x8] sm:$0xff] %v11977
        %p11980 = scmp.eq.s32.totalorder %s30, 3
        // Predicated region
        $region93: #{tpu_custom_call.1} parent=55 // pred_check
          %p11981 = pneg %p11980
        $region94: #{tpu_custom_call.1} parent=55 // pred_check_branch
          %11983 = sbr.rel (%p11981) target = $region96
        $region95: #{tpu_custom_call.1} parent=55 // pred_region
          %v11984 = vld [vmem:[#allocation2] sm:$0xff]
          %v11985 = vld [vmem:[#allocation2 + $0x8] sm:$0xff]
          %v11986 = vld [vmem:[#allocation12] sm:$0xff]
          %v11988 = vlaneseq
          %v11989 = vshrl.u32 %v11988, 7
          %v11990 = vsub.s32 0, %v11989
          %v11991 = vrot.slane %v11986, %v11990
          %v11992 = vlaneseq
          %v11993 = vshrl.u32 %v11992, 7
          %v11994 = vsub.s32 1, %v11993
          %v11995 = vrot.slane %v11986, %v11994
          %v11996 = vlaneseq
          %v11997 = vshrl.u32 %v11996, 7
          %v11998 = vsub.s32 2, %v11997
          %v11999 = vrot.slane %v11986, %v11998
          %v12000 = vlaneseq
          %v12001 = vshrl.u32 %v12000, 7
          %v12002 = vsub.s32 3, %v12001
          %v12003 = vrot.slane %v11986, %v12002
          %v12004 = vlaneseq
          %v12005 = vshrl.u32 %v12004, 7
          %v12006 = vsub.s32 4, %v12005
          %v12007 = vrot.slane %v11986, %v12006
          %v12008 = vlaneseq
          %v12009 = vshrl.u32 %v12008, 7
          %v12010 = vsub.s32 5, %v12009
          %v12011 = vrot.slane %v11986, %v12010
          %v12012 = vlaneseq
          %v12013 = vshrl.u32 %v12012, 7
          %v12014 = vsub.s32 6, %v12013
          %v12015 = vrot.slane %v11986, %v12014
          %v12016 = vlaneseq
          %v12017 = vshrl.u32 %v12016, 7
          %v12018 = vsub.s32 7, %v12017
          %v12019 = vrot.slane %v11986, %v12018
          %v12020 = vcombine.low %v11991, %v11995
          %v12021 = vcombine.low %v11999, %v12003
          %v12023 = vunpack.c.l.s4 1983009808
          %v12024 = vunpack.c.0.s8 %v12023
          %v12025 = vlaneseq
          %v12026 = vshrl.u32 %v12025, 7
          %v12027 = vsub.s32 %v12024, %v12026
          %v12028 = vrot.slane %v12020, %v12027
          %v12030 = vunpack.c.l.s4 1983009808
          %v12031 = vunpack.c.0.s8 %v12030
          %v12032 = vlaneseq
          %v12033 = vshrl.u32 %v12032, 7
          %v12034 = vsub.s32 %v12031, %v12033
          %v12035 = vrot.slane %v12021, %v12034
          %v12036 = vcombine.low %v12028, %v12035
          %v12037 = vcombine.low %v12007, %v12011
          %v12038 = vcombine.low %v12015, %v12019
          %v12040 = vunpack.c.l.s4 1983009808
          %v12041 = vunpack.c.0.s8 %v12040
          %v12042 = vlaneseq
          %v12043 = vshrl.u32 %v12042, 7
          %v12044 = vsub.s32 %v12041, %v12043
          %v12045 = vrot.slane %v12037, %v12044
          %v12047 = vunpack.c.l.s4 1983009808
          %v12048 = vunpack.c.0.s8 %v12047
          %v12049 = vlaneseq
          %v12050 = vshrl.u32 %v12049, 7
          %v12051 = vsub.s32 %v12048, %v12050
          %v12052 = vrot.slane %v12038, %v12051
          %v12053 = vcombine.low %v12045, %v12052
          %v12056 = vmul.f32 %v11984, %v12036
          %v12057 = vmul.f32 %v11985, %v12053
          %v12058 = vld [vmem:[#allocation14] sm:$0xff]
          %v12060 = vlaneseq
          %v12061 = vshrl.u32 %v12060, 7
          %v12062 = vsub.s32 0, %v12061
          %v12063 = vrot.slane %v12058, %v12062
          %v12064 = vlaneseq
          %v12065 = vshrl.u32 %v12064, 7
          %v12066 = vsub.s32 1, %v12065
          %v12067 = vrot.slane %v12058, %v12066
          %v12068 = vlaneseq
          %v12069 = vshrl.u32 %v12068, 7
          %v12070 = vsub.s32 2, %v12069
          %v12071 = vrot.slane %v12058, %v12070
          %v12072 = vlaneseq
          %v12073 = vshrl.u32 %v12072, 7
          %v12074 = vsub.s32 3, %v12073
          %v12075 = vrot.slane %v12058, %v12074
          %v12076 = vlaneseq
          %v12077 = vshrl.u32 %v12076, 7
          %v12078 = vsub.s32 4, %v12077
          %v12079 = vrot.slane %v12058, %v12078
          %v12080 = vlaneseq
          %v12081 = vshrl.u32 %v12080, 7
          %v12082 = vsub.s32 5, %v12081
          %v12083 = vrot.slane %v12058, %v12082
          %v12084 = vlaneseq
          %v12085 = vshrl.u32 %v12084, 7
          %v12086 = vsub.s32 6, %v12085
          %v12087 = vrot.slane %v12058, %v12086
          %v12088 = vlaneseq
          %v12089 = vshrl.u32 %v12088, 7
          %v12090 = vsub.s32 7, %v12089
          %v12091 = vrot.slane %v12058, %v12090
          %v12092 = vcombine.low %v12063, %v12067
          %v12093 = vcombine.low %v12071, %v12075
          %v12095 = vunpack.c.l.s4 1983009808
          %v12096 = vunpack.c.0.s8 %v12095
          %v12097 = vlaneseq
          %v12098 = vshrl.u32 %v12097, 7
          %v12099 = vsub.s32 %v12096, %v12098
          %v12100 = vrot.slane %v12092, %v12099
          %v12102 = vunpack.c.l.s4 1983009808
          %v12103 = vunpack.c.0.s8 %v12102
          %v12104 = vlaneseq
          %v12105 = vshrl.u32 %v12104, 7
          %v12106 = vsub.s32 %v12103, %v12105
          %v12107 = vrot.slane %v12093, %v12106
          %v12108 = vcombine.low %v12100, %v12107
          %v12109 = vcombine.low %v12079, %v12083
          %v12110 = vcombine.low %v12087, %v12091
          %v12112 = vunpack.c.l.s4 1983009808
          %v12113 = vunpack.c.0.s8 %v12112
          %v12114 = vlaneseq
          %v12115 = vshrl.u32 %v12114, 7
          %v12116 = vsub.s32 %v12113, %v12115
          %v12117 = vrot.slane %v12109, %v12116
          %v12119 = vunpack.c.l.s4 1983009808
          %v12120 = vunpack.c.0.s8 %v12119
          %v12121 = vlaneseq
          %v12122 = vshrl.u32 %v12121, 7
          %v12123 = vsub.s32 %v12120, %v12122
          %v12124 = vrot.slane %v12110, %v12123
          %v12125 = vcombine.low %v12117, %v12124
          %v12128 = vadd.f32 %v12056, %v12108
          %v12129 = vadd.f32 %v12057, %v12125
          %v12130 = vmax.f32 %v12128, 0.0
          %v12131 = vmax.f32 %v12129, 0.0
          %v12134 = vcombine.high %v12130, %v12130
          %v12136 = vunpack.c.l.s4 1983009808
          %v12137 = vunpack.c.0.s8 %v12136
          %v12138 = vlaneseq
          %v12139 = vshrl.u32 %v12138, 7
          %v12140 = vsub.s32 %v12137, %v12139
          %v12141 = vrot.slane %v12130, %v12140
          %v12143 = vunpack.c.l.s4 1983009808
          %v12144 = vunpack.c.0.s8 %v12143
          %v12145 = vlaneseq
          %v12146 = vshrl.u32 %v12145, 7
          %v12147 = vsub.s32 %v12144, %v12146
          %v12148 = vrot.slane %v12134, %v12147
          %v12149 = vcombine.high %v12141, %v12141
          %v12150 = vcombine.high %v12148, %v12148
          %v12151 = vcombine.high %v12131, %v12131
          %v12153 = vunpack.c.l.s4 1983009808
          %v12154 = vunpack.c.0.s8 %v12153
          %v12155 = vlaneseq
          %v12156 = vshrl.u32 %v12155, 7
          %v12157 = vsub.s32 %v12154, %v12156
          %v12158 = vrot.slane %v12131, %v12157
          %v12160 = vunpack.c.l.s4 1983009808
          %v12161 = vunpack.c.0.s8 %v12160
          %v12162 = vlaneseq
          %v12163 = vshrl.u32 %v12162, 7
          %v12164 = vsub.s32 %v12161, %v12163
          %v12165 = vrot.slane %v12151, %v12164
          %v12166 = vcombine.high %v12158, %v12158
          %v12167 = vcombine.high %v12165, %v12165
          %v12176 = vpack.c.bf16 %v12141, %v12141
          %v12177 = vpack.c.bf16 %v12149, %v12149
          %v12178 = vpack.c.bf16 %v12148, %v12148
          %v12179 = vpack.c.bf16 %v12150, %v12150
          %v12180 = vpack.c.bf16 %v12158, %v12158
          %v12181 = vpack.c.bf16 %v12166, %v12166
          %v12182 = vpack.c.bf16 %v12165, %v12165
          %v12183 = vpack.c.bf16 %v12167, %v12167
          %v12184 = vld [vmem:[%s7] sm:$0xf]
          %v12185 = vld [vmem:[%s7 + $0x4] sm:$0xf]
          %v12186 = vld [vmem:[%s7 + $0x8] sm:$0xf]
          %v12187 = vld [vmem:[%s7 + $0xc] sm:$0xf]
          %v12188 = vld [vmem:[%s7 + $0x10] sm:$0xf]
          %v12189 = vld [vmem:[%s7 + $0x14] sm:$0xf]
          %v12190 = vld [vmem:[%s7 + $0x18] sm:$0xf]
          %v12191 = vld [vmem:[%s7 + $0x1c] sm:$0xf]
          %v12192 = vld [vmem:[%s7 + $0x20] sm:$0xf]
          %v12193 = vld [vmem:[%s7 + $0x24] sm:$0xf]
          %v12194 = vld [vmem:[%s7 + $0x28] sm:$0xf]
          %v12195 = vld [vmem:[%s7 + $0x2c] sm:$0xf]
          %v12196 = vld [vmem:[%s7 + $0x30] sm:$0xf]
          %v12197 = vld [vmem:[%s7 + $0x34] sm:$0xf]
          %v12198 = vld [vmem:[%s7 + $0x38] sm:$0xf]
          %v12199 = vld [vmem:[%s7 + $0x3c] sm:$0xf]
          %v12200 = vld [vmem:[%s7 + $0x40] sm:$0xf]
          %v12201 = vld [vmem:[%s7 + $0x44] sm:$0xf]
          %v12202 = vld [vmem:[%s7 + $0x48] sm:$0xf]
          %v12203 = vld [vmem:[%s7 + $0x4c] sm:$0xf]
          %v12204 = vld [vmem:[%s7 + $0x50] sm:$0xf]
          %v12205 = vld [vmem:[%s7 + $0x54] sm:$0xf]
          %v12206 = vld [vmem:[%s7 + $0x58] sm:$0xf]
          %v12207 = vld [vmem:[%s7 + $0x5c] sm:$0xf]
          %v12208 = vld [vmem:[%s7 + $0x60] sm:$0xf]
          %v12209 = vld [vmem:[%s7 + $0x64] sm:$0xf]
          %v12210 = vld [vmem:[%s7 + $0x68] sm:$0xf]
          %v12211 = vld [vmem:[%s7 + $0x6c] sm:$0xf]
          %v12212 = vld [vmem:[%s7 + $0x70] sm:$0xf]
          %v12213 = vld [vmem:[%s7 + $0x74] sm:$0xf]
          %v12214 = vld [vmem:[%s7 + $0x78] sm:$0xf]
          %v12215 = vld [vmem:[%s7 + $0x7c] sm:$0xf]
          %v12216 = vld [vmem:[%s7 + $0x80] sm:$0xf]
          %v12217 = vld [vmem:[%s7 + $0x84] sm:$0xf]
          %v12218 = vld [vmem:[%s7 + $0x88] sm:$0xf]
          %v12219 = vld [vmem:[%s7 + $0x8c] sm:$0xf]
          %v12220 = vld [vmem:[%s7 + $0x90] sm:$0xf]
          %v12221 = vld [vmem:[%s7 + $0x94] sm:$0xf]
          %v12222 = vld [vmem:[%s7 + $0x98] sm:$0xf]
          %v12223 = vld [vmem:[%s7 + $0x9c] sm:$0xf]
          %v12224 = vld [vmem:[%s7 + $0xa0] sm:$0xf]
          %v12225 = vld [vmem:[%s7 + $0xa4] sm:$0xf]
          %v12226 = vld [vmem:[%s7 + $0xa8] sm:$0xf]
          %v12227 = vld [vmem:[%s7 + $0xac] sm:$0xf]
          %v12228 = vld [vmem:[%s7 + $0xb0] sm:$0xf]
          %v12229 = vld [vmem:[%s7 + $0xb4] sm:$0xf]
          %v12230 = vld [vmem:[%s7 + $0xb8] sm:$0xf]
          %v12231 = vld [vmem:[%s7 + $0xbc] sm:$0xf]
          %v12232 = vld [vmem:[%s7 + $0xc0] sm:$0xf]
          %v12233 = vld [vmem:[%s7 + $0xc4] sm:$0xf]
          %v12234 = vld [vmem:[%s7 + $0xc8] sm:$0xf]
          %v12235 = vld [vmem:[%s7 + $0xcc] sm:$0xf]
          %v12236 = vld [vmem:[%s7 + $0xd0] sm:$0xf]
          %v12237 = vld [vmem:[%s7 + $0xd4] sm:$0xf]
          %v12238 = vld [vmem:[%s7 + $0xd8] sm:$0xf]
          %v12239 = vld [vmem:[%s7 + $0xdc] sm:$0xf]
          %v12240 = vld [vmem:[%s7 + $0xe0] sm:$0xf]
          %v12241 = vld [vmem:[%s7 + $0xe4] sm:$0xf]
          %v12242 = vld [vmem:[%s7 + $0xe8] sm:$0xf]
          %v12243 = vld [vmem:[%s7 + $0xec] sm:$0xf]
          %v12244 = vld [vmem:[%s7 + $0xf0] sm:$0xf]
          %v12245 = vld [vmem:[%s7 + $0xf4] sm:$0xf]
          %v12246 = vld [vmem:[%s7 + $0xf8] sm:$0xf]
          %v12247 = vld [vmem:[%s7 + $0xfc] sm:$0xf]
          %v12248 = vld [vmem:[%s7 + $0x100] sm:$0xf]
          %v12249 = vld [vmem:[%s7 + $0x104] sm:$0xf]
          %v12250 = vld [vmem:[%s7 + $0x108] sm:$0xf]
          %v12251 = vld [vmem:[%s7 + $0x10c] sm:$0xf]
          %v12252 = vld [vmem:[%s7 + $0x110] sm:$0xf]
          %v12253 = vld [vmem:[%s7 + $0x114] sm:$0xf]
          %v12254 = vld [vmem:[%s7 + $0x118] sm:$0xf]
          %v12255 = vld [vmem:[%s7 + $0x11c] sm:$0xf]
          %v12256 = vld [vmem:[%s7 + $0x120] sm:$0xf]
          %v12257 = vld [vmem:[%s7 + $0x124] sm:$0xf]
          %v12258 = vld [vmem:[%s7 + $0x128] sm:$0xf]
          %v12259 = vld [vmem:[%s7 + $0x12c] sm:$0xf]
          %v12260 = vld [vmem:[%s7 + $0x130] sm:$0xf]
          %v12261 = vld [vmem:[%s7 + $0x134] sm:$0xf]
          %v12262 = vld [vmem:[%s7 + $0x138] sm:$0xf]
          %v12263 = vld [vmem:[%s7 + $0x13c] sm:$0xf]
          %v12264 = vld [vmem:[%s7 + $0x140] sm:$0xf]
          %v12265 = vld [vmem:[%s7 + $0x144] sm:$0xf]
          %v12266 = vld [vmem:[%s7 + $0x148] sm:$0xf]
          %v12267 = vld [vmem:[%s7 + $0x14c] sm:$0xf]
          %v12268 = vld [vmem:[%s7 + $0x150] sm:$0xf]
          %v12269 = vld [vmem:[%s7 + $0x154] sm:$0xf]
          %v12270 = vld [vmem:[%s7 + $0x158] sm:$0xf]
          %v12271 = vld [vmem:[%s7 + $0x15c] sm:$0xf]
          %v12272 = vld [vmem:[%s7 + $0x160] sm:$0xf]
          %v12273 = vld [vmem:[%s7 + $0x164] sm:$0xf]
          %v12274 = vld [vmem:[%s7 + $0x168] sm:$0xf]
          %v12275 = vld [vmem:[%s7 + $0x16c] sm:$0xf]
          %v12276 = vld [vmem:[%s7 + $0x170] sm:$0xf]
          %v12277 = vld [vmem:[%s7 + $0x174] sm:$0xf]
          %v12278 = vld [vmem:[%s7 + $0x178] sm:$0xf]
          %v12279 = vld [vmem:[%s7 + $0x17c] sm:$0xf]
          %v12280 = vld [vmem:[%s7 + $0x180] sm:$0xf]
          %v12281 = vld [vmem:[%s7 + $0x184] sm:$0xf]
          %v12282 = vld [vmem:[%s7 + $0x188] sm:$0xf]
          %v12283 = vld [vmem:[%s7 + $0x18c] sm:$0xf]
          %v12284 = vld [vmem:[%s7 + $0x190] sm:$0xf]
          %v12285 = vld [vmem:[%s7 + $0x194] sm:$0xf]
          %v12286 = vld [vmem:[%s7 + $0x198] sm:$0xf]
          %v12287 = vld [vmem:[%s7 + $0x19c] sm:$0xf]
          %v12288 = vld [vmem:[%s7 + $0x1a0] sm:$0xf]
          %v12289 = vld [vmem:[%s7 + $0x1a4] sm:$0xf]
          %v12290 = vld [vmem:[%s7 + $0x1a8] sm:$0xf]
          %v12291 = vld [vmem:[%s7 + $0x1ac] sm:$0xf]
          %v12292 = vld [vmem:[%s7 + $0x1b0] sm:$0xf]
          %v12293 = vld [vmem:[%s7 + $0x1b4] sm:$0xf]
          %v12294 = vld [vmem:[%s7 + $0x1b8] sm:$0xf]
          %v12295 = vld [vmem:[%s7 + $0x1bc] sm:$0xf]
          %v12296 = vld [vmem:[%s7 + $0x1c0] sm:$0xf]
          %v12297 = vld [vmem:[%s7 + $0x1c4] sm:$0xf]
          %v12298 = vld [vmem:[%s7 + $0x1c8] sm:$0xf]
          %v12299 = vld [vmem:[%s7 + $0x1cc] sm:$0xf]
          %v12300 = vld [vmem:[%s7 + $0x1d0] sm:$0xf]
          %v12301 = vld [vmem:[%s7 + $0x1d4] sm:$0xf]
          %v12302 = vld [vmem:[%s7 + $0x1d8] sm:$0xf]
          %v12303 = vld [vmem:[%s7 + $0x1dc] sm:$0xf]
          %v12304 = vld [vmem:[%s7 + $0x1e0] sm:$0xf]
          %v12305 = vld [vmem:[%s7 + $0x1e4] sm:$0xf]
          %v12306 = vld [vmem:[%s7 + $0x1e8] sm:$0xf]
          %v12307 = vld [vmem:[%s7 + $0x1ec] sm:$0xf]
          %v12308 = vld [vmem:[%s7 + $0x1f0] sm:$0xf]
          %v12309 = vld [vmem:[%s7 + $0x1f4] sm:$0xf]
          %v12310 = vld [vmem:[%s7 + $0x1f8] sm:$0xf]
          %v12311 = vld [vmem:[%s7 + $0x1fc] sm:$0xf]
          %v12312 = vld [vmem:[#allocation15] sm:$0x1]
          %v12314 = vlaneseq
          %v12315 = vshrl.u32 %v12314, 7
          %v12316 = vsub.s32 0, %v12315
          %v12317 = vrot.slane %v12312, %v12316
          %v12447 = vunpack.c.l.b16 %v12184
          %v12448 = vunpack.c.l.b16 %v12185
          %v12449 = vunpack.c.l.b16 %v12186
          %v12450 = vunpack.c.l.b16 %v12187
          %v12451 = vunpack.c.l.b16 %v12188
          %v12452 = vunpack.c.l.b16 %v12189
          %v12453 = vunpack.c.l.b16 %v12190
          %v12454 = vunpack.c.l.b16 %v12191
          %v12455 = vunpack.c.l.b16 %v12192
          %v12456 = vunpack.c.l.b16 %v12193
          %v12457 = vunpack.c.l.b16 %v12194
          %v12458 = vunpack.c.l.b16 %v12195
          %v12459 = vunpack.c.l.b16 %v12196
          %v12460 = vunpack.c.l.b16 %v12197
          %v12461 = vunpack.c.l.b16 %v12198
          %v12462 = vunpack.c.l.b16 %v12199
          %v12463 = vunpack.c.l.b16 %v12200
          %v12464 = vunpack.c.l.b16 %v12201
          %v12465 = vunpack.c.l.b16 %v12202
          %v12466 = vunpack.c.l.b16 %v12203
          %v12467 = vunpack.c.l.b16 %v12204
          %v12468 = vunpack.c.l.b16 %v12205
          %v12469 = vunpack.c.l.b16 %v12206
          %v12470 = vunpack.c.l.b16 %v12207
          %v12471 = vunpack.c.l.b16 %v12208
          %v12472 = vunpack.c.l.b16 %v12209
          %v12473 = vunpack.c.l.b16 %v12210
          %v12474 = vunpack.c.l.b16 %v12211
          %v12475 = vunpack.c.l.b16 %v12212
          %v12476 = vunpack.c.l.b16 %v12213
          %v12477 = vunpack.c.l.b16 %v12214
          %v12478 = vunpack.c.l.b16 %v12215
          %v12479 = vunpack.c.l.b16 %v12216
          %v12480 = vunpack.c.l.b16 %v12217
          %v12481 = vunpack.c.l.b16 %v12218
          %v12482 = vunpack.c.l.b16 %v12219
          %v12483 = vunpack.c.l.b16 %v12220
          %v12484 = vunpack.c.l.b16 %v12221
          %v12485 = vunpack.c.l.b16 %v12222
          %v12486 = vunpack.c.l.b16 %v12223
          %v12487 = vunpack.c.l.b16 %v12224
          %v12488 = vunpack.c.l.b16 %v12225
          %v12489 = vunpack.c.l.b16 %v12226
          %v12490 = vunpack.c.l.b16 %v12227
          %v12491 = vunpack.c.l.b16 %v12228
          %v12492 = vunpack.c.l.b16 %v12229
          %v12493 = vunpack.c.l.b16 %v12230
          %v12494 = vunpack.c.l.b16 %v12231
          %v12495 = vunpack.c.l.b16 %v12232
          %v12496 = vunpack.c.l.b16 %v12233
          %v12497 = vunpack.c.l.b16 %v12234
          %v12498 = vunpack.c.l.b16 %v12235
          %v12499 = vunpack.c.l.b16 %v12236
          %v12500 = vunpack.c.l.b16 %v12237
          %v12501 = vunpack.c.l.b16 %v12238
          %v12502 = vunpack.c.l.b16 %v12239
          %v12503 = vunpack.c.l.b16 %v12240
          %v12504 = vunpack.c.l.b16 %v12241
          %v12505 = vunpack.c.l.b16 %v12242
          %v12506 = vunpack.c.l.b16 %v12243
          %v12507 = vunpack.c.l.b16 %v12244
          %v12508 = vunpack.c.l.b16 %v12245
          %v12509 = vunpack.c.l.b16 %v12246
          %v12510 = vunpack.c.l.b16 %v12247
          %v12511 = vunpack.c.l.b16 %v12248
          %v12512 = vunpack.c.l.b16 %v12249
          %v12513 = vunpack.c.l.b16 %v12250
          %v12514 = vunpack.c.l.b16 %v12251
          %v12515 = vunpack.c.l.b16 %v12252
          %v12516 = vunpack.c.l.b16 %v12253
          %v12517 = vunpack.c.l.b16 %v12254
          %v12518 = vunpack.c.l.b16 %v12255
          %v12519 = vunpack.c.l.b16 %v12256
          %v12520 = vunpack.c.l.b16 %v12257
          %v12521 = vunpack.c.l.b16 %v12258
          %v12522 = vunpack.c.l.b16 %v12259
          %v12523 = vunpack.c.l.b16 %v12260
          %v12524 = vunpack.c.l.b16 %v12261
          %v12525 = vunpack.c.l.b16 %v12262
          %v12526 = vunpack.c.l.b16 %v12263
          %v12527 = vunpack.c.l.b16 %v12264
          %v12528 = vunpack.c.l.b16 %v12265
          %v12529 = vunpack.c.l.b16 %v12266
          %v12530 = vunpack.c.l.b16 %v12267
          %v12531 = vunpack.c.l.b16 %v12268
          %v12532 = vunpack.c.l.b16 %v12269
          %v12533 = vunpack.c.l.b16 %v12270
          %v12534 = vunpack.c.l.b16 %v12271
          %v12535 = vunpack.c.l.b16 %v12272
          %v12536 = vunpack.c.l.b16 %v12273
          %v12537 = vunpack.c.l.b16 %v12274
          %v12538 = vunpack.c.l.b16 %v12275
          %v12539 = vunpack.c.l.b16 %v12276
          %v12540 = vunpack.c.l.b16 %v12277
          %v12541 = vunpack.c.l.b16 %v12278
          %v12542 = vunpack.c.l.b16 %v12279
          %v12543 = vunpack.c.l.b16 %v12280
          %v12544 = vunpack.c.l.b16 %v12281
          %v12545 = vunpack.c.l.b16 %v12282
          %v12546 = vunpack.c.l.b16 %v12283
          %v12547 = vunpack.c.l.b16 %v12284
          %v12548 = vunpack.c.l.b16 %v12285
          %v12549 = vunpack.c.l.b16 %v12286
          %v12550 = vunpack.c.l.b16 %v12287
          %v12551 = vunpack.c.l.b16 %v12288
          %v12552 = vunpack.c.l.b16 %v12289
          %v12553 = vunpack.c.l.b16 %v12290
          %v12554 = vunpack.c.l.b16 %v12291
          %v12555 = vunpack.c.l.b16 %v12292
          %v12556 = vunpack.c.l.b16 %v12293
          %v12557 = vunpack.c.l.b16 %v12294
          %v12558 = vunpack.c.l.b16 %v12295
          %v12559 = vunpack.c.l.b16 %v12296
          %v12560 = vunpack.c.l.b16 %v12297
          %v12561 = vunpack.c.l.b16 %v12298
          %v12562 = vunpack.c.l.b16 %v12299
          %v12563 = vunpack.c.l.b16 %v12300
          %v12564 = vunpack.c.l.b16 %v12301
          %v12565 = vunpack.c.l.b16 %v12302
          %v12566 = vunpack.c.l.b16 %v12303
          %v12567 = vunpack.c.l.b16 %v12304
          %v12568 = vunpack.c.l.b16 %v12305
          %v12569 = vunpack.c.l.b16 %v12306
          %v12570 = vunpack.c.l.b16 %v12307
          %v12571 = vunpack.c.l.b16 %v12308
          %v12572 = vunpack.c.l.b16 %v12309
          %v12573 = vunpack.c.l.b16 %v12310
          %v12574 = vunpack.c.l.b16 %v12311
          %v12575 = vpack.c.b16 %v12448, %v12447
          %v12576 = vpack.c.b16 %v12450, %v12449
          %v12577 = vpack.c.b16 %v12452, %v12451
          %v12578 = vpack.c.b16 %v12454, %v12453
          %v12579 = vpack.c.b16 %v12456, %v12455
          %v12580 = vpack.c.b16 %v12458, %v12457
          %v12581 = vpack.c.b16 %v12460, %v12459
          %v12582 = vpack.c.b16 %v12462, %v12461
          %v12583 = vpack.c.b16 %v12464, %v12463
          %v12584 = vpack.c.b16 %v12466, %v12465
          %v12585 = vpack.c.b16 %v12468, %v12467
          %v12586 = vpack.c.b16 %v12470, %v12469
          %v12587 = vpack.c.b16 %v12472, %v12471
          %v12588 = vpack.c.b16 %v12474, %v12473
          %v12589 = vpack.c.b16 %v12476, %v12475
          %v12590 = vpack.c.b16 %v12478, %v12477
          %v12591 = vpack.c.b16 %v12480, %v12479
          %v12592 = vpack.c.b16 %v12482, %v12481
          %v12593 = vpack.c.b16 %v12484, %v12483
          %v12594 = vpack.c.b16 %v12486, %v12485
          %v12595 = vpack.c.b16 %v12488, %v12487
          %v12596 = vpack.c.b16 %v12490, %v12489
          %v12597 = vpack.c.b16 %v12492, %v12491
          %v12598 = vpack.c.b16 %v12494, %v12493
          %v12599 = vpack.c.b16 %v12496, %v12495
          %v12600 = vpack.c.b16 %v12498, %v12497
          %v12601 = vpack.c.b16 %v12500, %v12499
          %v12602 = vpack.c.b16 %v12502, %v12501
          %v12603 = vpack.c.b16 %v12504, %v12503
          %v12604 = vpack.c.b16 %v12506, %v12505
          %v12605 = vpack.c.b16 %v12508, %v12507
          %v12606 = vpack.c.b16 %v12510, %v12509
          %v12607 = vpack.c.b16 %v12512, %v12511
          %v12608 = vpack.c.b16 %v12514, %v12513
          %v12609 = vpack.c.b16 %v12516, %v12515
          %v12610 = vpack.c.b16 %v12518, %v12517
          %v12611 = vpack.c.b16 %v12520, %v12519
          %v12612 = vpack.c.b16 %v12522, %v12521
          %v12613 = vpack.c.b16 %v12524, %v12523
          %v12614 = vpack.c.b16 %v12526, %v12525
          %v12615 = vpack.c.b16 %v12528, %v12527
          %v12616 = vpack.c.b16 %v12530, %v12529
          %v12617 = vpack.c.b16 %v12532, %v12531
          %v12618 = vpack.c.b16 %v12534, %v12533
          %v12619 = vpack.c.b16 %v12536, %v12535
          %v12620 = vpack.c.b16 %v12538, %v12537
          %v12621 = vpack.c.b16 %v12540, %v12539
          %v12622 = vpack.c.b16 %v12542, %v12541
          %v12623 = vpack.c.b16 %v12544, %v12543
          %v12624 = vpack.c.b16 %v12546, %v12545
          %v12625 = vpack.c.b16 %v12548, %v12547
          %v12626 = vpack.c.b16 %v12550, %v12549
          %v12627 = vpack.c.b16 %v12552, %v12551
          %v12628 = vpack.c.b16 %v12554, %v12553
          %v12629 = vpack.c.b16 %v12556, %v12555
          %v12630 = vpack.c.b16 %v12558, %v12557
          %v12631 = vpack.c.b16 %v12560, %v12559
          %v12632 = vpack.c.b16 %v12562, %v12561
          %v12633 = vpack.c.b16 %v12564, %v12563
          %v12634 = vpack.c.b16 %v12566, %v12565
          %v12635 = vpack.c.b16 %v12568, %v12567
          %v12636 = vpack.c.b16 %v12570, %v12569
          %v12637 = vpack.c.b16 %v12572, %v12571
          %v12638 = vpack.c.b16 %v12574, %v12573
          %12703 = vmatprep.subr.bf16.mxu0 0
          %12704 = vmatpush1.bf16.msra.mxu0 %v12582
          %12705 = vmatprep.subr.bf16.mxu0 0
          %12706 = vmatpush1.bf16.msra.mxu0 %v12581
          %12707 = vmatprep.subr.bf16.mxu0 0
          %12708 = vmatpush1.bf16.msra.mxu0 %v12580
          %12709 = vmatprep.subr.bf16.mxu0 0
          %12710 = vmatpush1.bf16.msra.mxu0 %v12579
          %12711 = vmatprep.subr.bf16.mxu0 0
          %12712 = vmatpush1.bf16.msra.mxu0 %v12578
          %12713 = vmatprep.subr.bf16.mxu0 0
          %12714 = vmatpush1.bf16.msra.mxu0 %v12577
          %12715 = vmatprep.subr.bf16.mxu0 0
          %12716 = vmatpush1.bf16.msra.mxu0 %v12576
          %12717 = vmatprep.subr.bf16.mxu0 0
          %12718 = vmatpush1.bf16.msra.mxu0 %v12575
          %12719 = vmatprep.subr.bf16.mxu0 0
          %12720 = vmatpush2.bf16.msra.mxu0 %v12590
          %12721 = vmatprep.subr.bf16.mxu0 0
          %12722 = vmatpush2.bf16.msra.mxu0 %v12589
          %12723 = vmatprep.subr.bf16.mxu0 0
          %12724 = vmatpush2.bf16.msra.mxu0 %v12588
          %12725 = vmatprep.subr.bf16.mxu0 0
          %12726 = vmatpush2.bf16.msra.mxu0 %v12587
          %12727 = vmatprep.subr.bf16.mxu0 0
          %12728 = vmatpush2.bf16.msra.mxu0 %v12586
          %12729 = vmatprep.subr.bf16.mxu0 0
          %12730 = vmatpush2.bf16.msra.mxu0 %v12585
          %12731 = vmatprep.subr.bf16.mxu0 0
          %12732 = vmatpush2.bf16.msra.mxu0 %v12584
          %12733 = vmatprep.subr.bf16.mxu0 0
          %12734 = vmatpush2.bf16.msra.mxu0 %v12583
          %12735 = vmatprep.mubr.bf16.mxu0 %v12177
          %12736 = vmatmul.mubr.bf16.gmra.mxu0 %v12176
          %v12737 = vpop.f32.mrf.mxu0
          %v12738 = vadd.f32 %v12317, %v12737
          %v12739 = vpop.f32.mrf.mxu0
          %v12740 = vpop.f32.mrf.mxu0
          %v12741 = vpop.f32.mrf.mxu0
          %12742 = vdwg.mxu0
          %12743 = vmatprep.subr.bf16.mxu0 0
          %12744 = vmatpush1.bf16.msra.mxu0 %v12598
          %12745 = vmatprep.subr.bf16.mxu0 0
          %12746 = vmatpush1.bf16.msra.mxu0 %v12597
          %12747 = vmatprep.subr.bf16.mxu0 0
          %12748 = vmatpush1.bf16.msra.mxu0 %v12596
          %12749 = vmatprep.subr.bf16.mxu0 0
          %12750 = vmatpush1.bf16.msra.mxu0 %v12595
          %12751 = vmatprep.subr.bf16.mxu0 0
          %12752 = vmatpush1.bf16.msra.mxu0 %v12594
          %12753 = vmatprep.subr.bf16.mxu0 0
          %12754 = vmatpush1.bf16.msra.mxu0 %v12593
          %12755 = vmatprep.subr.bf16.mxu0 0
          %12756 = vmatpush1.bf16.msra.mxu0 %v12592
          %12757 = vmatprep.subr.bf16.mxu0 0
          %12758 = vmatpush1.bf16.msra.mxu0 %v12591
          %12759 = vmatprep.subr.bf16.mxu0 0
          %12760 = vmatpush2.bf16.msra.mxu0 %v12606
          %12761 = vmatprep.subr.bf16.mxu0 0
          %12762 = vmatpush2.bf16.msra.mxu0 %v12605
          %12763 = vmatprep.subr.bf16.mxu0 0
          %12764 = vmatpush2.bf16.msra.mxu0 %v12604
          %12765 = vmatprep.subr.bf16.mxu0 0
          %12766 = vmatpush2.bf16.msra.mxu0 %v12603
          %12767 = vmatprep.subr.bf16.mxu0 0
          %12768 = vmatpush2.bf16.msra.mxu0 %v12602
          %12769 = vmatprep.subr.bf16.mxu0 0
          %12770 = vmatpush2.bf16.msra.mxu0 %v12601
          %12771 = vmatprep.subr.bf16.mxu0 0
          %12772 = vmatpush2.bf16.msra.mxu0 %v12600
          %12773 = vmatprep.subr.bf16.mxu0 0
          %12774 = vmatpush2.bf16.msra.mxu0 %v12599
          %12775 = vmatprep.mubr.bf16.mxu0 %v12179
          %12776 = vmatmul.mubr.bf16.gmra.mxu0 %v12178
          %v12777 = vpop.f32.mrf.mxu0
          %v12778 = vadd.f32 %v12738, %v12777
          %v12779 = vpop.f32.mrf.mxu0
          %v12780 = vpop.f32.mrf.mxu0
          %v12781 = vpop.f32.mrf.mxu0
          %12782 = vdwg.mxu0
          %12783 = vmatprep.subr.bf16.mxu0 0
          %12784 = vmatpush1.bf16.msra.mxu0 %v12614
          %12785 = vmatprep.subr.bf16.mxu0 0
          %12786 = vmatpush1.bf16.msra.mxu0 %v12613
          %12787 = vmatprep.subr.bf16.mxu0 0
          %12788 = vmatpush1.bf16.msra.mxu0 %v12612
          %12789 = vmatprep.subr.bf16.mxu0 0
          %12790 = vmatpush1.bf16.msra.mxu0 %v12611
          %12791 = vmatprep.subr.bf16.mxu0 0
          %12792 = vmatpush1.bf16.msra.mxu0 %v12610
          %12793 = vmatprep.subr.bf16.mxu0 0
          %12794 = vmatpush1.bf16.msra.mxu0 %v12609
          %12795 = vmatprep.subr.bf16.mxu0 0
          %12796 = vmatpush1.bf16.msra.mxu0 %v12608
          %12797 = vmatprep.subr.bf16.mxu0 0
          %12798 = vmatpush1.bf16.msra.mxu0 %v12607
          %12799 = vmatprep.subr.bf16.mxu0 0
          %12800 = vmatpush2.bf16.msra.mxu0 %v12622
          %12801 = vmatprep.subr.bf16.mxu0 0
          %12802 = vmatpush2.bf16.msra.mxu0 %v12621
          %12803 = vmatprep.subr.bf16.mxu0 0
          %12804 = vmatpush2.bf16.msra.mxu0 %v12620
          %12805 = vmatprep.subr.bf16.mxu0 0
          %12806 = vmatpush2.bf16.msra.mxu0 %v12619
          %12807 = vmatprep.subr.bf16.mxu0 0
          %12808 = vmatpush2.bf16.msra.mxu0 %v12618
          %12809 = vmatprep.subr.bf16.mxu0 0
          %12810 = vmatpush2.bf16.msra.mxu0 %v12617
          %12811 = vmatprep.subr.bf16.mxu0 0
          %12812 = vmatpush2.bf16.msra.mxu0 %v12616
          %12813 = vmatprep.subr.bf16.mxu0 0
          %12814 = vmatpush2.bf16.msra.mxu0 %v12615
          %12815 = vmatprep.mubr.bf16.mxu0 %v12181
          %12816 = vmatmul.mubr.bf16.gmra.mxu0 %v12180
          %v12817 = vpop.f32.mrf.mxu0
          %v12818 = vadd.f32 %v12778, %v12817
          %v12819 = vpop.f32.mrf.mxu0
          %v12820 = vpop.f32.mrf.mxu0
          %v12821 = vpop.f32.mrf.mxu0
          %12822 = vdwg.mxu0
          %12823 = vmatprep.subr.bf16.mxu0 0
          %12824 = vmatpush1.bf16.msra.mxu0 %v12630
          %12825 = vmatprep.subr.bf16.mxu0 0
          %12826 = vmatpush1.bf16.msra.mxu0 %v12629
          %12827 = vmatprep.subr.bf16.mxu0 0
          %12828 = vmatpush1.bf16.msra.mxu0 %v12628
          %12829 = vmatprep.subr.bf16.mxu0 0
          %12830 = vmatpush1.bf16.msra.mxu0 %v12627
          %12831 = vmatprep.subr.bf16.mxu0 0
          %12832 = vmatpush1.bf16.msra.mxu0 %v12626
          %12833 = vmatprep.subr.bf16.mxu0 0
          %12834 = vmatpush1.bf16.msra.mxu0 %v12625
          %12835 = vmatprep.subr.bf16.mxu0 0
          %12836 = vmatpush1.bf16.msra.mxu0 %v12624
          %12837 = vmatprep.subr.bf16.mxu0 0
          %12838 = vmatpush1.bf16.msra.mxu0 %v12623
          %12839 = vmatprep.subr.bf16.mxu0 0
          %12840 = vmatpush2.bf16.msra.mxu0 %v12638
          %12841 = vmatprep.subr.bf16.mxu0 0
          %12842 = vmatpush2.bf16.msra.mxu0 %v12637
          %12843 = vmatprep.subr.bf16.mxu0 0
          %12844 = vmatpush2.bf16.msra.mxu0 %v12636
          %12845 = vmatprep.subr.bf16.mxu0 0
          %12846 = vmatpush2.bf16.msra.mxu0 %v12635
          %12847 = vmatprep.subr.bf16.mxu0 0
          %12848 = vmatpush2.bf16.msra.mxu0 %v12634
          %12849 = vmatprep.subr.bf16.mxu0 0
          %12850 = vmatpush2.bf16.msra.mxu0 %v12633
          %12851 = vmatprep.subr.bf16.mxu0 0
          %12852 = vmatpush2.bf16.msra.mxu0 %v12632
          %12853 = vmatprep.subr.bf16.mxu0 0
          %12854 = vmatpush2.bf16.msra.mxu0 %v12631
          %12855 = vmatprep.mubr.bf16.mxu0 %v12183
          %12856 = vmatmul.mubr.bf16.gmra.mxu0 %v12182
          %v12857 = vpop.f32.mrf.mxu0
          %v12858 = vadd.f32 %v12818, %v12857
          %v12859 = vpop.f32.mrf.mxu0
          %v12860 = vpop.f32.mrf.mxu0
          %v12861 = vpop.f32.mrf.mxu0
          %12862 = vdwg.mxu0
          %vm12863 = vcmask 74752
          %v12864 = vsel %vm12863, %v12858, -inf
          %12865 = vmax.xlane.f32.xlu0 %v12864
          %v12866 = vpop.xlane.xlu0 %12865
          %v12867 = vsub.f32 %v12858, %v12866
          %v12868 = vmul.f32 %v12867, 1.442695
          %v12869 = vpow.pop %v12868
          %v12870 = vsel %vm12863, %v12869, 0.0
          %12871 = vadd.xlane.f32.xlu0 %v12870
          %v12872 = vpop.xlane.xlu0 %12871
          %v12873 = vlog2.pop %v12872
          %v12874 = vmul.f32 %v12873, 0.6931472
          %v12875 = vsub.f32 %v12867, %v12874
          %12876 = vst.msk [vmem:[#allocation17] sm:$0x3] %vm12863, %v12875
        $region96: #{tpu_custom_call.1} parent=55 // pred_fallthru
          _
        // Predicated region
        $region97: #{tpu_custom_call.1} parent=55 // pred_check
          %p12877 = pneg %p252
        $region98: #{tpu_custom_call.1} parent=55 // pred_check_branch
          %12879 = sbr.rel (%p12877) target = $region100
        $region99: #{tpu_custom_call.1} parent=55 // pred_region
          %s12881 = ssub.s32 32, 32
          %12882 = vsyncadd [#allocation5], %s12881
          %s12884 = sshll.u32 [#allocation17], 4
          %s12885 = int_to_ptr.vmem [resolvable:$true] %s12884
          %12887 = dma.vmem_to_hbm [thread:$0]  %s12885, 32, %s9, [#allocation5]
        $region100: #{tpu_custom_call.1} parent=55 // pred_fallthru
          _
        // Predicated region
        $region101: #{tpu_custom_call.1} parent=55 // pred_check
          %p12888 = pneg %p252
        $region102: #{tpu_custom_call.1} parent=55 // pred_check_branch
          %12890 = sbr.rel (%p12888) target = $region104
        $region103: #{tpu_custom_call.1} parent=55 // pred_region
          %12891 = dma.done [#allocation5], 32
        $region104: #{tpu_custom_call.1} parent=55 // pred_fallthru
          _
      $region56: #{tpu_custom_call.1} parent=5 // pred_fallthru
        _
      %p12892 = scmp.le.s32.totalorder 2, %s25
      // Predicated region
      $region105: #{tpu_custom_call.1} parent=5 // pred_check
        %p12893 = pneg %p12892
      $region106: #{tpu_custom_call.1} parent=5 // pred_check_branch
        %12895 = sbr.rel (%p12893) target = $region108
      $region107: #{tpu_custom_call.1} parent=5 // pred_region
        %s12896 = ssub.s32 %s25, 2
      $region108: #{tpu_custom_call.1} parent=5 // pred_fallthru
        _
    $region6: #{tpu_custom_call.1} parent=1 // loop_footer
      %s29 = sadd.s32 1, %s25
    $region7: #{tpu_custom_call.1} parent=1 // loop_footer_branch
      %24 = sbr.rel target = $region3
    $region8: #{tpu_custom_call.1} parent=1 // loop_exit
      _
    %12897 = vsyncpa [#allocation4], 1
    %s12898 = scalar_lea.sflag [#allocation4], 1
    %12899 = vsyncpa %s12898, 1
    %12900 = vsyncpa [#allocation7], 1
    %s12901 = scalar_lea.sflag [#allocation7], 1
    %12902 = vsyncpa %s12901, 1
    %12903 = vsyncpa [#allocation10], 1
    %s12904 = scalar_lea.sflag [#allocation10], 1
    %12905 = vsyncpa %s12904, 1
    %12906 = vsyncpa [#allocation13], 1
    %12907 = vsyncpa [#allocation16], 1
    %12908 = vsyncpa [#allocation5], 1
    %s12909 = scalar_lea.sflag [#allocation5], 1
    %12910 = vsyncpa %s12909, 1

</llo_original>
